<compile_context>
chip_gen: v6e
topology: v6e:2x2x1
jax: 0.10.0
libtpu: 0.0.40
codegen_flags: <defaults>
</compile_context>

<pallas_src>
import functools

import jax
import jax.numpy as jnp
from jax.experimental import pallas as pl
from jax.experimental.pallas import tpu as pltpu


def _round_up(x, m):
    return (x + m - 1) // m * m


def _activate(x, act):
    if act == "leaky_relu":
        return jnp.where(x >= 0, x, 0.2 * x)
    if act == "relu":
        return jnp.maximum(x, 0.0)
    return x


# --------------------------------------------------------------------------
# Batched Pallas matmul kernel with fused bias/activation epilogue and
# optional BatchNorm sum / sum-of-squares side output.
# --------------------------------------------------------------------------
def _mm_kernel(a_ref, b_ref, bias_ref, *refs, act_out, with_stats, multi_k):
    if with_stats and multi_k:
        o_ref, stats_ref, acc_ref = refs
    elif with_stats:
        o_ref, stats_ref = refs
    elif multi_k:
        o_ref, acc_ref = refs
    else:
        (o_ref,) = refs

    def epilogue(acc):
        if with_stats:
            # Stats are taken pre-bias: every conv followed by BatchNorm has
            # bias=0 (use_bias=False), so this equals the BN-input statistics
            # and zero-padded rows/cols contribute nothing.
            s = jnp.sum(acc, axis=0, keepdims=True)
            ss = jnp.sum(acc * acc, axis=0, keepdims=True)
            pad = jnp.zeros((6, acc.shape[1]), jnp.float32)
            stats_ref[...] = jnp.concatenate([s, ss, pad], axis=0)
        r = acc + bias_ref[...]
        if act_out == "relu":
            r = jnp.maximum(r, 0.0)
        elif act_out == "leaky_relu":
            r = jnp.where(r >= 0, r, 0.2 * r)
        elif act_out == "tanh":
            r = jnp.tanh(r)
        o_ref[...] = r.astype(o_ref.dtype)

    if multi_k:
        @pl.when(pl.program_id(3) == 0)
        def _():
            acc_ref[...] = jnp.zeros_like(acc_ref)

        acc_ref[...] += jnp.dot(a_ref[...], b_ref[...],
                                preferred_element_type=jnp.float32)

        @pl.when(pl.program_id(3) == pl.num_programs(3) - 1)
        def _():
            epilogue(acc_ref[...])
    else:
        epilogue(jnp.dot(a_ref[...], b_ref[...],
                         preferred_element_type=jnp.float32))


def matmul_act(a, b, bias, act_out="none", out_dtype=jnp.bfloat16,
               with_stats=False):
    """out[p] = act(a[p] @ b[p] + bias).

    a: [P, M, K]   b: [P, K, N]   bias: [N] (shared over P).
    Returns (out[P, M, N] in out_dtype, stats) where stats is
    (sum[N], sumsq[N]) of the pre-bias accumulator over all P*M rows, or None.
    """
    P, M, K = a.shape
    _, _, N = b.shape

    # ---- tile selection -------------------------------------------------
    tm = min(256, _round_up(M, 16))
    if P == 1 and M >= 32 and _round_up(M, tm) == tm:
        # keep >= 2 points on a parallel axis so both v7x TensorCores work
        tm = max(16, _round_up((M + 1) // 2, 16))
    tn = min(512, _round_up(N, 128))
    tk = _round_up(K, 128) if K <= 1024 else 512   # full-K => no k loop
    Mp, Np, Kp = _round_up(M, tm), _round_up(N, tn), _round_up(K, tk)
    nm, nn, nk = Mp // tm, Np // tn, Kp // tk
    multi_k = nk > 1

    # ---- pad / cast operands -------------------------------------------
    a_p = a.astype(jnp.bfloat16)
    b_p = b.astype(jnp.bfloat16)
    if (Mp, Kp) != (M, K):
        a_p = jnp.pad(a_p, ((0, 0), (0, Mp - M), (0, Kp - K)))
    if (Kp, Np) != (K, N):
        b_p = jnp.pad(b_p, ((0, 0), (0, Kp - K), (0, Np - N)))
    bias_p = jnp.pad(bias.astype(jnp.float32).reshape(1, N),
                     ((0, 0), (0, Np - N)))

    # ---- grid & specs ----------------------------------------------------
    if multi_k:
        grid = (P, nm, nn, nk)
        a_spec = pl.BlockSpec((None, tm, tk), lambda p, i, j, k: (p, i, k))
        b_spec = pl.BlockSpec((None, tk, tn), lambda p, i, j, k: (p, k, j))
        bias_spec = pl.BlockSpec((1, tn), lambda p, i, j, k: (0, j))
        o_spec = pl.BlockSpec((None, tm, tn), lambda p, i, j, k: (p, i, j))
        st_spec = pl.BlockSpec((None, 8, tn), lambda p, i, j, k: (p, i, j))
        semantics = ("parallel", "parallel", "parallel", "arbitrary")
        scratch = [pltpu.VMEM((tm, tn), jnp.float32)]
    else:
        grid = (P, nm, nn)
        a_spec = pl.BlockSpec((None, tm, tk), lambda p, i, j: (p, i, 0))
        b_spec = pl.BlockSpec((None, tk, tn), lambda p, i, j: (p, 0, j))
        bias_spec = pl.BlockSpec((1, tn), lambda p, i, j: (0, j))
        o_spec = pl.BlockSpec((None, tm, tn), lambda p, i, j: (p, i, j))
        st_spec = pl.BlockSpec((None, 8, tn), lambda p, i, j: (p, i, j))
        semantics = ("parallel", "parallel", "parallel")
        scratch = []

    out_bytes = jnp.dtype(out_dtype).itemsize
    cost = pl.CostEstimate(
        flops=2 * P * Mp * Np * Kp,
        transcendentals=P * Mp * Np if act_out == "tanh" else 0,
        bytes_accessed=int(2 * P * Mp * Kp * nn      # A re-read per N tile
                           + 2 * P * Kp * Np * nm    # B re-read per M tile
                           + P * Mp * Np * out_bytes
                           + 4 * Np),
    )
    cparams = pltpu.CompilerParams(dimension_semantics=semantics,
                                   vmem_limit_bytes=32 * 1024 * 1024)
    kern = functools.partial(_mm_kernel, act_out=act_out,
                             with_stats=with_stats, multi_k=multi_k)

    if with_stats:
        out_shape = (jax.ShapeDtypeStruct((P, Mp, Np), out_dtype),
                     jax.ShapeDtypeStruct((P, nm * 8, Np), jnp.float32))
        out_specs = (o_spec, st_spec)
        out_p, stats_p = pl.pallas_call(
            kern, out_shape=out_shape, grid=grid,
            in_specs=[a_spec, b_spec, bias_spec], out_specs=out_specs,
            scratch_shapes=scratch, compiler_params=cparams,
            cost_estimate=cost)(a_p, b_p, bias_p)
        totals = stats_p.reshape(P, nm, 8, Np).sum(axis=(0, 1))
        stats = (totals[0, :N], totals[1, :N])
    else:
        out_p = pl.pallas_call(
            kern, out_shape=jax.ShapeDtypeStruct((P, Mp, Np), out_dtype),
            grid=grid, in_specs=[a_spec, b_spec, bias_spec], out_specs=o_spec,
            scratch_shapes=scratch, compiler_params=cparams,
            cost_estimate=cost)(a_p, b_p, bias_p)
        stats = None

    out = out_p[:, :M, :N]
    return out, stats


# --------------------------------------------------------------------------
# Lazy per-channel affine (deferred BatchNorm apply) helpers.
# A "lazy" activation is (t[N,H,W,C] bf16, scale[C] f32 | None, shift[C]|None)
# with actual value = t * scale + shift.  The affine + the pre-conv
# leaky_relu/relu are applied once, in plain JAX, at patch-build time.
# --------------------------------------------------------------------------
def _materialize(lazy_x, act):
    t, scale, shift = lazy_x
    if scale is None and act == "none":
        return t.astype(jnp.bfloat16)
    x = t.astype(jnp.float32)
    if scale is not None:
        x = x * scale + shift
    x = _activate(x, act)
    return x.astype(jnp.bfloat16)


def _concat_lazy(a, b):
    ta, sa, ha = a
    tb, sb, hb = b
    t = jnp.concatenate([ta.astype(jnp.bfloat16), tb.astype(jnp.bfloat16)],
                        axis=-1)
    if sa is None and sb is None:
        return (t, None, None)
    Ca, Cb = ta.shape[-1], tb.shape[-1]
    sa = jnp.ones((Ca,), jnp.float32) if sa is None else sa
    ha = jnp.zeros((Ca,), jnp.float32) if ha is None else ha
    sb = jnp.ones((Cb,), jnp.float32) if sb is None else sb
    hb = jnp.zeros((Cb,), jnp.float32) if hb is None else hb
    return (t, jnp.concatenate([sa, sb]), jnp.concatenate([ha, hb]))


def _bn_affine(stats, count, gamma, beta, eps=1e-5):
    s, ss = stats
    mean = s / count
    var = jnp.maximum(ss / count - mean * mean, 0.0)
    scale = gamma * jax.lax.rsqrt(var + eps)
    shift = beta - mean * scale
    return scale, shift


# --------------------------------------------------------------------------
# Conv / ConvTranspose lowered onto the batched Pallas matmul.
# --------------------------------------------------------------------------
def _im2col(x, K, stride, padding):
    # x: [N,H,W,C] bf16 -> [N*OH*OW, K*K*C] (feature order: kh, kw, cin)
    N, H, W, C = x.shape
    xp = jnp.pad(x, ((0, 0), (padding, padding), (padding, padding), (0, 0)))
    Hp, Wp = H + 2 * padding, W + 2 * padding
    OH = (Hp - K) // stride + 1
    OW = (Wp - K) // stride + 1
    cols = []
    for kh in range(K):
        for kw in range(K):
            cols.append(
                xp[:, kh: kh + (OH - 1) * stride + 1: stride,
                   kw: kw + (OW - 1) * stride + 1: stride, :])
    cols = jnp.concatenate(cols, axis=-1)
    return cols.reshape(N * OH * OW, K * K * C), (N, OH, OW)


def conv2d(lazy_x, w, bias, stride, padding, act_in="none", act_out="none",
           bn=None, out_dtype=jnp.bfloat16):
    """w: [Cout, Cin, K, K] (PyTorch Conv2d layout). Returns a lazy tensor."""
    Cout, Cin, K, _ = w.shape
    x = _materialize(lazy_x, act_in)            # affine + act fused here
    cols, (N, OH, OW) = _im2col(x, K, stride, padding)
    w_mat = jnp.transpose(w, (2, 3, 1, 0)).reshape(K * K * Cin, Cout)
    if bias is None:
        bias = jnp.zeros((Cout,), jnp.float32)
    out, stats = matmul_act(cols[None], w_mat[None], bias, act_out=act_out,
                            out_dtype=out_dtype, with_stats=(bn is not None))
    out = out[0].reshape(N, OH, OW, Cout)
    if bn is None:
        return (out, None, None)
    scale, shift = _bn_affine(stats, N * OH * OW, bn[0], bn[1])
    return (out, scale, shift)


def _conv_transpose_s2k4p1(lazy_x, w, bias, act_in, act_out, bn, out_dtype):
    """Phase-decomposed ConvTranspose2d (stride=2, K=4, pad=1, out_pad=0).
    All 4 sub-pixel phases are one batched pallas_call (leading grid axis)."""
    x = _materialize(lazy_x, act_in)
    N, H, W, Cin = x.shape
    Cout = w.shape[1]
    xp = jnp.pad(x, ((0, 0), (1, 1), (1, 1), (0, 0)))
    a_ph, b_ph = [], []
    for py in (0, 1):
        for px in (0, 1):
            cols = jnp.concatenate(
                [xp[:, py + dy: py + dy + H, px + dx: px + dx + W, :]
                 for dy in (0, 1) for dx in (0, 1)], axis=-1)
            a_ph.append(cols.reshape(N * H * W, 4 * Cin))
            b_ph.append(jnp.concatenate(
                [w[:, :, 3 - py - 2 * dy, 3 - px - 2 * dx]
                 for dy in (0, 1) for dx in (0, 1)], axis=0))   # [4*Cin, Cout]
    A = jnp.stack(a_ph, axis=0)                  # [4, N*H*W, 4*Cin]
    B = jnp.stack(b_ph, axis=0)                  # [4, 4*Cin, Cout]
    out, stats = matmul_act(A, B, bias, act_out=act_out, out_dtype=out_dtype,
                            with_stats=(bn is not None))
    # phase p = py*2 + px ; interleave back to (N, 2H, 2W, Cout)
    out = out.reshape(2, 2, N, H, W, Cout)
    out = jnp.transpose(out, (2, 3, 0, 4, 1, 5)).reshape(N, 2 * H, 2 * W, Cout)
    if bn is None:
        return (out, None, None)
    scale, shift = _bn_affine(stats, N * 2 * H * 2 * W, bn[0], bn[1])
    return (out, scale, shift)


def conv_transpose2d(lazy_x, w, bias, stride, padding, output_padding,
                     act_in="none", act_out="none", bn=None,
                     out_dtype=jnp.bfloat16):
    """w: [Cin, Cout, K, K] (PyTorch ConvTranspose2d layout)."""
    Cin, Cout, K, _ = w.shape
    if bias is None:
        bias = jnp.zeros((Cout,), jnp.float32)
    if stride == 2 and K == 4 and padding == 1 and output_padding == 0:
        return _conv_transpose_s2k4p1(lazy_x, w, bias, act_in, act_out, bn,
                                      out_dtype)
    # Generic fallback: zero-dilate, then stride-1 conv with flipped kernel.
    x = _materialize(lazy_x, act_in)
    N, H, W, C = x.shape
    Hd, Wd = (H - 1) * stride + 1, (W - 1) * stride + 1
    xd = jnp.zeros((N, Hd, Wd, C), x.dtype).at[:, ::stride, ::stride, :].set(x)
    pad_lo = K - 1 - padding
    pad_hi = K - 1 - padding + output_padding
    xd = jnp.pad(xd, ((0, 0), (pad_lo, pad_hi), (pad_lo, pad_hi), (0, 0)))
    w_conv = jnp.transpose(w[:, :, ::-1, ::-1], (1, 0, 2, 3))
    return conv2d((xd, None, None), w_conv, bias, 1, 0, act_in="none",
                  act_out=act_out, bn=bn, out_dtype=out_dtype)


# --------------------------------------------------------------------------
# UNet construction (mirrors UnetGenerator / UnetSkipConnectionBlock)
# --------------------------------------------------------------------------
def build_unet_params(key, input_nc, output_nc, num_downs, ngf, k=4):
    keys = list(jax.random.split(key, 512))
    it = iter(keys)

    def nk():
        return next(it)

    def bn_params(c):
        g = 1.0 + 0.01 * jax.random.normal(nk(), (c,), jnp.float32)
        b = 0.01 * jax.random.normal(nk(), (c,), jnp.float32)
        return g, b

    def make_block(outer_nc, inner_nc, in_nc, sub, outermost, innermost):
        p = {"outermost": outermost, "innermost": innermost, "sub": sub}
        # downconv: Conv2d(in_nc, inner_nc, k), bias=False (BatchNorm2d)
        p["down_w"] = 0.05 * jax.random.normal(nk(), (inner_nc, in_nc, k, k),
                                               jnp.float32)
        if (not outermost) and (not innermost):
            p["down_gamma"], p["down_beta"] = bn_params(inner_nc)
        up_in = inner_nc if innermost else inner_nc * 2
        # upconv: ConvTranspose2d(up_in, outer_nc, k); bias only on outermost
        p["up_w"] = 0.05 * jax.random.normal(nk(), (up_in, outer_nc, k, k),
                                             jnp.float32)
        if outermost:
            p["up_b"] = 0.05 * jax.random.normal(nk(), (outer_nc,), jnp.float32)
        else:
            p["up_gamma"], p["up_beta"] = bn_params(outer_nc)
        return p

    blk = make_block(ngf * 8, ngf * 8, ngf * 8, None, False, True)
    for _ in range(num_downs - 5):
        blk = make_block(ngf * 8, ngf * 8, ngf * 8, blk, False, False)
    blk = make_block(ngf * 4, ngf * 8, ngf * 4, blk, False, False)
    blk = make_block(ngf * 2, ngf * 4, ngf * 2, blk, False, False)
    blk = make_block(ngf, ngf * 2, ngf, blk, False, False)
    blk = make_block(output_nc, ngf, input_nc, blk, True, False)
    return blk


def _block_forward(p, x_lazy, stride, padding, output_padding):
    if p["outermost"]:
        h = conv2d(x_lazy, p["down_w"], None, stride, padding, act_in="none")
        s = _block_forward(p["sub"], h, stride, padding, output_padding)
        # ReLU -> ConvTranspose(+bias) -> Tanh, tanh fused into the epilogue.
        out = conv_transpose2d(s, p["up_w"], p["up_b"], stride, padding,
                               output_padding, act_in="relu", act_out="tanh",
                               out_dtype=jnp.float32)
        return out[0]
    elif p["innermost"]:
        h = conv2d(x_lazy, p["down_w"], None, stride, padding,
                   act_in="leaky_relu")
        u = conv_transpose2d(h, p["up_w"], None, stride, padding,
                             output_padding, act_in="relu",
                             bn=(p["up_gamma"], p["up_beta"]))
        return _concat_lazy(x_lazy, u)
    else:
        h = conv2d(x_lazy, p["down_w"], None, stride, padding,
                   act_in="leaky_relu",
                   bn=(p["down_gamma"], p["down_beta"]))
        s = _block_forward(p["sub"], h, stride, padding, output_padding)
        u = conv_transpose2d(s, p["up_w"], None, stride, padding,
                             output_padding, act_in="relu",
                             bn=(p["up_gamma"], p["up_beta"]))
        return _concat_lazy(x_lazy, u)


def unet_forward(params, x_nchw, stride=2, padding=1, output_padding=0):
    x = jnp.transpose(x_nchw.astype(jnp.float32), (0, 2, 3, 1))  # NCHW->NHWC
    y = _block_forward(params, (x, None, None), stride, padding,
                       output_padding)
    return jnp.transpose(y, (0, 3, 1, 2))  # back to NCHW, f32


if __name__ == "__main__":
    key = jax.random.PRNGKey(0)
    kp, kx = jax.random.split(key)

    # UnetGenerator(input_nc=4, output_nc=3, num_downs=5, ngf=8)
    input_nc, output_nc, num_downs, ngf = 4, 3, 5, 8
    params = build_unet_params(kp, input_nc, output_nc, num_downs, ngf)

    # 32x32 spatial so 5 downsamplings reach 1x1 at the bottleneck.
    x = jax.random.normal(kx, (2, input_nc, 32, 32), jnp.float32)

    fwd = jax.jit(lambda inp: unet_forward(params, inp))
    y = jax.block_until_ready(fwd(x))
    assert y.shape == (2, output_nc, 32, 32), y.shape
    assert y.dtype == jnp.float32
    assert bool(jnp.all(jnp.isfinite(y)))
    print("KERNEL_OK")
</pallas_src>

<mosaic_0001>
module attributes {stable_mosaic.version = 11 : i64} {
  func.func @_mm_kernel(%arg0: i32, %arg1: i32, %arg2: i32, %arg3: memref<1x256x128xbf16, #tpu.memory_space<vmem>>, %arg4: memref<1x128x128xbf16, #tpu.memory_space<vmem>>, %arg5: memref<1x128xf32, #tpu.memory_space<vmem>>, %arg6: memref<1x256x128xbf16, #tpu.memory_space<vmem>>) attributes {dimension_semantics = [#tpu.dimension_semantics<parallel>, #tpu.dimension_semantics<parallel>, #tpu.dimension_semantics<parallel>], iteration_bounds = array<i64: 1, 2, 1>, scalar_prefetch = 0 : i64, scratch_operands = 0 : i64, tpu.core_type = #tpu.core_type<tc>, window_params = [{transform_indices = @transform_0, window_bounds = array<i64: 1, 256, 128>}, {transform_indices = @transform_1, window_bounds = array<i64: 1, 128, 128>}, {transform_indices = @transform_2, window_bounds = array<i64: 1, 128>}, {transform_indices = @transform_3, window_bounds = array<i64: 1, 256, 128>}]} {
    %c0 = arith.constant 0 : index
    %c0_0 = arith.constant 0 : index
    %c0_1 = arith.constant 0 : index
    %0 = vector.load %arg3[%c0, %c0_0, %c0_1] : memref<1x256x128xbf16, #tpu.memory_space<vmem>>, vector<1x256x128xbf16>
    %1 = vector.shape_cast %0 : vector<1x256x128xbf16> to vector<256x128xbf16>
    %c0_2 = arith.constant 0 : index
    %c0_3 = arith.constant 0 : index
    %c0_4 = arith.constant 0 : index
    %2 = vector.load %arg4[%c0_2, %c0_3, %c0_4] : memref<1x128x128xbf16, #tpu.memory_space<vmem>>, vector<1x128x128xbf16>
    %3 = vector.shape_cast %2 : vector<1x128x128xbf16> to vector<128x128xbf16>
    %cst = arith.constant dense<0.000000e+00> : vector<256x128xf32>
    %4 = tpu.matmul %1, %3, %cst {dimension_numbers = #tpu.dot_dimension_numbers<[1], [0], [0], [1], [0, 0, 1, 1], [], []>} : vector<256x128xbf16>, vector<128x128xbf16>, vector<256x128xf32> -> vector<256x128xf32>
    %c0_5 = arith.constant 0 : index
    %c0_6 = arith.constant 0 : index
    %5 = vector.load %arg5[%c0_5, %c0_6] : memref<1x128xf32, #tpu.memory_space<vmem>>, vector<1x128xf32>
    %6 = vector.broadcast %5 : vector<1x128xf32> to vector<256x128xf32>
    %7 = arith.addf %4, %6 : vector<256x128xf32>
    %8 = arith.truncf %7 : vector<256x128xf32> to vector<256x128xbf16>
    %c0_7 = arith.constant 0 : index
    %c0_8 = arith.constant 0 : index
    %c0_9 = arith.constant 0 : index
    %9 = vector.load %arg6[%c0_7, %c0_8, %c0_9] : memref<1x256x128xbf16, #tpu.memory_space<vmem>>, vector<1x256x128xbf16>
    %10 = vector.shape_cast %9 : vector<1x256x128xbf16> to vector<256x128xbf16>
    %11 = vector.shape_cast %8 : vector<256x128xbf16> to vector<1x256x128xbf16>
    tpu.vector_store %arg6[%c0_7, %c0_8, %c0_9], %11 {strides = array<i32>} : memref<1x256x128xbf16, #tpu.memory_space<vmem>>, vector<1x256x128xbf16>,
    return
  }
  func.func @transform_0(%arg0: i32, %arg1: i32, %arg2: i32) -> (i32, i32, i32) {
    %c0_i32 = arith.constant 0 : i32
    %c0_i32_0 = arith.constant 0 : i32
    return %arg0, %arg1, %c0_i32 : i32, i32, i32
  }
  func.func @transform_1(%arg0: i32, %arg1: i32, %arg2: i32) -> (i32, i32, i32) {
    %c0_i32 = arith.constant 0 : i32
    %c0_i32_0 = arith.constant 0 : i32
    return %arg0, %c0_i32, %arg2 : i32, i32, i32
  }
  func.func @transform_2(%arg0: i32, %arg1: i32, %arg2: i32) -> (i32, i32) {
    %c0_i32 = arith.constant 0 : i32
    %c0_i32_0 = arith.constant 0 : i32
    return %c0_i32, %arg2 : i32, i32
  }
  func.func @transform_3(%arg0: i32, %arg1: i32, %arg2: i32) -> (i32, i32, i32) {
    %c0_i32 = arith.constant 0 : i32
    return %arg0, %arg1, %arg2 : i32, i32, i32
  }
}

module attributes {stable_mosaic.version = 11 : i64} {
  func.func @_mm_kernel(%arg0: i32, %arg1: i32, %arg2: i32, %arg3: memref<1x64x128xbf16, #tpu.memory_space<vmem>>, %arg4: memref<1x128x128xbf16, #tpu.memory_space<vmem>>, %arg5: memref<1x128xf32, #tpu.memory_space<vmem>>, %arg6: memref<1x64x128xbf16, #tpu.memory_space<vmem>>, %arg7: memref<1x8x128xf32, #tpu.memory_space<vmem>>) attributes {dimension_semantics = [#tpu.dimension_semantics<parallel>, #tpu.dimension_semantics<parallel>, #tpu.dimension_semantics<parallel>], iteration_bounds = array<i64: 1, 2, 1>, scalar_prefetch = 0 : i64, scratch_operands = 0 : i64, tpu.core_type = #tpu.core_type<tc>, window_params = [{transform_indices = @transform_0, window_bounds = array<i64: 1, 64, 128>}, {transform_indices = @transform_1, window_bounds = array<i64: 1, 128, 128>}, {transform_indices = @transform_2, window_bounds = array<i64: 1, 128>}, {transform_indices = @transform_3, window_bounds = array<i64: 1, 64, 128>}, {transform_indices = @transform_4, window_bounds = array<i64: 1, 8, 128>}]} {
    %c0 = arith.constant 0 : index
    %c0_0 = arith.constant 0 : index
    %c0_1 = arith.constant 0 : index
    %0 = vector.load %arg3[%c0, %c0_0, %c0_1] : memref<1x64x128xbf16, #tpu.memory_space<vmem>>, vector<1x64x128xbf16>
    %1 = vector.shape_cast %0 : vector<1x64x128xbf16> to vector<64x128xbf16>
    %c0_2 = arith.constant 0 : index
    %c0_3 = arith.constant 0 : index
    %c0_4 = arith.constant 0 : index
    %2 = vector.load %arg4[%c0_2, %c0_3, %c0_4] : memref<1x128x128xbf16, #tpu.memory_space<vmem>>, vector<1x128x128xbf16>
    %3 = vector.shape_cast %2 : vector<1x128x128xbf16> to vector<128x128xbf16>
    %cst = arith.constant dense<0.000000e+00> : vector<64x128xf32>
    %4 = tpu.matmul %1, %3, %cst {dimension_numbers = #tpu.dot_dimension_numbers<[1], [0], [0], [1], [0, 0, 1, 1], [], []>} : vector<64x128xbf16>, vector<128x128xbf16>, vector<64x128xf32> -> vector<64x128xf32>
    %cst_5 = arith.constant dense<0.000000e+00> : vector<128xf32>
    %5 = vector.multi_reduction <add>, %4, %cst_5 [0] : vector<64x128xf32> to vector<128xf32>
    %6 = vector.shape_cast %5 : vector<128xf32> to vector<1x128xf32>
    %7 = arith.mulf %4, %4 : vector<64x128xf32>
    %cst_6 = arith.constant dense<0.000000e+00> : vector<128xf32>
    %8 = vector.multi_reduction <add>, %7, %cst_6 [0] : vector<64x128xf32> to vector<128xf32>
    %9 = vector.shape_cast %8 : vector<128xf32> to vector<1x128xf32>
    %cst_7 = arith.constant 0.000000e+00 : f32
    %10 = vector.broadcast %cst_7 : f32 to vector<6x128xf32>
    %11 = tpu.concatenate %6, %9, %10 in 0 : vector<1x128xf32>, vector<1x128xf32>, vector<6x128xf32> -> vector<8x128xf32>
    %c0_8 = arith.constant 0 : index
    %c0_9 = arith.constant 0 : index
    %c0_10 = arith.constant 0 : index
    %12 = vector.load %arg7[%c0_8, %c0_9, %c0_10] : memref<1x8x128xf32, #tpu.memory_space<vmem>>, vector<1x8x128xf32>
    %13 = vector.shape_cast %12 : vector<1x8x128xf32> to vector<8x128xf32>
    %14 = vector.shape_cast %11 : vector<8x128xf32> to vector<1x8x128xf32>
    tpu.vector_store %arg7[%c0_8, %c0_9, %c0_10], %14 {strides = array<i32>} : memref<1x8x128xf32, #tpu.memory_space<vmem>>, vector<1x8x128xf32>,
    %c0_11 = arith.constant 0 : index
    %c0_12 = arith.constant 0 : index
    %15 = vector.load %arg5[%c0_11, %c0_12] : memref<1x128xf32, #tpu.memory_space<vmem>>, vector<1x128xf32>
    %16 = vector.broadcast %15 : vector<1x128xf32> to vector<64x128xf32>
    %17 = arith.addf %4, %16 : vector<64x128xf32>
    %18 = arith.truncf %17 : vector<64x128xf32> to vector<64x128xbf16>
    %c0_13 = arith.constant 0 : index
    %c0_14 = arith.constant 0 : index
    %c0_15 = arith.constant 0 : index
    %19 = vector.load %arg6[%c0_13, %c0_14, %c0_15] : memref<1x64x128xbf16, #tpu.memory_space<vmem>>, vector<1x64x128xbf16>
    %20 = vector.shape_cast %19 : vector<1x64x128xbf16> to vector<64x128xbf16>
    %21 = vector.shape_cast %18 : vector<64x128xbf16> to vector<1x64x128xbf16>
    tpu.vector_store %arg6[%c0_13, %c0_14, %c0_15], %21 {strides = array<i32>} : memref<1x64x128xbf16, #tpu.memory_space<vmem>>, vector<1x64x128xbf16>,
    return
  }
  func.func @transform_0(%arg0: i32, %arg1: i32, %arg2: i32) -> (i32, i32, i32) {
    %c0_i32 = arith.constant 0 : i32
    %c0_i32_0 = arith.constant 0 : i32
    return %arg0, %arg1, %c0_i32 : i32, i32, i32
  }
  func.func @transform_1(%arg0: i32, %arg1: i32, %arg2: i32) -> (i32, i32, i32) {
    %c0_i32 = arith.constant 0 : i32
    %c0_i32_0 = arith.constant 0 : i32
    return %arg0, %c0_i32, %arg2 : i32, i32, i32
  }
  func.func @transform_2(%arg0: i32, %arg1: i32, %arg2: i32) -> (i32, i32) {
    %c0_i32 = arith.constant 0 : i32
    %c0_i32_0 = arith.constant 0 : i32
    return %c0_i32, %arg2 : i32, i32
  }
  func.func @transform_3(%arg0: i32, %arg1: i32, %arg2: i32) -> (i32, i32, i32) {
    %c0_i32 = arith.constant 0 : i32
    return %arg0, %arg1, %arg2 : i32, i32, i32
  }
  func.func @transform_4(%arg0: i32, %arg1: i32, %arg2: i32) -> (i32, i32, i32) {
    %c0_i32 = arith.constant 0 : i32
    return %arg0, %arg1, %arg2 : i32, i32, i32
  }
}

module attributes {stable_mosaic.version = 11 : i64} {
  func.func @_mm_kernel(%arg0: i32, %arg1: i32, %arg2: i32, %arg3: memref<1x16x256xbf16, #tpu.memory_space<vmem>>, %arg4: memref<1x256x128xbf16, #tpu.memory_space<vmem>>, %arg5: memref<1x128xf32, #tpu.memory_space<vmem>>, %arg6: memref<1x16x128xbf16, #tpu.memory_space<vmem>>, %arg7: memref<1x8x128xf32, #tpu.memory_space<vmem>>) attributes {dimension_semantics = [#tpu.dimension_semantics<parallel>, #tpu.dimension_semantics<parallel>, #tpu.dimension_semantics<parallel>], iteration_bounds = array<i64: 1, 2, 1>, scalar_prefetch = 0 : i64, scratch_operands = 0 : i64, tpu.core_type = #tpu.core_type<tc>, window_params = [{transform_indices = @transform_0, window_bounds = array<i64: 1, 16, 256>}, {transform_indices = @transform_1, window_bounds = array<i64: 1, 256, 128>}, {transform_indices = @transform_2, window_bounds = array<i64: 1, 128>}, {transform_indices = @transform_3, window_bounds = array<i64: 1, 16, 128>}, {transform_indices = @transform_4, window_bounds = array<i64: 1, 8, 128>}]} {
    %c0 = arith.constant 0 : index
    %c0_0 = arith.constant 0 : index
    %c0_1 = arith.constant 0 : index
    %0 = vector.load %arg3[%c0, %c0_0, %c0_1] : memref<1x16x256xbf16, #tpu.memory_space<vmem>>, vector<1x16x256xbf16>
    %1 = vector.shape_cast %0 : vector<1x16x256xbf16> to vector<16x256xbf16>
    %c0_2 = arith.constant 0 : index
    %c0_3 = arith.constant 0 : index
    %c0_4 = arith.constant 0 : index
    %2 = vector.load %arg4[%c0_2, %c0_3, %c0_4] : memref<1x256x128xbf16, #tpu.memory_space<vmem>>, vector<1x256x128xbf16>
    %3 = vector.shape_cast %2 : vector<1x256x128xbf16> to vector<256x128xbf16>
    %cst = arith.constant dense<0.000000e+00> : vector<16x128xf32>
    %4 = tpu.matmul %1, %3, %cst {dimension_numbers = #tpu.dot_dimension_numbers<[1], [0], [0], [1], [0, 0, 1, 1], [], []>} : vector<16x256xbf16>, vector<256x128xbf16>, vector<16x128xf32> -> vector<16x128xf32>
    %cst_5 = arith.constant dense<0.000000e+00> : vector<128xf32>
    %5 = vector.multi_reduction <add>, %4, %cst_5 [0] : vector<16x128xf32> to vector<128xf32>
    %6 = vector.shape_cast %5 : vector<128xf32> to vector<1x128xf32>
    %7 = arith.mulf %4, %4 : vector<16x128xf32>
    %cst_6 = arith.constant dense<0.000000e+00> : vector<128xf32>
    %8 = vector.multi_reduction <add>, %7, %cst_6 [0] : vector<16x128xf32> to vector<128xf32>
    %9 = vector.shape_cast %8 : vector<128xf32> to vector<1x128xf32>
    %cst_7 = arith.constant 0.000000e+00 : f32
    %10 = vector.broadcast %cst_7 : f32 to vector<6x128xf32>
    %11 = tpu.concatenate %6, %9, %10 in 0 : vector<1x128xf32>, vector<1x128xf32>, vector<6x128xf32> -> vector<8x128xf32>
    %c0_8 = arith.constant 0 : index
    %c0_9 = arith.constant 0 : index
    %c0_10 = arith.constant 0 : index
    %12 = vector.load %arg7[%c0_8, %c0_9, %c0_10] : memref<1x8x128xf32, #tpu.memory_space<vmem>>, vector<1x8x128xf32>
    %13 = vector.shape_cast %12 : vector<1x8x128xf32> to vector<8x128xf32>
    %14 = vector.shape_cast %11 : vector<8x128xf32> to vector<1x8x128xf32>
    tpu.vector_store %arg7[%c0_8, %c0_9, %c0_10], %14 {strides = array<i32>} : memref<1x8x128xf32, #tpu.memory_space<vmem>>, vector<1x8x128xf32>,
    %c0_11 = arith.constant 0 : index
    %c0_12 = arith.constant 0 : index
    %15 = vector.load %arg5[%c0_11, %c0_12] : memref<1x128xf32, #tpu.memory_space<vmem>>, vector<1x128xf32>
    %16 = vector.broadcast %15 : vector<1x128xf32> to vector<16x128xf32>
    %17 = arith.addf %4, %16 : vector<16x128xf32>
    %18 = arith.truncf %17 : vector<16x128xf32> to vector<16x128xbf16>
    %c0_13 = arith.constant 0 : index
    %c0_14 = arith.constant 0 : index
    %c0_15 = arith.constant 0 : index
    %19 = vector.load %arg6[%c0_13, %c0_14, %c0_15] : memref<1x16x128xbf16, #tpu.memory_space<vmem>>, vector<1x16x128xbf16>
    %20 = vector.shape_cast %19 : vector<1x16x128xbf16> to vector<16x128xbf16>
    %21 = vector.shape_cast %18 : vector<16x128xbf16> to vector<1x16x128xbf16>
    tpu.vector_store %arg6[%c0_13, %c0_14, %c0_15], %21 {strides = array<i32>} : memref<1x16x128xbf16, #tpu.memory_space<vmem>>, vector<1x16x128xbf16>,
    return
  }
  func.func @transform_0(%arg0: i32, %arg1: i32, %arg2: i32) -> (i32, i32, i32) {
    %c0_i32 = arith.constant 0 : i32
    %c0_i32_0 = arith.constant 0 : i32
    return %arg0, %arg1, %c0_i32 : i32, i32, i32
  }
  func.func @transform_1(%arg0: i32, %arg1: i32, %arg2: i32) -> (i32, i32, i32) {
    %c0_i32 = arith.constant 0 : i32
    %c0_i32_0 = arith.constant 0 : i32
    return %arg0, %c0_i32, %arg2 : i32, i32, i32
  }
  func.func @transform_2(%arg0: i32, %arg1: i32, %arg2: i32) -> (i32, i32) {
    %c0_i32 = arith.constant 0 : i32
    %c0_i32_0 = arith.constant 0 : i32
    return %c0_i32, %arg2 : i32, i32
  }
  func.func @transform_3(%arg0: i32, %arg1: i32, %arg2: i32) -> (i32, i32, i32) {
    %c0_i32 = arith.constant 0 : i32
    return %arg0, %arg1, %arg2 : i32, i32, i32
  }
  func.func @transform_4(%arg0: i32, %arg1: i32, %arg2: i32) -> (i32, i32, i32) {
    %c0_i32 = arith.constant 0 : i32
    return %arg0, %arg1, %arg2 : i32, i32, i32
  }
}

module attributes {stable_mosaic.version = 11 : i64} {
  func.func @_mm_kernel(%arg0: i32, %arg1: i32, %arg2: i32, %arg3: memref<1x16x512xbf16, #tpu.memory_space<vmem>>, %arg4: memref<1x512x128xbf16, #tpu.memory_space<vmem>>, %arg5: memref<1x128xf32, #tpu.memory_space<vmem>>, %arg6: memref<1x16x128xbf16, #tpu.memory_space<vmem>>, %arg7: memref<1x8x128xf32, #tpu.memory_space<vmem>>) attributes {dimension_semantics = [#tpu.dimension_semantics<parallel>, #tpu.dimension_semantics<parallel>, #tpu.dimension_semantics<parallel>], iteration_bounds = array<i64: 1, 1, 1>, scalar_prefetch = 0 : i64, scratch_operands = 0 : i64, tpu.core_type = #tpu.core_type<tc>, window_params = [{transform_indices = @transform_0, window_bounds = array<i64: 1, 16, 512>}, {transform_indices = @transform_1, window_bounds = array<i64: 1, 512, 128>}, {transform_indices = @transform_2, window_bounds = array<i64: 1, 128>}, {transform_indices = @transform_3, window_bounds = array<i64: 1, 16, 128>}, {transform_indices = @transform_4, window_bounds = array<i64: 1, 8, 128>}]} {
    %c0 = arith.constant 0 : index
    %c0_0 = arith.constant 0 : index
    %c0_1 = arith.constant 0 : index
    %0 = vector.load %arg3[%c0, %c0_0, %c0_1] : memref<1x16x512xbf16, #tpu.memory_space<vmem>>, vector<1x16x512xbf16>
    %1 = vector.shape_cast %0 : vector<1x16x512xbf16> to vector<16x512xbf16>
    %c0_2 = arith.constant 0 : index
    %c0_3 = arith.constant 0 : index
    %c0_4 = arith.constant 0 : index
    %2 = vector.load %arg4[%c0_2, %c0_3, %c0_4] : memref<1x512x128xbf16, #tpu.memory_space<vmem>>, vector<1x512x128xbf16>
    %3 = vector.shape_cast %2 : vector<1x512x128xbf16> to vector<512x128xbf16>
    %cst = arith.constant dense<0.000000e+00> : vector<16x128xf32>
    %4 = tpu.matmul %1, %3, %cst {dimension_numbers = #tpu.dot_dimension_numbers<[1], [0], [0], [1], [0, 0, 1, 1], [], []>} : vector<16x512xbf16>, vector<512x128xbf16>, vector<16x128xf32> -> vector<16x128xf32>
    %cst_5 = arith.constant dense<0.000000e+00> : vector<128xf32>
    %5 = vector.multi_reduction <add>, %4, %cst_5 [0] : vector<16x128xf32> to vector<128xf32>
    %6 = vector.shape_cast %5 : vector<128xf32> to vector<1x128xf32>
    %7 = arith.mulf %4, %4 : vector<16x128xf32>
    %cst_6 = arith.constant dense<0.000000e+00> : vector<128xf32>
    %8 = vector.multi_reduction <add>, %7, %cst_6 [0] : vector<16x128xf32> to vector<128xf32>
    %9 = vector.shape_cast %8 : vector<128xf32> to vector<1x128xf32>
    %cst_7 = arith.constant 0.000000e+00 : f32
    %10 = vector.broadcast %cst_7 : f32 to vector<6x128xf32>
    %11 = tpu.concatenate %6, %9, %10 in 0 : vector<1x128xf32>, vector<1x128xf32>, vector<6x128xf32> -> vector<8x128xf32>
    %c0_8 = arith.constant 0 : index
    %c0_9 = arith.constant 0 : index
    %c0_10 = arith.constant 0 : index
    %12 = vector.load %arg7[%c0_8, %c0_9, %c0_10] : memref<1x8x128xf32, #tpu.memory_space<vmem>>, vector<1x8x128xf32>
    %13 = vector.shape_cast %12 : vector<1x8x128xf32> to vector<8x128xf32>
    %14 = vector.shape_cast %11 : vector<8x128xf32> to vector<1x8x128xf32>
    tpu.vector_store %arg7[%c0_8, %c0_9, %c0_10], %14 {strides = array<i32>} : memref<1x8x128xf32, #tpu.memory_space<vmem>>, vector<1x8x128xf32>,
    %c0_11 = arith.constant 0 : index
    %c0_12 = arith.constant 0 : index
    %15 = vector.load %arg5[%c0_11, %c0_12] : memref<1x128xf32, #tpu.memory_space<vmem>>, vector<1x128xf32>
    %16 = vector.broadcast %15 : vector<1x128xf32> to vector<16x128xf32>
    %17 = arith.addf %4, %16 : vector<16x128xf32>
    %18 = arith.truncf %17 : vector<16x128xf32> to vector<16x128xbf16>
    %c0_13 = arith.constant 0 : index
    %c0_14 = arith.constant 0 : index
    %c0_15 = arith.constant 0 : index
    %19 = vector.load %arg6[%c0_13, %c0_14, %c0_15] : memref<1x16x128xbf16, #tpu.memory_space<vmem>>, vector<1x16x128xbf16>
    %20 = vector.shape_cast %19 : vector<1x16x128xbf16> to vector<16x128xbf16>
    %21 = vector.shape_cast %18 : vector<16x128xbf16> to vector<1x16x128xbf16>
    tpu.vector_store %arg6[%c0_13, %c0_14, %c0_15], %21 {strides = array<i32>} : memref<1x16x128xbf16, #tpu.memory_space<vmem>>, vector<1x16x128xbf16>,
    return
  }
  func.func @transform_0(%arg0: i32, %arg1: i32, %arg2: i32) -> (i32, i32, i32) {
    %c0_i32 = arith.constant 0 : i32
    %c0_i32_0 = arith.constant 0 : i32
    return %arg0, %arg1, %c0_i32 : i32, i32, i32
  }
  func.func @transform_1(%arg0: i32, %arg1: i32, %arg2: i32) -> (i32, i32, i32) {
    %c0_i32 = arith.constant 0 : i32
    %c0_i32_0 = arith.constant 0 : i32
    return %arg0, %c0_i32, %arg2 : i32, i32, i32
  }
  func.func @transform_2(%arg0: i32, %arg1: i32, %arg2: i32) -> (i32, i32) {
    %c0_i32 = arith.constant 0 : i32
    %c0_i32_0 = arith.constant 0 : i32
    return %c0_i32, %arg2 : i32, i32
  }
  func.func @transform_3(%arg0: i32, %arg1: i32, %arg2: i32) -> (i32, i32, i32) {
    %c0_i32 = arith.constant 0 : i32
    return %arg0, %arg1, %arg2 : i32, i32, i32
  }
  func.func @transform_4(%arg0: i32, %arg1: i32, %arg2: i32) -> (i32, i32, i32) {
    %c0_i32 = arith.constant 0 : i32
    return %arg0, %arg1, %arg2 : i32, i32, i32
  }
}

module attributes {stable_mosaic.version = 11 : i64} {
  func.func @_mm_kernel(%arg0: i32, %arg1: i32, %arg2: i32, %arg3: memref<1x16x1024xbf16, #tpu.memory_space<vmem>>, %arg4: memref<1x1024x128xbf16, #tpu.memory_space<vmem>>, %arg5: memref<1x128xf32, #tpu.memory_space<vmem>>, %arg6: memref<1x16x128xbf16, #tpu.memory_space<vmem>>) attributes {dimension_semantics = [#tpu.dimension_semantics<parallel>, #tpu.dimension_semantics<parallel>, #tpu.dimension_semantics<parallel>], iteration_bounds = array<i64: 1, 1, 1>, scalar_prefetch = 0 : i64, scratch_operands = 0 : i64, tpu.core_type = #tpu.core_type<tc>, window_params = [{transform_indices = @transform_0, window_bounds = array<i64: 1, 16, 1024>}, {transform_indices = @transform_1, window_bounds = array<i64: 1, 1024, 128>}, {transform_indices = @transform_2, window_bounds = array<i64: 1, 128>}, {transform_indices = @transform_3, window_bounds = array<i64: 1, 16, 128>}]} {
    %c0 = arith.constant 0 : index
    %c0_0 = arith.constant 0 : index
    %c0_1 = arith.constant 0 : index
    %0 = vector.load %arg3[%c0, %c0_0, %c0_1] : memref<1x16x1024xbf16, #tpu.memory_space<vmem>>, vector<1x16x1024xbf16>
    %1 = vector.shape_cast %0 : vector<1x16x1024xbf16> to vector<16x1024xbf16>
    %c0_2 = arith.constant 0 : index
    %c0_3 = arith.constant 0 : index
    %c0_4 = arith.constant 0 : index
    %2 = vector.load %arg4[%c0_2, %c0_3, %c0_4] : memref<1x1024x128xbf16, #tpu.memory_space<vmem>>, vector<1x1024x128xbf16>
    %3 = vector.shape_cast %2 : vector<1x1024x128xbf16> to vector<1024x128xbf16>
    %cst = arith.constant dense<0.000000e+00> : vector<16x128xf32>
    %4 = tpu.matmul %1, %3, %cst {dimension_numbers = #tpu.dot_dimension_numbers<[1], [0], [0], [1], [0, 0, 1, 1], [], []>} : vector<16x1024xbf16>, vector<1024x128xbf16>, vector<16x128xf32> -> vector<16x128xf32>
    %c0_5 = arith.constant 0 : index
    %c0_6 = arith.constant 0 : index
    %5 = vector.load %arg5[%c0_5, %c0_6] : memref<1x128xf32, #tpu.memory_space<vmem>>, vector<1x128xf32>
    %6 = vector.broadcast %5 : vector<1x128xf32> to vector<16x128xf32>
    %7 = arith.addf %4, %6 : vector<16x128xf32>
    %8 = arith.truncf %7 : vector<16x128xf32> to vector<16x128xbf16>
    %c0_7 = arith.constant 0 : index
    %c0_8 = arith.constant 0 : index
    %c0_9 = arith.constant 0 : index
    %9 = vector.load %arg6[%c0_7, %c0_8, %c0_9] : memref<1x16x128xbf16, #tpu.memory_space<vmem>>, vector<1x16x128xbf16>
    %10 = vector.shape_cast %9 : vector<1x16x128xbf16> to vector<16x128xbf16>
    %11 = vector.shape_cast %8 : vector<16x128xbf16> to vector<1x16x128xbf16>
    tpu.vector_store %arg6[%c0_7, %c0_8, %c0_9], %11 {strides = array<i32>} : memref<1x16x128xbf16, #tpu.memory_space<vmem>>, vector<1x16x128xbf16>,
    return
  }
  func.func @transform_0(%arg0: i32, %arg1: i32, %arg2: i32) -> (i32, i32, i32) {
    %c0_i32 = arith.constant 0 : i32
    %c0_i32_0 = arith.constant 0 : i32
    return %arg0, %arg1, %c0_i32 : i32, i32, i32
  }
  func.func @transform_1(%arg0: i32, %arg1: i32, %arg2: i32) -> (i32, i32, i32) {
    %c0_i32 = arith.constant 0 : i32
    %c0_i32_0 = arith.constant 0 : i32
    return %arg0, %c0_i32, %arg2 : i32, i32, i32
  }
  func.func @transform_2(%arg0: i32, %arg1: i32, %arg2: i32) -> (i32, i32) {
    %c0_i32 = arith.constant 0 : i32
    %c0_i32_0 = arith.constant 0 : i32
    return %c0_i32, %arg2 : i32, i32
  }
  func.func @transform_3(%arg0: i32, %arg1: i32, %arg2: i32) -> (i32, i32, i32) {
    %c0_i32 = arith.constant 0 : i32
    return %arg0, %arg1, %arg2 : i32, i32, i32
  }
}

module attributes {stable_mosaic.version = 11 : i64} {
  func.func @_mm_kernel(%arg0: i32, %arg1: i32, %arg2: i32, %arg3: memref<1x16x256xbf16, #tpu.memory_space<vmem>>, %arg4: memref<1x256x128xbf16, #tpu.memory_space<vmem>>, %arg5: memref<1x128xf32, #tpu.memory_space<vmem>>, %arg6: memref<1x16x128xbf16, #tpu.memory_space<vmem>>, %arg7: memref<1x8x128xf32, #tpu.memory_space<vmem>>) attributes {dimension_semantics = [#tpu.dimension_semantics<parallel>, #tpu.dimension_semantics<parallel>, #tpu.dimension_semantics<parallel>], iteration_bounds = array<i64: 4, 1, 1>, scalar_prefetch = 0 : i64, scratch_operands = 0 : i64, tpu.core_type = #tpu.core_type<tc>, window_params = [{transform_indices = @transform_0, window_bounds = array<i64: 1, 16, 256>}, {transform_indices = @transform_1, window_bounds = array<i64: 1, 256, 128>}, {transform_indices = @transform_2, window_bounds = array<i64: 1, 128>}, {transform_indices = @transform_3, window_bounds = array<i64: 1, 16, 128>}, {transform_indices = @transform_4, window_bounds = array<i64: 1, 8, 128>}]} {
    %c0 = arith.constant 0 : index
    %c0_0 = arith.constant 0 : index
    %c0_1 = arith.constant 0 : index
    %0 = vector.load %arg3[%c0, %c0_0, %c0_1] : memref<1x16x256xbf16, #tpu.memory_space<vmem>>, vector<1x16x256xbf16>
    %1 = vector.shape_cast %0 : vector<1x16x256xbf16> to vector<16x256xbf16>
    %c0_2 = arith.constant 0 : index
    %c0_3 = arith.constant 0 : index
    %c0_4 = arith.constant 0 : index
    %2 = vector.load %arg4[%c0_2, %c0_3, %c0_4] : memref<1x256x128xbf16, #tpu.memory_space<vmem>>, vector<1x256x128xbf16>
    %3 = vector.shape_cast %2 : vector<1x256x128xbf16> to vector<256x128xbf16>
    %cst = arith.constant dense<0.000000e+00> : vector<16x128xf32>
    %4 = tpu.matmul %1, %3, %cst {dimension_numbers = #tpu.dot_dimension_numbers<[1], [0], [0], [1], [0, 0, 1, 1], [], []>} : vector<16x256xbf16>, vector<256x128xbf16>, vector<16x128xf32> -> vector<16x128xf32>
    %cst_5 = arith.constant dense<0.000000e+00> : vector<128xf32>
    %5 = vector.multi_reduction <add>, %4, %cst_5 [0] : vector<16x128xf32> to vector<128xf32>
    %6 = vector.shape_cast %5 : vector<128xf32> to vector<1x128xf32>
    %7 = arith.mulf %4, %4 : vector<16x128xf32>
    %cst_6 = arith.constant dense<0.000000e+00> : vector<128xf32>
    %8 = vector.multi_reduction <add>, %7, %cst_6 [0] : vector<16x128xf32> to vector<128xf32>
    %9 = vector.shape_cast %8 : vector<128xf32> to vector<1x128xf32>
    %cst_7 = arith.constant 0.000000e+00 : f32
    %10 = vector.broadcast %cst_7 : f32 to vector<6x128xf32>
    %11 = tpu.concatenate %6, %9, %10 in 0 : vector<1x128xf32>, vector<1x128xf32>, vector<6x128xf32> -> vector<8x128xf32>
    %c0_8 = arith.constant 0 : index
    %c0_9 = arith.constant 0 : index
    %c0_10 = arith.constant 0 : index
    %12 = vector.load %arg7[%c0_8, %c0_9, %c0_10] : memref<1x8x128xf32, #tpu.memory_space<vmem>>, vector<1x8x128xf32>
    %13 = vector.shape_cast %12 : vector<1x8x128xf32> to vector<8x128xf32>
    %14 = vector.shape_cast %11 : vector<8x128xf32> to vector<1x8x128xf32>
    tpu.vector_store %arg7[%c0_8, %c0_9, %c0_10], %14 {strides = array<i32>} : memref<1x8x128xf32, #tpu.memory_space<vmem>>, vector<1x8x128xf32>,
    %c0_11 = arith.constant 0 : index
    %c0_12 = arith.constant 0 : index
    %15 = vector.load %arg5[%c0_11, %c0_12] : memref<1x128xf32, #tpu.memory_space<vmem>>, vector<1x128xf32>
    %16 = vector.broadcast %15 : vector<1x128xf32> to vector<16x128xf32>
    %17 = arith.addf %4, %16 : vector<16x128xf32>
    %18 = arith.truncf %17 : vector<16x128xf32> to vector<16x128xbf16>
    %c0_13 = arith.constant 0 : index
    %c0_14 = arith.constant 0 : index
    %c0_15 = arith.constant 0 : index
    %19 = vector.load %arg6[%c0_13, %c0_14, %c0_15] : memref<1x16x128xbf16, #tpu.memory_space<vmem>>, vector<1x16x128xbf16>
    %20 = vector.shape_cast %19 : vector<1x16x128xbf16> to vector<16x128xbf16>
    %21 = vector.shape_cast %18 : vector<16x128xbf16> to vector<1x16x128xbf16>
    tpu.vector_store %arg6[%c0_13, %c0_14, %c0_15], %21 {strides = array<i32>} : memref<1x16x128xbf16, #tpu.memory_space<vmem>>, vector<1x16x128xbf16>,
    return
  }
  func.func @transform_0(%arg0: i32, %arg1: i32, %arg2: i32) -> (i32, i32, i32) {
    %c0_i32 = arith.constant 0 : i32
    %c0_i32_0 = arith.constant 0 : i32
    return %arg0, %arg1, %c0_i32 : i32, i32, i32
  }
  func.func @transform_1(%arg0: i32, %arg1: i32, %arg2: i32) -> (i32, i32, i32) {
    %c0_i32 = arith.constant 0 : i32
    %c0_i32_0 = arith.constant 0 : i32
    return %arg0, %c0_i32, %arg2 : i32, i32, i32
  }
  func.func @transform_2(%arg0: i32, %arg1: i32, %arg2: i32) -> (i32, i32) {
    %c0_i32 = arith.constant 0 : i32
    %c0_i32_0 = arith.constant 0 : i32
    return %c0_i32, %arg2 : i32, i32
  }
  func.func @transform_3(%arg0: i32, %arg1: i32, %arg2: i32) -> (i32, i32, i32) {
    %c0_i32 = arith.constant 0 : i32
    return %arg0, %arg1, %arg2 : i32, i32, i32
  }
  func.func @transform_4(%arg0: i32, %arg1: i32, %arg2: i32) -> (i32, i32, i32) {
    %c0_i32 = arith.constant 0 : i32
    return %arg0, %arg1, %arg2 : i32, i32, i32
  }
}

module attributes {stable_mosaic.version = 11 : i64} {
  func.func @_mm_kernel(%arg0: i32, %arg1: i32, %arg2: i32, %arg3: memref<1x16x512xbf16, #tpu.memory_space<vmem>>, %arg4: memref<1x512x128xbf16, #tpu.memory_space<vmem>>, %arg5: memref<1x128xf32, #tpu.memory_space<vmem>>, %arg6: memref<1x16x128xbf16, #tpu.memory_space<vmem>>, %arg7: memref<1x8x128xf32, #tpu.memory_space<vmem>>) attributes {dimension_semantics = [#tpu.dimension_semantics<parallel>, #tpu.dimension_semantics<parallel>, #tpu.dimension_semantics<parallel>], iteration_bounds = array<i64: 4, 1, 1>, scalar_prefetch = 0 : i64, scratch_operands = 0 : i64, tpu.core_type = #tpu.core_type<tc>, window_params = [{transform_indices = @transform_0, window_bounds = array<i64: 1, 16, 512>}, {transform_indices = @transform_1, window_bounds = array<i64: 1, 512, 128>}, {transform_indices = @transform_2, window_bounds = array<i64: 1, 128>}, {transform_indices = @transform_3, window_bounds = array<i64: 1, 16, 128>}, {transform_indices = @transform_4, window_bounds = array<i64: 1, 8, 128>}]} {
    %c0 = arith.constant 0 : index
    %c0_0 = arith.constant 0 : index
    %c0_1 = arith.constant 0 : index
    %0 = vector.load %arg3[%c0, %c0_0, %c0_1] : memref<1x16x512xbf16, #tpu.memory_space<vmem>>, vector<1x16x512xbf16>
    %1 = vector.shape_cast %0 : vector<1x16x512xbf16> to vector<16x512xbf16>
    %c0_2 = arith.constant 0 : index
    %c0_3 = arith.constant 0 : index
    %c0_4 = arith.constant 0 : index
    %2 = vector.load %arg4[%c0_2, %c0_3, %c0_4] : memref<1x512x128xbf16, #tpu.memory_space<vmem>>, vector<1x512x128xbf16>
    %3 = vector.shape_cast %2 : vector<1x512x128xbf16> to vector<512x128xbf16>
    %cst = arith.constant dense<0.000000e+00> : vector<16x128xf32>
    %4 = tpu.matmul %1, %3, %cst {dimension_numbers = #tpu.dot_dimension_numbers<[1], [0], [0], [1], [0, 0, 1, 1], [], []>} : vector<16x512xbf16>, vector<512x128xbf16>, vector<16x128xf32> -> vector<16x128xf32>
    %cst_5 = arith.constant dense<0.000000e+00> : vector<128xf32>
    %5 = vector.multi_reduction <add>, %4, %cst_5 [0] : vector<16x128xf32> to vector<128xf32>
    %6 = vector.shape_cast %5 : vector<128xf32> to vector<1x128xf32>
    %7 = arith.mulf %4, %4 : vector<16x128xf32>
    %cst_6 = arith.constant dense<0.000000e+00> : vector<128xf32>
    %8 = vector.multi_reduction <add>, %7, %cst_6 [0] : vector<16x128xf32> to vector<128xf32>
    %9 = vector.shape_cast %8 : vector<128xf32> to vector<1x128xf32>
    %cst_7 = arith.constant 0.000000e+00 : f32
    %10 = vector.broadcast %cst_7 : f32 to vector<6x128xf32>
    %11 = tpu.concatenate %6, %9, %10 in 0 : vector<1x128xf32>, vector<1x128xf32>, vector<6x128xf32> -> vector<8x128xf32>
    %c0_8 = arith.constant 0 : index
    %c0_9 = arith.constant 0 : index
    %c0_10 = arith.constant 0 : index
    %12 = vector.load %arg7[%c0_8, %c0_9, %c0_10] : memref<1x8x128xf32, #tpu.memory_space<vmem>>, vector<1x8x128xf32>
    %13 = vector.shape_cast %12 : vector<1x8x128xf32> to vector<8x128xf32>
    %14 = vector.shape_cast %11 : vector<8x128xf32> to vector<1x8x128xf32>
    tpu.vector_store %arg7[%c0_8, %c0_9, %c0_10], %14 {strides = array<i32>} : memref<1x8x128xf32, #tpu.memory_space<vmem>>, vector<1x8x128xf32>,
    %c0_11 = arith.constant 0 : index
    %c0_12 = arith.constant 0 : index
    %15 = vector.load %arg5[%c0_11, %c0_12] : memref<1x128xf32, #tpu.memory_space<vmem>>, vector<1x128xf32>
    %16 = vector.broadcast %15 : vector<1x128xf32> to vector<16x128xf32>
    %17 = arith.addf %4, %16 : vector<16x128xf32>
    %18 = arith.truncf %17 : vector<16x128xf32> to vector<16x128xbf16>
    %c0_13 = arith.constant 0 : index
    %c0_14 = arith.constant 0 : index
    %c0_15 = arith.constant 0 : index
    %19 = vector.load %arg6[%c0_13, %c0_14, %c0_15] : memref<1x16x128xbf16, #tpu.memory_space<vmem>>, vector<1x16x128xbf16>
    %20 = vector.shape_cast %19 : vector<1x16x128xbf16> to vector<16x128xbf16>
    %21 = vector.shape_cast %18 : vector<16x128xbf16> to vector<1x16x128xbf16>
    tpu.vector_store %arg6[%c0_13, %c0_14, %c0_15], %21 {strides = array<i32>} : memref<1x16x128xbf16, #tpu.memory_space<vmem>>, vector<1x16x128xbf16>,
    return
  }
  func.func @transform_0(%arg0: i32, %arg1: i32, %arg2: i32) -> (i32, i32, i32) {
    %c0_i32 = arith.constant 0 : i32
    %c0_i32_0 = arith.constant 0 : i32
    return %arg0, %arg1, %c0_i32 : i32, i32, i32
  }
  func.func @transform_1(%arg0: i32, %arg1: i32, %arg2: i32) -> (i32, i32, i32) {
    %c0_i32 = arith.constant 0 : i32
    %c0_i32_0 = arith.constant 0 : i32
    return %arg0, %c0_i32, %arg2 : i32, i32, i32
  }
  func.func @transform_2(%arg0: i32, %arg1: i32, %arg2: i32) -> (i32, i32) {
    %c0_i32 = arith.constant 0 : i32
    %c0_i32_0 = arith.constant 0 : i32
    return %c0_i32, %arg2 : i32, i32
  }
  func.func @transform_3(%arg0: i32, %arg1: i32, %arg2: i32) -> (i32, i32, i32) {
    %c0_i32 = arith.constant 0 : i32
    return %arg0, %arg1, %arg2 : i32, i32, i32
  }
  func.func @transform_4(%arg0: i32, %arg1: i32, %arg2: i32) -> (i32, i32, i32) {
    %c0_i32 = arith.constant 0 : i32
    return %arg0, %arg1, %arg2 : i32, i32, i32
  }
}

module attributes {stable_mosaic.version = 11 : i64} {
  func.func @_mm_kernel(%arg0: i32, %arg1: i32, %arg2: i32, %arg3: memref<1x32x256xbf16, #tpu.memory_space<vmem>>, %arg4: memref<1x256x128xbf16, #tpu.memory_space<vmem>>, %arg5: memref<1x128xf32, #tpu.memory_space<vmem>>, %arg6: memref<1x32x128xbf16, #tpu.memory_space<vmem>>, %arg7: memref<1x8x128xf32, #tpu.memory_space<vmem>>) attributes {dimension_semantics = [#tpu.dimension_semantics<parallel>, #tpu.dimension_semantics<parallel>, #tpu.dimension_semantics<parallel>], iteration_bounds = array<i64: 4, 1, 1>, scalar_prefetch = 0 : i64, scratch_operands = 0 : i64, tpu.core_type = #tpu.core_type<tc>, window_params = [{transform_indices = @transform_0, window_bounds = array<i64: 1, 32, 256>}, {transform_indices = @transform_1, window_bounds = array<i64: 1, 256, 128>}, {transform_indices = @transform_2, window_bounds = array<i64: 1, 128>}, {transform_indices = @transform_3, window_bounds = array<i64: 1, 32, 128>}, {transform_indices = @transform_4, window_bounds = array<i64: 1, 8, 128>}]} {
    %c0 = arith.constant 0 : index
    %c0_0 = arith.constant 0 : index
    %c0_1 = arith.constant 0 : index
    %0 = vector.load %arg3[%c0, %c0_0, %c0_1] : memref<1x32x256xbf16, #tpu.memory_space<vmem>>, vector<1x32x256xbf16>
    %1 = vector.shape_cast %0 : vector<1x32x256xbf16> to vector<32x256xbf16>
    %c0_2 = arith.constant 0 : index
    %c0_3 = arith.constant 0 : index
    %c0_4 = arith.constant 0 : index
    %2 = vector.load %arg4[%c0_2, %c0_3, %c0_4] : memref<1x256x128xbf16, #tpu.memory_space<vmem>>, vector<1x256x128xbf16>
    %3 = vector.shape_cast %2 : vector<1x256x128xbf16> to vector<256x128xbf16>
    %cst = arith.constant dense<0.000000e+00> : vector<32x128xf32>
    %4 = tpu.matmul %1, %3, %cst {dimension_numbers = #tpu.dot_dimension_numbers<[1], [0], [0], [1], [0, 0, 1, 1], [], []>} : vector<32x256xbf16>, vector<256x128xbf16>, vector<32x128xf32> -> vector<32x128xf32>
    %cst_5 = arith.constant dense<0.000000e+00> : vector<128xf32>
    %5 = vector.multi_reduction <add>, %4, %cst_5 [0] : vector<32x128xf32> to vector<128xf32>
    %6 = vector.shape_cast %5 : vector<128xf32> to vector<1x128xf32>
    %7 = arith.mulf %4, %4 : vector<32x128xf32>
    %cst_6 = arith.constant dense<0.000000e+00> : vector<128xf32>
    %8 = vector.multi_reduction <add>, %7, %cst_6 [0] : vector<32x128xf32> to vector<128xf32>
    %9 = vector.shape_cast %8 : vector<128xf32> to vector<1x128xf32>
    %cst_7 = arith.constant 0.000000e+00 : f32
    %10 = vector.broadcast %cst_7 : f32 to vector<6x128xf32>
    %11 = tpu.concatenate %6, %9, %10 in 0 : vector<1x128xf32>, vector<1x128xf32>, vector<6x128xf32> -> vector<8x128xf32>
    %c0_8 = arith.constant 0 : index
    %c0_9 = arith.constant 0 : index
    %c0_10 = arith.constant 0 : index
    %12 = vector.load %arg7[%c0_8, %c0_9, %c0_10] : memref<1x8x128xf32, #tpu.memory_space<vmem>>, vector<1x8x128xf32>
    %13 = vector.shape_cast %12 : vector<1x8x128xf32> to vector<8x128xf32>
    %14 = vector.shape_cast %11 : vector<8x128xf32> to vector<1x8x128xf32>
    tpu.vector_store %arg7[%c0_8, %c0_9, %c0_10], %14 {strides = array<i32>} : memref<1x8x128xf32, #tpu.memory_space<vmem>>, vector<1x8x128xf32>,
    %c0_11 = arith.constant 0 : index
    %c0_12 = arith.constant 0 : index
    %15 = vector.load %arg5[%c0_11, %c0_12] : memref<1x128xf32, #tpu.memory_space<vmem>>, vector<1x128xf32>
    %16 = vector.broadcast %15 : vector<1x128xf32> to vector<32x128xf32>
    %17 = arith.addf %4, %16 : vector<32x128xf32>
    %18 = arith.truncf %17 : vector<32x128xf32> to vector<32x128xbf16>
    %c0_13 = arith.constant 0 : index
    %c0_14 = arith.constant 0 : index
    %c0_15 = arith.constant 0 : index
    %19 = vector.load %arg6[%c0_13, %c0_14, %c0_15] : memref<1x32x128xbf16, #tpu.memory_space<vmem>>, vector<1x32x128xbf16>
    %20 = vector.shape_cast %19 : vector<1x32x128xbf16> to vector<32x128xbf16>
    %21 = vector.shape_cast %18 : vector<32x128xbf16> to vector<1x32x128xbf16>
    tpu.vector_store %arg6[%c0_13, %c0_14, %c0_15], %21 {strides = array<i32>} : memref<1x32x128xbf16, #tpu.memory_space<vmem>>, vector<1x32x128xbf16>,
    return
  }
  func.func @transform_0(%arg0: i32, %arg1: i32, %arg2: i32) -> (i32, i32, i32) {
    %c0_i32 = arith.constant 0 : i32
    %c0_i32_0 = arith.constant 0 : i32
    return %arg0, %arg1, %c0_i32 : i32, i32, i32
  }
  func.func @transform_1(%arg0: i32, %arg1: i32, %arg2: i32) -> (i32, i32, i32) {
    %c0_i32 = arith.constant 0 : i32
    %c0_i32_0 = arith.constant 0 : i32
    return %arg0, %c0_i32, %arg2 : i32, i32, i32
  }
  func.func @transform_2(%arg0: i32, %arg1: i32, %arg2: i32) -> (i32, i32) {
    %c0_i32 = arith.constant 0 : i32
    %c0_i32_0 = arith.constant 0 : i32
    return %c0_i32, %arg2 : i32, i32
  }
  func.func @transform_3(%arg0: i32, %arg1: i32, %arg2: i32) -> (i32, i32, i32) {
    %c0_i32 = arith.constant 0 : i32
    return %arg0, %arg1, %arg2 : i32, i32, i32
  }
  func.func @transform_4(%arg0: i32, %arg1: i32, %arg2: i32) -> (i32, i32, i32) {
    %c0_i32 = arith.constant 0 : i32
    return %arg0, %arg1, %arg2 : i32, i32, i32
  }
}

module attributes {stable_mosaic.version = 11 : i64} {
  func.func @_mm_kernel(%arg0: i32, %arg1: i32, %arg2: i32, %arg3: memref<1x128x128xbf16, #tpu.memory_space<vmem>>, %arg4: memref<1x128x128xbf16, #tpu.memory_space<vmem>>, %arg5: memref<1x128xf32, #tpu.memory_space<vmem>>, %arg6: memref<1x128x128xbf16, #tpu.memory_space<vmem>>, %arg7: memref<1x8x128xf32, #tpu.memory_space<vmem>>) attributes {dimension_semantics = [#tpu.dimension_semantics<parallel>, #tpu.dimension_semantics<parallel>, #tpu.dimension_semantics<parallel>], iteration_bounds = array<i64: 4, 1, 1>, scalar_prefetch = 0 : i64, scratch_operands = 0 : i64, tpu.core_type = #tpu.core_type<tc>, window_params = [{transform_indices = @transform_0, window_bounds = array<i64: 1, 128, 128>}, {transform_indices = @transform_1, window_bounds = array<i64: 1, 128, 128>}, {transform_indices = @transform_2, window_bounds = array<i64: 1, 128>}, {transform_indices = @transform_3, window_bounds = array<i64: 1, 128, 128>}, {transform_indices = @transform_4, window_bounds = array<i64: 1, 8, 128>}]} {
    %c0 = arith.constant 0 : index
    %c0_0 = arith.constant 0 : index
    %c0_1 = arith.constant 0 : index
    %0 = vector.load %arg3[%c0, %c0_0, %c0_1] : memref<1x128x128xbf16, #tpu.memory_space<vmem>>, vector<1x128x128xbf16>
    %1 = vector.shape_cast %0 : vector<1x128x128xbf16> to vector<128x128xbf16>
    %c0_2 = arith.constant 0 : index
    %c0_3 = arith.constant 0 : index
    %c0_4 = arith.constant 0 : index
    %2 = vector.load %arg4[%c0_2, %c0_3, %c0_4] : memref<1x128x128xbf16, #tpu.memory_space<vmem>>, vector<1x128x128xbf16>
    %3 = vector.shape_cast %2 : vector<1x128x128xbf16> to vector<128x128xbf16>
    %cst = arith.constant dense<0.000000e+00> : vector<128x128xf32>
    %4 = tpu.matmul %1, %3, %cst {dimension_numbers = #tpu.dot_dimension_numbers<[1], [0], [0], [1], [0, 0, 1, 1], [], []>} : vector<128x128xbf16>, vector<128x128xbf16>, vector<128x128xf32> -> vector<128x128xf32>
    %cst_5 = arith.constant dense<0.000000e+00> : vector<128xf32>
    %5 = vector.multi_reduction <add>, %4, %cst_5 [0] : vector<128x128xf32> to vector<128xf32>
    %6 = vector.shape_cast %5 : vector<128xf32> to vector<1x128xf32>
    %7 = arith.mulf %4, %4 : vector<128x128xf32>
    %cst_6 = arith.constant dense<0.000000e+00> : vector<128xf32>
    %8 = vector.multi_reduction <add>, %7, %cst_6 [0] : vector<128x128xf32> to vector<128xf32>
    %9 = vector.shape_cast %8 : vector<128xf32> to vector<1x128xf32>
    %cst_7 = arith.constant 0.000000e+00 : f32
    %10 = vector.broadcast %cst_7 : f32 to vector<6x128xf32>
    %11 = tpu.concatenate %6, %9, %10 in 0 : vector<1x128xf32>, vector<1x128xf32>, vector<6x128xf32> -> vector<8x128xf32>
    %c0_8 = arith.constant 0 : index
    %c0_9 = arith.constant 0 : index
    %c0_10 = arith.constant 0 : index
    %12 = vector.load %arg7[%c0_8, %c0_9, %c0_10] : memref<1x8x128xf32, #tpu.memory_space<vmem>>, vector<1x8x128xf32>
    %13 = vector.shape_cast %12 : vector<1x8x128xf32> to vector<8x128xf32>
    %14 = vector.shape_cast %11 : vector<8x128xf32> to vector<1x8x128xf32>
    tpu.vector_store %arg7[%c0_8, %c0_9, %c0_10], %14 {strides = array<i32>} : memref<1x8x128xf32, #tpu.memory_space<vmem>>, vector<1x8x128xf32>,
    %c0_11 = arith.constant 0 : index
    %c0_12 = arith.constant 0 : index
    %15 = vector.load %arg5[%c0_11, %c0_12] : memref<1x128xf32, #tpu.memory_space<vmem>>, vector<1x128xf32>
    %16 = vector.broadcast %15 : vector<1x128xf32> to vector<128x128xf32>
    %17 = arith.addf %4, %16 : vector<128x128xf32>
    %18 = arith.truncf %17 : vector<128x128xf32> to vector<128x128xbf16>
    %c0_13 = arith.constant 0 : index
    %c0_14 = arith.constant 0 : index
    %c0_15 = arith.constant 0 : index
    %19 = vector.load %arg6[%c0_13, %c0_14, %c0_15] : memref<1x128x128xbf16, #tpu.memory_space<vmem>>, vector<1x128x128xbf16>
    %20 = vector.shape_cast %19 : vector<1x128x128xbf16> to vector<128x128xbf16>
    %21 = vector.shape_cast %18 : vector<128x128xbf16> to vector<1x128x128xbf16>
    tpu.vector_store %arg6[%c0_13, %c0_14, %c0_15], %21 {strides = array<i32>} : memref<1x128x128xbf16, #tpu.memory_space<vmem>>, vector<1x128x128xbf16>,
    return
  }
  func.func @transform_0(%arg0: i32, %arg1: i32, %arg2: i32) -> (i32, i32, i32) {
    %c0_i32 = arith.constant 0 : i32
    %c0_i32_0 = arith.constant 0 : i32
    return %arg0, %arg1, %c0_i32 : i32, i32, i32
  }
  func.func @transform_1(%arg0: i32, %arg1: i32, %arg2: i32) -> (i32, i32, i32) {
    %c0_i32 = arith.constant 0 : i32
    %c0_i32_0 = arith.constant 0 : i32
    return %arg0, %c0_i32, %arg2 : i32, i32, i32
  }
  func.func @transform_2(%arg0: i32, %arg1: i32, %arg2: i32) -> (i32, i32) {
    %c0_i32 = arith.constant 0 : i32
    %c0_i32_0 = arith.constant 0 : i32
    return %c0_i32, %arg2 : i32, i32
  }
  func.func @transform_3(%arg0: i32, %arg1: i32, %arg2: i32) -> (i32, i32, i32) {
    %c0_i32 = arith.constant 0 : i32
    return %arg0, %arg1, %arg2 : i32, i32, i32
  }
  func.func @transform_4(%arg0: i32, %arg1: i32, %arg2: i32) -> (i32, i32, i32) {
    %c0_i32 = arith.constant 0 : i32
    return %arg0, %arg1, %arg2 : i32, i32, i32
  }
}

module attributes {stable_mosaic.version = 11 : i64} {
  func.func @_mm_kernel(%arg0: i32, %arg1: i32, %arg2: i32, %arg3: memref<1x256x128xbf16, #tpu.memory_space<vmem>>, %arg4: memref<1x128x128xbf16, #tpu.memory_space<vmem>>, %arg5: memref<1x128xf32, #tpu.memory_space<vmem>>, %arg6: memref<1x256x128xf32, #tpu.memory_space<vmem>>) attributes {dimension_semantics = [#tpu.dimension_semantics<parallel>, #tpu.dimension_semantics<parallel>, #tpu.dimension_semantics<parallel>], iteration_bounds = array<i64: 4, 2, 1>, scalar_prefetch = 0 : i64, scratch_operands = 0 : i64, tpu.core_type = #tpu.core_type<tc>, window_params = [{transform_indices = @transform_0, window_bounds = array<i64: 1, 256, 128>}, {transform_indices = @transform_1, window_bounds = array<i64: 1, 128, 128>}, {transform_indices = @transform_2, window_bounds = array<i64: 1, 128>}, {transform_indices = @transform_3, window_bounds = array<i64: 1, 256, 128>}]} {
    %c0 = arith.constant 0 : index
    %c0_0 = arith.constant 0 : index
    %c0_1 = arith.constant 0 : index
    %0 = vector.load %arg3[%c0, %c0_0, %c0_1] : memref<1x256x128xbf16, #tpu.memory_space<vmem>>, vector<1x256x128xbf16>
    %1 = vector.shape_cast %0 : vector<1x256x128xbf16> to vector<256x128xbf16>
    %c0_2 = arith.constant 0 : index
    %c0_3 = arith.constant 0 : index
    %c0_4 = arith.constant 0 : index
    %2 = vector.load %arg4[%c0_2, %c0_3, %c0_4] : memref<1x128x128xbf16, #tpu.memory_space<vmem>>, vector<1x128x128xbf16>
    %3 = vector.shape_cast %2 : vector<1x128x128xbf16> to vector<128x128xbf16>
    %cst = arith.constant dense<0.000000e+00> : vector<256x128xf32>
    %4 = tpu.matmul %1, %3, %cst {dimension_numbers = #tpu.dot_dimension_numbers<[1], [0], [0], [1], [0, 0, 1, 1], [], []>} : vector<256x128xbf16>, vector<128x128xbf16>, vector<256x128xf32> -> vector<256x128xf32>
    %c0_5 = arith.constant 0 : index
    %c0_6 = arith.constant 0 : index
    %5 = vector.load %arg5[%c0_5, %c0_6] : memref<1x128xf32, #tpu.memory_space<vmem>>, vector<1x128xf32>
    %6 = vector.broadcast %5 : vector<1x128xf32> to vector<256x128xf32>
    %7 = arith.addf %4, %6 : vector<256x128xf32>
    %8 = math.tanh %7 : vector<256x128xf32>
    %c0_7 = arith.constant 0 : index
    %c0_8 = arith.constant 0 : index
    %c0_9 = arith.constant 0 : index
    %9 = vector.load %arg6[%c0_7, %c0_8, %c0_9] : memref<1x256x128xf32, #tpu.memory_space<vmem>>, vector<1x256x128xf32>
    %10 = vector.shape_cast %9 : vector<1x256x128xf32> to vector<256x128xf32>
    %11 = vector.shape_cast %8 : vector<256x128xf32> to vector<1x256x128xf32>
    tpu.vector_store %arg6[%c0_7, %c0_8, %c0_9], %11 {strides = array<i32>} : memref<1x256x128xf32, #tpu.memory_space<vmem>>, vector<1x256x128xf32>,
    return
  }
  func.func @transform_0(%arg0: i32, %arg1: i32, %arg2: i32) -> (i32, i32, i32) {
    %c0_i32 = arith.constant 0 : i32
    %c0_i32_0 = arith.constant 0 : i32
    return %arg0, %arg1, %c0_i32 : i32, i32, i32
  }
  func.func @transform_1(%arg0: i32, %arg1: i32, %arg2: i32) -> (i32, i32, i32) {
    %c0_i32 = arith.constant 0 : i32
    %c0_i32_0 = arith.constant 0 : i32
    return %arg0, %c0_i32, %arg2 : i32, i32, i32
  }
  func.func @transform_2(%arg0: i32, %arg1: i32, %arg2: i32) -> (i32, i32) {
    %c0_i32 = arith.constant 0 : i32
    %c0_i32_0 = arith.constant 0 : i32
    return %c0_i32, %arg2 : i32, i32
  }
  func.func @transform_3(%arg0: i32, %arg1: i32, %arg2: i32) -> (i32, i32, i32) {
    %c0_i32 = arith.constant 0 : i32
    return %arg0, %arg1, %arg2 : i32, i32, i32
  }
}

</mosaic_0001>

<llo_original>
// kernel: _lambda_.10
$region0: #{_lambda_.10}
  #allocation0 [shape = 'u32[]', space=smem, size = 0x4, offset = 0x4, fixed_abs, tag = 'smem constant byte address 0x4 - core index']
  #allocation1 [shape = 'u32[144,128]{1,0:T(1,128)}', space=vmem, size = 0x12000, scoped, tag = 'internal scratch']
  %s0 = inlined_call_operand.vmem [shape: bf16[1,512,128], index: 0, kind: input, shape index: {}]
  %s1 = inlined_call_operand.vmem [shape: bf16[1,128,128], index: 1, kind: input, shape index: {}]
  %s2 = inlined_call_operand.vmem [shape: f32[1,128], index: 2, kind: input, shape index: {}]
  %s3 = inlined_call_operand.vmem [shape: bf16[1,512,128], index: 3, kind: output, shape index: {}]
  %s4 = sld [smem:[#allocation0]]
  $region45: #{_lambda_.10} parent=0
    _
  %s6 = ssub.s32 1, %s4
  %s7 = scalar_select 0, %s6, %s4
  loop: start=0, step=1, limit=4
  $region2: #{_lambda_.10} parent=0 // loop_pre_header
    _
  $region3: #{_lambda_.10} parent=0 // loop_header
    %s9 = sphi 0, %s13
    %p10 = scmp.ge.s32.totalorder %s9, 4
    %s16 = sphi 0, %s35
    %s17 = sphi 0, %s31
    %s18 = sphi 0, %s27
    %s19 = sphi 0, %s16
    %s20 = sphi 0, %s17
    %s21 = sphi 0, %s18
    %s22 = sphi 0, %s19
    %s23 = sphi 0, %s20
    %s24 = sphi 0, %s21
    %s40 = sphi 0, %s42
    %s43 = sphi 0, %s40
    %s44 = sphi 0, %s43
    %s60 = sphi 0, %s44
    %s68 = sphi 0, %s70
    %s71 = sphi 0, %s68
    %s72 = sphi 0, %s71
    %s88 = sphi 0, %s72
    %s94 = sphi 0, %s96
    %s97 = sphi 0, %s94
    %s98 = sphi 0, %s97
    %s114 = sphi 0, %s98
    %s124 = sphi 0, %s126
    %s127 = sphi 0, %s124
    %s128 = sphi 0, %s127
    %s144 = sphi 0, %s128
  $region4: #{_lambda_.10} parent=0 // loop_header_branch
    %12 = sbr.rel (%p10) target = $region8
  $region5: #{_lambda_.10} parent=0 // loop_body
    %s14 = ssub.s32 %s9, 1
    %s15 = ssub.s32 %s9, 2
    %s25 = sadd.s32 1, %s18
    %p26 = scmp.ge.s32.totalorder %s25, 1
    %s27 = scalar_select %p26, 0, %s25
    %s28 = sadd.s32 1, %s17
    %s29 = scalar_select %p26, %s28, %s17
    %p30 = scmp.ge.s32.totalorder %s29, 2
    %s31 = scalar_select %p30, 0, %s29
    %s32 = sadd.s32 1, %s16
    %s33 = scalar_select %p30, %s32, %s16
    %p34 = scmp.ge.s32.totalorder %s33, 1
    %s35 = scalar_select %p34, 0, %s33
    %s36 = ssub.s32 %s16, %s35
    %s37 = ssub.s32 %s17, %s31
    %s38 = sor.u32 %s36, %s37
    %p39 = scmp.eq.s32.totalorder %s38, 0
    %s41 = sadd.s32 %s40, 1
    %s42 = scalar_select %p39, %s40, %s41
    %p45 = pneg %p39
    %p46 = scmp.eq.s32.totalorder %s9, 1
    %p47 = por %p45, %p46
    %p48 = scmp.ne.s32.totalorder %s40, %s43
    %p49 = scmp.eq.s32.totalorder %s9, 0
    %p50 = por %p48, %p49
    %p51 = scmp.ne.s32.totalorder %s40, %s43
    %p52 = scmp.eq.s32.totalorder %s14, 1
    %p53 = por %p51, %p52
    %p54 = scmp.ne.s32.totalorder %s43, %s44
    %p55 = scmp.eq.s32.totalorder %s14, 0
    %p56 = por %p54, %p55
    %p57 = scmp.ne.s32.totalorder %s43, %s44
    %p58 = scmp.eq.s32.totalorder %s15, 1
    %p59 = por %p57, %p58
    %p61 = scmp.ne.s32.totalorder %s44, %s60
    %p62 = scmp.eq.s32.totalorder %s15, 0
    %p63 = por %p61, %p62
    %s64 = ssub.s32 %s16, %s35
    %s65 = ssub.s32 %s18, %s27
    %s66 = sor.u32 %s64, %s65
    %p67 = scmp.eq.s32.totalorder %s66, 0
    %s69 = sadd.s32 %s68, 1
    %s70 = scalar_select %p67, %s68, %s69
    %p73 = pneg %p67
    %p74 = scmp.eq.s32.totalorder %s9, 1
    %p75 = por %p73, %p74
    %p76 = scmp.ne.s32.totalorder %s68, %s71
    %p77 = scmp.eq.s32.totalorder %s9, 0
    %p78 = por %p76, %p77
    %p79 = scmp.ne.s32.totalorder %s68, %s71
    %p80 = scmp.eq.s32.totalorder %s14, 1
    %p81 = por %p79, %p80
    %p82 = scmp.ne.s32.totalorder %s71, %s72
    %p83 = scmp.eq.s32.totalorder %s14, 0
    %p84 = por %p82, %p83
    %p85 = scmp.ne.s32.totalorder %s71, %s72
    %p86 = scmp.eq.s32.totalorder %s15, 1
    %p87 = por %p85, %p86
    %p89 = scmp.ne.s32.totalorder %s72, %s88
    %p90 = scmp.eq.s32.totalorder %s15, 0
    %p91 = por %p89, %p90
    %s92 = ssub.s32 %s18, %s27
    %p93 = scmp.eq.s32.totalorder %s92, 0
    %s95 = sadd.s32 %s94, 1
    %s96 = scalar_select %p93, %s94, %s95
    %p99 = pneg %p93
    %p100 = scmp.eq.s32.totalorder %s9, 1
    %p101 = por %p99, %p100
    %p102 = scmp.ne.s32.totalorder %s94, %s97
    %p103 = scmp.eq.s32.totalorder %s9, 0
    %p104 = por %p102, %p103
    %p105 = scmp.ne.s32.totalorder %s94, %s97
    %p106 = scmp.eq.s32.totalorder %s14, 1
    %p107 = por %p105, %p106
    %p108 = scmp.ne.s32.totalorder %s97, %s98
    %p109 = scmp.eq.s32.totalorder %s14, 0
    %p110 = por %p108, %p109
    %p111 = scmp.ne.s32.totalorder %s97, %s98
    %p112 = scmp.eq.s32.totalorder %s15, 1
    %p113 = por %p111, %p112
    %p115 = scmp.ne.s32.totalorder %s98, %s114
    %p116 = scmp.eq.s32.totalorder %s15, 0
    %p117 = por %p115, %p116
    %s118 = ssub.s32 %s16, %s35
    %s119 = ssub.s32 %s17, %s31
    %s120 = sor.u32 %s118, %s119
    %s121 = ssub.s32 %s18, %s27
    %s122 = sor.u32 %s120, %s121
    %p123 = scmp.eq.s32.totalorder %s122, 0
    %s125 = sadd.s32 %s124, 1
    %s126 = scalar_select %p123, %s124, %s125
    %p129 = pneg %p123
    %p130 = scmp.eq.s32.totalorder %s9, 1
    %p131 = por %p129, %p130
    %p132 = scmp.ne.s32.totalorder %s124, %s127
    %p133 = scmp.eq.s32.totalorder %s9, 0
    %p134 = por %p132, %p133
    %p135 = scmp.ne.s32.totalorder %s124, %s127
    %p136 = scmp.eq.s32.totalorder %s14, 1
    %p137 = por %p135, %p136
    %p138 = scmp.ne.s32.totalorder %s127, %s128
    %p139 = scmp.eq.s32.totalorder %s14, 0
    %p140 = por %p138, %p139
    %p141 = scmp.ne.s32.totalorder %s127, %s128
    %p142 = scmp.eq.s32.totalorder %s15, 1
    %p143 = por %p141, %p142
    %p145 = scmp.ne.s32.totalorder %s128, %s144
    %p146 = scmp.eq.s32.totalorder %s15, 0
    %p147 = por %p145, %p146
    %p148 = scmp.le.s32.totalorder 1, %s9
    %p149 = scmp.lt.s32.totalorder %s9, 3
    %p150 = pnand %p148, %p149
    %p151 = pneg %p150
    // Predicated region
    $region9: #{_lambda_.10} parent=5 // pred_check
      _
    $region10: #{_lambda_.10} parent=5 // pred_check_branch
      %153 = sbr.rel (%p150) target = $region12
    $region11: #{_lambda_.10} parent=5 // pred_region
      %s154 = ssub.s32 %s9, 1
      // Predicated region
      $region13: #{_lambda_.10} parent=11 // pred_check
        %p155 = pneg %p84
      $region14: #{_lambda_.10} parent=11 // pred_check_branch
        %157 = sbr.rel (%p155) target = $region16
      $region15: #{_lambda_.10} parent=11 // pred_region
        %p158 = scmp.lt.s32.totalorder %s19, 0
        %s159 = scalar_select %p158, %s19, 0
        %p160 = scmp.lt.s32.totalorder %s21, 0
        %s161 = scalar_select %p160, %s21, 0
        %s162 = smul.addr %s159, 16
        %s163 = sadd.s32 %s161, %s162
        %s164 = smul.addr %s163, 4
        %s165 = scalar_lea.vmem %s1, %s164
      $region16: #{_lambda_.10} parent=11 // pred_fallthru
        _
      // Predicated region
      $region17: #{_lambda_.10} parent=11 // pred_check
        %p166 = pneg %p110
      $region18: #{_lambda_.10} parent=11 // pred_check_branch
        %168 = sbr.rel (%p166) target = $region20
      $region19: #{_lambda_.10} parent=11 // pred_region
        %p169 = scmp.lt.s32.totalorder %s21, 0
        %s170 = scalar_select %p169, %s21, 0
        %s171 = scalar_lea.vmem %s2, %s170
      $region20: #{_lambda_.10} parent=11 // pred_fallthru
        _
    $region12: #{_lambda_.10} parent=5 // pred_fallthru
      _
    %p172 = scmp.lt.s32.totalorder %s9, 2
    // Predicated region
    $region21: #{_lambda_.10} parent=5 // pred_check
      %p173 = pneg %p172
    $region22: #{_lambda_.10} parent=5 // pred_check_branch
      %175 = sbr.rel (%p173) target = $region24
    $region23: #{_lambda_.10} parent=5 // pred_region
      // Predicated region
      $region25: #{_lambda_.10} parent=23 // pred_check
        %p176 = pneg %p50
      $region26: #{_lambda_.10} parent=23 // pred_check_branch
        %178 = sbr.rel (%p176) target = $region28
      $region27: #{_lambda_.10} parent=23 // pred_region
        %s179 = smul.u32 32, %s17
        %p180 = scmp.lt.s32.totalorder %s16, 0
        %s181 = scalar_select %p180, %s16, 0
        %p182 = scmp.lt.s32.totalorder %s179, 63
        %s183 = scalar_select %p182, %s179, 63
        %s184 = smul.addr %s181, 64
        %s185 = sadd.s32 %s183, %s184
        %s186 = smul.addr %s185, 4
        %s187 = scalar_lea.vmem %s0, %s186
        %s188 = smul.u32 32, %s17
      $region28: #{_lambda_.10} parent=23 // pred_fallthru
        _
    $region24: #{_lambda_.10} parent=5 // pred_fallthru
      _
    %p189 = scmp.le.s32.totalorder 1, %s9
    %p190 = scmp.lt.s32.totalorder %s9, 3
    %p191 = pnand %p189, %p190
    %p192 = pneg %p191
    // Predicated region
    $region29: #{_lambda_.10} parent=5 // pred_check
      _
    $region30: #{_lambda_.10} parent=5 // pred_check_branch
      %194 = sbr.rel (%p191) target = $region32
    $region31: #{_lambda_.10} parent=5 // pred_region
      %s195 = ssub.s32 %s9, 1
      %s196 = smul.u32 32, %s20
      %p197 = scmp.lt.s32.totalorder %s19, 0
      %s198 = scalar_select %p197, %s19, 0
      %p199 = scmp.lt.s32.totalorder %s196, 63
      %s200 = scalar_select %p199, %s196, 63
      %s201 = smul.addr %s198, 64
      %s202 = sadd.s32 %s200, %s201
      %s203 = smul.addr %s202, 4
      %s204 = scalar_lea.vmem %s0, %s203
      %p205 = pneg %p56
      %p206 = pneg %p53
      %p207 = scmp.lt.s32.totalorder %s19, 0
      %s208 = scalar_select %p207, %s19, 0
      %p209 = scmp.lt.s32.totalorder %s21, 0
      %s210 = scalar_select %p209, %s21, 0
      %s211 = smul.addr %s208, 16
      %s212 = sadd.s32 %s210, %s211
      %s213 = smul.addr %s212, 4
      %s214 = scalar_lea.vmem %s1, %s213
      %p215 = pneg %p84
      %p216 = pneg %p81
      %p217 = scmp.lt.s32.totalorder %s21, 0
      %s218 = scalar_select %p217, %s21, 0
      %s219 = scalar_lea.vmem %s2, %s218
      %p220 = pneg %p110
      %p221 = pneg %p107
      %p222 = pneg %p140
      %p223 = pneg %p137
      %s224 = smul.u32 32, %s20
      %p225 = scmp.lt.s32.totalorder %s19, 0
      %s226 = scalar_select %p225, %s19, 0
      %p227 = scmp.lt.s32.totalorder %s224, 63
      %s228 = scalar_select %p227, %s224, 63
      %p229 = scmp.lt.s32.totalorder %s21, 0
      %s230 = scalar_select %p229, %s21, 0
      %s231 = sadd.s32 %s230, %s228
      %s232 = smul.addr %s226, 64
      %s233 = sadd.s32 %s231, %s232
      %s234 = smul.addr %s233, 4
      %s235 = scalar_lea.vmem %s3, %s234
      %s236 = smul.u32 32, %s20
      %p237 = scmp.lt.s32.totalorder %s19, 0
      %s238 = scalar_select %p237, %s19, 0
      %p239 = scmp.lt.s32.totalorder %s236, 63
      %s240 = scalar_select %p239, %s236, 63
      %s241 = smul.addr %s238, 64
      %s242 = sadd.s32 %s240, %s241
      %s243 = smul.addr %s242, 4
      %s244 = scalar_lea.vmem %s0, %s243
      %s245 = smul.u32 32, %s20
      %p246 = scmp.lt.s32.totalorder %s19, 0
      %s247 = scalar_select %p246, %s19, 0
      %p248 = scmp.lt.s32.totalorder %s21, 0
      %s249 = scalar_select %p248, %s21, 0
      %s250 = smul.addr %s247, 16
      %s251 = sadd.s32 %s249, %s250
      %s252 = smul.addr %s251, 4
      %s253 = scalar_lea.vmem %s1, %s252
      %p254 = scmp.lt.s32.totalorder %s21, 0
      %s255 = scalar_select %p254, %s21, 0
      %s256 = scalar_lea.vmem %s2, %s255
      %s257 = smul.u32 32, %s20
      %p258 = scmp.lt.s32.totalorder %s19, 0
      %s259 = scalar_select %p258, %s19, 0
      %p260 = scmp.lt.s32.totalorder %s257, 63
      %s261 = scalar_select %p260, %s257, 63
      %p262 = scmp.lt.s32.totalorder %s21, 0
      %s263 = scalar_select %p262, %s21, 0
      %s264 = sadd.s32 %s263, %s261
      %s265 = smul.addr %s259, 64
      %s266 = sadd.s32 %s264, %s265
      %s267 = smul.addr %s266, 4
      %s268 = scalar_lea.vmem %s3, %s267
      %s269 = smul.u32 32, %s20
      %v271 = vld [vmem:[%s244] sm:$0xf]
      %v272 = vld [vmem:[%s244 + $0x4] sm:$0xf]
      %v273 = vld [vmem:[%s244 + $0x8] sm:$0xf]
      %v274 = vld [vmem:[%s244 + $0xc] sm:$0xf]
      %v275 = vld [vmem:[%s244 + $0x10] sm:$0xf]
      %v276 = vld [vmem:[%s244 + $0x14] sm:$0xf]
      %v277 = vld [vmem:[%s244 + $0x18] sm:$0xf]
      %v278 = vld [vmem:[%s244 + $0x1c] sm:$0xf]
      %v279 = vld [vmem:[%s244 + $0x20] sm:$0xf]
      %v280 = vld [vmem:[%s244 + $0x24] sm:$0xf]
      %v281 = vld [vmem:[%s244 + $0x28] sm:$0xf]
      %v282 = vld [vmem:[%s244 + $0x2c] sm:$0xf]
      %v283 = vld [vmem:[%s244 + $0x30] sm:$0xf]
      %v284 = vld [vmem:[%s244 + $0x34] sm:$0xf]
      %v285 = vld [vmem:[%s244 + $0x38] sm:$0xf]
      %v286 = vld [vmem:[%s244 + $0x3c] sm:$0xf]
      %v287 = vld [vmem:[%s244 + $0x40] sm:$0xf]
      %v288 = vld [vmem:[%s244 + $0x44] sm:$0xf]
      %v289 = vld [vmem:[%s244 + $0x48] sm:$0xf]
      %v290 = vld [vmem:[%s244 + $0x4c] sm:$0xf]
      %v291 = vld [vmem:[%s244 + $0x50] sm:$0xf]
      %v292 = vld [vmem:[%s244 + $0x54] sm:$0xf]
      %v293 = vld [vmem:[%s244 + $0x58] sm:$0xf]
      %v294 = vld [vmem:[%s244 + $0x5c] sm:$0xf]
      %v295 = vld [vmem:[%s244 + $0x60] sm:$0xf]
      %v296 = vld [vmem:[%s244 + $0x64] sm:$0xf]
      %v297 = vld [vmem:[%s244 + $0x68] sm:$0xf]
      %v298 = vld [vmem:[%s244 + $0x6c] sm:$0xf]
      %v299 = vld [vmem:[%s244 + $0x70] sm:$0xf]
      %v300 = vld [vmem:[%s244 + $0x74] sm:$0xf]
      %v301 = vld [vmem:[%s244 + $0x78] sm:$0xf]
      %v302 = vld [vmem:[%s244 + $0x7c] sm:$0xf]
      %v303 = vld [vmem:[%s253] sm:$0xf]
      %v304 = vld [vmem:[%s253 + $0x4] sm:$0xf]
      %v305 = vld [vmem:[%s253 + $0x8] sm:$0xf]
      %v306 = vld [vmem:[%s253 + $0xc] sm:$0xf]
      %v307 = vld [vmem:[%s253 + $0x10] sm:$0xf]
      %v308 = vld [vmem:[%s253 + $0x14] sm:$0xf]
      %v309 = vld [vmem:[%s253 + $0x18] sm:$0xf]
      %v310 = vld [vmem:[%s253 + $0x1c] sm:$0xf]
      %v311 = vld [vmem:[%s253 + $0x20] sm:$0xf]
      %v312 = vld [vmem:[%s253 + $0x24] sm:$0xf]
      %v313 = vld [vmem:[%s253 + $0x28] sm:$0xf]
      %v314 = vld [vmem:[%s253 + $0x2c] sm:$0xf]
      %v315 = vld [vmem:[%s253 + $0x30] sm:$0xf]
      %v316 = vld [vmem:[%s253 + $0x34] sm:$0xf]
      %v317 = vld [vmem:[%s253 + $0x38] sm:$0xf]
      %v318 = vld [vmem:[%s253 + $0x3c] sm:$0xf]
      %v319 = vld [vmem:[%s256] sm:$0x1]
      %v321 = vlaneseq
      %v322 = vshrl.u32 %v321, 7
      %v323 = vsub.s32 0, %v322
      %v324 = vrot.slane %v319, %v323
      %v358 = vunpack.c.l.b16 %v271
      %v359 = vunpack.c.l.b16 %v272
      %v360 = vunpack.c.l.b16 %v273
      %v361 = vunpack.c.l.b16 %v274
      %v362 = vunpack.c.l.b16 %v275
      %v363 = vunpack.c.l.b16 %v276
      %v364 = vunpack.c.l.b16 %v277
      %v365 = vunpack.c.l.b16 %v278
      %v366 = vunpack.c.l.b16 %v279
      %v367 = vunpack.c.l.b16 %v280
      %v368 = vunpack.c.l.b16 %v281
      %v369 = vunpack.c.l.b16 %v282
      %v370 = vunpack.c.l.b16 %v283
      %v371 = vunpack.c.l.b16 %v284
      %v372 = vunpack.c.l.b16 %v285
      %v373 = vunpack.c.l.b16 %v286
      %v374 = vunpack.c.l.b16 %v287
      %v375 = vunpack.c.l.b16 %v288
      %v376 = vunpack.c.l.b16 %v289
      %v377 = vunpack.c.l.b16 %v290
      %v378 = vunpack.c.l.b16 %v291
      %v379 = vunpack.c.l.b16 %v292
      %v380 = vunpack.c.l.b16 %v293
      %v381 = vunpack.c.l.b16 %v294
      %v382 = vunpack.c.l.b16 %v295
      %v383 = vunpack.c.l.b16 %v296
      %v384 = vunpack.c.l.b16 %v297
      %v385 = vunpack.c.l.b16 %v298
      %v386 = vunpack.c.l.b16 %v299
      %v387 = vunpack.c.l.b16 %v300
      %v388 = vunpack.c.l.b16 %v301
      %v389 = vunpack.c.l.b16 %v302
      %v390 = vpack.c.b16 %v359, %v358
      %v391 = vpack.c.b16 %v361, %v360
      %v392 = vpack.c.b16 %v363, %v362
      %v393 = vpack.c.b16 %v365, %v364
      %v394 = vpack.c.b16 %v367, %v366
      %v395 = vpack.c.b16 %v369, %v368
      %v396 = vpack.c.b16 %v371, %v370
      %v397 = vpack.c.b16 %v373, %v372
      %v398 = vpack.c.b16 %v375, %v374
      %v399 = vpack.c.b16 %v377, %v376
      %v400 = vpack.c.b16 %v379, %v378
      %v401 = vpack.c.b16 %v381, %v380
      %v402 = vpack.c.b16 %v383, %v382
      %v403 = vpack.c.b16 %v385, %v384
      %v404 = vpack.c.b16 %v387, %v386
      %v405 = vpack.c.b16 %v389, %v388
      %v438 = vunpack.c.l.b16 %v303
      %v439 = vunpack.c.l.b16 %v304
      %v440 = vunpack.c.l.b16 %v305
      %v441 = vunpack.c.l.b16 %v306
      %v442 = vunpack.c.l.b16 %v307
      %v443 = vunpack.c.l.b16 %v308
      %v444 = vunpack.c.l.b16 %v309
      %v445 = vunpack.c.l.b16 %v310
      %v446 = vunpack.c.l.b16 %v311
      %v447 = vunpack.c.l.b16 %v312
      %v448 = vunpack.c.l.b16 %v313
      %v449 = vunpack.c.l.b16 %v314
      %v450 = vunpack.c.l.b16 %v315
      %v451 = vunpack.c.l.b16 %v316
      %v452 = vunpack.c.l.b16 %v317
      %v453 = vunpack.c.l.b16 %v318
      %v454 = vpack.c.b16 %v439, %v438
      %v455 = vpack.c.b16 %v441, %v440
      %v456 = vpack.c.b16 %v443, %v442
      %v457 = vpack.c.b16 %v445, %v444
      %v458 = vpack.c.b16 %v447, %v446
      %v459 = vpack.c.b16 %v449, %v448
      %v460 = vpack.c.b16 %v451, %v450
      %v461 = vpack.c.b16 %v453, %v452
      %470 = vmatprep.subr.bf16.mxu0 0
      %471 = vmatpush1.bf16.msra.mxu0 %v461
      %472 = vmatprep.subr.bf16.mxu0 0
      %473 = vmatpush1.bf16.msra.mxu0 %v460
      %474 = vmatprep.subr.bf16.mxu0 0
      %475 = vmatpush1.bf16.msra.mxu0 %v459
      %476 = vmatprep.subr.bf16.mxu0 0
      %477 = vmatpush1.bf16.msra.mxu0 %v458
      %478 = vmatprep.subr.bf16.mxu0 0
      %479 = vmatpush1.bf16.msra.mxu0 %v457
      %480 = vmatprep.subr.bf16.mxu0 0
      %481 = vmatpush1.bf16.msra.mxu0 %v456
      %482 = vmatprep.subr.bf16.mxu0 0
      %483 = vmatpush1.bf16.msra.mxu0 %v455
      %484 = vmatprep.subr.bf16.mxu0 0
      %485 = vmatpush1.bf16.msra.mxu0 %v454
      %486 = vmatprep.subr.bf16.mxu0 0
      %487 = vmatpush2.bf16.msra.mxu0 0
      %488 = vmatprep.subr.bf16.mxu0 0
      %489 = vmatpush2.bf16.msra.mxu0 0
      %490 = vmatprep.subr.bf16.mxu0 0
      %491 = vmatpush2.bf16.msra.mxu0 0
      %492 = vmatprep.subr.bf16.mxu0 0
      %493 = vmatpush2.bf16.msra.mxu0 0
      %494 = vmatprep.subr.bf16.mxu0 0
      %495 = vmatpush2.bf16.msra.mxu0 0
      %496 = vmatprep.subr.bf16.mxu0 0
      %497 = vmatpush2.bf16.msra.mxu0 0
      %498 = vmatprep.subr.bf16.mxu0 0
      %499 = vmatpush2.bf16.msra.mxu0 0
      %500 = vmatprep.subr.bf16.mxu0 0
      %501 = vmatpush2.bf16.msra.mxu0 0
      %502 = vmatprep.mubr.bf16.mxu0 0
      %503 = vmatmul.mubr.bf16.gmra.mxu0 %v390
      %v504 = vpop.f32.mrf.mxu0
      %v505 = vadd.f32 %v324, %v504
      %v506 = vpop.f32.mrf.mxu0
      %v507 = vpop.f32.mrf.mxu0
      %v508 = vadd.f32 %v324, %v507
      %v509 = vpop.f32.mrf.mxu0
      %510 = vmatprep.mubr.bf16.mxu0 0
      %511 = vmatmul.mubr.bf16.gmra.mxu0 %v391
      %v512 = vpop.f32.mrf.mxu0
      %v513 = vadd.f32 %v324, %v512
      %v514 = vpop.f32.mrf.mxu0
      %v515 = vpop.f32.mrf.mxu0
      %v516 = vadd.f32 %v324, %v515
      %v517 = vpop.f32.mrf.mxu0
      %518 = vmatprep.mubr.bf16.mxu0 0
      %519 = vmatmul.mubr.bf16.gmra.mxu0 %v392
      %v520 = vpop.f32.mrf.mxu0
      %v521 = vadd.f32 %v324, %v520
      %v522 = vpop.f32.mrf.mxu0
      %v523 = vpop.f32.mrf.mxu0
      %v524 = vadd.f32 %v324, %v523
      %v525 = vpop.f32.mrf.mxu0
      %526 = vmatprep.mubr.bf16.mxu0 0
      %527 = vmatmul.mubr.bf16.gmra.mxu0 %v393
      %v528 = vpop.f32.mrf.mxu0
      %v529 = vadd.f32 %v324, %v528
      %v530 = vpop.f32.mrf.mxu0
      %v531 = vpop.f32.mrf.mxu0
      %v532 = vadd.f32 %v324, %v531
      %v533 = vpop.f32.mrf.mxu0
      %534 = vmatprep.mubr.bf16.mxu0 0
      %535 = vmatmul.mubr.bf16.gmra.mxu0 %v394
      %v536 = vpop.f32.mrf.mxu0
      %v537 = vadd.f32 %v324, %v536
      %v538 = vpop.f32.mrf.mxu0
      %v539 = vpop.f32.mrf.mxu0
      %v540 = vadd.f32 %v324, %v539
      %v541 = vpop.f32.mrf.mxu0
      %542 = vmatprep.mubr.bf16.mxu0 0
      %543 = vmatmul.mubr.bf16.gmra.mxu0 %v395
      %v544 = vpop.f32.mrf.mxu0
      %v545 = vadd.f32 %v324, %v544
      %v546 = vpop.f32.mrf.mxu0
      %v547 = vpop.f32.mrf.mxu0
      %v548 = vadd.f32 %v324, %v547
      %v549 = vpop.f32.mrf.mxu0
      %550 = vmatprep.mubr.bf16.mxu0 0
      %551 = vmatmul.mubr.bf16.gmra.mxu0 %v396
      %v552 = vpop.f32.mrf.mxu0
      %v553 = vadd.f32 %v324, %v552
      %v554 = vpop.f32.mrf.mxu0
      %v555 = vpop.f32.mrf.mxu0
      %v556 = vadd.f32 %v324, %v555
      %v557 = vpop.f32.mrf.mxu0
      %558 = vmatprep.mubr.bf16.mxu0 0
      %559 = vmatmul.mubr.bf16.gmra.mxu0 %v397
      %v560 = vpop.f32.mrf.mxu0
      %v561 = vadd.f32 %v324, %v560
      %v562 = vpop.f32.mrf.mxu0
      %v563 = vpop.f32.mrf.mxu0
      %v564 = vadd.f32 %v324, %v563
      %v565 = vpop.f32.mrf.mxu0
      %566 = vmatprep.mubr.bf16.mxu0 0
      %567 = vmatmul.mubr.bf16.gmra.mxu0 %v398
      %v568 = vpop.f32.mrf.mxu0
      %v569 = vadd.f32 %v324, %v568
      %v570 = vpop.f32.mrf.mxu0
      %v571 = vpop.f32.mrf.mxu0
      %v572 = vadd.f32 %v324, %v571
      %v573 = vpop.f32.mrf.mxu0
      %574 = vmatprep.mubr.bf16.mxu0 0
      %575 = vmatmul.mubr.bf16.gmra.mxu0 %v399
      %v576 = vpop.f32.mrf.mxu0
      %v577 = vadd.f32 %v324, %v576
      %v578 = vpop.f32.mrf.mxu0
      %v579 = vpop.f32.mrf.mxu0
      %v580 = vadd.f32 %v324, %v579
      %v581 = vpop.f32.mrf.mxu0
      %582 = vmatprep.mubr.bf16.mxu0 0
      %583 = vmatmul.mubr.bf16.gmra.mxu0 %v400
      %v584 = vpop.f32.mrf.mxu0
      %v585 = vadd.f32 %v324, %v584
      %v586 = vpop.f32.mrf.mxu0
      %v587 = vpop.f32.mrf.mxu0
      %v588 = vadd.f32 %v324, %v587
      %v589 = vpop.f32.mrf.mxu0
      %590 = vmatprep.mubr.bf16.mxu0 0
      %591 = vmatmul.mubr.bf16.gmra.mxu0 %v401
      %v592 = vpop.f32.mrf.mxu0
      %v593 = vadd.f32 %v324, %v592
      %v594 = vpop.f32.mrf.mxu0
      %v595 = vpop.f32.mrf.mxu0
      %v596 = vadd.f32 %v324, %v595
      %v597 = vpop.f32.mrf.mxu0
      %598 = vmatprep.mubr.bf16.mxu0 0
      %599 = vmatmul.mubr.bf16.gmra.mxu0 %v402
      %v600 = vpop.f32.mrf.mxu0
      %v601 = vadd.f32 %v324, %v600
      %v602 = vpop.f32.mrf.mxu0
      %v603 = vpop.f32.mrf.mxu0
      %v604 = vadd.f32 %v324, %v603
      %v605 = vpop.f32.mrf.mxu0
      %606 = vmatprep.mubr.bf16.mxu0 0
      %607 = vmatmul.mubr.bf16.gmra.mxu0 %v403
      %v608 = vpop.f32.mrf.mxu0
      %v609 = vadd.f32 %v324, %v608
      %v610 = vpop.f32.mrf.mxu0
      %v611 = vpop.f32.mrf.mxu0
      %v612 = vadd.f32 %v324, %v611
      %v613 = vpop.f32.mrf.mxu0
      %614 = vmatprep.mubr.bf16.mxu0 0
      %615 = vmatmul.mubr.bf16.gmra.mxu0 %v404
      %v616 = vpop.f32.mrf.mxu0
      %v617 = vadd.f32 %v324, %v616
      %v618 = vpop.f32.mrf.mxu0
      %v619 = vpop.f32.mrf.mxu0
      %v620 = vadd.f32 %v324, %v619
      %v621 = vpop.f32.mrf.mxu0
      %622 = vmatprep.mubr.bf16.mxu0 0
      %623 = vmatmul.mubr.bf16.gmra.mxu0 %v405
      %v624 = vpop.f32.mrf.mxu0
      %v625 = vadd.f32 %v324, %v624
      %v626 = vpop.f32.mrf.mxu0
      %v627 = vpop.f32.mrf.mxu0
      %v628 = vadd.f32 %v324, %v627
      %v629 = vpop.f32.mrf.mxu0
      %630 = vdwg.mxu0
      %v631 = vpack.c.bf16 %v508, %v505
      %v632 = vpack.c.bf16 %v516, %v513
      %v633 = vpack.c.bf16 %v524, %v521
      %v634 = vpack.c.bf16 %v532, %v529
      %v635 = vpack.c.bf16 %v540, %v537
      %v636 = vpack.c.bf16 %v548, %v545
      %v637 = vpack.c.bf16 %v556, %v553
      %v638 = vpack.c.bf16 %v564, %v561
      %v639 = vpack.c.bf16 %v572, %v569
      %v640 = vpack.c.bf16 %v580, %v577
      %v641 = vpack.c.bf16 %v588, %v585
      %v642 = vpack.c.bf16 %v596, %v593
      %v643 = vpack.c.bf16 %v604, %v601
      %v644 = vpack.c.bf16 %v612, %v609
      %v645 = vpack.c.bf16 %v620, %v617
      %v646 = vpack.c.bf16 %v628, %v625
      %v663 = vunpack.c.l.b16 %v631
      %v664 = vunpack.c.h.b16 %v631
      %v665 = vunpack.c.l.b16 %v632
      %v666 = vunpack.c.h.b16 %v632
      %v667 = vunpack.c.l.b16 %v633
      %v668 = vunpack.c.h.b16 %v633
      %v669 = vunpack.c.l.b16 %v634
      %v670 = vunpack.c.h.b16 %v634
      %v671 = vunpack.c.l.b16 %v635
      %v672 = vunpack.c.h.b16 %v635
      %v673 = vunpack.c.l.b16 %v636
      %v674 = vunpack.c.h.b16 %v636
      %v675 = vunpack.c.l.b16 %v637
      %v676 = vunpack.c.h.b16 %v637
      %v677 = vunpack.c.l.b16 %v638
      %v678 = vunpack.c.h.b16 %v638
      %v679 = vunpack.c.l.b16 %v639
      %v680 = vunpack.c.h.b16 %v639
      %v681 = vunpack.c.l.b16 %v640
      %v682 = vunpack.c.h.b16 %v640
      %v683 = vunpack.c.l.b16 %v641
      %v684 = vunpack.c.h.b16 %v641
      %v685 = vunpack.c.l.b16 %v642
      %v686 = vunpack.c.h.b16 %v642
      %v687 = vunpack.c.l.b16 %v643
      %v688 = vunpack.c.h.b16 %v643
      %v689 = vunpack.c.l.b16 %v644
      %v690 = vunpack.c.h.b16 %v644
      %v691 = vunpack.c.l.b16 %v645
      %v692 = vunpack.c.h.b16 %v645
      %v693 = vunpack.c.l.b16 %v646
      %v694 = vunpack.c.h.b16 %v646
      %v695 = vpack.c.b16 %v663, %v663
      %v696 = vpack.c.b16 %v664, %v664
      %v697 = vpack.c.b16 %v665, %v665
      %v698 = vpack.c.b16 %v666, %v666
      %v699 = vpack.c.b16 %v667, %v667
      %v700 = vpack.c.b16 %v668, %v668
      %v701 = vpack.c.b16 %v669, %v669
      %v702 = vpack.c.b16 %v670, %v670
      %v703 = vpack.c.b16 %v671, %v671
      %v704 = vpack.c.b16 %v672, %v672
      %v705 = vpack.c.b16 %v673, %v673
      %v706 = vpack.c.b16 %v674, %v674
      %v707 = vpack.c.b16 %v675, %v675
      %v708 = vpack.c.b16 %v676, %v676
      %v709 = vpack.c.b16 %v677, %v677
      %v710 = vpack.c.b16 %v678, %v678
      %v711 = vpack.c.b16 %v679, %v679
      %v712 = vpack.c.b16 %v680, %v680
      %v713 = vpack.c.b16 %v681, %v681
      %v714 = vpack.c.b16 %v682, %v682
      %v715 = vpack.c.b16 %v683, %v683
      %v716 = vpack.c.b16 %v684, %v684
      %v717 = vpack.c.b16 %v685, %v685
      %v718 = vpack.c.b16 %v686, %v686
      %v719 = vpack.c.b16 %v687, %v687
      %v720 = vpack.c.b16 %v688, %v688
      %v721 = vpack.c.b16 %v689, %v689
      %v722 = vpack.c.b16 %v690, %v690
      %v723 = vpack.c.b16 %v691, %v691
      %v724 = vpack.c.b16 %v692, %v692
      %v725 = vpack.c.b16 %v693, %v693
      %v726 = vpack.c.b16 %v694, %v694
      %759 = vst [vmem:[%s268] sm:$0xf] %v695
      %760 = vst [vmem:[%s268 + $0x4] sm:$0xf] %v696
      %761 = vst [vmem:[%s268 + $0x8] sm:$0xf] %v697
      %762 = vst [vmem:[%s268 + $0xc] sm:$0xf] %v698
      %763 = vst [vmem:[%s268 + $0x10] sm:$0xf] %v699
      %764 = vst [vmem:[%s268 + $0x14] sm:$0xf] %v700
      %765 = vst [vmem:[%s268 + $0x18] sm:$0xf] %v701
      %766 = vst [vmem:[%s268 + $0x1c] sm:$0xf] %v702
      %767 = vst [vmem:[%s268 + $0x20] sm:$0xf] %v703
      %768 = vst [vmem:[%s268 + $0x24] sm:$0xf] %v704
      %769 = vst [vmem:[%s268 + $0x28] sm:$0xf] %v705
      %770 = vst [vmem:[%s268 + $0x2c] sm:$0xf] %v706
      %771 = vst [vmem:[%s268 + $0x30] sm:$0xf] %v707
      %772 = vst [vmem:[%s268 + $0x34] sm:$0xf] %v708
      %773 = vst [vmem:[%s268 + $0x38] sm:$0xf] %v709
      %774 = vst [vmem:[%s268 + $0x3c] sm:$0xf] %v710
      %775 = vst [vmem:[%s268 + $0x40] sm:$0xf] %v711
      %776 = vst [vmem:[%s268 + $0x44] sm:$0xf] %v712
      %777 = vst [vmem:[%s268 + $0x48] sm:$0xf] %v713
      %778 = vst [vmem:[%s268 + $0x4c] sm:$0xf] %v714
      %779 = vst [vmem:[%s268 + $0x50] sm:$0xf] %v715
      %780 = vst [vmem:[%s268 + $0x54] sm:$0xf] %v716
      %781 = vst [vmem:[%s268 + $0x58] sm:$0xf] %v717
      %782 = vst [vmem:[%s268 + $0x5c] sm:$0xf] %v718
      %783 = vst [vmem:[%s268 + $0x60] sm:$0xf] %v719
      %784 = vst [vmem:[%s268 + $0x64] sm:$0xf] %v720
      %785 = vst [vmem:[%s268 + $0x68] sm:$0xf] %v721
      %786 = vst [vmem:[%s268 + $0x6c] sm:$0xf] %v722
      %787 = vst [vmem:[%s268 + $0x70] sm:$0xf] %v723
      %788 = vst [vmem:[%s268 + $0x74] sm:$0xf] %v724
      %789 = vst [vmem:[%s268 + $0x78] sm:$0xf] %v725
      %790 = vst [vmem:[%s268 + $0x7c] sm:$0xf] %v726
      %s791 = smul.u32 32, %s20
      %p792 = scmp.lt.s32.totalorder %s19, 0
      %s793 = scalar_select %p792, %s19, 0
      %p794 = scmp.lt.s32.totalorder %s791, 63
      %s795 = scalar_select %p794, %s791, 63
      %p796 = scmp.lt.s32.totalorder %s21, 0
      %s797 = scalar_select %p796, %s21, 0
      %s798 = sadd.s32 %s797, %s795
      %s799 = smul.addr %s793, 64
      %s800 = sadd.s32 %s798, %s799
      %s801 = smul.addr %s800, 4
      %s802 = scalar_lea.vmem %s3, %s801
      // Predicated region
      $region33: #{_lambda_.10} parent=31 // pred_check
        %p803 = pneg %p137
      $region34: #{_lambda_.10} parent=31 // pred_check_branch
        %805 = sbr.rel (%p803) target = $region36
      $region35: #{_lambda_.10} parent=31 // pred_region
        %s806 = smul.u32 32, %s20
      $region36: #{_lambda_.10} parent=31 // pred_fallthru
        _
    $region32: #{_lambda_.10} parent=5 // pred_fallthru
      _
    %p807 = scmp.le.s32.totalorder 2, %s9
    // Predicated region
    $region37: #{_lambda_.10} parent=5 // pred_check
      %p808 = pneg %p807
    $region38: #{_lambda_.10} parent=5 // pred_check_branch
      %810 = sbr.rel (%p808) target = $region40
    $region39: #{_lambda_.10} parent=5 // pred_region
      %s811 = ssub.s32 %s9, 2
      // Predicated region
      $region41: #{_lambda_.10} parent=39 // pred_check
        %p812 = pneg %p143
      $region42: #{_lambda_.10} parent=39 // pred_check_branch
        %814 = sbr.rel (%p812) target = $region44
      $region43: #{_lambda_.10} parent=39 // pred_region
        %s815 = smul.u32 32, %s23
        %p816 = scmp.lt.s32.totalorder %s22, 0
        %s817 = scalar_select %p816, %s22, 0
        %p818 = scmp.lt.s32.totalorder %s815, 63
        %s819 = scalar_select %p818, %s815, 63
        %p820 = scmp.lt.s32.totalorder %s24, 0
        %s821 = scalar_select %p820, %s24, 0
        %s822 = sadd.s32 %s821, %s819
        %s823 = smul.addr %s817, 64
        %s824 = sadd.s32 %s822, %s823
        %s825 = smul.addr %s824, 4
        %s826 = scalar_lea.vmem %s3, %s825
      $region44: #{_lambda_.10} parent=39 // pred_fallthru
        _
    $region40: #{_lambda_.10} parent=5 // pred_fallthru
      _
  $region6: #{_lambda_.10} parent=0 // loop_footer
    %s13 = sadd.s32 1, %s9
  $region7: #{_lambda_.10} parent=0 // loop_footer_branch
    %8 = sbr.rel target = $region3
  $region8: #{_lambda_.10} parent=0 // loop_exit
    _

// kernel: _lambda_.11
$region0: #{_lambda_.11}
  #allocation0 [shape = 'u32[]', space=smem, size = 0x4, offset = 0x4, fixed_abs, tag = 'smem constant byte address 0x4 - core index']
  #allocation1 [shape = 'u32[144,128]{1,0:T(1,128)}', space=vmem, size = 0x12000, scoped, tag = 'internal scratch']
  %s0 = inlined_call_operand.vmem [shape: bf16[1,128,128], index: 0, kind: input, shape index: {}]
  %s1 = inlined_call_operand.vmem [shape: bf16[1,128,128], index: 1, kind: input, shape index: {}]
  %s2 = inlined_call_operand.vmem [shape: f32[1,128], index: 2, kind: input, shape index: {}]
  %s3 = inlined_call_operand.vmem [shape: bf16[1,128,128], index: 3, kind: output, shape index: {0}]
  %s4 = inlined_call_operand.vmem [shape: f32[1,16,128], index: 4, kind: output, shape index: {1}]
  %5 = xla_tuple %s3, %s4
  %s6 = sld [smem:[#allocation0]]
  $region53: #{_lambda_.11} parent=0
    _
  %s8 = ssub.s32 1, %s6
  %s9 = scalar_select 0, %s8, %s6
  loop: start=0, step=1, limit=4
  $region2: #{_lambda_.11} parent=0 // loop_pre_header
    _
  $region3: #{_lambda_.11} parent=0 // loop_header
    %s11 = sphi 0, %s15
    %p12 = scmp.ge.s32.totalorder %s11, 4
    %s18 = sphi 0, %s37
    %s19 = sphi 0, %s33
    %s20 = sphi 0, %s29
    %s21 = sphi 0, %s18
    %s22 = sphi 0, %s19
    %s23 = sphi 0, %s20
    %s24 = sphi 0, %s21
    %s25 = sphi 0, %s22
    %s26 = sphi 0, %s23
    %s42 = sphi 0, %s44
    %s45 = sphi 0, %s42
    %s46 = sphi 0, %s45
    %s62 = sphi 0, %s46
    %s70 = sphi 0, %s72
    %s73 = sphi 0, %s70
    %s74 = sphi 0, %s73
    %s90 = sphi 0, %s74
    %s96 = sphi 0, %s98
    %s99 = sphi 0, %s96
    %s100 = sphi 0, %s99
    %s116 = sphi 0, %s100
    %s126 = sphi 0, %s128
    %s129 = sphi 0, %s126
    %s130 = sphi 0, %s129
    %s146 = sphi 0, %s130
    %s156 = sphi 0, %s158
    %s159 = sphi 0, %s156
    %s160 = sphi 0, %s159
    %s176 = sphi 0, %s160
  $region4: #{_lambda_.11} parent=0 // loop_header_branch
    %14 = sbr.rel (%p12) target = $region8
  $region5: #{_lambda_.11} parent=0 // loop_body
    %s16 = ssub.s32 %s11, 1
    %s17 = ssub.s32 %s11, 2
    %s27 = sadd.s32 1, %s20
    %p28 = scmp.ge.s32.totalorder %s27, 1
    %s29 = scalar_select %p28, 0, %s27
    %s30 = sadd.s32 1, %s19
    %s31 = scalar_select %p28, %s30, %s19
    %p32 = scmp.ge.s32.totalorder %s31, 2
    %s33 = scalar_select %p32, 0, %s31
    %s34 = sadd.s32 1, %s18
    %s35 = scalar_select %p32, %s34, %s18
    %p36 = scmp.ge.s32.totalorder %s35, 1
    %s37 = scalar_select %p36, 0, %s35
    %s38 = ssub.s32 %s18, %s37
    %s39 = ssub.s32 %s19, %s33
    %s40 = sor.u32 %s38, %s39
    %p41 = scmp.eq.s32.totalorder %s40, 0
    %s43 = sadd.s32 %s42, 1
    %s44 = scalar_select %p41, %s42, %s43
    %p47 = pneg %p41
    %p48 = scmp.eq.s32.totalorder %s11, 1
    %p49 = por %p47, %p48
    %p50 = scmp.ne.s32.totalorder %s42, %s45
    %p51 = scmp.eq.s32.totalorder %s11, 0
    %p52 = por %p50, %p51
    %p53 = scmp.ne.s32.totalorder %s42, %s45
    %p54 = scmp.eq.s32.totalorder %s16, 1
    %p55 = por %p53, %p54
    %p56 = scmp.ne.s32.totalorder %s45, %s46
    %p57 = scmp.eq.s32.totalorder %s16, 0
    %p58 = por %p56, %p57
    %p59 = scmp.ne.s32.totalorder %s45, %s46
    %p60 = scmp.eq.s32.totalorder %s17, 1
    %p61 = por %p59, %p60
    %p63 = scmp.ne.s32.totalorder %s46, %s62
    %p64 = scmp.eq.s32.totalorder %s17, 0
    %p65 = por %p63, %p64
    %s66 = ssub.s32 %s18, %s37
    %s67 = ssub.s32 %s20, %s29
    %s68 = sor.u32 %s66, %s67
    %p69 = scmp.eq.s32.totalorder %s68, 0
    %s71 = sadd.s32 %s70, 1
    %s72 = scalar_select %p69, %s70, %s71
    %p75 = pneg %p69
    %p76 = scmp.eq.s32.totalorder %s11, 1
    %p77 = por %p75, %p76
    %p78 = scmp.ne.s32.totalorder %s70, %s73
    %p79 = scmp.eq.s32.totalorder %s11, 0
    %p80 = por %p78, %p79
    %p81 = scmp.ne.s32.totalorder %s70, %s73
    %p82 = scmp.eq.s32.totalorder %s16, 1
    %p83 = por %p81, %p82
    %p84 = scmp.ne.s32.totalorder %s73, %s74
    %p85 = scmp.eq.s32.totalorder %s16, 0
    %p86 = por %p84, %p85
    %p87 = scmp.ne.s32.totalorder %s73, %s74
    %p88 = scmp.eq.s32.totalorder %s17, 1
    %p89 = por %p87, %p88
    %p91 = scmp.ne.s32.totalorder %s74, %s90
    %p92 = scmp.eq.s32.totalorder %s17, 0
    %p93 = por %p91, %p92
    %s94 = ssub.s32 %s20, %s29
    %p95 = scmp.eq.s32.totalorder %s94, 0
    %s97 = sadd.s32 %s96, 1
    %s98 = scalar_select %p95, %s96, %s97
    %p101 = pneg %p95
    %p102 = scmp.eq.s32.totalorder %s11, 1
    %p103 = por %p101, %p102
    %p104 = scmp.ne.s32.totalorder %s96, %s99
    %p105 = scmp.eq.s32.totalorder %s11, 0
    %p106 = por %p104, %p105
    %p107 = scmp.ne.s32.totalorder %s96, %s99
    %p108 = scmp.eq.s32.totalorder %s16, 1
    %p109 = por %p107, %p108
    %p110 = scmp.ne.s32.totalorder %s99, %s100
    %p111 = scmp.eq.s32.totalorder %s16, 0
    %p112 = por %p110, %p111
    %p113 = scmp.ne.s32.totalorder %s99, %s100
    %p114 = scmp.eq.s32.totalorder %s17, 1
    %p115 = por %p113, %p114
    %p117 = scmp.ne.s32.totalorder %s100, %s116
    %p118 = scmp.eq.s32.totalorder %s17, 0
    %p119 = por %p117, %p118
    %s120 = ssub.s32 %s18, %s37
    %s121 = ssub.s32 %s19, %s33
    %s122 = sor.u32 %s120, %s121
    %s123 = ssub.s32 %s20, %s29
    %s124 = sor.u32 %s122, %s123
    %p125 = scmp.eq.s32.totalorder %s124, 0
    %s127 = sadd.s32 %s126, 1
    %s128 = scalar_select %p125, %s126, %s127
    %p131 = pneg %p125
    %p132 = scmp.eq.s32.totalorder %s11, 1
    %p133 = por %p131, %p132
    %p134 = scmp.ne.s32.totalorder %s126, %s129
    %p135 = scmp.eq.s32.totalorder %s11, 0
    %p136 = por %p134, %p135
    %p137 = scmp.ne.s32.totalorder %s126, %s129
    %p138 = scmp.eq.s32.totalorder %s16, 1
    %p139 = por %p137, %p138
    %p140 = scmp.ne.s32.totalorder %s129, %s130
    %p141 = scmp.eq.s32.totalorder %s16, 0
    %p142 = por %p140, %p141
    %p143 = scmp.ne.s32.totalorder %s129, %s130
    %p144 = scmp.eq.s32.totalorder %s17, 1
    %p145 = por %p143, %p144
    %p147 = scmp.ne.s32.totalorder %s130, %s146
    %p148 = scmp.eq.s32.totalorder %s17, 0
    %p149 = por %p147, %p148
    %s150 = ssub.s32 %s18, %s37
    %s151 = ssub.s32 %s19, %s33
    %s152 = sor.u32 %s150, %s151
    %s153 = ssub.s32 %s20, %s29
    %s154 = sor.u32 %s152, %s153
    %p155 = scmp.eq.s32.totalorder %s154, 0
    %s157 = sadd.s32 %s156, 1
    %s158 = scalar_select %p155, %s156, %s157
    %p161 = pneg %p155
    %p162 = scmp.eq.s32.totalorder %s11, 1
    %p163 = por %p161, %p162
    %p164 = scmp.ne.s32.totalorder %s156, %s159
    %p165 = scmp.eq.s32.totalorder %s11, 0
    %p166 = por %p164, %p165
    %p167 = scmp.ne.s32.totalorder %s156, %s159
    %p168 = scmp.eq.s32.totalorder %s16, 1
    %p169 = por %p167, %p168
    %p170 = scmp.ne.s32.totalorder %s159, %s160
    %p171 = scmp.eq.s32.totalorder %s16, 0
    %p172 = por %p170, %p171
    %p173 = scmp.ne.s32.totalorder %s159, %s160
    %p174 = scmp.eq.s32.totalorder %s17, 1
    %p175 = por %p173, %p174
    %p177 = scmp.ne.s32.totalorder %s160, %s176
    %p178 = scmp.eq.s32.totalorder %s17, 0
    %p179 = por %p177, %p178
    %p180 = scmp.le.s32.totalorder 1, %s11
    %p181 = scmp.lt.s32.totalorder %s11, 3
    %p182 = pnand %p180, %p181
    %p183 = pneg %p182
    // Predicated region
    $region9: #{_lambda_.11} parent=5 // pred_check
      _
    $region10: #{_lambda_.11} parent=5 // pred_check_branch
      %185 = sbr.rel (%p182) target = $region12
    $region11: #{_lambda_.11} parent=5 // pred_region
      %s186 = ssub.s32 %s11, 1
      // Predicated region
      $region13: #{_lambda_.11} parent=11 // pred_check
        %p187 = pneg %p86
      $region14: #{_lambda_.11} parent=11 // pred_check_branch
        %189 = sbr.rel (%p187) target = $region16
      $region15: #{_lambda_.11} parent=11 // pred_region
        %p190 = scmp.lt.s32.totalorder %s21, 0
        %s191 = scalar_select %p190, %s21, 0
        %p192 = scmp.lt.s32.totalorder %s23, 0
        %s193 = scalar_select %p192, %s23, 0
        %s194 = smul.addr %s191, 16
        %s195 = sadd.s32 %s193, %s194
        %s196 = smul.addr %s195, 4
        %s197 = scalar_lea.vmem %s1, %s196
      $region16: #{_lambda_.11} parent=11 // pred_fallthru
        _
      // Predicated region
      $region17: #{_lambda_.11} parent=11 // pred_check
        %p198 = pneg %p112
      $region18: #{_lambda_.11} parent=11 // pred_check_branch
        %200 = sbr.rel (%p198) target = $region20
      $region19: #{_lambda_.11} parent=11 // pred_region
        %p201 = scmp.lt.s32.totalorder %s23, 0
        %s202 = scalar_select %p201, %s23, 0
        %s203 = scalar_lea.vmem %s2, %s202
      $region20: #{_lambda_.11} parent=11 // pred_fallthru
        _
    $region12: #{_lambda_.11} parent=5 // pred_fallthru
      _
    %p204 = scmp.lt.s32.totalorder %s11, 2
    // Predicated region
    $region21: #{_lambda_.11} parent=5 // pred_check
      %p205 = pneg %p204
    $region22: #{_lambda_.11} parent=5 // pred_check_branch
      %207 = sbr.rel (%p205) target = $region24
    $region23: #{_lambda_.11} parent=5 // pred_region
      // Predicated region
      $region25: #{_lambda_.11} parent=23 // pred_check
        %p208 = pneg %p52
      $region26: #{_lambda_.11} parent=23 // pred_check_branch
        %210 = sbr.rel (%p208) target = $region28
      $region27: #{_lambda_.11} parent=23 // pred_region
        %s211 = smul.u32 8, %s19
        %p212 = scmp.lt.s32.totalorder %s18, 0
        %s213 = scalar_select %p212, %s18, 0
        %p214 = scmp.lt.s32.totalorder %s211, 15
        %s215 = scalar_select %p214, %s211, 15
        %s216 = smul.addr %s213, 16
        %s217 = sadd.s32 %s215, %s216
        %s218 = smul.addr %s217, 4
        %s219 = scalar_lea.vmem %s0, %s218
        %s220 = smul.u32 8, %s19
      $region28: #{_lambda_.11} parent=23 // pred_fallthru
        _
    $region24: #{_lambda_.11} parent=5 // pred_fallthru
      _
    %p221 = scmp.le.s32.totalorder 1, %s11
    %p222 = scmp.lt.s32.totalorder %s11, 3
    %p223 = pnand %p221, %p222
    %p224 = pneg %p223
    // Predicated region
    $region29: #{_lambda_.11} parent=5 // pred_check
      _
    $region30: #{_lambda_.11} parent=5 // pred_check_branch
      %226 = sbr.rel (%p223) target = $region32
    $region31: #{_lambda_.11} parent=5 // pred_region
      %s227 = ssub.s32 %s11, 1
      %s228 = smul.u32 8, %s22
      %p229 = scmp.lt.s32.totalorder %s21, 0
      %s230 = scalar_select %p229, %s21, 0
      %p231 = scmp.lt.s32.totalorder %s228, 15
      %s232 = scalar_select %p231, %s228, 15
      %s233 = smul.addr %s230, 16
      %s234 = sadd.s32 %s232, %s233
      %s235 = smul.addr %s234, 4
      %s236 = scalar_lea.vmem %s0, %s235
      %p237 = pneg %p58
      %p238 = pneg %p55
      %p239 = scmp.lt.s32.totalorder %s21, 0
      %s240 = scalar_select %p239, %s21, 0
      %p241 = scmp.lt.s32.totalorder %s23, 0
      %s242 = scalar_select %p241, %s23, 0
      %s243 = smul.addr %s240, 16
      %s244 = sadd.s32 %s242, %s243
      %s245 = smul.addr %s244, 4
      %s246 = scalar_lea.vmem %s1, %s245
      %p247 = pneg %p86
      %p248 = pneg %p83
      %p249 = scmp.lt.s32.totalorder %s23, 0
      %s250 = scalar_select %p249, %s23, 0
      %s251 = scalar_lea.vmem %s2, %s250
      %p252 = pneg %p112
      %p253 = pneg %p109
      %p254 = pneg %p142
      %p255 = pneg %p139
      %s256 = smul.u32 8, %s22
      %p257 = scmp.lt.s32.totalorder %s21, 0
      %s258 = scalar_select %p257, %s21, 0
      %p259 = scmp.lt.s32.totalorder %s256, 15
      %s260 = scalar_select %p259, %s256, 15
      %p261 = scmp.lt.s32.totalorder %s23, 0
      %s262 = scalar_select %p261, %s23, 0
      %s263 = sadd.s32 %s262, %s260
      %s264 = smul.addr %s258, 16
      %s265 = sadd.s32 %s263, %s264
      %s266 = smul.addr %s265, 4
      %s267 = scalar_lea.vmem %s3, %s266
      %p268 = pneg %p172
      %p269 = pneg %p169
      %p270 = scmp.lt.s32.totalorder %s21, 0
      %s271 = scalar_select %p270, %s21, 0
      %p272 = scmp.lt.s32.totalorder %s22, 1
      %s273 = scalar_select %p272, %s22, 1
      %p274 = scmp.lt.s32.totalorder %s23, 0
      %s275 = scalar_select %p274, %s23, 0
      %s276 = sadd.s32 %s275, %s273
      %s277 = smul.addr %s271, 2
      %s278 = sadd.s32 %s276, %s277
      %s279 = smul.addr %s278, 8
      %s280 = scalar_lea.vmem %s4, %s279
      %s281 = smul.u32 8, %s22
      %p282 = scmp.lt.s32.totalorder %s21, 0
      %s283 = scalar_select %p282, %s21, 0
      %p284 = scmp.lt.s32.totalorder %s281, 15
      %s285 = scalar_select %p284, %s281, 15
      %s286 = smul.addr %s283, 16
      %s287 = sadd.s32 %s285, %s286
      %s288 = smul.addr %s287, 4
      %s289 = scalar_lea.vmem %s0, %s288
      %s290 = smul.u32 8, %s22
      %p291 = scmp.lt.s32.totalorder %s21, 0
      %s292 = scalar_select %p291, %s21, 0
      %p293 = scmp.lt.s32.totalorder %s23, 0
      %s294 = scalar_select %p293, %s23, 0
      %s295 = smul.addr %s292, 16
      %s296 = sadd.s32 %s294, %s295
      %s297 = smul.addr %s296, 4
      %s298 = scalar_lea.vmem %s1, %s297
      %p299 = scmp.lt.s32.totalorder %s23, 0
      %s300 = scalar_select %p299, %s23, 0
      %s301 = scalar_lea.vmem %s2, %s300
      %s302 = smul.u32 8, %s22
      %p303 = scmp.lt.s32.totalorder %s21, 0
      %s304 = scalar_select %p303, %s21, 0
      %p305 = scmp.lt.s32.totalorder %s302, 15
      %s306 = scalar_select %p305, %s302, 15
      %p307 = scmp.lt.s32.totalorder %s23, 0
      %s308 = scalar_select %p307, %s23, 0
      %s309 = sadd.s32 %s308, %s306
      %s310 = smul.addr %s304, 16
      %s311 = sadd.s32 %s309, %s310
      %s312 = smul.addr %s311, 4
      %s313 = scalar_lea.vmem %s3, %s312
      %s314 = smul.u32 8, %s22
      %p315 = scmp.lt.s32.totalorder %s21, 0
      %s316 = scalar_select %p315, %s21, 0
      %p317 = scmp.lt.s32.totalorder %s22, 1
      %s318 = scalar_select %p317, %s22, 1
      %p319 = scmp.lt.s32.totalorder %s23, 0
      %s320 = scalar_select %p319, %s23, 0
      %s321 = sadd.s32 %s320, %s318
      %s322 = smul.addr %s316, 2
      %s323 = sadd.s32 %s321, %s322
      %s324 = smul.addr %s323, 8
      %s325 = scalar_lea.vmem %s4, %s324
      %v327 = vld [vmem:[%s289] sm:$0xf]
      %v328 = vld [vmem:[%s289 + $0x4] sm:$0xf]
      %v329 = vld [vmem:[%s289 + $0x8] sm:$0xf]
      %v330 = vld [vmem:[%s289 + $0xc] sm:$0xf]
      %v331 = vld [vmem:[%s289 + $0x10] sm:$0xf]
      %v332 = vld [vmem:[%s289 + $0x14] sm:$0xf]
      %v333 = vld [vmem:[%s289 + $0x18] sm:$0xf]
      %v334 = vld [vmem:[%s289 + $0x1c] sm:$0xf]
      %v335 = vld [vmem:[%s298] sm:$0xf]
      %v336 = vld [vmem:[%s298 + $0x4] sm:$0xf]
      %v337 = vld [vmem:[%s298 + $0x8] sm:$0xf]
      %v338 = vld [vmem:[%s298 + $0xc] sm:$0xf]
      %v339 = vld [vmem:[%s298 + $0x10] sm:$0xf]
      %v340 = vld [vmem:[%s298 + $0x14] sm:$0xf]
      %v341 = vld [vmem:[%s298 + $0x18] sm:$0xf]
      %v342 = vld [vmem:[%s298 + $0x1c] sm:$0xf]
      %v343 = vld [vmem:[%s298 + $0x20] sm:$0xf]
      %v344 = vld [vmem:[%s298 + $0x24] sm:$0xf]
      %v345 = vld [vmem:[%s298 + $0x28] sm:$0xf]
      %v346 = vld [vmem:[%s298 + $0x2c] sm:$0xf]
      %v347 = vld [vmem:[%s298 + $0x30] sm:$0xf]
      %v348 = vld [vmem:[%s298 + $0x34] sm:$0xf]
      %v349 = vld [vmem:[%s298 + $0x38] sm:$0xf]
      %v350 = vld [vmem:[%s298 + $0x3c] sm:$0xf]
      %v359 = vunpack.c.l.b16 %v327
      %v360 = vunpack.c.l.b16 %v328
      %v361 = vunpack.c.l.b16 %v329
      %v362 = vunpack.c.l.b16 %v330
      %v363 = vunpack.c.l.b16 %v331
      %v364 = vunpack.c.l.b16 %v332
      %v365 = vunpack.c.l.b16 %v333
      %v366 = vunpack.c.l.b16 %v334
      %v367 = vpack.c.b16 %v360, %v359
      %v368 = vpack.c.b16 %v362, %v361
      %v369 = vpack.c.b16 %v364, %v363
      %v370 = vpack.c.b16 %v366, %v365
      %v391 = vunpack.c.l.b16 %v335
      %v392 = vunpack.c.l.b16 %v336
      %v393 = vunpack.c.l.b16 %v337
      %v394 = vunpack.c.l.b16 %v338
      %v395 = vunpack.c.l.b16 %v339
      %v396 = vunpack.c.l.b16 %v340
      %v397 = vunpack.c.l.b16 %v341
      %v398 = vunpack.c.l.b16 %v342
      %v399 = vunpack.c.l.b16 %v343
      %v400 = vunpack.c.l.b16 %v344
      %v401 = vunpack.c.l.b16 %v345
      %v402 = vunpack.c.l.b16 %v346
      %v403 = vunpack.c.l.b16 %v347
      %v404 = vunpack.c.l.b16 %v348
      %v405 = vunpack.c.l.b16 %v349
      %v406 = vunpack.c.l.b16 %v350
      %v407 = vpack.c.b16 %v392, %v391
      %v408 = vpack.c.b16 %v394, %v393
      %v409 = vpack.c.b16 %v396, %v395
      %v410 = vpack.c.b16 %v398, %v397
      %v411 = vpack.c.b16 %v400, %v399
      %v412 = vpack.c.b16 %v402, %v401
      %v413 = vpack.c.b16 %v404, %v403
      %v414 = vpack.c.b16 %v406, %v405
      %423 = vmatprep.subr.bf16.mxu0 0
      %424 = vmatpush1.bf16.msra.mxu0 %v414
      %425 = vmatprep.subr.bf16.mxu0 0
      %426 = vmatpush1.bf16.msra.mxu0 %v413
      %427 = vmatprep.subr.bf16.mxu0 0
      %428 = vmatpush1.bf16.msra.mxu0 %v412
      %429 = vmatprep.subr.bf16.mxu0 0
      %430 = vmatpush1.bf16.msra.mxu0 %v411
      %431 = vmatprep.subr.bf16.mxu0 0
      %432 = vmatpush1.bf16.msra.mxu0 %v410
      %433 = vmatprep.subr.bf16.mxu0 0
      %434 = vmatpush1.bf16.msra.mxu0 %v409
      %435 = vmatprep.subr.bf16.mxu0 0
      %436 = vmatpush1.bf16.msra.mxu0 %v408
      %437 = vmatprep.subr.bf16.mxu0 0
      %438 = vmatpush1.bf16.msra.mxu0 %v407
      %439 = vmatprep.subr.bf16.mxu0 0
      %440 = vmatpush2.bf16.msra.mxu0 0
      %441 = vmatprep.subr.bf16.mxu0 0
      %442 = vmatpush2.bf16.msra.mxu0 0
      %443 = vmatprep.subr.bf16.mxu0 0
      %444 = vmatpush2.bf16.msra.mxu0 0
      %445 = vmatprep.subr.bf16.mxu0 0
      %446 = vmatpush2.bf16.msra.mxu0 0
      %447 = vmatprep.subr.bf16.mxu0 0
      %448 = vmatpush2.bf16.msra.mxu0 0
      %449 = vmatprep.subr.bf16.mxu0 0
      %450 = vmatpush2.bf16.msra.mxu0 0
      %451 = vmatprep.subr.bf16.mxu0 0
      %452 = vmatpush2.bf16.msra.mxu0 0
      %453 = vmatprep.subr.bf16.mxu0 0
      %454 = vmatpush2.bf16.msra.mxu0 0
      %455 = vmatprep.mubr.bf16.mxu0 0
      %456 = vmatmul.mubr.bf16.gmra.mxu0 %v367
      %v457 = vpop.f32.mrf.mxu0
      %v458 = vadd.f32 0.0, %v457
      %v459 = vpop.f32.mrf.mxu0
      %v460 = vpop.f32.mrf.mxu0
      %v461 = vadd.f32 0.0, %v460
      %v462 = vpop.f32.mrf.mxu0
      %463 = vmatprep.mubr.bf16.mxu0 0
      %464 = vmatmul.mubr.bf16.gmra.mxu0 %v368
      %v465 = vpop.f32.mrf.mxu0
      %v466 = vadd.f32 0.0, %v465
      %v467 = vpop.f32.mrf.mxu0
      %v468 = vpop.f32.mrf.mxu0
      %v469 = vadd.f32 0.0, %v468
      %v470 = vpop.f32.mrf.mxu0
      %471 = vmatprep.mubr.bf16.mxu0 0
      %472 = vmatmul.mubr.bf16.gmra.mxu0 %v369
      %v473 = vpop.f32.mrf.mxu0
      %v474 = vadd.f32 0.0, %v473
      %v475 = vpop.f32.mrf.mxu0
      %v476 = vpop.f32.mrf.mxu0
      %v477 = vadd.f32 0.0, %v476
      %v478 = vpop.f32.mrf.mxu0
      %479 = vmatprep.mubr.bf16.mxu0 0
      %480 = vmatmul.mubr.bf16.gmra.mxu0 %v370
      %v481 = vpop.f32.mrf.mxu0
      %v482 = vadd.f32 0.0, %v481
      %v483 = vpop.f32.mrf.mxu0
      %v484 = vpop.f32.mrf.mxu0
      %v485 = vadd.f32 0.0, %v484
      %v486 = vpop.f32.mrf.mxu0
      %487 = vdwg.mxu0
      %v488 = vadd.f32 %v458, %v461
      %v489 = vadd.f32 %v488, %v466
      %v490 = vadd.f32 %v489, %v469
      %v491 = vadd.f32 %v490, %v474
      %v492 = vadd.f32 %v491, %v477
      %v493 = vadd.f32 %v492, %v482
      %v494 = vadd.f32 %v493, %v485
      %v495 = vrot.slane %v494, 4
      %v496 = vadd.f32 %v494, %v495
      %v497 = vrot.slane %v496, 2
      %v498 = vadd.f32 %v496, %v497
      %v499 = vrot.slane %v498, 1
      %v500 = vadd.f32 %v498, %v499
      %v501 = vmul.f32 %v458, %v458
      %v502 = vmul.f32 %v461, %v461
      %v503 = vmul.f32 %v466, %v466
      %v504 = vmul.f32 %v469, %v469
      %v505 = vmul.f32 %v474, %v474
      %v506 = vmul.f32 %v477, %v477
      %v507 = vmul.f32 %v482, %v482
      %v508 = vmul.f32 %v485, %v485
      %v509 = vadd.f32 %v501, %v502
      %v510 = vadd.f32 %v509, %v503
      %v511 = vadd.f32 %v510, %v504
      %v512 = vadd.f32 %v511, %v505
      %v513 = vadd.f32 %v512, %v506
      %v514 = vadd.f32 %v513, %v507
      %v515 = vadd.f32 %v514, %v508
      %v516 = vrot.slane %v515, 4
      %v517 = vadd.f32 %v515, %v516
      %v518 = vrot.slane %v517, 2
      %v519 = vadd.f32 %v517, %v518
      %v520 = vrot.slane %v519, 1
      %v521 = vadd.f32 %v519, %v520
      %vm522 = vcmask 1040384
      %v523 = vsel %vm522, %v500, %v521
      %vm524 = vcmask 1041408
      %v525 = vsel %vm524, %v523, 0.0
      %526 = vst [vmem:[%s325] sm:$0xff] %v525
      %v527 = vld [vmem:[%s301] sm:$0x1]
      %v529 = vlaneseq
      %v530 = vshrl.u32 %v529, 7
      %v531 = vsub.s32 0, %v530
      %v532 = vrot.slane %v527, %v531
      %v534 = vadd.f32 %v458, %v532
      %v535 = vadd.f32 %v461, %v532
      %v536 = vadd.f32 %v466, %v532
      %v537 = vadd.f32 %v469, %v532
      %v538 = vadd.f32 %v474, %v532
      %v539 = vadd.f32 %v477, %v532
      %v540 = vadd.f32 %v482, %v532
      %v541 = vadd.f32 %v485, %v532
      %v542 = vpack.c.bf16 %v535, %v534
      %v543 = vpack.c.bf16 %v537, %v536
      %v544 = vpack.c.bf16 %v539, %v538
      %v545 = vpack.c.bf16 %v541, %v540
      %v550 = vunpack.c.l.b16 %v542
      %v551 = vunpack.c.h.b16 %v542
      %v552 = vunpack.c.l.b16 %v543
      %v553 = vunpack.c.h.b16 %v543
      %v554 = vunpack.c.l.b16 %v544
      %v555 = vunpack.c.h.b16 %v544
      %v556 = vunpack.c.l.b16 %v545
      %v557 = vunpack.c.h.b16 %v545
      %v558 = vpack.c.b16 %v550, %v550
      %v559 = vpack.c.b16 %v551, %v551
      %v560 = vpack.c.b16 %v552, %v552
      %v561 = vpack.c.b16 %v553, %v553
      %v562 = vpack.c.b16 %v554, %v554
      %v563 = vpack.c.b16 %v555, %v555
      %v564 = vpack.c.b16 %v556, %v556
      %v565 = vpack.c.b16 %v557, %v557
      %574 = vst [vmem:[%s313] sm:$0xf] %v558
      %575 = vst [vmem:[%s313 + $0x4] sm:$0xf] %v559
      %576 = vst [vmem:[%s313 + $0x8] sm:$0xf] %v560
      %577 = vst [vmem:[%s313 + $0xc] sm:$0xf] %v561
      %578 = vst [vmem:[%s313 + $0x10] sm:$0xf] %v562
      %579 = vst [vmem:[%s313 + $0x14] sm:$0xf] %v563
      %580 = vst [vmem:[%s313 + $0x18] sm:$0xf] %v564
      %581 = vst [vmem:[%s313 + $0x1c] sm:$0xf] %v565
      %s582 = smul.u32 8, %s22
      %p583 = scmp.lt.s32.totalorder %s21, 0
      %s584 = scalar_select %p583, %s21, 0
      %p585 = scmp.lt.s32.totalorder %s582, 15
      %s586 = scalar_select %p585, %s582, 15
      %p587 = scmp.lt.s32.totalorder %s23, 0
      %s588 = scalar_select %p587, %s23, 0
      %s589 = sadd.s32 %s588, %s586
      %s590 = smul.addr %s584, 16
      %s591 = sadd.s32 %s589, %s590
      %s592 = smul.addr %s591, 4
      %s593 = scalar_lea.vmem %s3, %s592
      %p594 = scmp.lt.s32.totalorder %s21, 0
      %s595 = scalar_select %p594, %s21, 0
      %p596 = scmp.lt.s32.totalorder %s22, 1
      %s597 = scalar_select %p596, %s22, 1
      %p598 = scmp.lt.s32.totalorder %s23, 0
      %s599 = scalar_select %p598, %s23, 0
      %s600 = sadd.s32 %s599, %s597
      %s601 = smul.addr %s595, 2
      %s602 = sadd.s32 %s600, %s601
      %s603 = smul.addr %s602, 8
      %s604 = scalar_lea.vmem %s4, %s603
      // Predicated region
      $region33: #{_lambda_.11} parent=31 // pred_check
        %p605 = pneg %p139
      $region34: #{_lambda_.11} parent=31 // pred_check_branch
        %607 = sbr.rel (%p605) target = $region36
      $region35: #{_lambda_.11} parent=31 // pred_region
        %s608 = smul.u32 8, %s22
      $region36: #{_lambda_.11} parent=31 // pred_fallthru
        _
      // Predicated region
      $region37: #{_lambda_.11} parent=31 // pred_check
        %p609 = pneg %p169
      $region38: #{_lambda_.11} parent=31 // pred_check_branch
        %611 = sbr.rel (%p609) target = $region40
      $region39: #{_lambda_.11} parent=31 // pred_region
        _
      $region40: #{_lambda_.11} parent=31 // pred_fallthru
        _
    $region32: #{_lambda_.11} parent=5 // pred_fallthru
      _
    %p612 = scmp.le.s32.totalorder 2, %s11
    // Predicated region
    $region41: #{_lambda_.11} parent=5 // pred_check
      %p613 = pneg %p612
    $region42: #{_lambda_.11} parent=5 // pred_check_branch
      %615 = sbr.rel (%p613) target = $region44
    $region43: #{_lambda_.11} parent=5 // pred_region
      %s616 = ssub.s32 %s11, 2
      // Predicated region
      $region45: #{_lambda_.11} parent=43 // pred_check
        %p617 = pneg %p145
      $region46: #{_lambda_.11} parent=43 // pred_check_branch
        %619 = sbr.rel (%p617) target = $region48
      $region47: #{_lambda_.11} parent=43 // pred_region
        %s620 = smul.u32 8, %s25
        %p621 = scmp.lt.s32.totalorder %s24, 0
        %s622 = scalar_select %p621, %s24, 0
        %p623 = scmp.lt.s32.totalorder %s620, 15
        %s624 = scalar_select %p623, %s620, 15
        %p625 = scmp.lt.s32.totalorder %s26, 0
        %s626 = scalar_select %p625, %s26, 0
        %s627 = sadd.s32 %s626, %s624
        %s628 = smul.addr %s622, 16
        %s629 = sadd.s32 %s627, %s628
        %s630 = smul.addr %s629, 4
        %s631 = scalar_lea.vmem %s3, %s630
      $region48: #{_lambda_.11} parent=43 // pred_fallthru
        _
      // Predicated region
      $region49: #{_lambda_.11} parent=43 // pred_check
        %p632 = pneg %p175
      $region50: #{_lambda_.11} parent=43 // pred_check_branch
        %634 = sbr.rel (%p632) target = $region52
      $region51: #{_lambda_.11} parent=43 // pred_region
        %p635 = scmp.lt.s32.totalorder %s24, 0
        %s636 = scalar_select %p635, %s24, 0
        %p637 = scmp.lt.s32.totalorder %s25, 1
        %s638 = scalar_select %p637, %s25, 1
        %p639 = scmp.lt.s32.totalorder %s26, 0
        %s640 = scalar_select %p639, %s26, 0
        %s641 = sadd.s32 %s640, %s638
        %s642 = smul.addr %s636, 2
        %s643 = sadd.s32 %s641, %s642
        %s644 = smul.addr %s643, 8
        %s645 = scalar_lea.vmem %s4, %s644
      $region52: #{_lambda_.11} parent=43 // pred_fallthru
        _
    $region44: #{_lambda_.11} parent=5 // pred_fallthru
      _
  $region6: #{_lambda_.11} parent=0 // loop_footer
    %s15 = sadd.s32 1, %s11
  $region7: #{_lambda_.11} parent=0 // loop_footer_branch
    %10 = sbr.rel target = $region3
  $region8: #{_lambda_.11} parent=0 // loop_exit
    _

// kernel: _lambda_.12
$region0: #{_lambda_.12}
  #allocation0 [shape = 'u32[]', space=smem, size = 0x4, offset = 0x4, fixed_abs, tag = 'smem constant byte address 0x4 - core index']
  #allocation1 [shape = 'u32[144,128]{1,0:T(1,128)}', space=vmem, size = 0x12000, scoped, tag = 'internal scratch']
  %s0 = inlined_call_operand.vmem [shape: bf16[1,32,256], index: 0, kind: input, shape index: {}]
  %s1 = inlined_call_operand.vmem [shape: bf16[1,256,128], index: 1, kind: input, shape index: {}]
  %s2 = inlined_call_operand.vmem [shape: f32[1,128], index: 2, kind: input, shape index: {}]
  %s3 = inlined_call_operand.vmem [shape: bf16[1,32,128], index: 3, kind: output, shape index: {0}]
  %s4 = inlined_call_operand.vmem [shape: f32[1,16,128], index: 4, kind: output, shape index: {1}]
  %5 = xla_tuple %s3, %s4
  %s6 = sld [smem:[#allocation0]]
  $region53: #{_lambda_.12} parent=0
    _
  %s8 = ssub.s32 1, %s6
  %s9 = scalar_select 0, %s8, %s6
  loop: start=0, step=1, limit=4
  $region2: #{_lambda_.12} parent=0 // loop_pre_header
    _
  $region3: #{_lambda_.12} parent=0 // loop_header
    %s11 = sphi 0, %s15
    %p12 = scmp.ge.s32.totalorder %s11, 4
    %s18 = sphi 0, %s37
    %s19 = sphi 0, %s33
    %s20 = sphi 0, %s29
    %s21 = sphi 0, %s18
    %s22 = sphi 0, %s19
    %s23 = sphi 0, %s20
    %s24 = sphi 0, %s21
    %s25 = sphi 0, %s22
    %s26 = sphi 0, %s23
    %s42 = sphi 0, %s44
    %s45 = sphi 0, %s42
    %s46 = sphi 0, %s45
    %s62 = sphi 0, %s46
    %s70 = sphi 0, %s72
    %s73 = sphi 0, %s70
    %s74 = sphi 0, %s73
    %s90 = sphi 0, %s74
    %s96 = sphi 0, %s98
    %s99 = sphi 0, %s96
    %s100 = sphi 0, %s99
    %s116 = sphi 0, %s100
    %s126 = sphi 0, %s128
    %s129 = sphi 0, %s126
    %s130 = sphi 0, %s129
    %s146 = sphi 0, %s130
    %s156 = sphi 0, %s158
    %s159 = sphi 0, %s156
    %s160 = sphi 0, %s159
    %s176 = sphi 0, %s160
  $region4: #{_lambda_.12} parent=0 // loop_header_branch
    %14 = sbr.rel (%p12) target = $region8
  $region5: #{_lambda_.12} parent=0 // loop_body
    %s16 = ssub.s32 %s11, 1
    %s17 = ssub.s32 %s11, 2
    %s27 = sadd.s32 1, %s20
    %p28 = scmp.ge.s32.totalorder %s27, 1
    %s29 = scalar_select %p28, 0, %s27
    %s30 = sadd.s32 1, %s19
    %s31 = scalar_select %p28, %s30, %s19
    %p32 = scmp.ge.s32.totalorder %s31, 2
    %s33 = scalar_select %p32, 0, %s31
    %s34 = sadd.s32 1, %s18
    %s35 = scalar_select %p32, %s34, %s18
    %p36 = scmp.ge.s32.totalorder %s35, 1
    %s37 = scalar_select %p36, 0, %s35
    %s38 = ssub.s32 %s18, %s37
    %s39 = ssub.s32 %s19, %s33
    %s40 = sor.u32 %s38, %s39
    %p41 = scmp.eq.s32.totalorder %s40, 0
    %s43 = sadd.s32 %s42, 1
    %s44 = scalar_select %p41, %s42, %s43
    %p47 = pneg %p41
    %p48 = scmp.eq.s32.totalorder %s11, 1
    %p49 = por %p47, %p48
    %p50 = scmp.ne.s32.totalorder %s42, %s45
    %p51 = scmp.eq.s32.totalorder %s11, 0
    %p52 = por %p50, %p51
    %p53 = scmp.ne.s32.totalorder %s42, %s45
    %p54 = scmp.eq.s32.totalorder %s16, 1
    %p55 = por %p53, %p54
    %p56 = scmp.ne.s32.totalorder %s45, %s46
    %p57 = scmp.eq.s32.totalorder %s16, 0
    %p58 = por %p56, %p57
    %p59 = scmp.ne.s32.totalorder %s45, %s46
    %p60 = scmp.eq.s32.totalorder %s17, 1
    %p61 = por %p59, %p60
    %p63 = scmp.ne.s32.totalorder %s46, %s62
    %p64 = scmp.eq.s32.totalorder %s17, 0
    %p65 = por %p63, %p64
    %s66 = ssub.s32 %s18, %s37
    %s67 = ssub.s32 %s20, %s29
    %s68 = sor.u32 %s66, %s67
    %p69 = scmp.eq.s32.totalorder %s68, 0
    %s71 = sadd.s32 %s70, 1
    %s72 = scalar_select %p69, %s70, %s71
    %p75 = pneg %p69
    %p76 = scmp.eq.s32.totalorder %s11, 1
    %p77 = por %p75, %p76
    %p78 = scmp.ne.s32.totalorder %s70, %s73
    %p79 = scmp.eq.s32.totalorder %s11, 0
    %p80 = por %p78, %p79
    %p81 = scmp.ne.s32.totalorder %s70, %s73
    %p82 = scmp.eq.s32.totalorder %s16, 1
    %p83 = por %p81, %p82
    %p84 = scmp.ne.s32.totalorder %s73, %s74
    %p85 = scmp.eq.s32.totalorder %s16, 0
    %p86 = por %p84, %p85
    %p87 = scmp.ne.s32.totalorder %s73, %s74
    %p88 = scmp.eq.s32.totalorder %s17, 1
    %p89 = por %p87, %p88
    %p91 = scmp.ne.s32.totalorder %s74, %s90
    %p92 = scmp.eq.s32.totalorder %s17, 0
    %p93 = por %p91, %p92
    %s94 = ssub.s32 %s20, %s29
    %p95 = scmp.eq.s32.totalorder %s94, 0
    %s97 = sadd.s32 %s96, 1
    %s98 = scalar_select %p95, %s96, %s97
    %p101 = pneg %p95
    %p102 = scmp.eq.s32.totalorder %s11, 1
    %p103 = por %p101, %p102
    %p104 = scmp.ne.s32.totalorder %s96, %s99
    %p105 = scmp.eq.s32.totalorder %s11, 0
    %p106 = por %p104, %p105
    %p107 = scmp.ne.s32.totalorder %s96, %s99
    %p108 = scmp.eq.s32.totalorder %s16, 1
    %p109 = por %p107, %p108
    %p110 = scmp.ne.s32.totalorder %s99, %s100
    %p111 = scmp.eq.s32.totalorder %s16, 0
    %p112 = por %p110, %p111
    %p113 = scmp.ne.s32.totalorder %s99, %s100
    %p114 = scmp.eq.s32.totalorder %s17, 1
    %p115 = por %p113, %p114
    %p117 = scmp.ne.s32.totalorder %s100, %s116
    %p118 = scmp.eq.s32.totalorder %s17, 0
    %p119 = por %p117, %p118
    %s120 = ssub.s32 %s18, %s37
    %s121 = ssub.s32 %s19, %s33
    %s122 = sor.u32 %s120, %s121
    %s123 = ssub.s32 %s20, %s29
    %s124 = sor.u32 %s122, %s123
    %p125 = scmp.eq.s32.totalorder %s124, 0
    %s127 = sadd.s32 %s126, 1
    %s128 = scalar_select %p125, %s126, %s127
    %p131 = pneg %p125
    %p132 = scmp.eq.s32.totalorder %s11, 1
    %p133 = por %p131, %p132
    %p134 = scmp.ne.s32.totalorder %s126, %s129
    %p135 = scmp.eq.s32.totalorder %s11, 0
    %p136 = por %p134, %p135
    %p137 = scmp.ne.s32.totalorder %s126, %s129
    %p138 = scmp.eq.s32.totalorder %s16, 1
    %p139 = por %p137, %p138
    %p140 = scmp.ne.s32.totalorder %s129, %s130
    %p141 = scmp.eq.s32.totalorder %s16, 0
    %p142 = por %p140, %p141
    %p143 = scmp.ne.s32.totalorder %s129, %s130
    %p144 = scmp.eq.s32.totalorder %s17, 1
    %p145 = por %p143, %p144
    %p147 = scmp.ne.s32.totalorder %s130, %s146
    %p148 = scmp.eq.s32.totalorder %s17, 0
    %p149 = por %p147, %p148
    %s150 = ssub.s32 %s18, %s37
    %s151 = ssub.s32 %s19, %s33
    %s152 = sor.u32 %s150, %s151
    %s153 = ssub.s32 %s20, %s29
    %s154 = sor.u32 %s152, %s153
    %p155 = scmp.eq.s32.totalorder %s154, 0
    %s157 = sadd.s32 %s156, 1
    %s158 = scalar_select %p155, %s156, %s157
    %p161 = pneg %p155
    %p162 = scmp.eq.s32.totalorder %s11, 1
    %p163 = por %p161, %p162
    %p164 = scmp.ne.s32.totalorder %s156, %s159
    %p165 = scmp.eq.s32.totalorder %s11, 0
    %p166 = por %p164, %p165
    %p167 = scmp.ne.s32.totalorder %s156, %s159
    %p168 = scmp.eq.s32.totalorder %s16, 1
    %p169 = por %p167, %p168
    %p170 = scmp.ne.s32.totalorder %s159, %s160
    %p171 = scmp.eq.s32.totalorder %s16, 0
    %p172 = por %p170, %p171
    %p173 = scmp.ne.s32.totalorder %s159, %s160
    %p174 = scmp.eq.s32.totalorder %s17, 1
    %p175 = por %p173, %p174
    %p177 = scmp.ne.s32.totalorder %s160, %s176
    %p178 = scmp.eq.s32.totalorder %s17, 0
    %p179 = por %p177, %p178
    %p180 = scmp.le.s32.totalorder 1, %s11
    %p181 = scmp.lt.s32.totalorder %s11, 3
    %p182 = pnand %p180, %p181
    %p183 = pneg %p182
    // Predicated region
    $region9: #{_lambda_.12} parent=5 // pred_check
      _
    $region10: #{_lambda_.12} parent=5 // pred_check_branch
      %185 = sbr.rel (%p182) target = $region12
    $region11: #{_lambda_.12} parent=5 // pred_region
      %s186 = ssub.s32 %s11, 1
      // Predicated region
      $region13: #{_lambda_.12} parent=11 // pred_check
        %p187 = pneg %p86
      $region14: #{_lambda_.12} parent=11 // pred_check_branch
        %189 = sbr.rel (%p187) target = $region16
      $region15: #{_lambda_.12} parent=11 // pred_region
        %p190 = scmp.lt.s32.totalorder %s21, 0
        %s191 = scalar_select %p190, %s21, 0
        %p192 = scmp.lt.s32.totalorder %s23, 0
        %s193 = scalar_select %p192, %s23, 0
        %s194 = smul.addr %s191, 32
        %s195 = sadd.s32 %s193, %s194
        %s196 = smul.addr %s195, 4
        %s197 = scalar_lea.vmem %s1, %s196
      $region16: #{_lambda_.12} parent=11 // pred_fallthru
        _
      // Predicated region
      $region17: #{_lambda_.12} parent=11 // pred_check
        %p198 = pneg %p112
      $region18: #{_lambda_.12} parent=11 // pred_check_branch
        %200 = sbr.rel (%p198) target = $region20
      $region19: #{_lambda_.12} parent=11 // pred_region
        %p201 = scmp.lt.s32.totalorder %s23, 0
        %s202 = scalar_select %p201, %s23, 0
        %s203 = scalar_lea.vmem %s2, %s202
      $region20: #{_lambda_.12} parent=11 // pred_fallthru
        _
    $region12: #{_lambda_.12} parent=5 // pred_fallthru
      _
    %p204 = scmp.lt.s32.totalorder %s11, 2
    // Predicated region
    $region21: #{_lambda_.12} parent=5 // pred_check
      %p205 = pneg %p204
    $region22: #{_lambda_.12} parent=5 // pred_check_branch
      %207 = sbr.rel (%p205) target = $region24
    $region23: #{_lambda_.12} parent=5 // pred_region
      // Predicated region
      $region25: #{_lambda_.12} parent=23 // pred_check
        %p208 = pneg %p52
      $region26: #{_lambda_.12} parent=23 // pred_check_branch
        %210 = sbr.rel (%p208) target = $region28
      $region27: #{_lambda_.12} parent=23 // pred_region
        %s211 = smul.u32 2, %s19
        %p212 = scmp.lt.s32.totalorder %s18, 0
        %s213 = scalar_select %p212, %s18, 0
        %p214 = scmp.lt.s32.totalorder %s211, 3
        %s215 = scalar_select %p214, %s211, 3
        %s216 = smul.addr %s215, 2
        %s217 = smul.addr %s213, 8
        %s218 = sadd.s32 %s216, %s217
        %s219 = smul.addr %s218, 4
        %s220 = scalar_lea.vmem %s0, %s219
        %s221 = smul.u32 2, %s19
      $region28: #{_lambda_.12} parent=23 // pred_fallthru
        _
    $region24: #{_lambda_.12} parent=5 // pred_fallthru
      _
    %p222 = scmp.le.s32.totalorder 1, %s11
    %p223 = scmp.lt.s32.totalorder %s11, 3
    %p224 = pnand %p222, %p223
    %p225 = pneg %p224
    // Predicated region
    $region29: #{_lambda_.12} parent=5 // pred_check
      _
    $region30: #{_lambda_.12} parent=5 // pred_check_branch
      %227 = sbr.rel (%p224) target = $region32
    $region31: #{_lambda_.12} parent=5 // pred_region
      %s228 = ssub.s32 %s11, 1
      %s229 = smul.u32 2, %s22
      %p230 = scmp.lt.s32.totalorder %s21, 0
      %s231 = scalar_select %p230, %s21, 0
      %p232 = scmp.lt.s32.totalorder %s229, 3
      %s233 = scalar_select %p232, %s229, 3
      %s234 = smul.addr %s233, 2
      %s235 = smul.addr %s231, 8
      %s236 = sadd.s32 %s234, %s235
      %s237 = smul.addr %s236, 4
      %s238 = scalar_lea.vmem %s0, %s237
      %p239 = pneg %p58
      %p240 = pneg %p55
      %p241 = scmp.lt.s32.totalorder %s21, 0
      %s242 = scalar_select %p241, %s21, 0
      %p243 = scmp.lt.s32.totalorder %s23, 0
      %s244 = scalar_select %p243, %s23, 0
      %s245 = smul.addr %s242, 32
      %s246 = sadd.s32 %s244, %s245
      %s247 = smul.addr %s246, 4
      %s248 = scalar_lea.vmem %s1, %s247
      %p249 = pneg %p86
      %p250 = pneg %p83
      %p251 = scmp.lt.s32.totalorder %s23, 0
      %s252 = scalar_select %p251, %s23, 0
      %s253 = scalar_lea.vmem %s2, %s252
      %p254 = pneg %p112
      %p255 = pneg %p109
      %p256 = pneg %p142
      %p257 = pneg %p139
      %s258 = smul.u32 2, %s22
      %p259 = scmp.lt.s32.totalorder %s21, 0
      %s260 = scalar_select %p259, %s21, 0
      %p261 = scmp.lt.s32.totalorder %s258, 3
      %s262 = scalar_select %p261, %s258, 3
      %p263 = scmp.lt.s32.totalorder %s23, 0
      %s264 = scalar_select %p263, %s23, 0
      %s265 = sadd.s32 %s264, %s262
      %s266 = smul.addr %s260, 4
      %s267 = sadd.s32 %s265, %s266
      %s268 = smul.addr %s267, 4
      %s269 = scalar_lea.vmem %s3, %s268
      %p270 = pneg %p172
      %p271 = pneg %p169
      %p272 = scmp.lt.s32.totalorder %s21, 0
      %s273 = scalar_select %p272, %s21, 0
      %p274 = scmp.lt.s32.totalorder %s22, 1
      %s275 = scalar_select %p274, %s22, 1
      %p276 = scmp.lt.s32.totalorder %s23, 0
      %s277 = scalar_select %p276, %s23, 0
      %s278 = sadd.s32 %s277, %s275
      %s279 = smul.addr %s273, 2
      %s280 = sadd.s32 %s278, %s279
      %s281 = smul.addr %s280, 8
      %s282 = scalar_lea.vmem %s4, %s281
      %s283 = smul.u32 2, %s22
      %p284 = scmp.lt.s32.totalorder %s21, 0
      %s285 = scalar_select %p284, %s21, 0
      %p286 = scmp.lt.s32.totalorder %s283, 3
      %s287 = scalar_select %p286, %s283, 3
      %s288 = smul.addr %s287, 2
      %s289 = smul.addr %s285, 8
      %s290 = sadd.s32 %s288, %s289
      %s291 = smul.addr %s290, 4
      %s292 = scalar_lea.vmem %s0, %s291
      %s293 = smul.u32 2, %s22
      %p294 = scmp.lt.s32.totalorder %s21, 0
      %s295 = scalar_select %p294, %s21, 0
      %p296 = scmp.lt.s32.totalorder %s23, 0
      %s297 = scalar_select %p296, %s23, 0
      %s298 = smul.addr %s295, 32
      %s299 = sadd.s32 %s297, %s298
      %s300 = smul.addr %s299, 4
      %s301 = scalar_lea.vmem %s1, %s300
      %p302 = scmp.lt.s32.totalorder %s23, 0
      %s303 = scalar_select %p302, %s23, 0
      %s304 = scalar_lea.vmem %s2, %s303
      %s305 = smul.u32 2, %s22
      %p306 = scmp.lt.s32.totalorder %s21, 0
      %s307 = scalar_select %p306, %s21, 0
      %p308 = scmp.lt.s32.totalorder %s305, 3
      %s309 = scalar_select %p308, %s305, 3
      %p310 = scmp.lt.s32.totalorder %s23, 0
      %s311 = scalar_select %p310, %s23, 0
      %s312 = sadd.s32 %s311, %s309
      %s313 = smul.addr %s307, 4
      %s314 = sadd.s32 %s312, %s313
      %s315 = smul.addr %s314, 4
      %s316 = scalar_lea.vmem %s3, %s315
      %s317 = smul.u32 2, %s22
      %p318 = scmp.lt.s32.totalorder %s21, 0
      %s319 = scalar_select %p318, %s21, 0
      %p320 = scmp.lt.s32.totalorder %s22, 1
      %s321 = scalar_select %p320, %s22, 1
      %p322 = scmp.lt.s32.totalorder %s23, 0
      %s323 = scalar_select %p322, %s23, 0
      %s324 = sadd.s32 %s323, %s321
      %s325 = smul.addr %s319, 2
      %s326 = sadd.s32 %s324, %s325
      %s327 = smul.addr %s326, 8
      %s328 = scalar_lea.vmem %s4, %s327
      %v330 = vld [vmem:[%s292] sm:$0xff]
      %v331 = vld [vmem:[%s292 + $0x8] sm:$0xff]
      %v332 = vld [vmem:[%s301] sm:$0xf]
      %v333 = vld [vmem:[%s301 + $0x4] sm:$0xf]
      %v334 = vld [vmem:[%s301 + $0x8] sm:$0xf]
      %v335 = vld [vmem:[%s301 + $0xc] sm:$0xf]
      %v336 = vld [vmem:[%s301 + $0x10] sm:$0xf]
      %v337 = vld [vmem:[%s301 + $0x14] sm:$0xf]
      %v338 = vld [vmem:[%s301 + $0x18] sm:$0xf]
      %v339 = vld [vmem:[%s301 + $0x1c] sm:$0xf]
      %v340 = vld [vmem:[%s301 + $0x20] sm:$0xf]
      %v341 = vld [vmem:[%s301 + $0x24] sm:$0xf]
      %v342 = vld [vmem:[%s301 + $0x28] sm:$0xf]
      %v343 = vld [vmem:[%s301 + $0x2c] sm:$0xf]
      %v344 = vld [vmem:[%s301 + $0x30] sm:$0xf]
      %v345 = vld [vmem:[%s301 + $0x34] sm:$0xf]
      %v346 = vld [vmem:[%s301 + $0x38] sm:$0xf]
      %v347 = vld [vmem:[%s301 + $0x3c] sm:$0xf]
      %v348 = vld [vmem:[%s301 + $0x40] sm:$0xf]
      %v349 = vld [vmem:[%s301 + $0x44] sm:$0xf]
      %v350 = vld [vmem:[%s301 + $0x48] sm:$0xf]
      %v351 = vld [vmem:[%s301 + $0x4c] sm:$0xf]
      %v352 = vld [vmem:[%s301 + $0x50] sm:$0xf]
      %v353 = vld [vmem:[%s301 + $0x54] sm:$0xf]
      %v354 = vld [vmem:[%s301 + $0x58] sm:$0xf]
      %v355 = vld [vmem:[%s301 + $0x5c] sm:$0xf]
      %v356 = vld [vmem:[%s301 + $0x60] sm:$0xf]
      %v357 = vld [vmem:[%s301 + $0x64] sm:$0xf]
      %v358 = vld [vmem:[%s301 + $0x68] sm:$0xf]
      %v359 = vld [vmem:[%s301 + $0x6c] sm:$0xf]
      %v360 = vld [vmem:[%s301 + $0x70] sm:$0xf]
      %v361 = vld [vmem:[%s301 + $0x74] sm:$0xf]
      %v362 = vld [vmem:[%s301 + $0x78] sm:$0xf]
      %v363 = vld [vmem:[%s301 + $0x7c] sm:$0xf]
      %v366 = vunpack.c.l.b16 %v330
      %v367 = vunpack.c.h.b16 %v330
      %v368 = vunpack.c.l.b16 %v331
      %v369 = vunpack.c.h.b16 %v331
      %v370 = vpack.c.b16 %v368, %v366
      %v371 = vpack.c.b16 %v369, %v367
      %v406 = vunpack.c.l.b16 %v332
      %v407 = vunpack.c.l.b16 %v333
      %v408 = vunpack.c.l.b16 %v334
      %v409 = vunpack.c.l.b16 %v335
      %v410 = vunpack.c.l.b16 %v336
      %v411 = vunpack.c.l.b16 %v337
      %v412 = vunpack.c.l.b16 %v338
      %v413 = vunpack.c.l.b16 %v339
      %v414 = vunpack.c.l.b16 %v340
      %v415 = vunpack.c.l.b16 %v341
      %v416 = vunpack.c.l.b16 %v342
      %v417 = vunpack.c.l.b16 %v343
      %v418 = vunpack.c.l.b16 %v344
      %v419 = vunpack.c.l.b16 %v345
      %v420 = vunpack.c.l.b16 %v346
      %v421 = vunpack.c.l.b16 %v347
      %v422 = vunpack.c.l.b16 %v348
      %v423 = vunpack.c.l.b16 %v349
      %v424 = vunpack.c.l.b16 %v350
      %v425 = vunpack.c.l.b16 %v351
      %v426 = vunpack.c.l.b16 %v352
      %v427 = vunpack.c.l.b16 %v353
      %v428 = vunpack.c.l.b16 %v354
      %v429 = vunpack.c.l.b16 %v355
      %v430 = vunpack.c.l.b16 %v356
      %v431 = vunpack.c.l.b16 %v357
      %v432 = vunpack.c.l.b16 %v358
      %v433 = vunpack.c.l.b16 %v359
      %v434 = vunpack.c.l.b16 %v360
      %v435 = vunpack.c.l.b16 %v361
      %v436 = vunpack.c.l.b16 %v362
      %v437 = vunpack.c.l.b16 %v363
      %v438 = vpack.c.b16 %v407, %v406
      %v439 = vpack.c.b16 %v409, %v408
      %v440 = vpack.c.b16 %v411, %v410
      %v441 = vpack.c.b16 %v413, %v412
      %v442 = vpack.c.b16 %v415, %v414
      %v443 = vpack.c.b16 %v417, %v416
      %v444 = vpack.c.b16 %v419, %v418
      %v445 = vpack.c.b16 %v421, %v420
      %v446 = vpack.c.b16 %v423, %v422
      %v447 = vpack.c.b16 %v425, %v424
      %v448 = vpack.c.b16 %v427, %v426
      %v449 = vpack.c.b16 %v429, %v428
      %v450 = vpack.c.b16 %v431, %v430
      %v451 = vpack.c.b16 %v433, %v432
      %v452 = vpack.c.b16 %v435, %v434
      %v453 = vpack.c.b16 %v437, %v436
      %470 = vmatprep.subr.bf16.mxu0 0
      %471 = vmatpush1.bf16.msra.mxu0 %v445
      %472 = vmatprep.subr.bf16.mxu0 0
      %473 = vmatpush1.bf16.msra.mxu0 %v444
      %474 = vmatprep.subr.bf16.mxu0 0
      %475 = vmatpush1.bf16.msra.mxu0 %v443
      %476 = vmatprep.subr.bf16.mxu0 0
      %477 = vmatpush1.bf16.msra.mxu0 %v442
      %478 = vmatprep.subr.bf16.mxu0 0
      %479 = vmatpush1.bf16.msra.mxu0 %v441
      %480 = vmatprep.subr.bf16.mxu0 0
      %481 = vmatpush1.bf16.msra.mxu0 %v440
      %482 = vmatprep.subr.bf16.mxu0 0
      %483 = vmatpush1.bf16.msra.mxu0 %v439
      %484 = vmatprep.subr.bf16.mxu0 0
      %485 = vmatpush1.bf16.msra.mxu0 %v438
      %486 = vmatprep.subr.bf16.mxu0 0
      %487 = vmatpush2.bf16.msra.mxu0 %v453
      %488 = vmatprep.subr.bf16.mxu0 0
      %489 = vmatpush2.bf16.msra.mxu0 %v452
      %490 = vmatprep.subr.bf16.mxu0 0
      %491 = vmatpush2.bf16.msra.mxu0 %v451
      %492 = vmatprep.subr.bf16.mxu0 0
      %493 = vmatpush2.bf16.msra.mxu0 %v450
      %494 = vmatprep.subr.bf16.mxu0 0
      %495 = vmatpush2.bf16.msra.mxu0 %v449
      %496 = vmatprep.subr.bf16.mxu0 0
      %497 = vmatpush2.bf16.msra.mxu0 %v448
      %498 = vmatprep.subr.bf16.mxu0 0
      %499 = vmatpush2.bf16.msra.mxu0 %v447
      %500 = vmatprep.subr.bf16.mxu0 0
      %501 = vmatpush2.bf16.msra.mxu0 %v446
      %502 = vmatprep.mubr.bf16.mxu0 %v371
      %503 = vmatmul.mubr.bf16.gmra.mxu0 %v370
      %v504 = vpop.f32.mrf.mxu0
      %v505 = vadd.f32 0.0, %v504
      %v506 = vpop.f32.mrf.mxu0
      %v507 = vpop.f32.mrf.mxu0
      %v508 = vadd.f32 0.0, %v507
      %v509 = vpop.f32.mrf.mxu0
      %510 = vdwg.mxu0
      %v511 = vadd.f32 %v505, %v508
      %v512 = vrot.slane %v511, 4
      %v513 = vadd.f32 %v511, %v512
      %v514 = vrot.slane %v513, 2
      %v515 = vadd.f32 %v513, %v514
      %v516 = vrot.slane %v515, 1
      %v517 = vadd.f32 %v515, %v516
      %v518 = vmul.f32 %v505, %v505
      %v519 = vmul.f32 %v508, %v508
      %v520 = vadd.f32 %v518, %v519
      %v521 = vrot.slane %v520, 4
      %v522 = vadd.f32 %v520, %v521
      %v523 = vrot.slane %v522, 2
      %v524 = vadd.f32 %v522, %v523
      %v525 = vrot.slane %v524, 1
      %v526 = vadd.f32 %v524, %v525
      %vm527 = vcmask 1040384
      %v528 = vsel %vm527, %v517, %v526
      %vm529 = vcmask 1041408
      %v530 = vsel %vm529, %v528, 0.0
      %531 = vst [vmem:[%s328] sm:$0xff] %v530
      %v532 = vld [vmem:[%s304] sm:$0x1]
      %v534 = vlaneseq
      %v535 = vshrl.u32 %v534, 7
      %v536 = vsub.s32 0, %v535
      %v537 = vrot.slane %v532, %v536
      %v539 = vadd.f32 %v505, %v537
      %v540 = vadd.f32 %v508, %v537
      %v541 = vpack.c.bf16 %v540, %v539
      %v543 = vunpack.c.l.b16 %v541
      %v544 = vunpack.c.h.b16 %v541
      %v545 = vpack.c.b16 %v543, %v543
      %v546 = vpack.c.b16 %v544, %v544
      %549 = vst [vmem:[%s316] sm:$0xf] %v545
      %550 = vst [vmem:[%s316 + $0x4] sm:$0xf] %v546
      %s551 = smul.u32 2, %s22
      %p552 = scmp.lt.s32.totalorder %s21, 0
      %s553 = scalar_select %p552, %s21, 0
      %p554 = scmp.lt.s32.totalorder %s551, 3
      %s555 = scalar_select %p554, %s551, 3
      %p556 = scmp.lt.s32.totalorder %s23, 0
      %s557 = scalar_select %p556, %s23, 0
      %s558 = sadd.s32 %s557, %s555
      %s559 = smul.addr %s553, 4
      %s560 = sadd.s32 %s558, %s559
      %s561 = smul.addr %s560, 4
      %s562 = scalar_lea.vmem %s3, %s561
      %p563 = scmp.lt.s32.totalorder %s21, 0
      %s564 = scalar_select %p563, %s21, 0
      %p565 = scmp.lt.s32.totalorder %s22, 1
      %s566 = scalar_select %p565, %s22, 1
      %p567 = scmp.lt.s32.totalorder %s23, 0
      %s568 = scalar_select %p567, %s23, 0
      %s569 = sadd.s32 %s568, %s566
      %s570 = smul.addr %s564, 2
      %s571 = sadd.s32 %s569, %s570
      %s572 = smul.addr %s571, 8
      %s573 = scalar_lea.vmem %s4, %s572
      // Predicated region
      $region33: #{_lambda_.12} parent=31 // pred_check
        %p574 = pneg %p139
      $region34: #{_lambda_.12} parent=31 // pred_check_branch
        %576 = sbr.rel (%p574) target = $region36
      $region35: #{_lambda_.12} parent=31 // pred_region
        %s577 = smul.u32 2, %s22
      $region36: #{_lambda_.12} parent=31 // pred_fallthru
        _
      // Predicated region
      $region37: #{_lambda_.12} parent=31 // pred_check
        %p578 = pneg %p169
      $region38: #{_lambda_.12} parent=31 // pred_check_branch
        %580 = sbr.rel (%p578) target = $region40
      $region39: #{_lambda_.12} parent=31 // pred_region
        _
      $region40: #{_lambda_.12} parent=31 // pred_fallthru
        _
    $region32: #{_lambda_.12} parent=5 // pred_fallthru
      _
    %p581 = scmp.le.s32.totalorder 2, %s11
    // Predicated region
    $region41: #{_lambda_.12} parent=5 // pred_check
      %p582 = pneg %p581
    $region42: #{_lambda_.12} parent=5 // pred_check_branch
      %584 = sbr.rel (%p582) target = $region44
    $region43: #{_lambda_.12} parent=5 // pred_region
      %s585 = ssub.s32 %s11, 2
      // Predicated region
      $region45: #{_lambda_.12} parent=43 // pred_check
        %p586 = pneg %p145
      $region46: #{_lambda_.12} parent=43 // pred_check_branch
        %588 = sbr.rel (%p586) target = $region48
      $region47: #{_lambda_.12} parent=43 // pred_region
        %s589 = smul.u32 2, %s25
        %p590 = scmp.lt.s32.totalorder %s24, 0
        %s591 = scalar_select %p590, %s24, 0
        %p592 = scmp.lt.s32.totalorder %s589, 3
        %s593 = scalar_select %p592, %s589, 3
        %p594 = scmp.lt.s32.totalorder %s26, 0
        %s595 = scalar_select %p594, %s26, 0
        %s596 = sadd.s32 %s595, %s593
        %s597 = smul.addr %s591, 4
        %s598 = sadd.s32 %s596, %s597
        %s599 = smul.addr %s598, 4
        %s600 = scalar_lea.vmem %s3, %s599
      $region48: #{_lambda_.12} parent=43 // pred_fallthru
        _
      // Predicated region
      $region49: #{_lambda_.12} parent=43 // pred_check
        %p601 = pneg %p175
      $region50: #{_lambda_.12} parent=43 // pred_check_branch
        %603 = sbr.rel (%p601) target = $region52
      $region51: #{_lambda_.12} parent=43 // pred_region
        %p604 = scmp.lt.s32.totalorder %s24, 0
        %s605 = scalar_select %p604, %s24, 0
        %p606 = scmp.lt.s32.totalorder %s25, 1
        %s607 = scalar_select %p606, %s25, 1
        %p608 = scmp.lt.s32.totalorder %s26, 0
        %s609 = scalar_select %p608, %s26, 0
        %s610 = sadd.s32 %s609, %s607
        %s611 = smul.addr %s605, 2
        %s612 = sadd.s32 %s610, %s611
        %s613 = smul.addr %s612, 8
        %s614 = scalar_lea.vmem %s4, %s613
      $region52: #{_lambda_.12} parent=43 // pred_fallthru
        _
    $region44: #{_lambda_.12} parent=5 // pred_fallthru
      _
  $region6: #{_lambda_.12} parent=0 // loop_footer
    %s15 = sadd.s32 1, %s11
  $region7: #{_lambda_.12} parent=0 // loop_footer_branch
    %10 = sbr.rel target = $region3
  $region8: #{_lambda_.12} parent=0 // loop_exit
    _

// kernel: _lambda_.13
$region0: #{_lambda_.13}
  #allocation0 [shape = 'u32[]', space=smem, size = 0x4, offset = 0x4, fixed_abs, tag = 'smem constant byte address 0x4 - core index']
  #allocation1 [shape = 'u32[144,128]{1,0:T(1,128)}', space=vmem, size = 0x12000, scoped, tag = 'internal scratch']
  %s0 = inlined_call_operand.vmem [shape: bf16[1,16,512], index: 0, kind: input, shape index: {}]
  %s1 = inlined_call_operand.vmem [shape: bf16[1,512,128], index: 1, kind: input, shape index: {}]
  %s2 = inlined_call_operand.vmem [shape: f32[1,128], index: 2, kind: input, shape index: {}]
  %s3 = inlined_call_operand.vmem [shape: bf16[1,16,128], index: 3, kind: output, shape index: {0}]
  %s4 = inlined_call_operand.vmem [shape: f32[1,8,128], index: 4, kind: output, shape index: {1}]
  %5 = xla_tuple %s3, %s4
  %s6 = sld [smem:[#allocation0]]
  $region30: #{_lambda_.13} parent=0
    _
  %s8 = ssub.s32 1, %s6
  %s9 = scalar_select 0, %s8, %s6
  // Predicated region
  $region2: #{_lambda_.13} parent=0 // pred_check
    _
  $region3: #{_lambda_.13} parent=0 // pred_check_branch
    %11 = sbr.rel (0) target = $region5
  $region4: #{_lambda_.13} parent=0 // pred_region
    _
  $region5: #{_lambda_.13} parent=0 // pred_fallthru
    _
  // Predicated region
  $region6: #{_lambda_.13} parent=0 // pred_check
    _
  $region7: #{_lambda_.13} parent=0 // pred_check_branch
    %13 = sbr.rel (0) target = $region9
  $region8: #{_lambda_.13} parent=0 // pred_region
    _
  $region9: #{_lambda_.13} parent=0 // pred_fallthru
    _
  // Predicated region
  $region10: #{_lambda_.13} parent=0 // pred_check
    _
  $region11: #{_lambda_.13} parent=0 // pred_check_branch
    %15 = sbr.rel (0) target = $region13
  $region12: #{_lambda_.13} parent=0 // pred_region
    _
  $region13: #{_lambda_.13} parent=0 // pred_fallthru
    _
  %v17 = vld [vmem:[%s0] sm:$0xff]
  %v18 = vld [vmem:[%s0 + $0x8] sm:$0xff]
  %v19 = vld [vmem:[%s0 + $0x10] sm:$0xff]
  %v20 = vld [vmem:[%s0 + $0x18] sm:$0xff]
  %v21 = vld [vmem:[%s1] sm:$0xf]
  %v22 = vld [vmem:[%s1 + $0x4] sm:$0xf]
  %v23 = vld [vmem:[%s1 + $0x8] sm:$0xf]
  %v24 = vld [vmem:[%s1 + $0xc] sm:$0xf]
  %v25 = vld [vmem:[%s1 + $0x10] sm:$0xf]
  %v26 = vld [vmem:[%s1 + $0x14] sm:$0xf]
  %v27 = vld [vmem:[%s1 + $0x18] sm:$0xf]
  %v28 = vld [vmem:[%s1 + $0x1c] sm:$0xf]
  %v29 = vld [vmem:[%s1 + $0x20] sm:$0xf]
  %v30 = vld [vmem:[%s1 + $0x24] sm:$0xf]
  %v31 = vld [vmem:[%s1 + $0x28] sm:$0xf]
  %v32 = vld [vmem:[%s1 + $0x2c] sm:$0xf]
  %v33 = vld [vmem:[%s1 + $0x30] sm:$0xf]
  %v34 = vld [vmem:[%s1 + $0x34] sm:$0xf]
  %v35 = vld [vmem:[%s1 + $0x38] sm:$0xf]
  %v36 = vld [vmem:[%s1 + $0x3c] sm:$0xf]
  %v37 = vld [vmem:[%s1 + $0x40] sm:$0xf]
  %v38 = vld [vmem:[%s1 + $0x44] sm:$0xf]
  %v39 = vld [vmem:[%s1 + $0x48] sm:$0xf]
  %v40 = vld [vmem:[%s1 + $0x4c] sm:$0xf]
  %v41 = vld [vmem:[%s1 + $0x50] sm:$0xf]
  %v42 = vld [vmem:[%s1 + $0x54] sm:$0xf]
  %v43 = vld [vmem:[%s1 + $0x58] sm:$0xf]
  %v44 = vld [vmem:[%s1 + $0x5c] sm:$0xf]
  %v45 = vld [vmem:[%s1 + $0x60] sm:$0xf]
  %v46 = vld [vmem:[%s1 + $0x64] sm:$0xf]
  %v47 = vld [vmem:[%s1 + $0x68] sm:$0xf]
  %v48 = vld [vmem:[%s1 + $0x6c] sm:$0xf]
  %v49 = vld [vmem:[%s1 + $0x70] sm:$0xf]
  %v50 = vld [vmem:[%s1 + $0x74] sm:$0xf]
  %v51 = vld [vmem:[%s1 + $0x78] sm:$0xf]
  %v52 = vld [vmem:[%s1 + $0x7c] sm:$0xf]
  %v53 = vld [vmem:[%s1 + $0x80] sm:$0xf]
  %v54 = vld [vmem:[%s1 + $0x84] sm:$0xf]
  %v55 = vld [vmem:[%s1 + $0x88] sm:$0xf]
  %v56 = vld [vmem:[%s1 + $0x8c] sm:$0xf]
  %v57 = vld [vmem:[%s1 + $0x90] sm:$0xf]
  %v58 = vld [vmem:[%s1 + $0x94] sm:$0xf]
  %v59 = vld [vmem:[%s1 + $0x98] sm:$0xf]
  %v60 = vld [vmem:[%s1 + $0x9c] sm:$0xf]
  %v61 = vld [vmem:[%s1 + $0xa0] sm:$0xf]
  %v62 = vld [vmem:[%s1 + $0xa4] sm:$0xf]
  %v63 = vld [vmem:[%s1 + $0xa8] sm:$0xf]
  %v64 = vld [vmem:[%s1 + $0xac] sm:$0xf]
  %v65 = vld [vmem:[%s1 + $0xb0] sm:$0xf]
  %v66 = vld [vmem:[%s1 + $0xb4] sm:$0xf]
  %v67 = vld [vmem:[%s1 + $0xb8] sm:$0xf]
  %v68 = vld [vmem:[%s1 + $0xbc] sm:$0xf]
  %v69 = vld [vmem:[%s1 + $0xc0] sm:$0xf]
  %v70 = vld [vmem:[%s1 + $0xc4] sm:$0xf]
  %v71 = vld [vmem:[%s1 + $0xc8] sm:$0xf]
  %v72 = vld [vmem:[%s1 + $0xcc] sm:$0xf]
  %v73 = vld [vmem:[%s1 + $0xd0] sm:$0xf]
  %v74 = vld [vmem:[%s1 + $0xd4] sm:$0xf]
  %v75 = vld [vmem:[%s1 + $0xd8] sm:$0xf]
  %v76 = vld [vmem:[%s1 + $0xdc] sm:$0xf]
  %v77 = vld [vmem:[%s1 + $0xe0] sm:$0xf]
  %v78 = vld [vmem:[%s1 + $0xe4] sm:$0xf]
  %v79 = vld [vmem:[%s1 + $0xe8] sm:$0xf]
  %v80 = vld [vmem:[%s1 + $0xec] sm:$0xf]
  %v81 = vld [vmem:[%s1 + $0xf0] sm:$0xf]
  %v82 = vld [vmem:[%s1 + $0xf4] sm:$0xf]
  %v83 = vld [vmem:[%s1 + $0xf8] sm:$0xf]
  %v84 = vld [vmem:[%s1 + $0xfc] sm:$0xf]
  %v89 = vunpack.c.l.b16 %v17
  %v90 = vunpack.c.h.b16 %v17
  %v91 = vunpack.c.l.b16 %v18
  %v92 = vunpack.c.h.b16 %v18
  %v93 = vunpack.c.l.b16 %v19
  %v94 = vunpack.c.h.b16 %v19
  %v95 = vunpack.c.l.b16 %v20
  %v96 = vunpack.c.h.b16 %v20
  %v97 = vpack.c.b16 %v93, %v89
  %v98 = vpack.c.b16 %v94, %v90
  %v99 = vpack.c.b16 %v95, %v91
  %v100 = vpack.c.b16 %v96, %v92
  %v169 = vunpack.c.l.b16 %v21
  %v170 = vunpack.c.l.b16 %v22
  %v171 = vunpack.c.l.b16 %v23
  %v172 = vunpack.c.l.b16 %v24
  %v173 = vunpack.c.l.b16 %v25
  %v174 = vunpack.c.l.b16 %v26
  %v175 = vunpack.c.l.b16 %v27
  %v176 = vunpack.c.l.b16 %v28
  %v177 = vunpack.c.l.b16 %v29
  %v178 = vunpack.c.l.b16 %v30
  %v179 = vunpack.c.l.b16 %v31
  %v180 = vunpack.c.l.b16 %v32
  %v181 = vunpack.c.l.b16 %v33
  %v182 = vunpack.c.l.b16 %v34
  %v183 = vunpack.c.l.b16 %v35
  %v184 = vunpack.c.l.b16 %v36
  %v185 = vunpack.c.l.b16 %v37
  %v186 = vunpack.c.l.b16 %v38
  %v187 = vunpack.c.l.b16 %v39
  %v188 = vunpack.c.l.b16 %v40
  %v189 = vunpack.c.l.b16 %v41
  %v190 = vunpack.c.l.b16 %v42
  %v191 = vunpack.c.l.b16 %v43
  %v192 = vunpack.c.l.b16 %v44
  %v193 = vunpack.c.l.b16 %v45
  %v194 = vunpack.c.l.b16 %v46
  %v195 = vunpack.c.l.b16 %v47
  %v196 = vunpack.c.l.b16 %v48
  %v197 = vunpack.c.l.b16 %v49
  %v198 = vunpack.c.l.b16 %v50
  %v199 = vunpack.c.l.b16 %v51
  %v200 = vunpack.c.l.b16 %v52
  %v201 = vunpack.c.l.b16 %v53
  %v202 = vunpack.c.l.b16 %v54
  %v203 = vunpack.c.l.b16 %v55
  %v204 = vunpack.c.l.b16 %v56
  %v205 = vunpack.c.l.b16 %v57
  %v206 = vunpack.c.l.b16 %v58
  %v207 = vunpack.c.l.b16 %v59
  %v208 = vunpack.c.l.b16 %v60
  %v209 = vunpack.c.l.b16 %v61
  %v210 = vunpack.c.l.b16 %v62
  %v211 = vunpack.c.l.b16 %v63
  %v212 = vunpack.c.l.b16 %v64
  %v213 = vunpack.c.l.b16 %v65
  %v214 = vunpack.c.l.b16 %v66
  %v215 = vunpack.c.l.b16 %v67
  %v216 = vunpack.c.l.b16 %v68
  %v217 = vunpack.c.l.b16 %v69
  %v218 = vunpack.c.l.b16 %v70
  %v219 = vunpack.c.l.b16 %v71
  %v220 = vunpack.c.l.b16 %v72
  %v221 = vunpack.c.l.b16 %v73
  %v222 = vunpack.c.l.b16 %v74
  %v223 = vunpack.c.l.b16 %v75
  %v224 = vunpack.c.l.b16 %v76
  %v225 = vunpack.c.l.b16 %v77
  %v226 = vunpack.c.l.b16 %v78
  %v227 = vunpack.c.l.b16 %v79
  %v228 = vunpack.c.l.b16 %v80
  %v229 = vunpack.c.l.b16 %v81
  %v230 = vunpack.c.l.b16 %v82
  %v231 = vunpack.c.l.b16 %v83
  %v232 = vunpack.c.l.b16 %v84
  %v233 = vpack.c.b16 %v170, %v169
  %v234 = vpack.c.b16 %v172, %v171
  %v235 = vpack.c.b16 %v174, %v173
  %v236 = vpack.c.b16 %v176, %v175
  %v237 = vpack.c.b16 %v178, %v177
  %v238 = vpack.c.b16 %v180, %v179
  %v239 = vpack.c.b16 %v182, %v181
  %v240 = vpack.c.b16 %v184, %v183
  %v241 = vpack.c.b16 %v186, %v185
  %v242 = vpack.c.b16 %v188, %v187
  %v243 = vpack.c.b16 %v190, %v189
  %v244 = vpack.c.b16 %v192, %v191
  %v245 = vpack.c.b16 %v194, %v193
  %v246 = vpack.c.b16 %v196, %v195
  %v247 = vpack.c.b16 %v198, %v197
  %v248 = vpack.c.b16 %v200, %v199
  %v249 = vpack.c.b16 %v202, %v201
  %v250 = vpack.c.b16 %v204, %v203
  %v251 = vpack.c.b16 %v206, %v205
  %v252 = vpack.c.b16 %v208, %v207
  %v253 = vpack.c.b16 %v210, %v209
  %v254 = vpack.c.b16 %v212, %v211
  %v255 = vpack.c.b16 %v214, %v213
  %v256 = vpack.c.b16 %v216, %v215
  %v257 = vpack.c.b16 %v218, %v217
  %v258 = vpack.c.b16 %v220, %v219
  %v259 = vpack.c.b16 %v222, %v221
  %v260 = vpack.c.b16 %v224, %v223
  %v261 = vpack.c.b16 %v226, %v225
  %v262 = vpack.c.b16 %v228, %v227
  %v263 = vpack.c.b16 %v230, %v229
  %v264 = vpack.c.b16 %v232, %v231
  %297 = vmatprep.subr.bf16.mxu0 0
  %298 = vmatpush1.bf16.msra.mxu0 %v240
  %299 = vmatprep.subr.bf16.mxu0 0
  %300 = vmatpush1.bf16.msra.mxu0 %v239
  %301 = vmatprep.subr.bf16.mxu0 0
  %302 = vmatpush1.bf16.msra.mxu0 %v238
  %303 = vmatprep.subr.bf16.mxu0 0
  %304 = vmatpush1.bf16.msra.mxu0 %v237
  %305 = vmatprep.subr.bf16.mxu0 0
  %306 = vmatpush1.bf16.msra.mxu0 %v236
  %307 = vmatprep.subr.bf16.mxu0 0
  %308 = vmatpush1.bf16.msra.mxu0 %v235
  %309 = vmatprep.subr.bf16.mxu0 0
  %310 = vmatpush1.bf16.msra.mxu0 %v234
  %311 = vmatprep.subr.bf16.mxu0 0
  %312 = vmatpush1.bf16.msra.mxu0 %v233
  %313 = vmatprep.subr.bf16.mxu0 0
  %314 = vmatpush2.bf16.msra.mxu0 %v248
  %315 = vmatprep.subr.bf16.mxu0 0
  %316 = vmatpush2.bf16.msra.mxu0 %v247
  %317 = vmatprep.subr.bf16.mxu0 0
  %318 = vmatpush2.bf16.msra.mxu0 %v246
  %319 = vmatprep.subr.bf16.mxu0 0
  %320 = vmatpush2.bf16.msra.mxu0 %v245
  %321 = vmatprep.subr.bf16.mxu0 0
  %322 = vmatpush2.bf16.msra.mxu0 %v244
  %323 = vmatprep.subr.bf16.mxu0 0
  %324 = vmatpush2.bf16.msra.mxu0 %v243
  %325 = vmatprep.subr.bf16.mxu0 0
  %326 = vmatpush2.bf16.msra.mxu0 %v242
  %327 = vmatprep.subr.bf16.mxu0 0
  %328 = vmatpush2.bf16.msra.mxu0 %v241
  %329 = vmatprep.mubr.bf16.mxu0 %v98
  %330 = vmatmul.mubr.bf16.gmra.mxu0 %v97
  %v331 = vpop.f32.mrf.mxu0
  %v332 = vadd.f32 0.0, %v331
  %v333 = vpop.f32.mrf.mxu0
  %v334 = vpop.f32.mrf.mxu0
  %v335 = vadd.f32 0.0, %v334
  %v336 = vpop.f32.mrf.mxu0
  %337 = vdwg.mxu0
  %338 = vmatprep.subr.bf16.mxu0 0
  %339 = vmatpush1.bf16.msra.mxu0 %v256
  %340 = vmatprep.subr.bf16.mxu0 0
  %341 = vmatpush1.bf16.msra.mxu0 %v255
  %342 = vmatprep.subr.bf16.mxu0 0
  %343 = vmatpush1.bf16.msra.mxu0 %v254
  %344 = vmatprep.subr.bf16.mxu0 0
  %345 = vmatpush1.bf16.msra.mxu0 %v253
  %346 = vmatprep.subr.bf16.mxu0 0
  %347 = vmatpush1.bf16.msra.mxu0 %v252
  %348 = vmatprep.subr.bf16.mxu0 0
  %349 = vmatpush1.bf16.msra.mxu0 %v251
  %350 = vmatprep.subr.bf16.mxu0 0
  %351 = vmatpush1.bf16.msra.mxu0 %v250
  %352 = vmatprep.subr.bf16.mxu0 0
  %353 = vmatpush1.bf16.msra.mxu0 %v249
  %354 = vmatprep.subr.bf16.mxu0 0
  %355 = vmatpush2.bf16.msra.mxu0 %v264
  %356 = vmatprep.subr.bf16.mxu0 0
  %357 = vmatpush2.bf16.msra.mxu0 %v263
  %358 = vmatprep.subr.bf16.mxu0 0
  %359 = vmatpush2.bf16.msra.mxu0 %v262
  %360 = vmatprep.subr.bf16.mxu0 0
  %361 = vmatpush2.bf16.msra.mxu0 %v261
  %362 = vmatprep.subr.bf16.mxu0 0
  %363 = vmatpush2.bf16.msra.mxu0 %v260
  %364 = vmatprep.subr.bf16.mxu0 0
  %365 = vmatpush2.bf16.msra.mxu0 %v259
  %366 = vmatprep.subr.bf16.mxu0 0
  %367 = vmatpush2.bf16.msra.mxu0 %v258
  %368 = vmatprep.subr.bf16.mxu0 0
  %369 = vmatpush2.bf16.msra.mxu0 %v257
  %370 = vmatprep.mubr.bf16.mxu0 %v100
  %371 = vmatmul.mubr.bf16.gmra.mxu0 %v99
  %v372 = vpop.f32.mrf.mxu0
  %v373 = vadd.f32 %v332, %v372
  %v374 = vpop.f32.mrf.mxu0
  %v375 = vpop.f32.mrf.mxu0
  %v376 = vadd.f32 %v335, %v375
  %v377 = vpop.f32.mrf.mxu0
  %378 = vdwg.mxu0
  %v379 = vadd.f32 %v373, %v376
  %v380 = vrot.slane %v379, 4
  %v381 = vadd.f32 %v379, %v380
  %v382 = vrot.slane %v381, 2
  %v383 = vadd.f32 %v381, %v382
  %v384 = vrot.slane %v383, 1
  %v385 = vadd.f32 %v383, %v384
  %v386 = vmul.f32 %v373, %v373
  %v387 = vmul.f32 %v376, %v376
  %v388 = vadd.f32 %v386, %v387
  %v389 = vrot.slane %v388, 4
  %v390 = vadd.f32 %v388, %v389
  %v391 = vrot.slane %v390, 2
  %v392 = vadd.f32 %v390, %v391
  %v393 = vrot.slane %v392, 1
  %v394 = vadd.f32 %v392, %v393
  %vm395 = vcmask 1040384
  %v396 = vsel %vm395, %v385, %v394
  %vm397 = vcmask 1041408
  %v398 = vsel %vm397, %v396, 0.0
  %399 = vst [vmem:[%s4] sm:$0xff] %v398
  %v400 = vld [vmem:[%s2] sm:$0x1]
  %v402 = vlaneseq
  %v403 = vshrl.u32 %v402, 7
  %v404 = vsub.s32 0, %v403
  %v405 = vrot.slane %v400, %v404
  %v407 = vadd.f32 %v373, %v405
  %v408 = vadd.f32 %v376, %v405
  %v409 = vpack.c.bf16 %v408, %v407
  %v411 = vunpack.c.l.b16 %v409
  %v412 = vunpack.c.h.b16 %v409
  %v413 = vpack.c.b16 %v411, %v411
  %v414 = vpack.c.b16 %v412, %v412
  %417 = vst [vmem:[%s3] sm:$0xf] %v413
  %418 = vst [vmem:[%s3 + $0x4] sm:$0xf] %v414
  // Predicated region
  $region14: #{_lambda_.13} parent=0 // pred_check
    _
  $region15: #{_lambda_.13} parent=0 // pred_check_branch
    %420 = sbr.rel (0) target = $region17
  $region16: #{_lambda_.13} parent=0 // pred_region
    _
  $region17: #{_lambda_.13} parent=0 // pred_fallthru
    _
  // Predicated region
  $region18: #{_lambda_.13} parent=0 // pred_check
    _
  $region19: #{_lambda_.13} parent=0 // pred_check_branch
    %422 = sbr.rel (0) target = $region21
  $region20: #{_lambda_.13} parent=0 // pred_region
    _
  $region21: #{_lambda_.13} parent=0 // pred_fallthru
    _
  // Predicated region
  $region22: #{_lambda_.13} parent=0 // pred_check
    _
  $region23: #{_lambda_.13} parent=0 // pred_check_branch
    %424 = sbr.rel (0) target = $region25
  $region24: #{_lambda_.13} parent=0 // pred_region
    _
  $region25: #{_lambda_.13} parent=0 // pred_fallthru
    _
  // Predicated region
  $region26: #{_lambda_.13} parent=0 // pred_check
    _
  $region27: #{_lambda_.13} parent=0 // pred_check_branch
    %426 = sbr.rel (0) target = $region29
  $region28: #{_lambda_.13} parent=0 // pred_region
    _
  $region29: #{_lambda_.13} parent=0 // pred_fallthru
    _

// kernel: _lambda_.15
$region0: #{_lambda_.15}
  #allocation0 [shape = 'u32[]', space=smem, size = 0x4, offset = 0x4, fixed_abs, tag = 'smem constant byte address 0x4 - core index']
  #allocation1 [shape = 'u32[144,128]{1,0:T(1,128)}', space=vmem, size = 0x12000, scoped, tag = 'internal scratch']
  %s0 = inlined_call_operand.vmem [shape: bf16[4,16,256], index: 0, kind: input, shape index: {}]
  %s1 = inlined_call_operand.vmem [shape: bf16[4,256,128], index: 1, kind: input, shape index: {}]
  %s2 = inlined_call_operand.vmem [shape: f32[1,128], index: 2, kind: input, shape index: {}]
  %s3 = inlined_call_operand.vmem [shape: bf16[4,16,128], index: 3, kind: output, shape index: {0}]
  %s4 = inlined_call_operand.vmem [shape: f32[4,8,128], index: 4, kind: output, shape index: {1}]
  %5 = xla_tuple %s3, %s4
  %s6 = sld [smem:[#allocation0]]
  $region53: #{_lambda_.15} parent=0
    _
  %s8 = ssub.s32 1, %s6
  %s9 = scalar_select 0, %s8, %s6
  loop: start=0, step=1, limit=6
  $region2: #{_lambda_.15} parent=0 // loop_pre_header
    _
  $region3: #{_lambda_.15} parent=0 // loop_header
    %s11 = sphi 0, %s15
    %p12 = scmp.ge.s32.totalorder %s11, 6
    %s18 = sphi 0, %s37
    %s19 = sphi 0, %s33
    %s20 = sphi 0, %s29
    %s21 = sphi 0, %s18
    %s22 = sphi 0, %s19
    %s23 = sphi 0, %s20
    %s24 = sphi 0, %s21
    %s25 = sphi 0, %s22
    %s26 = sphi 0, %s23
    %s42 = sphi 0, %s44
    %s45 = sphi 0, %s42
    %s46 = sphi 0, %s45
    %s62 = sphi 0, %s46
    %s70 = sphi 0, %s72
    %s73 = sphi 0, %s70
    %s74 = sphi 0, %s73
    %s90 = sphi 0, %s74
    %s96 = sphi 0, %s98
    %s99 = sphi 0, %s96
    %s100 = sphi 0, %s99
    %s116 = sphi 0, %s100
    %s126 = sphi 0, %s128
    %s129 = sphi 0, %s126
    %s130 = sphi 0, %s129
    %s146 = sphi 0, %s130
    %s156 = sphi 0, %s158
    %s159 = sphi 0, %s156
    %s160 = sphi 0, %s159
    %s176 = sphi 0, %s160
  $region4: #{_lambda_.15} parent=0 // loop_header_branch
    %14 = sbr.rel (%p12) target = $region8
  $region5: #{_lambda_.15} parent=0 // loop_body
    %s16 = ssub.s32 %s11, 1
    %s17 = ssub.s32 %s11, 2
    %s27 = sadd.s32 1, %s20
    %p28 = scmp.ge.s32.totalorder %s27, 1
    %s29 = scalar_select %p28, 0, %s27
    %s30 = sadd.s32 1, %s19
    %s31 = scalar_select %p28, %s30, %s19
    %p32 = scmp.ge.s32.totalorder %s31, 1
    %s33 = scalar_select %p32, 0, %s31
    %s34 = sadd.s32 1, %s18
    %s35 = scalar_select %p32, %s34, %s18
    %p36 = scmp.ge.s32.totalorder %s35, 4
    %s37 = scalar_select %p36, 0, %s35
    %s38 = ssub.s32 %s18, %s37
    %s39 = ssub.s32 %s19, %s33
    %s40 = sor.u32 %s38, %s39
    %p41 = scmp.eq.s32.totalorder %s40, 0
    %s43 = sadd.s32 %s42, 1
    %s44 = scalar_select %p41, %s42, %s43
    %p47 = pneg %p41
    %p48 = scmp.eq.s32.totalorder %s11, 3
    %p49 = por %p47, %p48
    %p50 = scmp.ne.s32.totalorder %s42, %s45
    %p51 = scmp.eq.s32.totalorder %s11, 0
    %p52 = por %p50, %p51
    %p53 = scmp.ne.s32.totalorder %s42, %s45
    %p54 = scmp.eq.s32.totalorder %s16, 3
    %p55 = por %p53, %p54
    %p56 = scmp.ne.s32.totalorder %s45, %s46
    %p57 = scmp.eq.s32.totalorder %s16, 0
    %p58 = por %p56, %p57
    %p59 = scmp.ne.s32.totalorder %s45, %s46
    %p60 = scmp.eq.s32.totalorder %s17, 3
    %p61 = por %p59, %p60
    %p63 = scmp.ne.s32.totalorder %s46, %s62
    %p64 = scmp.eq.s32.totalorder %s17, 0
    %p65 = por %p63, %p64
    %s66 = ssub.s32 %s18, %s37
    %s67 = ssub.s32 %s20, %s29
    %s68 = sor.u32 %s66, %s67
    %p69 = scmp.eq.s32.totalorder %s68, 0
    %s71 = sadd.s32 %s70, 1
    %s72 = scalar_select %p69, %s70, %s71
    %p75 = pneg %p69
    %p76 = scmp.eq.s32.totalorder %s11, 3
    %p77 = por %p75, %p76
    %p78 = scmp.ne.s32.totalorder %s70, %s73
    %p79 = scmp.eq.s32.totalorder %s11, 0
    %p80 = por %p78, %p79
    %p81 = scmp.ne.s32.totalorder %s70, %s73
    %p82 = scmp.eq.s32.totalorder %s16, 3
    %p83 = por %p81, %p82
    %p84 = scmp.ne.s32.totalorder %s73, %s74
    %p85 = scmp.eq.s32.totalorder %s16, 0
    %p86 = por %p84, %p85
    %p87 = scmp.ne.s32.totalorder %s73, %s74
    %p88 = scmp.eq.s32.totalorder %s17, 3
    %p89 = por %p87, %p88
    %p91 = scmp.ne.s32.totalorder %s74, %s90
    %p92 = scmp.eq.s32.totalorder %s17, 0
    %p93 = por %p91, %p92
    %s94 = ssub.s32 %s20, %s29
    %p95 = scmp.eq.s32.totalorder %s94, 0
    %s97 = sadd.s32 %s96, 1
    %s98 = scalar_select %p95, %s96, %s97
    %p101 = pneg %p95
    %p102 = scmp.eq.s32.totalorder %s11, 3
    %p103 = por %p101, %p102
    %p104 = scmp.ne.s32.totalorder %s96, %s99
    %p105 = scmp.eq.s32.totalorder %s11, 0
    %p106 = por %p104, %p105
    %p107 = scmp.ne.s32.totalorder %s96, %s99
    %p108 = scmp.eq.s32.totalorder %s16, 3
    %p109 = por %p107, %p108
    %p110 = scmp.ne.s32.totalorder %s99, %s100
    %p111 = scmp.eq.s32.totalorder %s16, 0
    %p112 = por %p110, %p111
    %p113 = scmp.ne.s32.totalorder %s99, %s100
    %p114 = scmp.eq.s32.totalorder %s17, 3
    %p115 = por %p113, %p114
    %p117 = scmp.ne.s32.totalorder %s100, %s116
    %p118 = scmp.eq.s32.totalorder %s17, 0
    %p119 = por %p117, %p118
    %s120 = ssub.s32 %s18, %s37
    %s121 = ssub.s32 %s19, %s33
    %s122 = sor.u32 %s120, %s121
    %s123 = ssub.s32 %s20, %s29
    %s124 = sor.u32 %s122, %s123
    %p125 = scmp.eq.s32.totalorder %s124, 0
    %s127 = sadd.s32 %s126, 1
    %s128 = scalar_select %p125, %s126, %s127
    %p131 = pneg %p125
    %p132 = scmp.eq.s32.totalorder %s11, 3
    %p133 = por %p131, %p132
    %p134 = scmp.ne.s32.totalorder %s126, %s129
    %p135 = scmp.eq.s32.totalorder %s11, 0
    %p136 = por %p134, %p135
    %p137 = scmp.ne.s32.totalorder %s126, %s129
    %p138 = scmp.eq.s32.totalorder %s16, 3
    %p139 = por %p137, %p138
    %p140 = scmp.ne.s32.totalorder %s129, %s130
    %p141 = scmp.eq.s32.totalorder %s16, 0
    %p142 = por %p140, %p141
    %p143 = scmp.ne.s32.totalorder %s129, %s130
    %p144 = scmp.eq.s32.totalorder %s17, 3
    %p145 = por %p143, %p144
    %p147 = scmp.ne.s32.totalorder %s130, %s146
    %p148 = scmp.eq.s32.totalorder %s17, 0
    %p149 = por %p147, %p148
    %s150 = ssub.s32 %s18, %s37
    %s151 = ssub.s32 %s19, %s33
    %s152 = sor.u32 %s150, %s151
    %s153 = ssub.s32 %s20, %s29
    %s154 = sor.u32 %s152, %s153
    %p155 = scmp.eq.s32.totalorder %s154, 0
    %s157 = sadd.s32 %s156, 1
    %s158 = scalar_select %p155, %s156, %s157
    %p161 = pneg %p155
    %p162 = scmp.eq.s32.totalorder %s11, 3
    %p163 = por %p161, %p162
    %p164 = scmp.ne.s32.totalorder %s156, %s159
    %p165 = scmp.eq.s32.totalorder %s11, 0
    %p166 = por %p164, %p165
    %p167 = scmp.ne.s32.totalorder %s156, %s159
    %p168 = scmp.eq.s32.totalorder %s16, 3
    %p169 = por %p167, %p168
    %p170 = scmp.ne.s32.totalorder %s159, %s160
    %p171 = scmp.eq.s32.totalorder %s16, 0
    %p172 = por %p170, %p171
    %p173 = scmp.ne.s32.totalorder %s159, %s160
    %p174 = scmp.eq.s32.totalorder %s17, 3
    %p175 = por %p173, %p174
    %p177 = scmp.ne.s32.totalorder %s160, %s176
    %p178 = scmp.eq.s32.totalorder %s17, 0
    %p179 = por %p177, %p178
    %p180 = scmp.le.s32.totalorder 1, %s11
    %p181 = scmp.lt.s32.totalorder %s11, 5
    %p182 = pnand %p180, %p181
    %p183 = pneg %p182
    // Predicated region
    $region9: #{_lambda_.15} parent=5 // pred_check
      _
    $region10: #{_lambda_.15} parent=5 // pred_check_branch
      %185 = sbr.rel (%p182) target = $region12
    $region11: #{_lambda_.15} parent=5 // pred_region
      %s186 = ssub.s32 %s11, 1
      // Predicated region
      $region13: #{_lambda_.15} parent=11 // pred_check
        %p187 = pneg %p112
      $region14: #{_lambda_.15} parent=11 // pred_check_branch
        %189 = sbr.rel (%p187) target = $region16
      $region15: #{_lambda_.15} parent=11 // pred_region
        %p190 = scmp.lt.s32.totalorder %s23, 0
        %s191 = scalar_select %p190, %s23, 0
        %s192 = scalar_lea.vmem %s2, %s191
      $region16: #{_lambda_.15} parent=11 // pred_fallthru
        _
    $region12: #{_lambda_.15} parent=5 // pred_fallthru
      _
    %p193 = scmp.lt.s32.totalorder %s11, 4
    // Predicated region
    $region17: #{_lambda_.15} parent=5 // pred_check
      %p194 = pneg %p193
    $region18: #{_lambda_.15} parent=5 // pred_check_branch
      %196 = sbr.rel (%p194) target = $region20
    $region19: #{_lambda_.15} parent=5 // pred_region
      // Predicated region
      $region21: #{_lambda_.15} parent=19 // pred_check
        %p197 = pneg %p52
      $region22: #{_lambda_.15} parent=19 // pred_check_branch
        %199 = sbr.rel (%p197) target = $region24
      $region23: #{_lambda_.15} parent=19 // pred_region
        %s200 = smul.u32 2, %s19
        %p201 = scmp.lt.s32.totalorder %s18, 3
        %s202 = scalar_select %p201, %s18, 3
        %p203 = scmp.lt.s32.totalorder %s200, 1
        %s204 = scalar_select %p203, %s200, 1
        %s205 = smul.addr %s204, 2
        %s206 = smul.addr %s202, 4
        %s207 = sadd.s32 %s205, %s206
        %s208 = smul.addr %s207, 4
        %s209 = scalar_lea.vmem %s0, %s208
        %s210 = smul.u32 2, %s19
      $region24: #{_lambda_.15} parent=19 // pred_fallthru
        _
      // Predicated region
      $region25: #{_lambda_.15} parent=19 // pred_check
        %p211 = pneg %p80
      $region26: #{_lambda_.15} parent=19 // pred_check_branch
        %213 = sbr.rel (%p211) target = $region28
      $region27: #{_lambda_.15} parent=19 // pred_region
        %p214 = scmp.lt.s32.totalorder %s18, 3
        %s215 = scalar_select %p214, %s18, 3
        %p216 = scmp.lt.s32.totalorder %s20, 0
        %s217 = scalar_select %p216, %s20, 0
        %s218 = smul.addr %s215, 32
        %s219 = sadd.s32 %s217, %s218
        %s220 = smul.addr %s219, 4
        %s221 = scalar_lea.vmem %s1, %s220
      $region28: #{_lambda_.15} parent=19 // pred_fallthru
        _
    $region20: #{_lambda_.15} parent=5 // pred_fallthru
      _
    %p222 = scmp.le.s32.totalorder 1, %s11
    %p223 = scmp.lt.s32.totalorder %s11, 5
    %p224 = pnand %p222, %p223
    %p225 = pneg %p224
    // Predicated region
    $region29: #{_lambda_.15} parent=5 // pred_check
      _
    $region30: #{_lambda_.15} parent=5 // pred_check_branch
      %227 = sbr.rel (%p224) target = $region32
    $region31: #{_lambda_.15} parent=5 // pred_region
      %s228 = ssub.s32 %s11, 1
      %s229 = smul.u32 2, %s22
      %p230 = scmp.lt.s32.totalorder %s21, 3
      %s231 = scalar_select %p230, %s21, 3
      %p232 = scmp.lt.s32.totalorder %s229, 1
      %s233 = scalar_select %p232, %s229, 1
      %s234 = smul.addr %s233, 2
      %s235 = smul.addr %s231, 4
      %s236 = sadd.s32 %s234, %s235
      %s237 = smul.addr %s236, 4
      %s238 = scalar_lea.vmem %s0, %s237
      %p239 = pneg %p58
      %p240 = pneg %p55
      %p241 = scmp.lt.s32.totalorder %s21, 3
      %s242 = scalar_select %p241, %s21, 3
      %p243 = scmp.lt.s32.totalorder %s23, 0
      %s244 = scalar_select %p243, %s23, 0
      %s245 = smul.addr %s242, 32
      %s246 = sadd.s32 %s244, %s245
      %s247 = smul.addr %s246, 4
      %s248 = scalar_lea.vmem %s1, %s247
      %p249 = pneg %p86
      %p250 = pneg %p83
      %p251 = scmp.lt.s32.totalorder %s23, 0
      %s252 = scalar_select %p251, %s23, 0
      %s253 = scalar_lea.vmem %s2, %s252
      %p254 = pneg %p112
      %p255 = pneg %p109
      %p256 = pneg %p142
      %p257 = pneg %p139
      %s258 = smul.u32 2, %s22
      %p259 = scmp.lt.s32.totalorder %s21, 3
      %s260 = scalar_select %p259, %s21, 3
      %p261 = scmp.lt.s32.totalorder %s258, 1
      %s262 = scalar_select %p261, %s258, 1
      %p263 = scmp.lt.s32.totalorder %s23, 0
      %s264 = scalar_select %p263, %s23, 0
      %s265 = sadd.s32 %s264, %s262
      %s266 = smul.addr %s260, 2
      %s267 = sadd.s32 %s265, %s266
      %s268 = smul.addr %s267, 4
      %s269 = scalar_lea.vmem %s3, %s268
      %p270 = pneg %p172
      %p271 = pneg %p169
      %p272 = scmp.lt.s32.totalorder %s21, 3
      %s273 = scalar_select %p272, %s21, 3
      %p274 = scmp.lt.s32.totalorder %s22, 0
      %s275 = scalar_select %p274, %s22, 0
      %p276 = scmp.lt.s32.totalorder %s23, 0
      %s277 = scalar_select %p276, %s23, 0
      %s278 = sadd.s32 %s277, %s275
      %s279 = sadd.s32 %s278, %s273
      %s280 = smul.addr %s279, 8
      %s281 = scalar_lea.vmem %s4, %s280
      %s282 = smul.u32 2, %s22
      %p283 = scmp.lt.s32.totalorder %s21, 3
      %s284 = scalar_select %p283, %s21, 3
      %p285 = scmp.lt.s32.totalorder %s282, 1
      %s286 = scalar_select %p285, %s282, 1
      %s287 = smul.addr %s286, 2
      %s288 = smul.addr %s284, 4
      %s289 = sadd.s32 %s287, %s288
      %s290 = smul.addr %s289, 4
      %s291 = scalar_lea.vmem %s0, %s290
      %s292 = smul.u32 2, %s22
      %p293 = scmp.lt.s32.totalorder %s21, 3
      %s294 = scalar_select %p293, %s21, 3
      %p295 = scmp.lt.s32.totalorder %s23, 0
      %s296 = scalar_select %p295, %s23, 0
      %s297 = smul.addr %s294, 32
      %s298 = sadd.s32 %s296, %s297
      %s299 = smul.addr %s298, 4
      %s300 = scalar_lea.vmem %s1, %s299
      %p301 = scmp.lt.s32.totalorder %s23, 0
      %s302 = scalar_select %p301, %s23, 0
      %s303 = scalar_lea.vmem %s2, %s302
      %s304 = smul.u32 2, %s22
      %p305 = scmp.lt.s32.totalorder %s21, 3
      %s306 = scalar_select %p305, %s21, 3
      %p307 = scmp.lt.s32.totalorder %s304, 1
      %s308 = scalar_select %p307, %s304, 1
      %p309 = scmp.lt.s32.totalorder %s23, 0
      %s310 = scalar_select %p309, %s23, 0
      %s311 = sadd.s32 %s310, %s308
      %s312 = smul.addr %s306, 2
      %s313 = sadd.s32 %s311, %s312
      %s314 = smul.addr %s313, 4
      %s315 = scalar_lea.vmem %s3, %s314
      %s316 = smul.u32 2, %s22
      %p317 = scmp.lt.s32.totalorder %s21, 3
      %s318 = scalar_select %p317, %s21, 3
      %p319 = scmp.lt.s32.totalorder %s22, 0
      %s320 = scalar_select %p319, %s22, 0
      %p321 = scmp.lt.s32.totalorder %s23, 0
      %s322 = scalar_select %p321, %s23, 0
      %s323 = sadd.s32 %s322, %s320
      %s324 = sadd.s32 %s323, %s318
      %s325 = smul.addr %s324, 8
      %s326 = scalar_lea.vmem %s4, %s325
      %v328 = vld [vmem:[%s291] sm:$0xff]
      %v329 = vld [vmem:[%s291 + $0x8] sm:$0xff]
      %v330 = vld [vmem:[%s300] sm:$0xf]
      %v331 = vld [vmem:[%s300 + $0x4] sm:$0xf]
      %v332 = vld [vmem:[%s300 + $0x8] sm:$0xf]
      %v333 = vld [vmem:[%s300 + $0xc] sm:$0xf]
      %v334 = vld [vmem:[%s300 + $0x10] sm:$0xf]
      %v335 = vld [vmem:[%s300 + $0x14] sm:$0xf]
      %v336 = vld [vmem:[%s300 + $0x18] sm:$0xf]
      %v337 = vld [vmem:[%s300 + $0x1c] sm:$0xf]
      %v338 = vld [vmem:[%s300 + $0x20] sm:$0xf]
      %v339 = vld [vmem:[%s300 + $0x24] sm:$0xf]
      %v340 = vld [vmem:[%s300 + $0x28] sm:$0xf]
      %v341 = vld [vmem:[%s300 + $0x2c] sm:$0xf]
      %v342 = vld [vmem:[%s300 + $0x30] sm:$0xf]
      %v343 = vld [vmem:[%s300 + $0x34] sm:$0xf]
      %v344 = vld [vmem:[%s300 + $0x38] sm:$0xf]
      %v345 = vld [vmem:[%s300 + $0x3c] sm:$0xf]
      %v346 = vld [vmem:[%s300 + $0x40] sm:$0xf]
      %v347 = vld [vmem:[%s300 + $0x44] sm:$0xf]
      %v348 = vld [vmem:[%s300 + $0x48] sm:$0xf]
      %v349 = vld [vmem:[%s300 + $0x4c] sm:$0xf]
      %v350 = vld [vmem:[%s300 + $0x50] sm:$0xf]
      %v351 = vld [vmem:[%s300 + $0x54] sm:$0xf]
      %v352 = vld [vmem:[%s300 + $0x58] sm:$0xf]
      %v353 = vld [vmem:[%s300 + $0x5c] sm:$0xf]
      %v354 = vld [vmem:[%s300 + $0x60] sm:$0xf]
      %v355 = vld [vmem:[%s300 + $0x64] sm:$0xf]
      %v356 = vld [vmem:[%s300 + $0x68] sm:$0xf]
      %v357 = vld [vmem:[%s300 + $0x6c] sm:$0xf]
      %v358 = vld [vmem:[%s300 + $0x70] sm:$0xf]
      %v359 = vld [vmem:[%s300 + $0x74] sm:$0xf]
      %v360 = vld [vmem:[%s300 + $0x78] sm:$0xf]
      %v361 = vld [vmem:[%s300 + $0x7c] sm:$0xf]
      %v364 = vunpack.c.l.b16 %v328
      %v365 = vunpack.c.h.b16 %v328
      %v366 = vunpack.c.l.b16 %v329
      %v367 = vunpack.c.h.b16 %v329
      %v368 = vpack.c.b16 %v366, %v364
      %v369 = vpack.c.b16 %v367, %v365
      %v404 = vunpack.c.l.b16 %v330
      %v405 = vunpack.c.l.b16 %v331
      %v406 = vunpack.c.l.b16 %v332
      %v407 = vunpack.c.l.b16 %v333
      %v408 = vunpack.c.l.b16 %v334
      %v409 = vunpack.c.l.b16 %v335
      %v410 = vunpack.c.l.b16 %v336
      %v411 = vunpack.c.l.b16 %v337
      %v412 = vunpack.c.l.b16 %v338
      %v413 = vunpack.c.l.b16 %v339
      %v414 = vunpack.c.l.b16 %v340
      %v415 = vunpack.c.l.b16 %v341
      %v416 = vunpack.c.l.b16 %v342
      %v417 = vunpack.c.l.b16 %v343
      %v418 = vunpack.c.l.b16 %v344
      %v419 = vunpack.c.l.b16 %v345
      %v420 = vunpack.c.l.b16 %v346
      %v421 = vunpack.c.l.b16 %v347
      %v422 = vunpack.c.l.b16 %v348
      %v423 = vunpack.c.l.b16 %v349
      %v424 = vunpack.c.l.b16 %v350
      %v425 = vunpack.c.l.b16 %v351
      %v426 = vunpack.c.l.b16 %v352
      %v427 = vunpack.c.l.b16 %v353
      %v428 = vunpack.c.l.b16 %v354
      %v429 = vunpack.c.l.b16 %v355
      %v430 = vunpack.c.l.b16 %v356
      %v431 = vunpack.c.l.b16 %v357
      %v432 = vunpack.c.l.b16 %v358
      %v433 = vunpack.c.l.b16 %v359
      %v434 = vunpack.c.l.b16 %v360
      %v435 = vunpack.c.l.b16 %v361
      %v436 = vpack.c.b16 %v405, %v404
      %v437 = vpack.c.b16 %v407, %v406
      %v438 = vpack.c.b16 %v409, %v408
      %v439 = vpack.c.b16 %v411, %v410
      %v440 = vpack.c.b16 %v413, %v412
      %v441 = vpack.c.b16 %v415, %v414
      %v442 = vpack.c.b16 %v417, %v416
      %v443 = vpack.c.b16 %v419, %v418
      %v444 = vpack.c.b16 %v421, %v420
      %v445 = vpack.c.b16 %v423, %v422
      %v446 = vpack.c.b16 %v425, %v424
      %v447 = vpack.c.b16 %v427, %v426
      %v448 = vpack.c.b16 %v429, %v428
      %v449 = vpack.c.b16 %v431, %v430
      %v450 = vpack.c.b16 %v433, %v432
      %v451 = vpack.c.b16 %v435, %v434
      %468 = vmatprep.subr.bf16.mxu0 0
      %469 = vmatpush1.bf16.msra.mxu0 %v443
      %470 = vmatprep.subr.bf16.mxu0 0
      %471 = vmatpush1.bf16.msra.mxu0 %v442
      %472 = vmatprep.subr.bf16.mxu0 0
      %473 = vmatpush1.bf16.msra.mxu0 %v441
      %474 = vmatprep.subr.bf16.mxu0 0
      %475 = vmatpush1.bf16.msra.mxu0 %v440
      %476 = vmatprep.subr.bf16.mxu0 0
      %477 = vmatpush1.bf16.msra.mxu0 %v439
      %478 = vmatprep.subr.bf16.mxu0 0
      %479 = vmatpush1.bf16.msra.mxu0 %v438
      %480 = vmatprep.subr.bf16.mxu0 0
      %481 = vmatpush1.bf16.msra.mxu0 %v437
      %482 = vmatprep.subr.bf16.mxu0 0
      %483 = vmatpush1.bf16.msra.mxu0 %v436
      %484 = vmatprep.subr.bf16.mxu0 0
      %485 = vmatpush2.bf16.msra.mxu0 %v451
      %486 = vmatprep.subr.bf16.mxu0 0
      %487 = vmatpush2.bf16.msra.mxu0 %v450
      %488 = vmatprep.subr.bf16.mxu0 0
      %489 = vmatpush2.bf16.msra.mxu0 %v449
      %490 = vmatprep.subr.bf16.mxu0 0
      %491 = vmatpush2.bf16.msra.mxu0 %v448
      %492 = vmatprep.subr.bf16.mxu0 0
      %493 = vmatpush2.bf16.msra.mxu0 %v447
      %494 = vmatprep.subr.bf16.mxu0 0
      %495 = vmatpush2.bf16.msra.mxu0 %v446
      %496 = vmatprep.subr.bf16.mxu0 0
      %497 = vmatpush2.bf16.msra.mxu0 %v445
      %498 = vmatprep.subr.bf16.mxu0 0
      %499 = vmatpush2.bf16.msra.mxu0 %v444
      %500 = vmatprep.mubr.bf16.mxu0 %v369
      %501 = vmatmul.mubr.bf16.gmra.mxu0 %v368
      %v502 = vpop.f32.mrf.mxu0
      %v503 = vadd.f32 0.0, %v502
      %v504 = vpop.f32.mrf.mxu0
      %v505 = vpop.f32.mrf.mxu0
      %v506 = vadd.f32 0.0, %v505
      %v507 = vpop.f32.mrf.mxu0
      %508 = vdwg.mxu0
      %v509 = vadd.f32 %v503, %v506
      %v510 = vrot.slane %v509, 4
      %v511 = vadd.f32 %v509, %v510
      %v512 = vrot.slane %v511, 2
      %v513 = vadd.f32 %v511, %v512
      %v514 = vrot.slane %v513, 1
      %v515 = vadd.f32 %v513, %v514
      %v516 = vmul.f32 %v503, %v503
      %v517 = vmul.f32 %v506, %v506
      %v518 = vadd.f32 %v516, %v517
      %v519 = vrot.slane %v518, 4
      %v520 = vadd.f32 %v518, %v519
      %v521 = vrot.slane %v520, 2
      %v522 = vadd.f32 %v520, %v521
      %v523 = vrot.slane %v522, 1
      %v524 = vadd.f32 %v522, %v523
      %vm525 = vcmask 1040384
      %v526 = vsel %vm525, %v515, %v524
      %vm527 = vcmask 1041408
      %v528 = vsel %vm527, %v526, 0.0
      %529 = vst [vmem:[%s326] sm:$0xff] %v528
      %v530 = vld [vmem:[%s303] sm:$0x1]
      %v532 = vlaneseq
      %v533 = vshrl.u32 %v532, 7
      %v534 = vsub.s32 0, %v533
      %v535 = vrot.slane %v530, %v534
      %v537 = vadd.f32 %v503, %v535
      %v538 = vadd.f32 %v506, %v535
      %v539 = vpack.c.bf16 %v538, %v537
      %v541 = vunpack.c.l.b16 %v539
      %v542 = vunpack.c.h.b16 %v539
      %v543 = vpack.c.b16 %v541, %v541
      %v544 = vpack.c.b16 %v542, %v542
      %547 = vst [vmem:[%s315] sm:$0xf] %v543
      %548 = vst [vmem:[%s315 + $0x4] sm:$0xf] %v544
      %s549 = smul.u32 2, %s22
      %p550 = scmp.lt.s32.totalorder %s21, 3
      %s551 = scalar_select %p550, %s21, 3
      %p552 = scmp.lt.s32.totalorder %s549, 1
      %s553 = scalar_select %p552, %s549, 1
      %p554 = scmp.lt.s32.totalorder %s23, 0
      %s555 = scalar_select %p554, %s23, 0
      %s556 = sadd.s32 %s555, %s553
      %s557 = smul.addr %s551, 2
      %s558 = sadd.s32 %s556, %s557
      %s559 = smul.addr %s558, 4
      %s560 = scalar_lea.vmem %s3, %s559
      %p561 = scmp.lt.s32.totalorder %s21, 3
      %s562 = scalar_select %p561, %s21, 3
      %p563 = scmp.lt.s32.totalorder %s22, 0
      %s564 = scalar_select %p563, %s22, 0
      %p565 = scmp.lt.s32.totalorder %s23, 0
      %s566 = scalar_select %p565, %s23, 0
      %s567 = sadd.s32 %s566, %s564
      %s568 = sadd.s32 %s567, %s562
      %s569 = smul.addr %s568, 8
      %s570 = scalar_lea.vmem %s4, %s569
      // Predicated region
      $region33: #{_lambda_.15} parent=31 // pred_check
        %p571 = pneg %p139
      $region34: #{_lambda_.15} parent=31 // pred_check_branch
        %573 = sbr.rel (%p571) target = $region36
      $region35: #{_lambda_.15} parent=31 // pred_region
        %s574 = smul.u32 2, %s22
      $region36: #{_lambda_.15} parent=31 // pred_fallthru
        _
      // Predicated region
      $region37: #{_lambda_.15} parent=31 // pred_check
        %p575 = pneg %p169
      $region38: #{_lambda_.15} parent=31 // pred_check_branch
        %577 = sbr.rel (%p575) target = $region40
      $region39: #{_lambda_.15} parent=31 // pred_region
        _
      $region40: #{_lambda_.15} parent=31 // pred_fallthru
        _
    $region32: #{_lambda_.15} parent=5 // pred_fallthru
      _
    %p578 = scmp.le.s32.totalorder 2, %s11
    // Predicated region
    $region41: #{_lambda_.15} parent=5 // pred_check
      %p579 = pneg %p578
    $region42: #{_lambda_.15} parent=5 // pred_check_branch
      %581 = sbr.rel (%p579) target = $region44
    $region43: #{_lambda_.15} parent=5 // pred_region
      %s582 = ssub.s32 %s11, 2
      // Predicated region
      $region45: #{_lambda_.15} parent=43 // pred_check
        %p583 = pneg %p145
      $region46: #{_lambda_.15} parent=43 // pred_check_branch
        %585 = sbr.rel (%p583) target = $region48
      $region47: #{_lambda_.15} parent=43 // pred_region
        %s586 = smul.u32 2, %s25
        %p587 = scmp.lt.s32.totalorder %s24, 3
        %s588 = scalar_select %p587, %s24, 3
        %p589 = scmp.lt.s32.totalorder %s586, 1
        %s590 = scalar_select %p589, %s586, 1
        %p591 = scmp.lt.s32.totalorder %s26, 0
        %s592 = scalar_select %p591, %s26, 0
        %s593 = sadd.s32 %s592, %s590
        %s594 = smul.addr %s588, 2
        %s595 = sadd.s32 %s593, %s594
        %s596 = smul.addr %s595, 4
        %s597 = scalar_lea.vmem %s3, %s596
      $region48: #{_lambda_.15} parent=43 // pred_fallthru
        _
      // Predicated region
      $region49: #{_lambda_.15} parent=43 // pred_check
        %p598 = pneg %p175
      $region50: #{_lambda_.15} parent=43 // pred_check_branch
        %600 = sbr.rel (%p598) target = $region52
      $region51: #{_lambda_.15} parent=43 // pred_region
        %p601 = scmp.lt.s32.totalorder %s24, 3
        %s602 = scalar_select %p601, %s24, 3
        %p603 = scmp.lt.s32.totalorder %s25, 0
        %s604 = scalar_select %p603, %s25, 0
        %p605 = scmp.lt.s32.totalorder %s26, 0
        %s606 = scalar_select %p605, %s26, 0
        %s607 = sadd.s32 %s606, %s604
        %s608 = sadd.s32 %s607, %s602
        %s609 = smul.addr %s608, 8
        %s610 = scalar_lea.vmem %s4, %s609
      $region52: #{_lambda_.15} parent=43 // pred_fallthru
        _
    $region44: #{_lambda_.15} parent=5 // pred_fallthru
      _
  $region6: #{_lambda_.15} parent=0 // loop_footer
    %s15 = sadd.s32 1, %s11
  $region7: #{_lambda_.15} parent=0 // loop_footer_branch
    %10 = sbr.rel target = $region3
  $region8: #{_lambda_.15} parent=0 // loop_exit
    _

// kernel: _lambda_.14
$region0: #{_lambda_.14}
  #allocation0 [shape = 'u32[]', space=smem, size = 0x4, offset = 0x4, fixed_abs, tag = 'smem constant byte address 0x4 - core index']
  #allocation1 [shape = 'u32[144,128]{1,0:T(1,128)}', space=vmem, size = 0x12000, scoped, tag = 'internal scratch']
  %s0 = inlined_call_operand.vmem [shape: bf16[1,16,1024], index: 0, kind: input, shape index: {}]
  %s1 = inlined_call_operand.vmem [shape: bf16[1,1024,128], index: 1, kind: input, shape index: {}]
  %s2 = inlined_call_operand.vmem [shape: f32[1,128], index: 2, kind: input, shape index: {}]
  %s3 = inlined_call_operand.vmem [shape: bf16[1,16,128], index: 3, kind: output, shape index: {}]
  %s4 = sld [smem:[#allocation0]]
  $region22: #{_lambda_.14} parent=0
    _
  %s6 = ssub.s32 1, %s4
  %s7 = scalar_select 0, %s6, %s4
  // Predicated region
  $region2: #{_lambda_.14} parent=0 // pred_check
    _
  $region3: #{_lambda_.14} parent=0 // pred_check_branch
    %9 = sbr.rel (0) target = $region5
  $region4: #{_lambda_.14} parent=0 // pred_region
    _
  $region5: #{_lambda_.14} parent=0 // pred_fallthru
    _
  // Predicated region
  $region6: #{_lambda_.14} parent=0 // pred_check
    _
  $region7: #{_lambda_.14} parent=0 // pred_check_branch
    %11 = sbr.rel (0) target = $region9
  $region8: #{_lambda_.14} parent=0 // pred_region
    _
  $region9: #{_lambda_.14} parent=0 // pred_fallthru
    _
  // Predicated region
  $region10: #{_lambda_.14} parent=0 // pred_check
    _
  $region11: #{_lambda_.14} parent=0 // pred_check_branch
    %13 = sbr.rel (0) target = $region13
  $region12: #{_lambda_.14} parent=0 // pred_region
    _
  $region13: #{_lambda_.14} parent=0 // pred_fallthru
    _
  %v15 = vld [vmem:[%s0] sm:$0xff]
  %v16 = vld [vmem:[%s0 + $0x8] sm:$0xff]
  %v17 = vld [vmem:[%s0 + $0x10] sm:$0xff]
  %v18 = vld [vmem:[%s0 + $0x18] sm:$0xff]
  %v19 = vld [vmem:[%s0 + $0x20] sm:$0xff]
  %v20 = vld [vmem:[%s0 + $0x28] sm:$0xff]
  %v21 = vld [vmem:[%s0 + $0x30] sm:$0xff]
  %v22 = vld [vmem:[%s0 + $0x38] sm:$0xff]
  %v23 = vld [vmem:[%s1] sm:$0xf]
  %v24 = vld [vmem:[%s1 + $0x4] sm:$0xf]
  %v25 = vld [vmem:[%s1 + $0x8] sm:$0xf]
  %v26 = vld [vmem:[%s1 + $0xc] sm:$0xf]
  %v27 = vld [vmem:[%s1 + $0x10] sm:$0xf]
  %v28 = vld [vmem:[%s1 + $0x14] sm:$0xf]
  %v29 = vld [vmem:[%s1 + $0x18] sm:$0xf]
  %v30 = vld [vmem:[%s1 + $0x1c] sm:$0xf]
  %v31 = vld [vmem:[%s1 + $0x20] sm:$0xf]
  %v32 = vld [vmem:[%s1 + $0x24] sm:$0xf]
  %v33 = vld [vmem:[%s1 + $0x28] sm:$0xf]
  %v34 = vld [vmem:[%s1 + $0x2c] sm:$0xf]
  %v35 = vld [vmem:[%s1 + $0x30] sm:$0xf]
  %v36 = vld [vmem:[%s1 + $0x34] sm:$0xf]
  %v37 = vld [vmem:[%s1 + $0x38] sm:$0xf]
  %v38 = vld [vmem:[%s1 + $0x3c] sm:$0xf]
  %v39 = vld [vmem:[%s1 + $0x40] sm:$0xf]
  %v40 = vld [vmem:[%s1 + $0x44] sm:$0xf]
  %v41 = vld [vmem:[%s1 + $0x48] sm:$0xf]
  %v42 = vld [vmem:[%s1 + $0x4c] sm:$0xf]
  %v43 = vld [vmem:[%s1 + $0x50] sm:$0xf]
  %v44 = vld [vmem:[%s1 + $0x54] sm:$0xf]
  %v45 = vld [vmem:[%s1 + $0x58] sm:$0xf]
  %v46 = vld [vmem:[%s1 + $0x5c] sm:$0xf]
  %v47 = vld [vmem:[%s1 + $0x60] sm:$0xf]
  %v48 = vld [vmem:[%s1 + $0x64] sm:$0xf]
  %v49 = vld [vmem:[%s1 + $0x68] sm:$0xf]
  %v50 = vld [vmem:[%s1 + $0x6c] sm:$0xf]
  %v51 = vld [vmem:[%s1 + $0x70] sm:$0xf]
  %v52 = vld [vmem:[%s1 + $0x74] sm:$0xf]
  %v53 = vld [vmem:[%s1 + $0x78] sm:$0xf]
  %v54 = vld [vmem:[%s1 + $0x7c] sm:$0xf]
  %v55 = vld [vmem:[%s1 + $0x80] sm:$0xf]
  %v56 = vld [vmem:[%s1 + $0x84] sm:$0xf]
  %v57 = vld [vmem:[%s1 + $0x88] sm:$0xf]
  %v58 = vld [vmem:[%s1 + $0x8c] sm:$0xf]
  %v59 = vld [vmem:[%s1 + $0x90] sm:$0xf]
  %v60 = vld [vmem:[%s1 + $0x94] sm:$0xf]
  %v61 = vld [vmem:[%s1 + $0x98] sm:$0xf]
  %v62 = vld [vmem:[%s1 + $0x9c] sm:$0xf]
  %v63 = vld [vmem:[%s1 + $0xa0] sm:$0xf]
  %v64 = vld [vmem:[%s1 + $0xa4] sm:$0xf]
  %v65 = vld [vmem:[%s1 + $0xa8] sm:$0xf]
  %v66 = vld [vmem:[%s1 + $0xac] sm:$0xf]
  %v67 = vld [vmem:[%s1 + $0xb0] sm:$0xf]
  %v68 = vld [vmem:[%s1 + $0xb4] sm:$0xf]
  %v69 = vld [vmem:[%s1 + $0xb8] sm:$0xf]
  %v70 = vld [vmem:[%s1 + $0xbc] sm:$0xf]
  %v71 = vld [vmem:[%s1 + $0xc0] sm:$0xf]
  %v72 = vld [vmem:[%s1 + $0xc4] sm:$0xf]
  %v73 = vld [vmem:[%s1 + $0xc8] sm:$0xf]
  %v74 = vld [vmem:[%s1 + $0xcc] sm:$0xf]
  %v75 = vld [vmem:[%s1 + $0xd0] sm:$0xf]
  %v76 = vld [vmem:[%s1 + $0xd4] sm:$0xf]
  %v77 = vld [vmem:[%s1 + $0xd8] sm:$0xf]
  %v78 = vld [vmem:[%s1 + $0xdc] sm:$0xf]
  %v79 = vld [vmem:[%s1 + $0xe0] sm:$0xf]
  %v80 = vld [vmem:[%s1 + $0xe4] sm:$0xf]
  %v81 = vld [vmem:[%s1 + $0xe8] sm:$0xf]
  %v82 = vld [vmem:[%s1 + $0xec] sm:$0xf]
  %v83 = vld [vmem:[%s1 + $0xf0] sm:$0xf]
  %v84 = vld [vmem:[%s1 + $0xf4] sm:$0xf]
  %v85 = vld [vmem:[%s1 + $0xf8] sm:$0xf]
  %v86 = vld [vmem:[%s1 + $0xfc] sm:$0xf]
  %v87 = vld [vmem:[%s1 + $0x100] sm:$0xf]
  %v88 = vld [vmem:[%s1 + $0x104] sm:$0xf]
  %v89 = vld [vmem:[%s1 + $0x108] sm:$0xf]
  %v90 = vld [vmem:[%s1 + $0x10c] sm:$0xf]
  %v91 = vld [vmem:[%s1 + $0x110] sm:$0xf]
  %v92 = vld [vmem:[%s1 + $0x114] sm:$0xf]
  %v93 = vld [vmem:[%s1 + $0x118] sm:$0xf]
  %v94 = vld [vmem:[%s1 + $0x11c] sm:$0xf]
  %v95 = vld [vmem:[%s1 + $0x120] sm:$0xf]
  %v96 = vld [vmem:[%s1 + $0x124] sm:$0xf]
  %v97 = vld [vmem:[%s1 + $0x128] sm:$0xf]
  %v98 = vld [vmem:[%s1 + $0x12c] sm:$0xf]
  %v99 = vld [vmem:[%s1 + $0x130] sm:$0xf]
  %v100 = vld [vmem:[%s1 + $0x134] sm:$0xf]
  %v101 = vld [vmem:[%s1 + $0x138] sm:$0xf]
  %v102 = vld [vmem:[%s1 + $0x13c] sm:$0xf]
  %v103 = vld [vmem:[%s1 + $0x140] sm:$0xf]
  %v104 = vld [vmem:[%s1 + $0x144] sm:$0xf]
  %v105 = vld [vmem:[%s1 + $0x148] sm:$0xf]
  %v106 = vld [vmem:[%s1 + $0x14c] sm:$0xf]
  %v107 = vld [vmem:[%s1 + $0x150] sm:$0xf]
  %v108 = vld [vmem:[%s1 + $0x154] sm:$0xf]
  %v109 = vld [vmem:[%s1 + $0x158] sm:$0xf]
  %v110 = vld [vmem:[%s1 + $0x15c] sm:$0xf]
  %v111 = vld [vmem:[%s1 + $0x160] sm:$0xf]
  %v112 = vld [vmem:[%s1 + $0x164] sm:$0xf]
  %v113 = vld [vmem:[%s1 + $0x168] sm:$0xf]
  %v114 = vld [vmem:[%s1 + $0x16c] sm:$0xf]
  %v115 = vld [vmem:[%s1 + $0x170] sm:$0xf]
  %v116 = vld [vmem:[%s1 + $0x174] sm:$0xf]
  %v117 = vld [vmem:[%s1 + $0x178] sm:$0xf]
  %v118 = vld [vmem:[%s1 + $0x17c] sm:$0xf]
  %v119 = vld [vmem:[%s1 + $0x180] sm:$0xf]
  %v120 = vld [vmem:[%s1 + $0x184] sm:$0xf]
  %v121 = vld [vmem:[%s1 + $0x188] sm:$0xf]
  %v122 = vld [vmem:[%s1 + $0x18c] sm:$0xf]
  %v123 = vld [vmem:[%s1 + $0x190] sm:$0xf]
  %v124 = vld [vmem:[%s1 + $0x194] sm:$0xf]
  %v125 = vld [vmem:[%s1 + $0x198] sm:$0xf]
  %v126 = vld [vmem:[%s1 + $0x19c] sm:$0xf]
  %v127 = vld [vmem:[%s1 + $0x1a0] sm:$0xf]
  %v128 = vld [vmem:[%s1 + $0x1a4] sm:$0xf]
  %v129 = vld [vmem:[%s1 + $0x1a8] sm:$0xf]
  %v130 = vld [vmem:[%s1 + $0x1ac] sm:$0xf]
  %v131 = vld [vmem:[%s1 + $0x1b0] sm:$0xf]
  %v132 = vld [vmem:[%s1 + $0x1b4] sm:$0xf]
  %v133 = vld [vmem:[%s1 + $0x1b8] sm:$0xf]
  %v134 = vld [vmem:[%s1 + $0x1bc] sm:$0xf]
  %v135 = vld [vmem:[%s1 + $0x1c0] sm:$0xf]
  %v136 = vld [vmem:[%s1 + $0x1c4] sm:$0xf]
  %v137 = vld [vmem:[%s1 + $0x1c8] sm:$0xf]
  %v138 = vld [vmem:[%s1 + $0x1cc] sm:$0xf]
  %v139 = vld [vmem:[%s1 + $0x1d0] sm:$0xf]
  %v140 = vld [vmem:[%s1 + $0x1d4] sm:$0xf]
  %v141 = vld [vmem:[%s1 + $0x1d8] sm:$0xf]
  %v142 = vld [vmem:[%s1 + $0x1dc] sm:$0xf]
  %v143 = vld [vmem:[%s1 + $0x1e0] sm:$0xf]
  %v144 = vld [vmem:[%s1 + $0x1e4] sm:$0xf]
  %v145 = vld [vmem:[%s1 + $0x1e8] sm:$0xf]
  %v146 = vld [vmem:[%s1 + $0x1ec] sm:$0xf]
  %v147 = vld [vmem:[%s1 + $0x1f0] sm:$0xf]
  %v148 = vld [vmem:[%s1 + $0x1f4] sm:$0xf]
  %v149 = vld [vmem:[%s1 + $0x1f8] sm:$0xf]
  %v150 = vld [vmem:[%s1 + $0x1fc] sm:$0xf]
  %v151 = vld [vmem:[%s2] sm:$0x1]
  %v153 = vlaneseq
  %v154 = vshrl.u32 %v153, 7
  %v155 = vsub.s32 0, %v154
  %v156 = vrot.slane %v151, %v155
  %v166 = vunpack.c.l.b16 %v15
  %v167 = vunpack.c.h.b16 %v15
  %v168 = vunpack.c.l.b16 %v16
  %v169 = vunpack.c.h.b16 %v16
  %v170 = vunpack.c.l.b16 %v17
  %v171 = vunpack.c.h.b16 %v17
  %v172 = vunpack.c.l.b16 %v18
  %v173 = vunpack.c.h.b16 %v18
  %v174 = vunpack.c.l.b16 %v19
  %v175 = vunpack.c.h.b16 %v19
  %v176 = vunpack.c.l.b16 %v20
  %v177 = vunpack.c.h.b16 %v20
  %v178 = vunpack.c.l.b16 %v21
  %v179 = vunpack.c.h.b16 %v21
  %v180 = vunpack.c.l.b16 %v22
  %v181 = vunpack.c.h.b16 %v22
  %v182 = vpack.c.b16 %v174, %v166
  %v183 = vpack.c.b16 %v175, %v167
  %v184 = vpack.c.b16 %v176, %v168
  %v185 = vpack.c.b16 %v177, %v169
  %v186 = vpack.c.b16 %v178, %v170
  %v187 = vpack.c.b16 %v179, %v171
  %v188 = vpack.c.b16 %v180, %v172
  %v189 = vpack.c.b16 %v181, %v173
  %v326 = vunpack.c.l.b16 %v23
  %v327 = vunpack.c.l.b16 %v24
  %v328 = vunpack.c.l.b16 %v25
  %v329 = vunpack.c.l.b16 %v26
  %v330 = vunpack.c.l.b16 %v27
  %v331 = vunpack.c.l.b16 %v28
  %v332 = vunpack.c.l.b16 %v29
  %v333 = vunpack.c.l.b16 %v30
  %v334 = vunpack.c.l.b16 %v31
  %v335 = vunpack.c.l.b16 %v32
  %v336 = vunpack.c.l.b16 %v33
  %v337 = vunpack.c.l.b16 %v34
  %v338 = vunpack.c.l.b16 %v35
  %v339 = vunpack.c.l.b16 %v36
  %v340 = vunpack.c.l.b16 %v37
  %v341 = vunpack.c.l.b16 %v38
  %v342 = vunpack.c.l.b16 %v39
  %v343 = vunpack.c.l.b16 %v40
  %v344 = vunpack.c.l.b16 %v41
  %v345 = vunpack.c.l.b16 %v42
  %v346 = vunpack.c.l.b16 %v43
  %v347 = vunpack.c.l.b16 %v44
  %v348 = vunpack.c.l.b16 %v45
  %v349 = vunpack.c.l.b16 %v46
  %v350 = vunpack.c.l.b16 %v47
  %v351 = vunpack.c.l.b16 %v48
  %v352 = vunpack.c.l.b16 %v49
  %v353 = vunpack.c.l.b16 %v50
  %v354 = vunpack.c.l.b16 %v51
  %v355 = vunpack.c.l.b16 %v52
  %v356 = vunpack.c.l.b16 %v53
  %v357 = vunpack.c.l.b16 %v54
  %v358 = vunpack.c.l.b16 %v55
  %v359 = vunpack.c.l.b16 %v56
  %v360 = vunpack.c.l.b16 %v57
  %v361 = vunpack.c.l.b16 %v58
  %v362 = vunpack.c.l.b16 %v59
  %v363 = vunpack.c.l.b16 %v60
  %v364 = vunpack.c.l.b16 %v61
  %v365 = vunpack.c.l.b16 %v62
  %v366 = vunpack.c.l.b16 %v63
  %v367 = vunpack.c.l.b16 %v64
  %v368 = vunpack.c.l.b16 %v65
  %v369 = vunpack.c.l.b16 %v66
  %v370 = vunpack.c.l.b16 %v67
  %v371 = vunpack.c.l.b16 %v68
  %v372 = vunpack.c.l.b16 %v69
  %v373 = vunpack.c.l.b16 %v70
  %v374 = vunpack.c.l.b16 %v71
  %v375 = vunpack.c.l.b16 %v72
  %v376 = vunpack.c.l.b16 %v73
  %v377 = vunpack.c.l.b16 %v74
  %v378 = vunpack.c.l.b16 %v75
  %v379 = vunpack.c.l.b16 %v76
  %v380 = vunpack.c.l.b16 %v77
  %v381 = vunpack.c.l.b16 %v78
  %v382 = vunpack.c.l.b16 %v79
  %v383 = vunpack.c.l.b16 %v80
  %v384 = vunpack.c.l.b16 %v81
  %v385 = vunpack.c.l.b16 %v82
  %v386 = vunpack.c.l.b16 %v83
  %v387 = vunpack.c.l.b16 %v84
  %v388 = vunpack.c.l.b16 %v85
  %v389 = vunpack.c.l.b16 %v86
  %v390 = vunpack.c.l.b16 %v87
  %v391 = vunpack.c.l.b16 %v88
  %v392 = vunpack.c.l.b16 %v89
  %v393 = vunpack.c.l.b16 %v90
  %v394 = vunpack.c.l.b16 %v91
  %v395 = vunpack.c.l.b16 %v92
  %v396 = vunpack.c.l.b16 %v93
  %v397 = vunpack.c.l.b16 %v94
  %v398 = vunpack.c.l.b16 %v95
  %v399 = vunpack.c.l.b16 %v96
  %v400 = vunpack.c.l.b16 %v97
  %v401 = vunpack.c.l.b16 %v98
  %v402 = vunpack.c.l.b16 %v99
  %v403 = vunpack.c.l.b16 %v100
  %v404 = vunpack.c.l.b16 %v101
  %v405 = vunpack.c.l.b16 %v102
  %v406 = vunpack.c.l.b16 %v103
  %v407 = vunpack.c.l.b16 %v104
  %v408 = vunpack.c.l.b16 %v105
  %v409 = vunpack.c.l.b16 %v106
  %v410 = vunpack.c.l.b16 %v107
  %v411 = vunpack.c.l.b16 %v108
  %v412 = vunpack.c.l.b16 %v109
  %v413 = vunpack.c.l.b16 %v110
  %v414 = vunpack.c.l.b16 %v111
  %v415 = vunpack.c.l.b16 %v112
  %v416 = vunpack.c.l.b16 %v113
  %v417 = vunpack.c.l.b16 %v114
  %v418 = vunpack.c.l.b16 %v115
  %v419 = vunpack.c.l.b16 %v116
  %v420 = vunpack.c.l.b16 %v117
  %v421 = vunpack.c.l.b16 %v118
  %v422 = vunpack.c.l.b16 %v119
  %v423 = vunpack.c.l.b16 %v120
  %v424 = vunpack.c.l.b16 %v121
  %v425 = vunpack.c.l.b16 %v122
  %v426 = vunpack.c.l.b16 %v123
  %v427 = vunpack.c.l.b16 %v124
  %v428 = vunpack.c.l.b16 %v125
  %v429 = vunpack.c.l.b16 %v126
  %v430 = vunpack.c.l.b16 %v127
  %v431 = vunpack.c.l.b16 %v128
  %v432 = vunpack.c.l.b16 %v129
  %v433 = vunpack.c.l.b16 %v130
  %v434 = vunpack.c.l.b16 %v131
  %v435 = vunpack.c.l.b16 %v132
  %v436 = vunpack.c.l.b16 %v133
  %v437 = vunpack.c.l.b16 %v134
  %v438 = vunpack.c.l.b16 %v135
  %v439 = vunpack.c.l.b16 %v136
  %v440 = vunpack.c.l.b16 %v137
  %v441 = vunpack.c.l.b16 %v138
  %v442 = vunpack.c.l.b16 %v139
  %v443 = vunpack.c.l.b16 %v140
  %v444 = vunpack.c.l.b16 %v141
  %v445 = vunpack.c.l.b16 %v142
  %v446 = vunpack.c.l.b16 %v143
  %v447 = vunpack.c.l.b16 %v144
  %v448 = vunpack.c.l.b16 %v145
  %v449 = vunpack.c.l.b16 %v146
  %v450 = vunpack.c.l.b16 %v147
  %v451 = vunpack.c.l.b16 %v148
  %v452 = vunpack.c.l.b16 %v149
  %v453 = vunpack.c.l.b16 %v150
  %v454 = vpack.c.b16 %v327, %v326
  %v455 = vpack.c.b16 %v329, %v328
  %v456 = vpack.c.b16 %v331, %v330
  %v457 = vpack.c.b16 %v333, %v332
  %v458 = vpack.c.b16 %v335, %v334
  %v459 = vpack.c.b16 %v337, %v336
  %v460 = vpack.c.b16 %v339, %v338
  %v461 = vpack.c.b16 %v341, %v340
  %v462 = vpack.c.b16 %v343, %v342
  %v463 = vpack.c.b16 %v345, %v344
  %v464 = vpack.c.b16 %v347, %v346
  %v465 = vpack.c.b16 %v349, %v348
  %v466 = vpack.c.b16 %v351, %v350
  %v467 = vpack.c.b16 %v353, %v352
  %v468 = vpack.c.b16 %v355, %v354
  %v469 = vpack.c.b16 %v357, %v356
  %v470 = vpack.c.b16 %v359, %v358
  %v471 = vpack.c.b16 %v361, %v360
  %v472 = vpack.c.b16 %v363, %v362
  %v473 = vpack.c.b16 %v365, %v364
  %v474 = vpack.c.b16 %v367, %v366
  %v475 = vpack.c.b16 %v369, %v368
  %v476 = vpack.c.b16 %v371, %v370
  %v477 = vpack.c.b16 %v373, %v372
  %v478 = vpack.c.b16 %v375, %v374
  %v479 = vpack.c.b16 %v377, %v376
  %v480 = vpack.c.b16 %v379, %v378
  %v481 = vpack.c.b16 %v381, %v380
  %v482 = vpack.c.b16 %v383, %v382
  %v483 = vpack.c.b16 %v385, %v384
  %v484 = vpack.c.b16 %v387, %v386
  %v485 = vpack.c.b16 %v389, %v388
  %v486 = vpack.c.b16 %v391, %v390
  %v487 = vpack.c.b16 %v393, %v392
  %v488 = vpack.c.b16 %v395, %v394
  %v489 = vpack.c.b16 %v397, %v396
  %v490 = vpack.c.b16 %v399, %v398
  %v491 = vpack.c.b16 %v401, %v400
  %v492 = vpack.c.b16 %v403, %v402
  %v493 = vpack.c.b16 %v405, %v404
  %v494 = vpack.c.b16 %v407, %v406
  %v495 = vpack.c.b16 %v409, %v408
  %v496 = vpack.c.b16 %v411, %v410
  %v497 = vpack.c.b16 %v413, %v412
  %v498 = vpack.c.b16 %v415, %v414
  %v499 = vpack.c.b16 %v417, %v416
  %v500 = vpack.c.b16 %v419, %v418
  %v501 = vpack.c.b16 %v421, %v420
  %v502 = vpack.c.b16 %v423, %v422
  %v503 = vpack.c.b16 %v425, %v424
  %v504 = vpack.c.b16 %v427, %v426
  %v505 = vpack.c.b16 %v429, %v428
  %v506 = vpack.c.b16 %v431, %v430
  %v507 = vpack.c.b16 %v433, %v432
  %v508 = vpack.c.b16 %v435, %v434
  %v509 = vpack.c.b16 %v437, %v436
  %v510 = vpack.c.b16 %v439, %v438
  %v511 = vpack.c.b16 %v441, %v440
  %v512 = vpack.c.b16 %v443, %v442
  %v513 = vpack.c.b16 %v445, %v444
  %v514 = vpack.c.b16 %v447, %v446
  %v515 = vpack.c.b16 %v449, %v448
  %v516 = vpack.c.b16 %v451, %v450
  %v517 = vpack.c.b16 %v453, %v452
  %582 = vmatprep.subr.bf16.mxu0 0
  %583 = vmatpush1.bf16.msra.mxu0 %v461
  %584 = vmatprep.subr.bf16.mxu0 0
  %585 = vmatpush1.bf16.msra.mxu0 %v460
  %586 = vmatprep.subr.bf16.mxu0 0
  %587 = vmatpush1.bf16.msra.mxu0 %v459
  %588 = vmatprep.subr.bf16.mxu0 0
  %589 = vmatpush1.bf16.msra.mxu0 %v458
  %590 = vmatprep.subr.bf16.mxu0 0
  %591 = vmatpush1.bf16.msra.mxu0 %v457
  %592 = vmatprep.subr.bf16.mxu0 0
  %593 = vmatpush1.bf16.msra.mxu0 %v456
  %594 = vmatprep.subr.bf16.mxu0 0
  %595 = vmatpush1.bf16.msra.mxu0 %v455
  %596 = vmatprep.subr.bf16.mxu0 0
  %597 = vmatpush1.bf16.msra.mxu0 %v454
  %598 = vmatprep.subr.bf16.mxu0 0
  %599 = vmatpush2.bf16.msra.mxu0 %v469
  %600 = vmatprep.subr.bf16.mxu0 0
  %601 = vmatpush2.bf16.msra.mxu0 %v468
  %602 = vmatprep.subr.bf16.mxu0 0
  %603 = vmatpush2.bf16.msra.mxu0 %v467
  %604 = vmatprep.subr.bf16.mxu0 0
  %605 = vmatpush2.bf16.msra.mxu0 %v466
  %606 = vmatprep.subr.bf16.mxu0 0
  %607 = vmatpush2.bf16.msra.mxu0 %v465
  %608 = vmatprep.subr.bf16.mxu0 0
  %609 = vmatpush2.bf16.msra.mxu0 %v464
  %610 = vmatprep.subr.bf16.mxu0 0
  %611 = vmatpush2.bf16.msra.mxu0 %v463
  %612 = vmatprep.subr.bf16.mxu0 0
  %613 = vmatpush2.bf16.msra.mxu0 %v462
  %614 = vmatprep.mubr.bf16.mxu0 %v183
  %615 = vmatmul.mubr.bf16.gmra.mxu0 %v182
  %v616 = vpop.f32.mrf.mxu0
  %v617 = vadd.f32 %v156, %v616
  %v618 = vpop.f32.mrf.mxu0
  %v619 = vpop.f32.mrf.mxu0
  %v620 = vadd.f32 %v156, %v619
  %v621 = vpop.f32.mrf.mxu0
  %622 = vdwg.mxu0
  %623 = vmatprep.subr.bf16.mxu0 0
  %624 = vmatpush1.bf16.msra.mxu0 %v477
  %625 = vmatprep.subr.bf16.mxu0 0
  %626 = vmatpush1.bf16.msra.mxu0 %v476
  %627 = vmatprep.subr.bf16.mxu0 0
  %628 = vmatpush1.bf16.msra.mxu0 %v475
  %629 = vmatprep.subr.bf16.mxu0 0
  %630 = vmatpush1.bf16.msra.mxu0 %v474
  %631 = vmatprep.subr.bf16.mxu0 0
  %632 = vmatpush1.bf16.msra.mxu0 %v473
  %633 = vmatprep.subr.bf16.mxu0 0
  %634 = vmatpush1.bf16.msra.mxu0 %v472
  %635 = vmatprep.subr.bf16.mxu0 0
  %636 = vmatpush1.bf16.msra.mxu0 %v471
  %637 = vmatprep.subr.bf16.mxu0 0
  %638 = vmatpush1.bf16.msra.mxu0 %v470
  %639 = vmatprep.subr.bf16.mxu0 0
  %640 = vmatpush2.bf16.msra.mxu0 %v485
  %641 = vmatprep.subr.bf16.mxu0 0
  %642 = vmatpush2.bf16.msra.mxu0 %v484
  %643 = vmatprep.subr.bf16.mxu0 0
  %644 = vmatpush2.bf16.msra.mxu0 %v483
  %645 = vmatprep.subr.bf16.mxu0 0
  %646 = vmatpush2.bf16.msra.mxu0 %v482
  %647 = vmatprep.subr.bf16.mxu0 0
  %648 = vmatpush2.bf16.msra.mxu0 %v481
  %649 = vmatprep.subr.bf16.mxu0 0
  %650 = vmatpush2.bf16.msra.mxu0 %v480
  %651 = vmatprep.subr.bf16.mxu0 0
  %652 = vmatpush2.bf16.msra.mxu0 %v479
  %653 = vmatprep.subr.bf16.mxu0 0
  %654 = vmatpush2.bf16.msra.mxu0 %v478
  %655 = vmatprep.mubr.bf16.mxu0 %v185
  %656 = vmatmul.mubr.bf16.gmra.mxu0 %v184
  %v657 = vpop.f32.mrf.mxu0
  %v658 = vadd.f32 %v617, %v657
  %v659 = vpop.f32.mrf.mxu0
  %v660 = vpop.f32.mrf.mxu0
  %v661 = vadd.f32 %v620, %v660
  %v662 = vpop.f32.mrf.mxu0
  %663 = vdwg.mxu0
  %664 = vmatprep.subr.bf16.mxu0 0
  %665 = vmatpush1.bf16.msra.mxu0 %v493
  %666 = vmatprep.subr.bf16.mxu0 0
  %667 = vmatpush1.bf16.msra.mxu0 %v492
  %668 = vmatprep.subr.bf16.mxu0 0
  %669 = vmatpush1.bf16.msra.mxu0 %v491
  %670 = vmatprep.subr.bf16.mxu0 0
  %671 = vmatpush1.bf16.msra.mxu0 %v490
  %672 = vmatprep.subr.bf16.mxu0 0
  %673 = vmatpush1.bf16.msra.mxu0 %v489
  %674 = vmatprep.subr.bf16.mxu0 0
  %675 = vmatpush1.bf16.msra.mxu0 %v488
  %676 = vmatprep.subr.bf16.mxu0 0
  %677 = vmatpush1.bf16.msra.mxu0 %v487
  %678 = vmatprep.subr.bf16.mxu0 0
  %679 = vmatpush1.bf16.msra.mxu0 %v486
  %680 = vmatprep.subr.bf16.mxu0 0
  %681 = vmatpush2.bf16.msra.mxu0 %v501
  %682 = vmatprep.subr.bf16.mxu0 0
  %683 = vmatpush2.bf16.msra.mxu0 %v500
  %684 = vmatprep.subr.bf16.mxu0 0
  %685 = vmatpush2.bf16.msra.mxu0 %v499
  %686 = vmatprep.subr.bf16.mxu0 0
  %687 = vmatpush2.bf16.msra.mxu0 %v498
  %688 = vmatprep.subr.bf16.mxu0 0
  %689 = vmatpush2.bf16.msra.mxu0 %v497
  %690 = vmatprep.subr.bf16.mxu0 0
  %691 = vmatpush2.bf16.msra.mxu0 %v496
  %692 = vmatprep.subr.bf16.mxu0 0
  %693 = vmatpush2.bf16.msra.mxu0 %v495
  %694 = vmatprep.subr.bf16.mxu0 0
  %695 = vmatpush2.bf16.msra.mxu0 %v494
  %696 = vmatprep.mubr.bf16.mxu0 %v187
  %697 = vmatmul.mubr.bf16.gmra.mxu0 %v186
  %v698 = vpop.f32.mrf.mxu0
  %v699 = vadd.f32 %v658, %v698
  %v700 = vpop.f32.mrf.mxu0
  %v701 = vpop.f32.mrf.mxu0
  %v702 = vadd.f32 %v661, %v701
  %v703 = vpop.f32.mrf.mxu0
  %704 = vdwg.mxu0
  %705 = vmatprep.subr.bf16.mxu0 0
  %706 = vmatpush1.bf16.msra.mxu0 %v509
  %707 = vmatprep.subr.bf16.mxu0 0
  %708 = vmatpush1.bf16.msra.mxu0 %v508
  %709 = vmatprep.subr.bf16.mxu0 0
  %710 = vmatpush1.bf16.msra.mxu0 %v507
  %711 = vmatprep.subr.bf16.mxu0 0
  %712 = vmatpush1.bf16.msra.mxu0 %v506
  %713 = vmatprep.subr.bf16.mxu0 0
  %714 = vmatpush1.bf16.msra.mxu0 %v505
  %715 = vmatprep.subr.bf16.mxu0 0
  %716 = vmatpush1.bf16.msra.mxu0 %v504
  %717 = vmatprep.subr.bf16.mxu0 0
  %718 = vmatpush1.bf16.msra.mxu0 %v503
  %719 = vmatprep.subr.bf16.mxu0 0
  %720 = vmatpush1.bf16.msra.mxu0 %v502
  %721 = vmatprep.subr.bf16.mxu0 0
  %722 = vmatpush2.bf16.msra.mxu0 %v517
  %723 = vmatprep.subr.bf16.mxu0 0
  %724 = vmatpush2.bf16.msra.mxu0 %v516
  %725 = vmatprep.subr.bf16.mxu0 0
  %726 = vmatpush2.bf16.msra.mxu0 %v515
  %727 = vmatprep.subr.bf16.mxu0 0
  %728 = vmatpush2.bf16.msra.mxu0 %v514
  %729 = vmatprep.subr.bf16.mxu0 0
  %730 = vmatpush2.bf16.msra.mxu0 %v513
  %731 = vmatprep.subr.bf16.mxu0 0
  %732 = vmatpush2.bf16.msra.mxu0 %v512
  %733 = vmatprep.subr.bf16.mxu0 0
  %734 = vmatpush2.bf16.msra.mxu0 %v511
  %735 = vmatprep.subr.bf16.mxu0 0
  %736 = vmatpush2.bf16.msra.mxu0 %v510
  %737 = vmatprep.mubr.bf16.mxu0 %v189
  %738 = vmatmul.mubr.bf16.gmra.mxu0 %v188
  %v739 = vpop.f32.mrf.mxu0
  %v740 = vadd.f32 %v699, %v739
  %v741 = vpop.f32.mrf.mxu0
  %v742 = vpop.f32.mrf.mxu0
  %v743 = vadd.f32 %v702, %v742
  %v744 = vpop.f32.mrf.mxu0
  %745 = vdwg.mxu0
  %v746 = vpack.c.bf16 %v743, %v740
  %v748 = vunpack.c.l.b16 %v746
  %v749 = vunpack.c.h.b16 %v746
  %v750 = vpack.c.b16 %v748, %v748
  %v751 = vpack.c.b16 %v749, %v749
  %754 = vst [vmem:[%s3] sm:$0xf] %v750
  %755 = vst [vmem:[%s3 + $0x4] sm:$0xf] %v751
  // Predicated region
  $region14: #{_lambda_.14} parent=0 // pred_check
    _
  $region15: #{_lambda_.14} parent=0 // pred_check_branch
    %757 = sbr.rel (0) target = $region17
  $region16: #{_lambda_.14} parent=0 // pred_region
    _
  $region17: #{_lambda_.14} parent=0 // pred_fallthru
    _
  // Predicated region
  $region18: #{_lambda_.14} parent=0 // pred_check
    _
  $region19: #{_lambda_.14} parent=0 // pred_check_branch
    %759 = sbr.rel (0) target = $region21
  $region20: #{_lambda_.14} parent=0 // pred_region
    _
  $region21: #{_lambda_.14} parent=0 // pred_fallthru
    _

// kernel: _lambda_.16
$region0: #{_lambda_.16}
  #allocation0 [shape = 'u32[]', space=smem, size = 0x4, offset = 0x4, fixed_abs, tag = 'smem constant byte address 0x4 - core index']
  #allocation1 [shape = 'u32[144,128]{1,0:T(1,128)}', space=vmem, size = 0x12000, scoped, tag = 'internal scratch']
  %s0 = inlined_call_operand.vmem [shape: bf16[4,16,512], index: 0, kind: input, shape index: {}]
  %s1 = inlined_call_operand.vmem [shape: bf16[4,512,128], index: 1, kind: input, shape index: {}]
  %s2 = inlined_call_operand.vmem [shape: f32[1,128], index: 2, kind: input, shape index: {}]
  %s3 = inlined_call_operand.vmem [shape: bf16[4,16,128], index: 3, kind: output, shape index: {0}]
  %s4 = inlined_call_operand.vmem [shape: f32[4,8,128], index: 4, kind: output, shape index: {1}]
  %5 = xla_tuple %s3, %s4
  %s6 = sld [smem:[#allocation0]]
  $region53: #{_lambda_.16} parent=0
    _
  %s8 = ssub.s32 1, %s6
  %s9 = scalar_select 0, %s8, %s6
  loop: start=0, step=1, limit=6
  $region2: #{_lambda_.16} parent=0 // loop_pre_header
    _
  $region3: #{_lambda_.16} parent=0 // loop_header
    %s11 = sphi 0, %s15
    %p12 = scmp.ge.s32.totalorder %s11, 6
    %s18 = sphi 0, %s37
    %s19 = sphi 0, %s33
    %s20 = sphi 0, %s29
    %s21 = sphi 0, %s18
    %s22 = sphi 0, %s19
    %s23 = sphi 0, %s20
    %s24 = sphi 0, %s21
    %s25 = sphi 0, %s22
    %s26 = sphi 0, %s23
    %s42 = sphi 0, %s44
    %s45 = sphi 0, %s42
    %s46 = sphi 0, %s45
    %s62 = sphi 0, %s46
    %s70 = sphi 0, %s72
    %s73 = sphi 0, %s70
    %s74 = sphi 0, %s73
    %s90 = sphi 0, %s74
    %s96 = sphi 0, %s98
    %s99 = sphi 0, %s96
    %s100 = sphi 0, %s99
    %s116 = sphi 0, %s100
    %s126 = sphi 0, %s128
    %s129 = sphi 0, %s126
    %s130 = sphi 0, %s129
    %s146 = sphi 0, %s130
    %s156 = sphi 0, %s158
    %s159 = sphi 0, %s156
    %s160 = sphi 0, %s159
    %s176 = sphi 0, %s160
  $region4: #{_lambda_.16} parent=0 // loop_header_branch
    %14 = sbr.rel (%p12) target = $region8
  $region5: #{_lambda_.16} parent=0 // loop_body
    %s16 = ssub.s32 %s11, 1
    %s17 = ssub.s32 %s11, 2
    %s27 = sadd.s32 1, %s20
    %p28 = scmp.ge.s32.totalorder %s27, 1
    %s29 = scalar_select %p28, 0, %s27
    %s30 = sadd.s32 1, %s19
    %s31 = scalar_select %p28, %s30, %s19
    %p32 = scmp.ge.s32.totalorder %s31, 1
    %s33 = scalar_select %p32, 0, %s31
    %s34 = sadd.s32 1, %s18
    %s35 = scalar_select %p32, %s34, %s18
    %p36 = scmp.ge.s32.totalorder %s35, 4
    %s37 = scalar_select %p36, 0, %s35
    %s38 = ssub.s32 %s18, %s37
    %s39 = ssub.s32 %s19, %s33
    %s40 = sor.u32 %s38, %s39
    %p41 = scmp.eq.s32.totalorder %s40, 0
    %s43 = sadd.s32 %s42, 1
    %s44 = scalar_select %p41, %s42, %s43
    %p47 = pneg %p41
    %p48 = scmp.eq.s32.totalorder %s11, 3
    %p49 = por %p47, %p48
    %p50 = scmp.ne.s32.totalorder %s42, %s45
    %p51 = scmp.eq.s32.totalorder %s11, 0
    %p52 = por %p50, %p51
    %p53 = scmp.ne.s32.totalorder %s42, %s45
    %p54 = scmp.eq.s32.totalorder %s16, 3
    %p55 = por %p53, %p54
    %p56 = scmp.ne.s32.totalorder %s45, %s46
    %p57 = scmp.eq.s32.totalorder %s16, 0
    %p58 = por %p56, %p57
    %p59 = scmp.ne.s32.totalorder %s45, %s46
    %p60 = scmp.eq.s32.totalorder %s17, 3
    %p61 = por %p59, %p60
    %p63 = scmp.ne.s32.totalorder %s46, %s62
    %p64 = scmp.eq.s32.totalorder %s17, 0
    %p65 = por %p63, %p64
    %s66 = ssub.s32 %s18, %s37
    %s67 = ssub.s32 %s20, %s29
    %s68 = sor.u32 %s66, %s67
    %p69 = scmp.eq.s32.totalorder %s68, 0
    %s71 = sadd.s32 %s70, 1
    %s72 = scalar_select %p69, %s70, %s71
    %p75 = pneg %p69
    %p76 = scmp.eq.s32.totalorder %s11, 3
    %p77 = por %p75, %p76
    %p78 = scmp.ne.s32.totalorder %s70, %s73
    %p79 = scmp.eq.s32.totalorder %s11, 0
    %p80 = por %p78, %p79
    %p81 = scmp.ne.s32.totalorder %s70, %s73
    %p82 = scmp.eq.s32.totalorder %s16, 3
    %p83 = por %p81, %p82
    %p84 = scmp.ne.s32.totalorder %s73, %s74
    %p85 = scmp.eq.s32.totalorder %s16, 0
    %p86 = por %p84, %p85
    %p87 = scmp.ne.s32.totalorder %s73, %s74
    %p88 = scmp.eq.s32.totalorder %s17, 3
    %p89 = por %p87, %p88
    %p91 = scmp.ne.s32.totalorder %s74, %s90
    %p92 = scmp.eq.s32.totalorder %s17, 0
    %p93 = por %p91, %p92
    %s94 = ssub.s32 %s20, %s29
    %p95 = scmp.eq.s32.totalorder %s94, 0
    %s97 = sadd.s32 %s96, 1
    %s98 = scalar_select %p95, %s96, %s97
    %p101 = pneg %p95
    %p102 = scmp.eq.s32.totalorder %s11, 3
    %p103 = por %p101, %p102
    %p104 = scmp.ne.s32.totalorder %s96, %s99
    %p105 = scmp.eq.s32.totalorder %s11, 0
    %p106 = por %p104, %p105
    %p107 = scmp.ne.s32.totalorder %s96, %s99
    %p108 = scmp.eq.s32.totalorder %s16, 3
    %p109 = por %p107, %p108
    %p110 = scmp.ne.s32.totalorder %s99, %s100
    %p111 = scmp.eq.s32.totalorder %s16, 0
    %p112 = por %p110, %p111
    %p113 = scmp.ne.s32.totalorder %s99, %s100
    %p114 = scmp.eq.s32.totalorder %s17, 3
    %p115 = por %p113, %p114
    %p117 = scmp.ne.s32.totalorder %s100, %s116
    %p118 = scmp.eq.s32.totalorder %s17, 0
    %p119 = por %p117, %p118
    %s120 = ssub.s32 %s18, %s37
    %s121 = ssub.s32 %s19, %s33
    %s122 = sor.u32 %s120, %s121
    %s123 = ssub.s32 %s20, %s29
    %s124 = sor.u32 %s122, %s123
    %p125 = scmp.eq.s32.totalorder %s124, 0
    %s127 = sadd.s32 %s126, 1
    %s128 = scalar_select %p125, %s126, %s127
    %p131 = pneg %p125
    %p132 = scmp.eq.s32.totalorder %s11, 3
    %p133 = por %p131, %p132
    %p134 = scmp.ne.s32.totalorder %s126, %s129
    %p135 = scmp.eq.s32.totalorder %s11, 0
    %p136 = por %p134, %p135
    %p137 = scmp.ne.s32.totalorder %s126, %s129
    %p138 = scmp.eq.s32.totalorder %s16, 3
    %p139 = por %p137, %p138
    %p140 = scmp.ne.s32.totalorder %s129, %s130
    %p141 = scmp.eq.s32.totalorder %s16, 0
    %p142 = por %p140, %p141
    %p143 = scmp.ne.s32.totalorder %s129, %s130
    %p144 = scmp.eq.s32.totalorder %s17, 3
    %p145 = por %p143, %p144
    %p147 = scmp.ne.s32.totalorder %s130, %s146
    %p148 = scmp.eq.s32.totalorder %s17, 0
    %p149 = por %p147, %p148
    %s150 = ssub.s32 %s18, %s37
    %s151 = ssub.s32 %s19, %s33
    %s152 = sor.u32 %s150, %s151
    %s153 = ssub.s32 %s20, %s29
    %s154 = sor.u32 %s152, %s153
    %p155 = scmp.eq.s32.totalorder %s154, 0
    %s157 = sadd.s32 %s156, 1
    %s158 = scalar_select %p155, %s156, %s157
    %p161 = pneg %p155
    %p162 = scmp.eq.s32.totalorder %s11, 3
    %p163 = por %p161, %p162
    %p164 = scmp.ne.s32.totalorder %s156, %s159
    %p165 = scmp.eq.s32.totalorder %s11, 0
    %p166 = por %p164, %p165
    %p167 = scmp.ne.s32.totalorder %s156, %s159
    %p168 = scmp.eq.s32.totalorder %s16, 3
    %p169 = por %p167, %p168
    %p170 = scmp.ne.s32.totalorder %s159, %s160
    %p171 = scmp.eq.s32.totalorder %s16, 0
    %p172 = por %p170, %p171
    %p173 = scmp.ne.s32.totalorder %s159, %s160
    %p174 = scmp.eq.s32.totalorder %s17, 3
    %p175 = por %p173, %p174
    %p177 = scmp.ne.s32.totalorder %s160, %s176
    %p178 = scmp.eq.s32.totalorder %s17, 0
    %p179 = por %p177, %p178
    %p180 = scmp.le.s32.totalorder 1, %s11
    %p181 = scmp.lt.s32.totalorder %s11, 5
    %p182 = pnand %p180, %p181
    %p183 = pneg %p182
    // Predicated region
    $region9: #{_lambda_.16} parent=5 // pred_check
      _
    $region10: #{_lambda_.16} parent=5 // pred_check_branch
      %185 = sbr.rel (%p182) target = $region12
    $region11: #{_lambda_.16} parent=5 // pred_region
      %s186 = ssub.s32 %s11, 1
      // Predicated region
      $region13: #{_lambda_.16} parent=11 // pred_check
        %p187 = pneg %p112
      $region14: #{_lambda_.16} parent=11 // pred_check_branch
        %189 = sbr.rel (%p187) target = $region16
      $region15: #{_lambda_.16} parent=11 // pred_region
        %p190 = scmp.lt.s32.totalorder %s23, 0
        %s191 = scalar_select %p190, %s23, 0
        %s192 = scalar_lea.vmem %s2, %s191
      $region16: #{_lambda_.16} parent=11 // pred_fallthru
        _
    $region12: #{_lambda_.16} parent=5 // pred_fallthru
      _
    %p193 = scmp.lt.s32.totalorder %s11, 4
    // Predicated region
    $region17: #{_lambda_.16} parent=5 // pred_check
      %p194 = pneg %p193
    $region18: #{_lambda_.16} parent=5 // pred_check_branch
      %196 = sbr.rel (%p194) target = $region20
    $region19: #{_lambda_.16} parent=5 // pred_region
      // Predicated region
      $region21: #{_lambda_.16} parent=19 // pred_check
        %p197 = pneg %p52
      $region22: #{_lambda_.16} parent=19 // pred_check_branch
        %199 = sbr.rel (%p197) target = $region24
      $region23: #{_lambda_.16} parent=19 // pred_region
        %s200 = smul.u32 2, %s19
        %p201 = scmp.lt.s32.totalorder %s18, 3
        %s202 = scalar_select %p201, %s18, 3
        %p203 = scmp.lt.s32.totalorder %s200, 1
        %s204 = scalar_select %p203, %s200, 1
        %s205 = smul.addr %s204, 4
        %s206 = smul.addr %s202, 8
        %s207 = sadd.s32 %s205, %s206
        %s208 = smul.addr %s207, 4
        %s209 = scalar_lea.vmem %s0, %s208
        %s210 = smul.u32 2, %s19
      $region24: #{_lambda_.16} parent=19 // pred_fallthru
        _
      // Predicated region
      $region25: #{_lambda_.16} parent=19 // pred_check
        %p211 = pneg %p80
      $region26: #{_lambda_.16} parent=19 // pred_check_branch
        %213 = sbr.rel (%p211) target = $region28
      $region27: #{_lambda_.16} parent=19 // pred_region
        %p214 = scmp.lt.s32.totalorder %s18, 3
        %s215 = scalar_select %p214, %s18, 3
        %p216 = scmp.lt.s32.totalorder %s20, 0
        %s217 = scalar_select %p216, %s20, 0
        %s218 = smul.addr %s215, 64
        %s219 = sadd.s32 %s217, %s218
        %s220 = smul.addr %s219, 4
        %s221 = scalar_lea.vmem %s1, %s220
      $region28: #{_lambda_.16} parent=19 // pred_fallthru
        _
    $region20: #{_lambda_.16} parent=5 // pred_fallthru
      _
    %p222 = scmp.le.s32.totalorder 1, %s11
    %p223 = scmp.lt.s32.totalorder %s11, 5
    %p224 = pnand %p222, %p223
    %p225 = pneg %p224
    // Predicated region
    $region29: #{_lambda_.16} parent=5 // pred_check
      _
    $region30: #{_lambda_.16} parent=5 // pred_check_branch
      %227 = sbr.rel (%p224) target = $region32
    $region31: #{_lambda_.16} parent=5 // pred_region
      %s228 = ssub.s32 %s11, 1
      %s229 = smul.u32 2, %s22
      %p230 = scmp.lt.s32.totalorder %s21, 3
      %s231 = scalar_select %p230, %s21, 3
      %p232 = scmp.lt.s32.totalorder %s229, 1
      %s233 = scalar_select %p232, %s229, 1
      %s234 = smul.addr %s233, 4
      %s235 = smul.addr %s231, 8
      %s236 = sadd.s32 %s234, %s235
      %s237 = smul.addr %s236, 4
      %s238 = scalar_lea.vmem %s0, %s237
      %p239 = pneg %p58
      %p240 = pneg %p55
      %p241 = scmp.lt.s32.totalorder %s21, 3
      %s242 = scalar_select %p241, %s21, 3
      %p243 = scmp.lt.s32.totalorder %s23, 0
      %s244 = scalar_select %p243, %s23, 0
      %s245 = smul.addr %s242, 64
      %s246 = sadd.s32 %s244, %s245
      %s247 = smul.addr %s246, 4
      %s248 = scalar_lea.vmem %s1, %s247
      %p249 = pneg %p86
      %p250 = pneg %p83
      %p251 = scmp.lt.s32.totalorder %s23, 0
      %s252 = scalar_select %p251, %s23, 0
      %s253 = scalar_lea.vmem %s2, %s252
      %p254 = pneg %p112
      %p255 = pneg %p109
      %p256 = pneg %p142
      %p257 = pneg %p139
      %s258 = smul.u32 2, %s22
      %p259 = scmp.lt.s32.totalorder %s21, 3
      %s260 = scalar_select %p259, %s21, 3
      %p261 = scmp.lt.s32.totalorder %s258, 1
      %s262 = scalar_select %p261, %s258, 1
      %p263 = scmp.lt.s32.totalorder %s23, 0
      %s264 = scalar_select %p263, %s23, 0
      %s265 = sadd.s32 %s264, %s262
      %s266 = smul.addr %s260, 2
      %s267 = sadd.s32 %s265, %s266
      %s268 = smul.addr %s267, 4
      %s269 = scalar_lea.vmem %s3, %s268
      %p270 = pneg %p172
      %p271 = pneg %p169
      %p272 = scmp.lt.s32.totalorder %s21, 3
      %s273 = scalar_select %p272, %s21, 3
      %p274 = scmp.lt.s32.totalorder %s22, 0
      %s275 = scalar_select %p274, %s22, 0
      %p276 = scmp.lt.s32.totalorder %s23, 0
      %s277 = scalar_select %p276, %s23, 0
      %s278 = sadd.s32 %s277, %s275
      %s279 = sadd.s32 %s278, %s273
      %s280 = smul.addr %s279, 8
      %s281 = scalar_lea.vmem %s4, %s280
      %s282 = smul.u32 2, %s22
      %p283 = scmp.lt.s32.totalorder %s21, 3
      %s284 = scalar_select %p283, %s21, 3
      %p285 = scmp.lt.s32.totalorder %s282, 1
      %s286 = scalar_select %p285, %s282, 1
      %s287 = smul.addr %s286, 4
      %s288 = smul.addr %s284, 8
      %s289 = sadd.s32 %s287, %s288
      %s290 = smul.addr %s289, 4
      %s291 = scalar_lea.vmem %s0, %s290
      %s292 = smul.u32 2, %s22
      %p293 = scmp.lt.s32.totalorder %s21, 3
      %s294 = scalar_select %p293, %s21, 3
      %p295 = scmp.lt.s32.totalorder %s23, 0
      %s296 = scalar_select %p295, %s23, 0
      %s297 = smul.addr %s294, 64
      %s298 = sadd.s32 %s296, %s297
      %s299 = smul.addr %s298, 4
      %s300 = scalar_lea.vmem %s1, %s299
      %p301 = scmp.lt.s32.totalorder %s23, 0
      %s302 = scalar_select %p301, %s23, 0
      %s303 = scalar_lea.vmem %s2, %s302
      %s304 = smul.u32 2, %s22
      %p305 = scmp.lt.s32.totalorder %s21, 3
      %s306 = scalar_select %p305, %s21, 3
      %p307 = scmp.lt.s32.totalorder %s304, 1
      %s308 = scalar_select %p307, %s304, 1
      %p309 = scmp.lt.s32.totalorder %s23, 0
      %s310 = scalar_select %p309, %s23, 0
      %s311 = sadd.s32 %s310, %s308
      %s312 = smul.addr %s306, 2
      %s313 = sadd.s32 %s311, %s312
      %s314 = smul.addr %s313, 4
      %s315 = scalar_lea.vmem %s3, %s314
      %s316 = smul.u32 2, %s22
      %p317 = scmp.lt.s32.totalorder %s21, 3
      %s318 = scalar_select %p317, %s21, 3
      %p319 = scmp.lt.s32.totalorder %s22, 0
      %s320 = scalar_select %p319, %s22, 0
      %p321 = scmp.lt.s32.totalorder %s23, 0
      %s322 = scalar_select %p321, %s23, 0
      %s323 = sadd.s32 %s322, %s320
      %s324 = sadd.s32 %s323, %s318
      %s325 = smul.addr %s324, 8
      %s326 = scalar_lea.vmem %s4, %s325
      %v328 = vld [vmem:[%s291] sm:$0xff]
      %v329 = vld [vmem:[%s291 + $0x8] sm:$0xff]
      %v330 = vld [vmem:[%s291 + $0x10] sm:$0xff]
      %v331 = vld [vmem:[%s291 + $0x18] sm:$0xff]
      %v332 = vld [vmem:[%s300] sm:$0xf]
      %v333 = vld [vmem:[%s300 + $0x4] sm:$0xf]
      %v334 = vld [vmem:[%s300 + $0x8] sm:$0xf]
      %v335 = vld [vmem:[%s300 + $0xc] sm:$0xf]
      %v336 = vld [vmem:[%s300 + $0x10] sm:$0xf]
      %v337 = vld [vmem:[%s300 + $0x14] sm:$0xf]
      %v338 = vld [vmem:[%s300 + $0x18] sm:$0xf]
      %v339 = vld [vmem:[%s300 + $0x1c] sm:$0xf]
      %v340 = vld [vmem:[%s300 + $0x20] sm:$0xf]
      %v341 = vld [vmem:[%s300 + $0x24] sm:$0xf]
      %v342 = vld [vmem:[%s300 + $0x28] sm:$0xf]
      %v343 = vld [vmem:[%s300 + $0x2c] sm:$0xf]
      %v344 = vld [vmem:[%s300 + $0x30] sm:$0xf]
      %v345 = vld [vmem:[%s300 + $0x34] sm:$0xf]
      %v346 = vld [vmem:[%s300 + $0x38] sm:$0xf]
      %v347 = vld [vmem:[%s300 + $0x3c] sm:$0xf]
      %v348 = vld [vmem:[%s300 + $0x40] sm:$0xf]
      %v349 = vld [vmem:[%s300 + $0x44] sm:$0xf]
      %v350 = vld [vmem:[%s300 + $0x48] sm:$0xf]
      %v351 = vld [vmem:[%s300 + $0x4c] sm:$0xf]
      %v352 = vld [vmem:[%s300 + $0x50] sm:$0xf]
      %v353 = vld [vmem:[%s300 + $0x54] sm:$0xf]
      %v354 = vld [vmem:[%s300 + $0x58] sm:$0xf]
      %v355 = vld [vmem:[%s300 + $0x5c] sm:$0xf]
      %v356 = vld [vmem:[%s300 + $0x60] sm:$0xf]
      %v357 = vld [vmem:[%s300 + $0x64] sm:$0xf]
      %v358 = vld [vmem:[%s300 + $0x68] sm:$0xf]
      %v359 = vld [vmem:[%s300 + $0x6c] sm:$0xf]
      %v360 = vld [vmem:[%s300 + $0x70] sm:$0xf]
      %v361 = vld [vmem:[%s300 + $0x74] sm:$0xf]
      %v362 = vld [vmem:[%s300 + $0x78] sm:$0xf]
      %v363 = vld [vmem:[%s300 + $0x7c] sm:$0xf]
      %v364 = vld [vmem:[%s300 + $0x80] sm:$0xf]
      %v365 = vld [vmem:[%s300 + $0x84] sm:$0xf]
      %v366 = vld [vmem:[%s300 + $0x88] sm:$0xf]
      %v367 = vld [vmem:[%s300 + $0x8c] sm:$0xf]
      %v368 = vld [vmem:[%s300 + $0x90] sm:$0xf]
      %v369 = vld [vmem:[%s300 + $0x94] sm:$0xf]
      %v370 = vld [vmem:[%s300 + $0x98] sm:$0xf]
      %v371 = vld [vmem:[%s300 + $0x9c] sm:$0xf]
      %v372 = vld [vmem:[%s300 + $0xa0] sm:$0xf]
      %v373 = vld [vmem:[%s300 + $0xa4] sm:$0xf]
      %v374 = vld [vmem:[%s300 + $0xa8] sm:$0xf]
      %v375 = vld [vmem:[%s300 + $0xac] sm:$0xf]
      %v376 = vld [vmem:[%s300 + $0xb0] sm:$0xf]
      %v377 = vld [vmem:[%s300 + $0xb4] sm:$0xf]
      %v378 = vld [vmem:[%s300 + $0xb8] sm:$0xf]
      %v379 = vld [vmem:[%s300 + $0xbc] sm:$0xf]
      %v380 = vld [vmem:[%s300 + $0xc0] sm:$0xf]
      %v381 = vld [vmem:[%s300 + $0xc4] sm:$0xf]
      %v382 = vld [vmem:[%s300 + $0xc8] sm:$0xf]
      %v383 = vld [vmem:[%s300 + $0xcc] sm:$0xf]
      %v384 = vld [vmem:[%s300 + $0xd0] sm:$0xf]
      %v385 = vld [vmem:[%s300 + $0xd4] sm:$0xf]
      %v386 = vld [vmem:[%s300 + $0xd8] sm:$0xf]
      %v387 = vld [vmem:[%s300 + $0xdc] sm:$0xf]
      %v388 = vld [vmem:[%s300 + $0xe0] sm:$0xf]
      %v389 = vld [vmem:[%s300 + $0xe4] sm:$0xf]
      %v390 = vld [vmem:[%s300 + $0xe8] sm:$0xf]
      %v391 = vld [vmem:[%s300 + $0xec] sm:$0xf]
      %v392 = vld [vmem:[%s300 + $0xf0] sm:$0xf]
      %v393 = vld [vmem:[%s300 + $0xf4] sm:$0xf]
      %v394 = vld [vmem:[%s300 + $0xf8] sm:$0xf]
      %v395 = vld [vmem:[%s300 + $0xfc] sm:$0xf]
      %v400 = vunpack.c.l.b16 %v328
      %v401 = vunpack.c.h.b16 %v328
      %v402 = vunpack.c.l.b16 %v329
      %v403 = vunpack.c.h.b16 %v329
      %v404 = vunpack.c.l.b16 %v330
      %v405 = vunpack.c.h.b16 %v330
      %v406 = vunpack.c.l.b16 %v331
      %v407 = vunpack.c.h.b16 %v331
      %v408 = vpack.c.b16 %v404, %v400
      %v409 = vpack.c.b16 %v405, %v401
      %v410 = vpack.c.b16 %v406, %v402
      %v411 = vpack.c.b16 %v407, %v403
      %v480 = vunpack.c.l.b16 %v332
      %v481 = vunpack.c.l.b16 %v333
      %v482 = vunpack.c.l.b16 %v334
      %v483 = vunpack.c.l.b16 %v335
      %v484 = vunpack.c.l.b16 %v336
      %v485 = vunpack.c.l.b16 %v337
      %v486 = vunpack.c.l.b16 %v338
      %v487 = vunpack.c.l.b16 %v339
      %v488 = vunpack.c.l.b16 %v340
      %v489 = vunpack.c.l.b16 %v341
      %v490 = vunpack.c.l.b16 %v342
      %v491 = vunpack.c.l.b16 %v343
      %v492 = vunpack.c.l.b16 %v344
      %v493 = vunpack.c.l.b16 %v345
      %v494 = vunpack.c.l.b16 %v346
      %v495 = vunpack.c.l.b16 %v347
      %v496 = vunpack.c.l.b16 %v348
      %v497 = vunpack.c.l.b16 %v349
      %v498 = vunpack.c.l.b16 %v350
      %v499 = vunpack.c.l.b16 %v351
      %v500 = vunpack.c.l.b16 %v352
      %v501 = vunpack.c.l.b16 %v353
      %v502 = vunpack.c.l.b16 %v354
      %v503 = vunpack.c.l.b16 %v355
      %v504 = vunpack.c.l.b16 %v356
      %v505 = vunpack.c.l.b16 %v357
      %v506 = vunpack.c.l.b16 %v358
      %v507 = vunpack.c.l.b16 %v359
      %v508 = vunpack.c.l.b16 %v360
      %v509 = vunpack.c.l.b16 %v361
      %v510 = vunpack.c.l.b16 %v362
      %v511 = vunpack.c.l.b16 %v363
      %v512 = vunpack.c.l.b16 %v364
      %v513 = vunpack.c.l.b16 %v365
      %v514 = vunpack.c.l.b16 %v366
      %v515 = vunpack.c.l.b16 %v367
      %v516 = vunpack.c.l.b16 %v368
      %v517 = vunpack.c.l.b16 %v369
      %v518 = vunpack.c.l.b16 %v370
      %v519 = vunpack.c.l.b16 %v371
      %v520 = vunpack.c.l.b16 %v372
      %v521 = vunpack.c.l.b16 %v373
      %v522 = vunpack.c.l.b16 %v374
      %v523 = vunpack.c.l.b16 %v375
      %v524 = vunpack.c.l.b16 %v376
      %v525 = vunpack.c.l.b16 %v377
      %v526 = vunpack.c.l.b16 %v378
      %v527 = vunpack.c.l.b16 %v379
      %v528 = vunpack.c.l.b16 %v380
      %v529 = vunpack.c.l.b16 %v381
      %v530 = vunpack.c.l.b16 %v382
      %v531 = vunpack.c.l.b16 %v383
      %v532 = vunpack.c.l.b16 %v384
      %v533 = vunpack.c.l.b16 %v385
      %v534 = vunpack.c.l.b16 %v386
      %v535 = vunpack.c.l.b16 %v387
      %v536 = vunpack.c.l.b16 %v388
      %v537 = vunpack.c.l.b16 %v389
      %v538 = vunpack.c.l.b16 %v390
      %v539 = vunpack.c.l.b16 %v391
      %v540 = vunpack.c.l.b16 %v392
      %v541 = vunpack.c.l.b16 %v393
      %v542 = vunpack.c.l.b16 %v394
      %v543 = vunpack.c.l.b16 %v395
      %v544 = vpack.c.b16 %v481, %v480
      %v545 = vpack.c.b16 %v483, %v482
      %v546 = vpack.c.b16 %v485, %v484
      %v547 = vpack.c.b16 %v487, %v486
      %v548 = vpack.c.b16 %v489, %v488
      %v549 = vpack.c.b16 %v491, %v490
      %v550 = vpack.c.b16 %v493, %v492
      %v551 = vpack.c.b16 %v495, %v494
      %v552 = vpack.c.b16 %v497, %v496
      %v553 = vpack.c.b16 %v499, %v498
      %v554 = vpack.c.b16 %v501, %v500
      %v555 = vpack.c.b16 %v503, %v502
      %v556 = vpack.c.b16 %v505, %v504
      %v557 = vpack.c.b16 %v507, %v506
      %v558 = vpack.c.b16 %v509, %v508
      %v559 = vpack.c.b16 %v511, %v510
      %v560 = vpack.c.b16 %v513, %v512
      %v561 = vpack.c.b16 %v515, %v514
      %v562 = vpack.c.b16 %v517, %v516
      %v563 = vpack.c.b16 %v519, %v518
      %v564 = vpack.c.b16 %v521, %v520
      %v565 = vpack.c.b16 %v523, %v522
      %v566 = vpack.c.b16 %v525, %v524
      %v567 = vpack.c.b16 %v527, %v526
      %v568 = vpack.c.b16 %v529, %v528
      %v569 = vpack.c.b16 %v531, %v530
      %v570 = vpack.c.b16 %v533, %v532
      %v571 = vpack.c.b16 %v535, %v534
      %v572 = vpack.c.b16 %v537, %v536
      %v573 = vpack.c.b16 %v539, %v538
      %v574 = vpack.c.b16 %v541, %v540
      %v575 = vpack.c.b16 %v543, %v542
      %608 = vmatprep.subr.bf16.mxu0 0
      %609 = vmatpush1.bf16.msra.mxu0 %v551
      %610 = vmatprep.subr.bf16.mxu0 0
      %611 = vmatpush1.bf16.msra.mxu0 %v550
      %612 = vmatprep.subr.bf16.mxu0 0
      %613 = vmatpush1.bf16.msra.mxu0 %v549
      %614 = vmatprep.subr.bf16.mxu0 0
      %615 = vmatpush1.bf16.msra.mxu0 %v548
      %616 = vmatprep.subr.bf16.mxu0 0
      %617 = vmatpush1.bf16.msra.mxu0 %v547
      %618 = vmatprep.subr.bf16.mxu0 0
      %619 = vmatpush1.bf16.msra.mxu0 %v546
      %620 = vmatprep.subr.bf16.mxu0 0
      %621 = vmatpush1.bf16.msra.mxu0 %v545
      %622 = vmatprep.subr.bf16.mxu0 0
      %623 = vmatpush1.bf16.msra.mxu0 %v544
      %624 = vmatprep.subr.bf16.mxu0 0
      %625 = vmatpush2.bf16.msra.mxu0 %v559
      %626 = vmatprep.subr.bf16.mxu0 0
      %627 = vmatpush2.bf16.msra.mxu0 %v558
      %628 = vmatprep.subr.bf16.mxu0 0
      %629 = vmatpush2.bf16.msra.mxu0 %v557
      %630 = vmatprep.subr.bf16.mxu0 0
      %631 = vmatpush2.bf16.msra.mxu0 %v556
      %632 = vmatprep.subr.bf16.mxu0 0
      %633 = vmatpush2.bf16.msra.mxu0 %v555
      %634 = vmatprep.subr.bf16.mxu0 0
      %635 = vmatpush2.bf16.msra.mxu0 %v554
      %636 = vmatprep.subr.bf16.mxu0 0
      %637 = vmatpush2.bf16.msra.mxu0 %v553
      %638 = vmatprep.subr.bf16.mxu0 0
      %639 = vmatpush2.bf16.msra.mxu0 %v552
      %640 = vmatprep.mubr.bf16.mxu0 %v409
      %641 = vmatmul.mubr.bf16.gmra.mxu0 %v408
      %v642 = vpop.f32.mrf.mxu0
      %v643 = vadd.f32 0.0, %v642
      %v644 = vpop.f32.mrf.mxu0
      %v645 = vpop.f32.mrf.mxu0
      %v646 = vadd.f32 0.0, %v645
      %v647 = vpop.f32.mrf.mxu0
      %648 = vdwg.mxu0
      %649 = vmatprep.subr.bf16.mxu0 0
      %650 = vmatpush1.bf16.msra.mxu0 %v567
      %651 = vmatprep.subr.bf16.mxu0 0
      %652 = vmatpush1.bf16.msra.mxu0 %v566
      %653 = vmatprep.subr.bf16.mxu0 0
      %654 = vmatpush1.bf16.msra.mxu0 %v565
      %655 = vmatprep.subr.bf16.mxu0 0
      %656 = vmatpush1.bf16.msra.mxu0 %v564
      %657 = vmatprep.subr.bf16.mxu0 0
      %658 = vmatpush1.bf16.msra.mxu0 %v563
      %659 = vmatprep.subr.bf16.mxu0 0
      %660 = vmatpush1.bf16.msra.mxu0 %v562
      %661 = vmatprep.subr.bf16.mxu0 0
      %662 = vmatpush1.bf16.msra.mxu0 %v561
      %663 = vmatprep.subr.bf16.mxu0 0
      %664 = vmatpush1.bf16.msra.mxu0 %v560
      %665 = vmatprep.subr.bf16.mxu0 0
      %666 = vmatpush2.bf16.msra.mxu0 %v575
      %667 = vmatprep.subr.bf16.mxu0 0
      %668 = vmatpush2.bf16.msra.mxu0 %v574
      %669 = vmatprep.subr.bf16.mxu0 0
      %670 = vmatpush2.bf16.msra.mxu0 %v573
      %671 = vmatprep.subr.bf16.mxu0 0
      %672 = vmatpush2.bf16.msra.mxu0 %v572
      %673 = vmatprep.subr.bf16.mxu0 0
      %674 = vmatpush2.bf16.msra.mxu0 %v571
      %675 = vmatprep.subr.bf16.mxu0 0
      %676 = vmatpush2.bf16.msra.mxu0 %v570
      %677 = vmatprep.subr.bf16.mxu0 0
      %678 = vmatpush2.bf16.msra.mxu0 %v569
      %679 = vmatprep.subr.bf16.mxu0 0
      %680 = vmatpush2.bf16.msra.mxu0 %v568
      %681 = vmatprep.mubr.bf16.mxu0 %v411
      %682 = vmatmul.mubr.bf16.gmra.mxu0 %v410
      %v683 = vpop.f32.mrf.mxu0
      %v684 = vadd.f32 %v643, %v683
      %v685 = vpop.f32.mrf.mxu0
      %v686 = vpop.f32.mrf.mxu0
      %v687 = vadd.f32 %v646, %v686
      %v688 = vpop.f32.mrf.mxu0
      %689 = vdwg.mxu0
      %v690 = vadd.f32 %v684, %v687
      %v691 = vrot.slane %v690, 4
      %v692 = vadd.f32 %v690, %v691
      %v693 = vrot.slane %v692, 2
      %v694 = vadd.f32 %v692, %v693
      %v695 = vrot.slane %v694, 1
      %v696 = vadd.f32 %v694, %v695
      %v697 = vmul.f32 %v684, %v684
      %v698 = vmul.f32 %v687, %v687
      %v699 = vadd.f32 %v697, %v698
      %v700 = vrot.slane %v699, 4
      %v701 = vadd.f32 %v699, %v700
      %v702 = vrot.slane %v701, 2
      %v703 = vadd.f32 %v701, %v702
      %v704 = vrot.slane %v703, 1
      %v705 = vadd.f32 %v703, %v704
      %vm706 = vcmask 1040384
      %v707 = vsel %vm706, %v696, %v705
      %vm708 = vcmask 1041408
      %v709 = vsel %vm708, %v707, 0.0
      %710 = vst [vmem:[%s326] sm:$0xff] %v709
      %v711 = vld [vmem:[%s303] sm:$0x1]
      %v713 = vlaneseq
      %v714 = vshrl.u32 %v713, 7
      %v715 = vsub.s32 0, %v714
      %v716 = vrot.slane %v711, %v715
      %v718 = vadd.f32 %v684, %v716
      %v719 = vadd.f32 %v687, %v716
      %v720 = vpack.c.bf16 %v719, %v718
      %v722 = vunpack.c.l.b16 %v720
      %v723 = vunpack.c.h.b16 %v720
      %v724 = vpack.c.b16 %v722, %v722
      %v725 = vpack.c.b16 %v723, %v723
      %728 = vst [vmem:[%s315] sm:$0xf] %v724
      %729 = vst [vmem:[%s315 + $0x4] sm:$0xf] %v725
      %s730 = smul.u32 2, %s22
      %p731 = scmp.lt.s32.totalorder %s21, 3
      %s732 = scalar_select %p731, %s21, 3
      %p733 = scmp.lt.s32.totalorder %s730, 1
      %s734 = scalar_select %p733, %s730, 1
      %p735 = scmp.lt.s32.totalorder %s23, 0
      %s736 = scalar_select %p735, %s23, 0
      %s737 = sadd.s32 %s736, %s734
      %s738 = smul.addr %s732, 2
      %s739 = sadd.s32 %s737, %s738
      %s740 = smul.addr %s739, 4
      %s741 = scalar_lea.vmem %s3, %s740
      %p742 = scmp.lt.s32.totalorder %s21, 3
      %s743 = scalar_select %p742, %s21, 3
      %p744 = scmp.lt.s32.totalorder %s22, 0
      %s745 = scalar_select %p744, %s22, 0
      %p746 = scmp.lt.s32.totalorder %s23, 0
      %s747 = scalar_select %p746, %s23, 0
      %s748 = sadd.s32 %s747, %s745
      %s749 = sadd.s32 %s748, %s743
      %s750 = smul.addr %s749, 8
      %s751 = scalar_lea.vmem %s4, %s750
      // Predicated region
      $region33: #{_lambda_.16} parent=31 // pred_check
        %p752 = pneg %p139
      $region34: #{_lambda_.16} parent=31 // pred_check_branch
        %754 = sbr.rel (%p752) target = $region36
      $region35: #{_lambda_.16} parent=31 // pred_region
        %s755 = smul.u32 2, %s22
      $region36: #{_lambda_.16} parent=31 // pred_fallthru
        _
      // Predicated region
      $region37: #{_lambda_.16} parent=31 // pred_check
        %p756 = pneg %p169
      $region38: #{_lambda_.16} parent=31 // pred_check_branch
        %758 = sbr.rel (%p756) target = $region40
      $region39: #{_lambda_.16} parent=31 // pred_region
        _
      $region40: #{_lambda_.16} parent=31 // pred_fallthru
        _
    $region32: #{_lambda_.16} parent=5 // pred_fallthru
      _
    %p759 = scmp.le.s32.totalorder 2, %s11
    // Predicated region
    $region41: #{_lambda_.16} parent=5 // pred_check
      %p760 = pneg %p759
    $region42: #{_lambda_.16} parent=5 // pred_check_branch
      %762 = sbr.rel (%p760) target = $region44
    $region43: #{_lambda_.16} parent=5 // pred_region
      %s763 = ssub.s32 %s11, 2
      // Predicated region
      $region45: #{_lambda_.16} parent=43 // pred_check
        %p764 = pneg %p145
      $region46: #{_lambda_.16} parent=43 // pred_check_branch
        %766 = sbr.rel (%p764) target = $region48
      $region47: #{_lambda_.16} parent=43 // pred_region
        %s767 = smul.u32 2, %s25
        %p768 = scmp.lt.s32.totalorder %s24, 3
        %s769 = scalar_select %p768, %s24, 3
        %p770 = scmp.lt.s32.totalorder %s767, 1
        %s771 = scalar_select %p770, %s767, 1
        %p772 = scmp.lt.s32.totalorder %s26, 0
        %s773 = scalar_select %p772, %s26, 0
        %s774 = sadd.s32 %s773, %s771
        %s775 = smul.addr %s769, 2
        %s776 = sadd.s32 %s774, %s775
        %s777 = smul.addr %s776, 4
        %s778 = scalar_lea.vmem %s3, %s777
      $region48: #{_lambda_.16} parent=43 // pred_fallthru
        _
      // Predicated region
      $region49: #{_lambda_.16} parent=43 // pred_check
        %p779 = pneg %p175
      $region50: #{_lambda_.16} parent=43 // pred_check_branch
        %781 = sbr.rel (%p779) target = $region52
      $region51: #{_lambda_.16} parent=43 // pred_region
        %p782 = scmp.lt.s32.totalorder %s24, 3
        %s783 = scalar_select %p782, %s24, 3
        %p784 = scmp.lt.s32.totalorder %s25, 0
        %s785 = scalar_select %p784, %s25, 0
        %p786 = scmp.lt.s32.totalorder %s26, 0
        %s787 = scalar_select %p786, %s26, 0
        %s788 = sadd.s32 %s787, %s785
        %s789 = sadd.s32 %s788, %s783
        %s790 = smul.addr %s789, 8
        %s791 = scalar_lea.vmem %s4, %s790
      $region52: #{_lambda_.16} parent=43 // pred_fallthru
        _
    $region44: #{_lambda_.16} parent=5 // pred_fallthru
      _
  $region6: #{_lambda_.16} parent=0 // loop_footer
    %s15 = sadd.s32 1, %s11
  $region7: #{_lambda_.16} parent=0 // loop_footer_branch
    %10 = sbr.rel target = $region3
  $region8: #{_lambda_.16} parent=0 // loop_exit
    _

// kernel: _lambda_.17
$region0: #{_lambda_.17}
  #allocation0 [shape = 'u32[]', space=smem, size = 0x4, offset = 0x4, fixed_abs, tag = 'smem constant byte address 0x4 - core index']
  #allocation1 [shape = 'u32[144,128]{1,0:T(1,128)}', space=vmem, size = 0x12000, scoped, tag = 'internal scratch']
  %s0 = inlined_call_operand.vmem [shape: bf16[4,32,256], index: 0, kind: input, shape index: {}]
  %s1 = inlined_call_operand.vmem [shape: bf16[4,256,128], index: 1, kind: input, shape index: {}]
  %s2 = inlined_call_operand.vmem [shape: f32[1,128], index: 2, kind: input, shape index: {}]
  %s3 = inlined_call_operand.vmem [shape: bf16[4,32,128], index: 3, kind: output, shape index: {0}]
  %s4 = inlined_call_operand.vmem [shape: f32[4,8,128], index: 4, kind: output, shape index: {1}]
  %5 = xla_tuple %s3, %s4
  %s6 = sld [smem:[#allocation0]]
  $region53: #{_lambda_.17} parent=0
    _
  %s8 = ssub.s32 1, %s6
  %s9 = scalar_select 0, %s8, %s6
  loop: start=0, step=1, limit=6
  $region2: #{_lambda_.17} parent=0 // loop_pre_header
    _
  $region3: #{_lambda_.17} parent=0 // loop_header
    %s11 = sphi 0, %s15
    %p12 = scmp.ge.s32.totalorder %s11, 6
    %s18 = sphi 0, %s37
    %s19 = sphi 0, %s33
    %s20 = sphi 0, %s29
    %s21 = sphi 0, %s18
    %s22 = sphi 0, %s19
    %s23 = sphi 0, %s20
    %s24 = sphi 0, %s21
    %s25 = sphi 0, %s22
    %s26 = sphi 0, %s23
    %s42 = sphi 0, %s44
    %s45 = sphi 0, %s42
    %s46 = sphi 0, %s45
    %s62 = sphi 0, %s46
    %s70 = sphi 0, %s72
    %s73 = sphi 0, %s70
    %s74 = sphi 0, %s73
    %s90 = sphi 0, %s74
    %s96 = sphi 0, %s98
    %s99 = sphi 0, %s96
    %s100 = sphi 0, %s99
    %s116 = sphi 0, %s100
    %s126 = sphi 0, %s128
    %s129 = sphi 0, %s126
    %s130 = sphi 0, %s129
    %s146 = sphi 0, %s130
    %s156 = sphi 0, %s158
    %s159 = sphi 0, %s156
    %s160 = sphi 0, %s159
    %s176 = sphi 0, %s160
  $region4: #{_lambda_.17} parent=0 // loop_header_branch
    %14 = sbr.rel (%p12) target = $region8
  $region5: #{_lambda_.17} parent=0 // loop_body
    %s16 = ssub.s32 %s11, 1
    %s17 = ssub.s32 %s11, 2
    %s27 = sadd.s32 1, %s20
    %p28 = scmp.ge.s32.totalorder %s27, 1
    %s29 = scalar_select %p28, 0, %s27
    %s30 = sadd.s32 1, %s19
    %s31 = scalar_select %p28, %s30, %s19
    %p32 = scmp.ge.s32.totalorder %s31, 1
    %s33 = scalar_select %p32, 0, %s31
    %s34 = sadd.s32 1, %s18
    %s35 = scalar_select %p32, %s34, %s18
    %p36 = scmp.ge.s32.totalorder %s35, 4
    %s37 = scalar_select %p36, 0, %s35
    %s38 = ssub.s32 %s18, %s37
    %s39 = ssub.s32 %s19, %s33
    %s40 = sor.u32 %s38, %s39
    %p41 = scmp.eq.s32.totalorder %s40, 0
    %s43 = sadd.s32 %s42, 1
    %s44 = scalar_select %p41, %s42, %s43
    %p47 = pneg %p41
    %p48 = scmp.eq.s32.totalorder %s11, 3
    %p49 = por %p47, %p48
    %p50 = scmp.ne.s32.totalorder %s42, %s45
    %p51 = scmp.eq.s32.totalorder %s11, 0
    %p52 = por %p50, %p51
    %p53 = scmp.ne.s32.totalorder %s42, %s45
    %p54 = scmp.eq.s32.totalorder %s16, 3
    %p55 = por %p53, %p54
    %p56 = scmp.ne.s32.totalorder %s45, %s46
    %p57 = scmp.eq.s32.totalorder %s16, 0
    %p58 = por %p56, %p57
    %p59 = scmp.ne.s32.totalorder %s45, %s46
    %p60 = scmp.eq.s32.totalorder %s17, 3
    %p61 = por %p59, %p60
    %p63 = scmp.ne.s32.totalorder %s46, %s62
    %p64 = scmp.eq.s32.totalorder %s17, 0
    %p65 = por %p63, %p64
    %s66 = ssub.s32 %s18, %s37
    %s67 = ssub.s32 %s20, %s29
    %s68 = sor.u32 %s66, %s67
    %p69 = scmp.eq.s32.totalorder %s68, 0
    %s71 = sadd.s32 %s70, 1
    %s72 = scalar_select %p69, %s70, %s71
    %p75 = pneg %p69
    %p76 = scmp.eq.s32.totalorder %s11, 3
    %p77 = por %p75, %p76
    %p78 = scmp.ne.s32.totalorder %s70, %s73
    %p79 = scmp.eq.s32.totalorder %s11, 0
    %p80 = por %p78, %p79
    %p81 = scmp.ne.s32.totalorder %s70, %s73
    %p82 = scmp.eq.s32.totalorder %s16, 3
    %p83 = por %p81, %p82
    %p84 = scmp.ne.s32.totalorder %s73, %s74
    %p85 = scmp.eq.s32.totalorder %s16, 0
    %p86 = por %p84, %p85
    %p87 = scmp.ne.s32.totalorder %s73, %s74
    %p88 = scmp.eq.s32.totalorder %s17, 3
    %p89 = por %p87, %p88
    %p91 = scmp.ne.s32.totalorder %s74, %s90
    %p92 = scmp.eq.s32.totalorder %s17, 0
    %p93 = por %p91, %p92
    %s94 = ssub.s32 %s20, %s29
    %p95 = scmp.eq.s32.totalorder %s94, 0
    %s97 = sadd.s32 %s96, 1
    %s98 = scalar_select %p95, %s96, %s97
    %p101 = pneg %p95
    %p102 = scmp.eq.s32.totalorder %s11, 3
    %p103 = por %p101, %p102
    %p104 = scmp.ne.s32.totalorder %s96, %s99
    %p105 = scmp.eq.s32.totalorder %s11, 0
    %p106 = por %p104, %p105
    %p107 = scmp.ne.s32.totalorder %s96, %s99
    %p108 = scmp.eq.s32.totalorder %s16, 3
    %p109 = por %p107, %p108
    %p110 = scmp.ne.s32.totalorder %s99, %s100
    %p111 = scmp.eq.s32.totalorder %s16, 0
    %p112 = por %p110, %p111
    %p113 = scmp.ne.s32.totalorder %s99, %s100
    %p114 = scmp.eq.s32.totalorder %s17, 3
    %p115 = por %p113, %p114
    %p117 = scmp.ne.s32.totalorder %s100, %s116
    %p118 = scmp.eq.s32.totalorder %s17, 0
    %p119 = por %p117, %p118
    %s120 = ssub.s32 %s18, %s37
    %s121 = ssub.s32 %s19, %s33
    %s122 = sor.u32 %s120, %s121
    %s123 = ssub.s32 %s20, %s29
    %s124 = sor.u32 %s122, %s123
    %p125 = scmp.eq.s32.totalorder %s124, 0
    %s127 = sadd.s32 %s126, 1
    %s128 = scalar_select %p125, %s126, %s127
    %p131 = pneg %p125
    %p132 = scmp.eq.s32.totalorder %s11, 3
    %p133 = por %p131, %p132
    %p134 = scmp.ne.s32.totalorder %s126, %s129
    %p135 = scmp.eq.s32.totalorder %s11, 0
    %p136 = por %p134, %p135
    %p137 = scmp.ne.s32.totalorder %s126, %s129
    %p138 = scmp.eq.s32.totalorder %s16, 3
    %p139 = por %p137, %p138
    %p140 = scmp.ne.s32.totalorder %s129, %s130
    %p141 = scmp.eq.s32.totalorder %s16, 0
    %p142 = por %p140, %p141
    %p143 = scmp.ne.s32.totalorder %s129, %s130
    %p144 = scmp.eq.s32.totalorder %s17, 3
    %p145 = por %p143, %p144
    %p147 = scmp.ne.s32.totalorder %s130, %s146
    %p148 = scmp.eq.s32.totalorder %s17, 0
    %p149 = por %p147, %p148
    %s150 = ssub.s32 %s18, %s37
    %s151 = ssub.s32 %s19, %s33
    %s152 = sor.u32 %s150, %s151
    %s153 = ssub.s32 %s20, %s29
    %s154 = sor.u32 %s152, %s153
    %p155 = scmp.eq.s32.totalorder %s154, 0
    %s157 = sadd.s32 %s156, 1
    %s158 = scalar_select %p155, %s156, %s157
    %p161 = pneg %p155
    %p162 = scmp.eq.s32.totalorder %s11, 3
    %p163 = por %p161, %p162
    %p164 = scmp.ne.s32.totalorder %s156, %s159
    %p165 = scmp.eq.s32.totalorder %s11, 0
    %p166 = por %p164, %p165
    %p167 = scmp.ne.s32.totalorder %s156, %s159
    %p168 = scmp.eq.s32.totalorder %s16, 3
    %p169 = por %p167, %p168
    %p170 = scmp.ne.s32.totalorder %s159, %s160
    %p171 = scmp.eq.s32.totalorder %s16, 0
    %p172 = por %p170, %p171
    %p173 = scmp.ne.s32.totalorder %s159, %s160
    %p174 = scmp.eq.s32.totalorder %s17, 3
    %p175 = por %p173, %p174
    %p177 = scmp.ne.s32.totalorder %s160, %s176
    %p178 = scmp.eq.s32.totalorder %s17, 0
    %p179 = por %p177, %p178
    %p180 = scmp.le.s32.totalorder 1, %s11
    %p181 = scmp.lt.s32.totalorder %s11, 5
    %p182 = pnand %p180, %p181
    %p183 = pneg %p182
    // Predicated region
    $region9: #{_lambda_.17} parent=5 // pred_check
      _
    $region10: #{_lambda_.17} parent=5 // pred_check_branch
      %185 = sbr.rel (%p182) target = $region12
    $region11: #{_lambda_.17} parent=5 // pred_region
      %s186 = ssub.s32 %s11, 1
      // Predicated region
      $region13: #{_lambda_.17} parent=11 // pred_check
        %p187 = pneg %p112
      $region14: #{_lambda_.17} parent=11 // pred_check_branch
        %189 = sbr.rel (%p187) target = $region16
      $region15: #{_lambda_.17} parent=11 // pred_region
        %p190 = scmp.lt.s32.totalorder %s23, 0
        %s191 = scalar_select %p190, %s23, 0
        %s192 = scalar_lea.vmem %s2, %s191
      $region16: #{_lambda_.17} parent=11 // pred_fallthru
        _
    $region12: #{_lambda_.17} parent=5 // pred_fallthru
      _
    %p193 = scmp.lt.s32.totalorder %s11, 4
    // Predicated region
    $region17: #{_lambda_.17} parent=5 // pred_check
      %p194 = pneg %p193
    $region18: #{_lambda_.17} parent=5 // pred_check_branch
      %196 = sbr.rel (%p194) target = $region20
    $region19: #{_lambda_.17} parent=5 // pred_region
      // Predicated region
      $region21: #{_lambda_.17} parent=19 // pred_check
        %p197 = pneg %p52
      $region22: #{_lambda_.17} parent=19 // pred_check_branch
        %199 = sbr.rel (%p197) target = $region24
      $region23: #{_lambda_.17} parent=19 // pred_region
        %s200 = smul.u32 4, %s19
        %p201 = scmp.lt.s32.totalorder %s18, 3
        %s202 = scalar_select %p201, %s18, 3
        %p203 = scmp.lt.s32.totalorder %s200, 3
        %s204 = scalar_select %p203, %s200, 3
        %s205 = smul.addr %s204, 2
        %s206 = smul.addr %s202, 8
        %s207 = sadd.s32 %s205, %s206
        %s208 = smul.addr %s207, 4
        %s209 = scalar_lea.vmem %s0, %s208
        %s210 = smul.u32 4, %s19
      $region24: #{_lambda_.17} parent=19 // pred_fallthru
        _
      // Predicated region
      $region25: #{_lambda_.17} parent=19 // pred_check
        %p211 = pneg %p80
      $region26: #{_lambda_.17} parent=19 // pred_check_branch
        %213 = sbr.rel (%p211) target = $region28
      $region27: #{_lambda_.17} parent=19 // pred_region
        %p214 = scmp.lt.s32.totalorder %s18, 3
        %s215 = scalar_select %p214, %s18, 3
        %p216 = scmp.lt.s32.totalorder %s20, 0
        %s217 = scalar_select %p216, %s20, 0
        %s218 = smul.addr %s215, 32
        %s219 = sadd.s32 %s217, %s218
        %s220 = smul.addr %s219, 4
        %s221 = scalar_lea.vmem %s1, %s220
      $region28: #{_lambda_.17} parent=19 // pred_fallthru
        _
    $region20: #{_lambda_.17} parent=5 // pred_fallthru
      _
    %p222 = scmp.le.s32.totalorder 1, %s11
    %p223 = scmp.lt.s32.totalorder %s11, 5
    %p224 = pnand %p222, %p223
    %p225 = pneg %p224
    // Predicated region
    $region29: #{_lambda_.17} parent=5 // pred_check
      _
    $region30: #{_lambda_.17} parent=5 // pred_check_branch
      %227 = sbr.rel (%p224) target = $region32
    $region31: #{_lambda_.17} parent=5 // pred_region
      %s228 = ssub.s32 %s11, 1
      %s229 = smul.u32 4, %s22
      %p230 = scmp.lt.s32.totalorder %s21, 3
      %s231 = scalar_select %p230, %s21, 3
      %p232 = scmp.lt.s32.totalorder %s229, 3
      %s233 = scalar_select %p232, %s229, 3
      %s234 = smul.addr %s233, 2
      %s235 = smul.addr %s231, 8
      %s236 = sadd.s32 %s234, %s235
      %s237 = smul.addr %s236, 4
      %s238 = scalar_lea.vmem %s0, %s237
      %p239 = pneg %p58
      %p240 = pneg %p55
      %p241 = scmp.lt.s32.totalorder %s21, 3
      %s242 = scalar_select %p241, %s21, 3
      %p243 = scmp.lt.s32.totalorder %s23, 0
      %s244 = scalar_select %p243, %s23, 0
      %s245 = smul.addr %s242, 32
      %s246 = sadd.s32 %s244, %s245
      %s247 = smul.addr %s246, 4
      %s248 = scalar_lea.vmem %s1, %s247
      %p249 = pneg %p86
      %p250 = pneg %p83
      %p251 = scmp.lt.s32.totalorder %s23, 0
      %s252 = scalar_select %p251, %s23, 0
      %s253 = scalar_lea.vmem %s2, %s252
      %p254 = pneg %p112
      %p255 = pneg %p109
      %p256 = pneg %p142
      %p257 = pneg %p139
      %s258 = smul.u32 4, %s22
      %p259 = scmp.lt.s32.totalorder %s21, 3
      %s260 = scalar_select %p259, %s21, 3
      %p261 = scmp.lt.s32.totalorder %s258, 3
      %s262 = scalar_select %p261, %s258, 3
      %p263 = scmp.lt.s32.totalorder %s23, 0
      %s264 = scalar_select %p263, %s23, 0
      %s265 = sadd.s32 %s264, %s262
      %s266 = smul.addr %s260, 4
      %s267 = sadd.s32 %s265, %s266
      %s268 = smul.addr %s267, 4
      %s269 = scalar_lea.vmem %s3, %s268
      %p270 = pneg %p172
      %p271 = pneg %p169
      %p272 = scmp.lt.s32.totalorder %s21, 3
      %s273 = scalar_select %p272, %s21, 3
      %p274 = scmp.lt.s32.totalorder %s22, 0
      %s275 = scalar_select %p274, %s22, 0
      %p276 = scmp.lt.s32.totalorder %s23, 0
      %s277 = scalar_select %p276, %s23, 0
      %s278 = sadd.s32 %s277, %s275
      %s279 = sadd.s32 %s278, %s273
      %s280 = smul.addr %s279, 8
      %s281 = scalar_lea.vmem %s4, %s280
      %s282 = smul.u32 4, %s22
      %p283 = scmp.lt.s32.totalorder %s21, 3
      %s284 = scalar_select %p283, %s21, 3
      %p285 = scmp.lt.s32.totalorder %s282, 3
      %s286 = scalar_select %p285, %s282, 3
      %s287 = smul.addr %s286, 2
      %s288 = smul.addr %s284, 8
      %s289 = sadd.s32 %s287, %s288
      %s290 = smul.addr %s289, 4
      %s291 = scalar_lea.vmem %s0, %s290
      %s292 = smul.u32 4, %s22
      %p293 = scmp.lt.s32.totalorder %s21, 3
      %s294 = scalar_select %p293, %s21, 3
      %p295 = scmp.lt.s32.totalorder %s23, 0
      %s296 = scalar_select %p295, %s23, 0
      %s297 = smul.addr %s294, 32
      %s298 = sadd.s32 %s296, %s297
      %s299 = smul.addr %s298, 4
      %s300 = scalar_lea.vmem %s1, %s299
      %p301 = scmp.lt.s32.totalorder %s23, 0
      %s302 = scalar_select %p301, %s23, 0
      %s303 = scalar_lea.vmem %s2, %s302
      %s304 = smul.u32 4, %s22
      %p305 = scmp.lt.s32.totalorder %s21, 3
      %s306 = scalar_select %p305, %s21, 3
      %p307 = scmp.lt.s32.totalorder %s304, 3
      %s308 = scalar_select %p307, %s304, 3
      %p309 = scmp.lt.s32.totalorder %s23, 0
      %s310 = scalar_select %p309, %s23, 0
      %s311 = sadd.s32 %s310, %s308
      %s312 = smul.addr %s306, 4
      %s313 = sadd.s32 %s311, %s312
      %s314 = smul.addr %s313, 4
      %s315 = scalar_lea.vmem %s3, %s314
      %s316 = smul.u32 4, %s22
      %p317 = scmp.lt.s32.totalorder %s21, 3
      %s318 = scalar_select %p317, %s21, 3
      %p319 = scmp.lt.s32.totalorder %s22, 0
      %s320 = scalar_select %p319, %s22, 0
      %p321 = scmp.lt.s32.totalorder %s23, 0
      %s322 = scalar_select %p321, %s23, 0
      %s323 = sadd.s32 %s322, %s320
      %s324 = sadd.s32 %s323, %s318
      %s325 = smul.addr %s324, 8
      %s326 = scalar_lea.vmem %s4, %s325
      %v328 = vld [vmem:[%s291] sm:$0xff]
      %v329 = vld [vmem:[%s291 + $0x8] sm:$0xff]
      %v330 = vld [vmem:[%s291 + $0x10] sm:$0xff]
      %v331 = vld [vmem:[%s291 + $0x18] sm:$0xff]
      %v332 = vld [vmem:[%s300] sm:$0xf]
      %v333 = vld [vmem:[%s300 + $0x4] sm:$0xf]
      %v334 = vld [vmem:[%s300 + $0x8] sm:$0xf]
      %v335 = vld [vmem:[%s300 + $0xc] sm:$0xf]
      %v336 = vld [vmem:[%s300 + $0x10] sm:$0xf]
      %v337 = vld [vmem:[%s300 + $0x14] sm:$0xf]
      %v338 = vld [vmem:[%s300 + $0x18] sm:$0xf]
      %v339 = vld [vmem:[%s300 + $0x1c] sm:$0xf]
      %v340 = vld [vmem:[%s300 + $0x20] sm:$0xf]
      %v341 = vld [vmem:[%s300 + $0x24] sm:$0xf]
      %v342 = vld [vmem:[%s300 + $0x28] sm:$0xf]
      %v343 = vld [vmem:[%s300 + $0x2c] sm:$0xf]
      %v344 = vld [vmem:[%s300 + $0x30] sm:$0xf]
      %v345 = vld [vmem:[%s300 + $0x34] sm:$0xf]
      %v346 = vld [vmem:[%s300 + $0x38] sm:$0xf]
      %v347 = vld [vmem:[%s300 + $0x3c] sm:$0xf]
      %v348 = vld [vmem:[%s300 + $0x40] sm:$0xf]
      %v349 = vld [vmem:[%s300 + $0x44] sm:$0xf]
      %v350 = vld [vmem:[%s300 + $0x48] sm:$0xf]
      %v351 = vld [vmem:[%s300 + $0x4c] sm:$0xf]
      %v352 = vld [vmem:[%s300 + $0x50] sm:$0xf]
      %v353 = vld [vmem:[%s300 + $0x54] sm:$0xf]
      %v354 = vld [vmem:[%s300 + $0x58] sm:$0xf]
      %v355 = vld [vmem:[%s300 + $0x5c] sm:$0xf]
      %v356 = vld [vmem:[%s300 + $0x60] sm:$0xf]
      %v357 = vld [vmem:[%s300 + $0x64] sm:$0xf]
      %v358 = vld [vmem:[%s300 + $0x68] sm:$0xf]
      %v359 = vld [vmem:[%s300 + $0x6c] sm:$0xf]
      %v360 = vld [vmem:[%s300 + $0x70] sm:$0xf]
      %v361 = vld [vmem:[%s300 + $0x74] sm:$0xf]
      %v362 = vld [vmem:[%s300 + $0x78] sm:$0xf]
      %v363 = vld [vmem:[%s300 + $0x7c] sm:$0xf]
      %v368 = vunpack.c.l.b16 %v328
      %v369 = vunpack.c.h.b16 %v328
      %v370 = vunpack.c.l.b16 %v329
      %v371 = vunpack.c.h.b16 %v329
      %v372 = vunpack.c.l.b16 %v330
      %v373 = vunpack.c.h.b16 %v330
      %v374 = vunpack.c.l.b16 %v331
      %v375 = vunpack.c.h.b16 %v331
      %v376 = vpack.c.b16 %v370, %v368
      %v377 = vpack.c.b16 %v371, %v369
      %v378 = vpack.c.b16 %v374, %v372
      %v379 = vpack.c.b16 %v375, %v373
      %v416 = vunpack.c.l.b16 %v332
      %v417 = vunpack.c.l.b16 %v333
      %v418 = vunpack.c.l.b16 %v334
      %v419 = vunpack.c.l.b16 %v335
      %v420 = vunpack.c.l.b16 %v336
      %v421 = vunpack.c.l.b16 %v337
      %v422 = vunpack.c.l.b16 %v338
      %v423 = vunpack.c.l.b16 %v339
      %v424 = vunpack.c.l.b16 %v340
      %v425 = vunpack.c.l.b16 %v341
      %v426 = vunpack.c.l.b16 %v342
      %v427 = vunpack.c.l.b16 %v343
      %v428 = vunpack.c.l.b16 %v344
      %v429 = vunpack.c.l.b16 %v345
      %v430 = vunpack.c.l.b16 %v346
      %v431 = vunpack.c.l.b16 %v347
      %v432 = vunpack.c.l.b16 %v348
      %v433 = vunpack.c.l.b16 %v349
      %v434 = vunpack.c.l.b16 %v350
      %v435 = vunpack.c.l.b16 %v351
      %v436 = vunpack.c.l.b16 %v352
      %v437 = vunpack.c.l.b16 %v353
      %v438 = vunpack.c.l.b16 %v354
      %v439 = vunpack.c.l.b16 %v355
      %v440 = vunpack.c.l.b16 %v356
      %v441 = vunpack.c.l.b16 %v357
      %v442 = vunpack.c.l.b16 %v358
      %v443 = vunpack.c.l.b16 %v359
      %v444 = vunpack.c.l.b16 %v360
      %v445 = vunpack.c.l.b16 %v361
      %v446 = vunpack.c.l.b16 %v362
      %v447 = vunpack.c.l.b16 %v363
      %v448 = vpack.c.b16 %v417, %v416
      %v449 = vpack.c.b16 %v419, %v418
      %v450 = vpack.c.b16 %v421, %v420
      %v451 = vpack.c.b16 %v423, %v422
      %v452 = vpack.c.b16 %v425, %v424
      %v453 = vpack.c.b16 %v427, %v426
      %v454 = vpack.c.b16 %v429, %v428
      %v455 = vpack.c.b16 %v431, %v430
      %v456 = vpack.c.b16 %v433, %v432
      %v457 = vpack.c.b16 %v435, %v434
      %v458 = vpack.c.b16 %v437, %v436
      %v459 = vpack.c.b16 %v439, %v438
      %v460 = vpack.c.b16 %v441, %v440
      %v461 = vpack.c.b16 %v443, %v442
      %v462 = vpack.c.b16 %v445, %v444
      %v463 = vpack.c.b16 %v447, %v446
      %480 = vmatprep.subr.bf16.mxu0 0
      %481 = vmatpush1.bf16.msra.mxu0 %v455
      %482 = vmatprep.subr.bf16.mxu0 0
      %483 = vmatpush1.bf16.msra.mxu0 %v454
      %484 = vmatprep.subr.bf16.mxu0 0
      %485 = vmatpush1.bf16.msra.mxu0 %v453
      %486 = vmatprep.subr.bf16.mxu0 0
      %487 = vmatpush1.bf16.msra.mxu0 %v452
      %488 = vmatprep.subr.bf16.mxu0 0
      %489 = vmatpush1.bf16.msra.mxu0 %v451
      %490 = vmatprep.subr.bf16.mxu0 0
      %491 = vmatpush1.bf16.msra.mxu0 %v450
      %492 = vmatprep.subr.bf16.mxu0 0
      %493 = vmatpush1.bf16.msra.mxu0 %v449
      %494 = vmatprep.subr.bf16.mxu0 0
      %495 = vmatpush1.bf16.msra.mxu0 %v448
      %496 = vmatprep.subr.bf16.mxu0 0
      %497 = vmatpush2.bf16.msra.mxu0 %v463
      %498 = vmatprep.subr.bf16.mxu0 0
      %499 = vmatpush2.bf16.msra.mxu0 %v462
      %500 = vmatprep.subr.bf16.mxu0 0
      %501 = vmatpush2.bf16.msra.mxu0 %v461
      %502 = vmatprep.subr.bf16.mxu0 0
      %503 = vmatpush2.bf16.msra.mxu0 %v460
      %504 = vmatprep.subr.bf16.mxu0 0
      %505 = vmatpush2.bf16.msra.mxu0 %v459
      %506 = vmatprep.subr.bf16.mxu0 0
      %507 = vmatpush2.bf16.msra.mxu0 %v458
      %508 = vmatprep.subr.bf16.mxu0 0
      %509 = vmatpush2.bf16.msra.mxu0 %v457
      %510 = vmatprep.subr.bf16.mxu0 0
      %511 = vmatpush2.bf16.msra.mxu0 %v456
      %512 = vmatprep.mubr.bf16.mxu0 %v377
      %513 = vmatmul.mubr.bf16.gmra.mxu0 %v376
      %v514 = vpop.f32.mrf.mxu0
      %v515 = vadd.f32 0.0, %v514
      %v516 = vpop.f32.mrf.mxu0
      %v517 = vpop.f32.mrf.mxu0
      %v518 = vadd.f32 0.0, %v517
      %v519 = vpop.f32.mrf.mxu0
      %520 = vmatprep.mubr.bf16.mxu0 %v379
      %521 = vmatmul.mubr.bf16.gmra.mxu0 %v378
      %v522 = vpop.f32.mrf.mxu0
      %v523 = vadd.f32 0.0, %v522
      %v524 = vpop.f32.mrf.mxu0
      %v525 = vpop.f32.mrf.mxu0
      %v526 = vadd.f32 0.0, %v525
      %v527 = vpop.f32.mrf.mxu0
      %528 = vdwg.mxu0
      %v529 = vadd.f32 %v515, %v518
      %v530 = vadd.f32 %v529, %v523
      %v531 = vadd.f32 %v530, %v526
      %v532 = vrot.slane %v531, 4
      %v533 = vadd.f32 %v531, %v532
      %v534 = vrot.slane %v533, 2
      %v535 = vadd.f32 %v533, %v534
      %v536 = vrot.slane %v535, 1
      %v537 = vadd.f32 %v535, %v536
      %v538 = vmul.f32 %v515, %v515
      %v539 = vmul.f32 %v518, %v518
      %v540 = vmul.f32 %v523, %v523
      %v541 = vmul.f32 %v526, %v526
      %v542 = vadd.f32 %v538, %v539
      %v543 = vadd.f32 %v542, %v540
      %v544 = vadd.f32 %v543, %v541
      %v545 = vrot.slane %v544, 4
      %v546 = vadd.f32 %v544, %v545
      %v547 = vrot.slane %v546, 2
      %v548 = vadd.f32 %v546, %v547
      %v549 = vrot.slane %v548, 1
      %v550 = vadd.f32 %v548, %v549
      %vm551 = vcmask 1040384
      %v552 = vsel %vm551, %v537, %v550
      %vm553 = vcmask 1041408
      %v554 = vsel %vm553, %v552, 0.0
      %555 = vst [vmem:[%s326] sm:$0xff] %v554
      %v556 = vld [vmem:[%s303] sm:$0x1]
      %v558 = vlaneseq
      %v559 = vshrl.u32 %v558, 7
      %v560 = vsub.s32 0, %v559
      %v561 = vrot.slane %v556, %v560
      %v563 = vadd.f32 %v515, %v561
      %v564 = vadd.f32 %v518, %v561
      %v565 = vadd.f32 %v523, %v561
      %v566 = vadd.f32 %v526, %v561
      %v567 = vpack.c.bf16 %v564, %v563
      %v568 = vpack.c.bf16 %v566, %v565
      %v571 = vunpack.c.l.b16 %v567
      %v572 = vunpack.c.h.b16 %v567
      %v573 = vunpack.c.l.b16 %v568
      %v574 = vunpack.c.h.b16 %v568
      %v575 = vpack.c.b16 %v571, %v571
      %v576 = vpack.c.b16 %v572, %v572
      %v577 = vpack.c.b16 %v573, %v573
      %v578 = vpack.c.b16 %v574, %v574
      %583 = vst [vmem:[%s315] sm:$0xf] %v575
      %584 = vst [vmem:[%s315 + $0x4] sm:$0xf] %v576
      %585 = vst [vmem:[%s315 + $0x8] sm:$0xf] %v577
      %586 = vst [vmem:[%s315 + $0xc] sm:$0xf] %v578
      %s587 = smul.u32 4, %s22
      %p588 = scmp.lt.s32.totalorder %s21, 3
      %s589 = scalar_select %p588, %s21, 3
      %p590 = scmp.lt.s32.totalorder %s587, 3
      %s591 = scalar_select %p590, %s587, 3
      %p592 = scmp.lt.s32.totalorder %s23, 0
      %s593 = scalar_select %p592, %s23, 0
      %s594 = sadd.s32 %s593, %s591
      %s595 = smul.addr %s589, 4
      %s596 = sadd.s32 %s594, %s595
      %s597 = smul.addr %s596, 4
      %s598 = scalar_lea.vmem %s3, %s597
      %p599 = scmp.lt.s32.totalorder %s21, 3
      %s600 = scalar_select %p599, %s21, 3
      %p601 = scmp.lt.s32.totalorder %s22, 0
      %s602 = scalar_select %p601, %s22, 0
      %p603 = scmp.lt.s32.totalorder %s23, 0
      %s604 = scalar_select %p603, %s23, 0
      %s605 = sadd.s32 %s604, %s602
      %s606 = sadd.s32 %s605, %s600
      %s607 = smul.addr %s606, 8
      %s608 = scalar_lea.vmem %s4, %s607
      // Predicated region
      $region33: #{_lambda_.17} parent=31 // pred_check
        %p609 = pneg %p139
      $region34: #{_lambda_.17} parent=31 // pred_check_branch
        %611 = sbr.rel (%p609) target = $region36
      $region35: #{_lambda_.17} parent=31 // pred_region
        %s612 = smul.u32 4, %s22
      $region36: #{_lambda_.17} parent=31 // pred_fallthru
        _
      // Predicated region
      $region37: #{_lambda_.17} parent=31 // pred_check
        %p613 = pneg %p169
      $region38: #{_lambda_.17} parent=31 // pred_check_branch
        %615 = sbr.rel (%p613) target = $region40
      $region39: #{_lambda_.17} parent=31 // pred_region
        _
      $region40: #{_lambda_.17} parent=31 // pred_fallthru
        _
    $region32: #{_lambda_.17} parent=5 // pred_fallthru
      _
    %p616 = scmp.le.s32.totalorder 2, %s11
    // Predicated region
    $region41: #{_lambda_.17} parent=5 // pred_check
      %p617 = pneg %p616
    $region42: #{_lambda_.17} parent=5 // pred_check_branch
      %619 = sbr.rel (%p617) target = $region44
    $region43: #{_lambda_.17} parent=5 // pred_region
      %s620 = ssub.s32 %s11, 2
      // Predicated region
      $region45: #{_lambda_.17} parent=43 // pred_check
        %p621 = pneg %p145
      $region46: #{_lambda_.17} parent=43 // pred_check_branch
        %623 = sbr.rel (%p621) target = $region48
      $region47: #{_lambda_.17} parent=43 // pred_region
        %s624 = smul.u32 4, %s25
        %p625 = scmp.lt.s32.totalorder %s24, 3
        %s626 = scalar_select %p625, %s24, 3
        %p627 = scmp.lt.s32.totalorder %s624, 3
        %s628 = scalar_select %p627, %s624, 3
        %p629 = scmp.lt.s32.totalorder %s26, 0
        %s630 = scalar_select %p629, %s26, 0
        %s631 = sadd.s32 %s630, %s628
        %s632 = smul.addr %s626, 4
        %s633 = sadd.s32 %s631, %s632
        %s634 = smul.addr %s633, 4
        %s635 = scalar_lea.vmem %s3, %s634
      $region48: #{_lambda_.17} parent=43 // pred_fallthru
        _
      // Predicated region
      $region49: #{_lambda_.17} parent=43 // pred_check
        %p636 = pneg %p175
      $region50: #{_lambda_.17} parent=43 // pred_check_branch
        %638 = sbr.rel (%p636) target = $region52
      $region51: #{_lambda_.17} parent=43 // pred_region
        %p639 = scmp.lt.s32.totalorder %s24, 3
        %s640 = scalar_select %p639, %s24, 3
        %p641 = scmp.lt.s32.totalorder %s25, 0
        %s642 = scalar_select %p641, %s25, 0
        %p643 = scmp.lt.s32.totalorder %s26, 0
        %s644 = scalar_select %p643, %s26, 0
        %s645 = sadd.s32 %s644, %s642
        %s646 = sadd.s32 %s645, %s640
        %s647 = smul.addr %s646, 8
        %s648 = scalar_lea.vmem %s4, %s647
      $region52: #{_lambda_.17} parent=43 // pred_fallthru
        _
    $region44: #{_lambda_.17} parent=5 // pred_fallthru
      _
  $region6: #{_lambda_.17} parent=0 // loop_footer
    %s15 = sadd.s32 1, %s11
  $region7: #{_lambda_.17} parent=0 // loop_footer_branch
    %10 = sbr.rel target = $region3
  $region8: #{_lambda_.17} parent=0 // loop_exit
    _

// kernel: _lambda_.18
$region0: #{_lambda_.18}
  #allocation0 [shape = 'u32[]', space=smem, size = 0x4, offset = 0x4, fixed_abs, tag = 'smem constant byte address 0x4 - core index']
  #allocation1 [shape = 'u32[144,128]{1,0:T(1,128)}', space=vmem, size = 0x12000, scoped, tag = 'internal scratch']
  %s0 = inlined_call_operand.vmem [shape: bf16[4,128,128], index: 0, kind: input, shape index: {}]
  %s1 = inlined_call_operand.vmem [shape: bf16[4,128,128], index: 1, kind: input, shape index: {}]
  %s2 = inlined_call_operand.vmem [shape: f32[1,128], index: 2, kind: input, shape index: {}]
  %s3 = inlined_call_operand.vmem [shape: bf16[4,128,128], index: 3, kind: output, shape index: {0}]
  %s4 = inlined_call_operand.vmem [shape: f32[4,8,128], index: 4, kind: output, shape index: {1}]
  %5 = xla_tuple %s3, %s4
  %s6 = sld [smem:[#allocation0]]
  $region53: #{_lambda_.18} parent=0
    _
  %s8 = ssub.s32 1, %s6
  %s9 = scalar_select 0, %s8, %s6
  loop: start=0, step=1, limit=6
  $region2: #{_lambda_.18} parent=0 // loop_pre_header
    _
  $region3: #{_lambda_.18} parent=0 // loop_header
    %s11 = sphi 0, %s15
    %p12 = scmp.ge.s32.totalorder %s11, 6
    %s18 = sphi 0, %s37
    %s19 = sphi 0, %s33
    %s20 = sphi 0, %s29
    %s21 = sphi 0, %s18
    %s22 = sphi 0, %s19
    %s23 = sphi 0, %s20
    %s24 = sphi 0, %s21
    %s25 = sphi 0, %s22
    %s26 = sphi 0, %s23
    %s42 = sphi 0, %s44
    %s45 = sphi 0, %s42
    %s46 = sphi 0, %s45
    %s62 = sphi 0, %s46
    %s70 = sphi 0, %s72
    %s73 = sphi 0, %s70
    %s74 = sphi 0, %s73
    %s90 = sphi 0, %s74
    %s96 = sphi 0, %s98
    %s99 = sphi 0, %s96
    %s100 = sphi 0, %s99
    %s116 = sphi 0, %s100
    %s126 = sphi 0, %s128
    %s129 = sphi 0, %s126
    %s130 = sphi 0, %s129
    %s146 = sphi 0, %s130
    %s156 = sphi 0, %s158
    %s159 = sphi 0, %s156
    %s160 = sphi 0, %s159
    %s176 = sphi 0, %s160
  $region4: #{_lambda_.18} parent=0 // loop_header_branch
    %14 = sbr.rel (%p12) target = $region8
  $region5: #{_lambda_.18} parent=0 // loop_body
    %s16 = ssub.s32 %s11, 1
    %s17 = ssub.s32 %s11, 2
    %s27 = sadd.s32 1, %s20
    %p28 = scmp.ge.s32.totalorder %s27, 1
    %s29 = scalar_select %p28, 0, %s27
    %s30 = sadd.s32 1, %s19
    %s31 = scalar_select %p28, %s30, %s19
    %p32 = scmp.ge.s32.totalorder %s31, 1
    %s33 = scalar_select %p32, 0, %s31
    %s34 = sadd.s32 1, %s18
    %s35 = scalar_select %p32, %s34, %s18
    %p36 = scmp.ge.s32.totalorder %s35, 4
    %s37 = scalar_select %p36, 0, %s35
    %s38 = ssub.s32 %s18, %s37
    %s39 = ssub.s32 %s19, %s33
    %s40 = sor.u32 %s38, %s39
    %p41 = scmp.eq.s32.totalorder %s40, 0
    %s43 = sadd.s32 %s42, 1
    %s44 = scalar_select %p41, %s42, %s43
    %p47 = pneg %p41
    %p48 = scmp.eq.s32.totalorder %s11, 3
    %p49 = por %p47, %p48
    %p50 = scmp.ne.s32.totalorder %s42, %s45
    %p51 = scmp.eq.s32.totalorder %s11, 0
    %p52 = por %p50, %p51
    %p53 = scmp.ne.s32.totalorder %s42, %s45
    %p54 = scmp.eq.s32.totalorder %s16, 3
    %p55 = por %p53, %p54
    %p56 = scmp.ne.s32.totalorder %s45, %s46
    %p57 = scmp.eq.s32.totalorder %s16, 0
    %p58 = por %p56, %p57
    %p59 = scmp.ne.s32.totalorder %s45, %s46
    %p60 = scmp.eq.s32.totalorder %s17, 3
    %p61 = por %p59, %p60
    %p63 = scmp.ne.s32.totalorder %s46, %s62
    %p64 = scmp.eq.s32.totalorder %s17, 0
    %p65 = por %p63, %p64
    %s66 = ssub.s32 %s18, %s37
    %s67 = ssub.s32 %s20, %s29
    %s68 = sor.u32 %s66, %s67
    %p69 = scmp.eq.s32.totalorder %s68, 0
    %s71 = sadd.s32 %s70, 1
    %s72 = scalar_select %p69, %s70, %s71
    %p75 = pneg %p69
    %p76 = scmp.eq.s32.totalorder %s11, 3
    %p77 = por %p75, %p76
    %p78 = scmp.ne.s32.totalorder %s70, %s73
    %p79 = scmp.eq.s32.totalorder %s11, 0
    %p80 = por %p78, %p79
    %p81 = scmp.ne.s32.totalorder %s70, %s73
    %p82 = scmp.eq.s32.totalorder %s16, 3
    %p83 = por %p81, %p82
    %p84 = scmp.ne.s32.totalorder %s73, %s74
    %p85 = scmp.eq.s32.totalorder %s16, 0
    %p86 = por %p84, %p85
    %p87 = scmp.ne.s32.totalorder %s73, %s74
    %p88 = scmp.eq.s32.totalorder %s17, 3
    %p89 = por %p87, %p88
    %p91 = scmp.ne.s32.totalorder %s74, %s90
    %p92 = scmp.eq.s32.totalorder %s17, 0
    %p93 = por %p91, %p92
    %s94 = ssub.s32 %s20, %s29
    %p95 = scmp.eq.s32.totalorder %s94, 0
    %s97 = sadd.s32 %s96, 1
    %s98 = scalar_select %p95, %s96, %s97
    %p101 = pneg %p95
    %p102 = scmp.eq.s32.totalorder %s11, 3
    %p103 = por %p101, %p102
    %p104 = scmp.ne.s32.totalorder %s96, %s99
    %p105 = scmp.eq.s32.totalorder %s11, 0
    %p106 = por %p104, %p105
    %p107 = scmp.ne.s32.totalorder %s96, %s99
    %p108 = scmp.eq.s32.totalorder %s16, 3
    %p109 = por %p107, %p108
    %p110 = scmp.ne.s32.totalorder %s99, %s100
    %p111 = scmp.eq.s32.totalorder %s16, 0
    %p112 = por %p110, %p111
    %p113 = scmp.ne.s32.totalorder %s99, %s100
    %p114 = scmp.eq.s32.totalorder %s17, 3
    %p115 = por %p113, %p114
    %p117 = scmp.ne.s32.totalorder %s100, %s116
    %p118 = scmp.eq.s32.totalorder %s17, 0
    %p119 = por %p117, %p118
    %s120 = ssub.s32 %s18, %s37
    %s121 = ssub.s32 %s19, %s33
    %s122 = sor.u32 %s120, %s121
    %s123 = ssub.s32 %s20, %s29
    %s124 = sor.u32 %s122, %s123
    %p125 = scmp.eq.s32.totalorder %s124, 0
    %s127 = sadd.s32 %s126, 1
    %s128 = scalar_select %p125, %s126, %s127
    %p131 = pneg %p125
    %p132 = scmp.eq.s32.totalorder %s11, 3
    %p133 = por %p131, %p132
    %p134 = scmp.ne.s32.totalorder %s126, %s129
    %p135 = scmp.eq.s32.totalorder %s11, 0
    %p136 = por %p134, %p135
    %p137 = scmp.ne.s32.totalorder %s126, %s129
    %p138 = scmp.eq.s32.totalorder %s16, 3
    %p139 = por %p137, %p138
    %p140 = scmp.ne.s32.totalorder %s129, %s130
    %p141 = scmp.eq.s32.totalorder %s16, 0
    %p142 = por %p140, %p141
    %p143 = scmp.ne.s32.totalorder %s129, %s130
    %p144 = scmp.eq.s32.totalorder %s17, 3
    %p145 = por %p143, %p144
    %p147 = scmp.ne.s32.totalorder %s130, %s146
    %p148 = scmp.eq.s32.totalorder %s17, 0
    %p149 = por %p147, %p148
    %s150 = ssub.s32 %s18, %s37
    %s151 = ssub.s32 %s19, %s33
    %s152 = sor.u32 %s150, %s151
    %s153 = ssub.s32 %s20, %s29
    %s154 = sor.u32 %s152, %s153
    %p155 = scmp.eq.s32.totalorder %s154, 0
    %s157 = sadd.s32 %s156, 1
    %s158 = scalar_select %p155, %s156, %s157
    %p161 = pneg %p155
    %p162 = scmp.eq.s32.totalorder %s11, 3
    %p163 = por %p161, %p162
    %p164 = scmp.ne.s32.totalorder %s156, %s159
    %p165 = scmp.eq.s32.totalorder %s11, 0
    %p166 = por %p164, %p165
    %p167 = scmp.ne.s32.totalorder %s156, %s159
    %p168 = scmp.eq.s32.totalorder %s16, 3
    %p169 = por %p167, %p168
    %p170 = scmp.ne.s32.totalorder %s159, %s160
    %p171 = scmp.eq.s32.totalorder %s16, 0
    %p172 = por %p170, %p171
    %p173 = scmp.ne.s32.totalorder %s159, %s160
    %p174 = scmp.eq.s32.totalorder %s17, 3
    %p175 = por %p173, %p174
    %p177 = scmp.ne.s32.totalorder %s160, %s176
    %p178 = scmp.eq.s32.totalorder %s17, 0
    %p179 = por %p177, %p178
    %p180 = scmp.le.s32.totalorder 1, %s11
    %p181 = scmp.lt.s32.totalorder %s11, 5
    %p182 = pnand %p180, %p181
    %p183 = pneg %p182
    // Predicated region
    $region9: #{_lambda_.18} parent=5 // pred_check
      _
    $region10: #{_lambda_.18} parent=5 // pred_check_branch
      %185 = sbr.rel (%p182) target = $region12
    $region11: #{_lambda_.18} parent=5 // pred_region
      %s186 = ssub.s32 %s11, 1
      // Predicated region
      $region13: #{_lambda_.18} parent=11 // pred_check
        %p187 = pneg %p112
      $region14: #{_lambda_.18} parent=11 // pred_check_branch
        %189 = sbr.rel (%p187) target = $region16
      $region15: #{_lambda_.18} parent=11 // pred_region
        %p190 = scmp.lt.s32.totalorder %s23, 0
        %s191 = scalar_select %p190, %s23, 0
        %s192 = scalar_lea.vmem %s2, %s191
      $region16: #{_lambda_.18} parent=11 // pred_fallthru
        _
    $region12: #{_lambda_.18} parent=5 // pred_fallthru
      _
    %p193 = scmp.lt.s32.totalorder %s11, 4
    // Predicated region
    $region17: #{_lambda_.18} parent=5 // pred_check
      %p194 = pneg %p193
    $region18: #{_lambda_.18} parent=5 // pred_check_branch
      %196 = sbr.rel (%p194) target = $region20
    $region19: #{_lambda_.18} parent=5 // pred_region
      // Predicated region
      $region21: #{_lambda_.18} parent=19 // pred_check
        %p197 = pneg %p52
      $region22: #{_lambda_.18} parent=19 // pred_check_branch
        %199 = sbr.rel (%p197) target = $region24
      $region23: #{_lambda_.18} parent=19 // pred_region
        %s200 = smul.u32 16, %s19
        %p201 = scmp.lt.s32.totalorder %s18, 3
        %s202 = scalar_select %p201, %s18, 3
        %p203 = scmp.lt.s32.totalorder %s200, 15
        %s204 = scalar_select %p203, %s200, 15
        %s205 = smul.addr %s202, 16
        %s206 = sadd.s32 %s204, %s205
        %s207 = smul.addr %s206, 4
        %s208 = scalar_lea.vmem %s0, %s207
        %s209 = smul.u32 16, %s19
      $region24: #{_lambda_.18} parent=19 // pred_fallthru
        _
      // Predicated region
      $region25: #{_lambda_.18} parent=19 // pred_check
        %p210 = pneg %p80
      $region26: #{_lambda_.18} parent=19 // pred_check_branch
        %212 = sbr.rel (%p210) target = $region28
      $region27: #{_lambda_.18} parent=19 // pred_region
        %p213 = scmp.lt.s32.totalorder %s18, 3
        %s214 = scalar_select %p213, %s18, 3
        %p215 = scmp.lt.s32.totalorder %s20, 0
        %s216 = scalar_select %p215, %s20, 0
        %s217 = smul.addr %s214, 16
        %s218 = sadd.s32 %s216, %s217
        %s219 = smul.addr %s218, 4
        %s220 = scalar_lea.vmem %s1, %s219
      $region28: #{_lambda_.18} parent=19 // pred_fallthru
        _
    $region20: #{_lambda_.18} parent=5 // pred_fallthru
      _
    %p221 = scmp.le.s32.totalorder 1, %s11
    %p222 = scmp.lt.s32.totalorder %s11, 5
    %p223 = pnand %p221, %p222
    %p224 = pneg %p223
    // Predicated region
    $region29: #{_lambda_.18} parent=5 // pred_check
      _
    $region30: #{_lambda_.18} parent=5 // pred_check_branch
      %226 = sbr.rel (%p223) target = $region32
    $region31: #{_lambda_.18} parent=5 // pred_region
      %s227 = ssub.s32 %s11, 1
      %s228 = smul.u32 16, %s22
      %p229 = scmp.lt.s32.totalorder %s21, 3
      %s230 = scalar_select %p229, %s21, 3
      %p231 = scmp.lt.s32.totalorder %s228, 15
      %s232 = scalar_select %p231, %s228, 15
      %s233 = smul.addr %s230, 16
      %s234 = sadd.s32 %s232, %s233
      %s235 = smul.addr %s234, 4
      %s236 = scalar_lea.vmem %s0, %s235
      %p237 = pneg %p58
      %p238 = pneg %p55
      %p239 = scmp.lt.s32.totalorder %s21, 3
      %s240 = scalar_select %p239, %s21, 3
      %p241 = scmp.lt.s32.totalorder %s23, 0
      %s242 = scalar_select %p241, %s23, 0
      %s243 = smul.addr %s240, 16
      %s244 = sadd.s32 %s242, %s243
      %s245 = smul.addr %s244, 4
      %s246 = scalar_lea.vmem %s1, %s245
      %p247 = pneg %p86
      %p248 = pneg %p83
      %p249 = scmp.lt.s32.totalorder %s23, 0
      %s250 = scalar_select %p249, %s23, 0
      %s251 = scalar_lea.vmem %s2, %s250
      %p252 = pneg %p112
      %p253 = pneg %p109
      %p254 = pneg %p142
      %p255 = pneg %p139
      %s256 = smul.u32 16, %s22
      %p257 = scmp.lt.s32.totalorder %s21, 3
      %s258 = scalar_select %p257, %s21, 3
      %p259 = scmp.lt.s32.totalorder %s256, 15
      %s260 = scalar_select %p259, %s256, 15
      %p261 = scmp.lt.s32.totalorder %s23, 0
      %s262 = scalar_select %p261, %s23, 0
      %s263 = sadd.s32 %s262, %s260
      %s264 = smul.addr %s258, 16
      %s265 = sadd.s32 %s263, %s264
      %s266 = smul.addr %s265, 4
      %s267 = scalar_lea.vmem %s3, %s266
      %p268 = pneg %p172
      %p269 = pneg %p169
      %p270 = scmp.lt.s32.totalorder %s21, 3
      %s271 = scalar_select %p270, %s21, 3
      %p272 = scmp.lt.s32.totalorder %s22, 0
      %s273 = scalar_select %p272, %s22, 0
      %p274 = scmp.lt.s32.totalorder %s23, 0
      %s275 = scalar_select %p274, %s23, 0
      %s276 = sadd.s32 %s275, %s273
      %s277 = sadd.s32 %s276, %s271
      %s278 = smul.addr %s277, 8
      %s279 = scalar_lea.vmem %s4, %s278
      %s280 = smul.u32 16, %s22
      %p281 = scmp.lt.s32.totalorder %s21, 3
      %s282 = scalar_select %p281, %s21, 3
      %p283 = scmp.lt.s32.totalorder %s280, 15
      %s284 = scalar_select %p283, %s280, 15
      %s285 = smul.addr %s282, 16
      %s286 = sadd.s32 %s284, %s285
      %s287 = smul.addr %s286, 4
      %s288 = scalar_lea.vmem %s0, %s287
      %s289 = smul.u32 16, %s22
      %p290 = scmp.lt.s32.totalorder %s21, 3
      %s291 = scalar_select %p290, %s21, 3
      %p292 = scmp.lt.s32.totalorder %s23, 0
      %s293 = scalar_select %p292, %s23, 0
      %s294 = smul.addr %s291, 16
      %s295 = sadd.s32 %s293, %s294
      %s296 = smul.addr %s295, 4
      %s297 = scalar_lea.vmem %s1, %s296
      %p298 = scmp.lt.s32.totalorder %s23, 0
      %s299 = scalar_select %p298, %s23, 0
      %s300 = scalar_lea.vmem %s2, %s299
      %s301 = smul.u32 16, %s22
      %p302 = scmp.lt.s32.totalorder %s21, 3
      %s303 = scalar_select %p302, %s21, 3
      %p304 = scmp.lt.s32.totalorder %s301, 15
      %s305 = scalar_select %p304, %s301, 15
      %p306 = scmp.lt.s32.totalorder %s23, 0
      %s307 = scalar_select %p306, %s23, 0
      %s308 = sadd.s32 %s307, %s305
      %s309 = smul.addr %s303, 16
      %s310 = sadd.s32 %s308, %s309
      %s311 = smul.addr %s310, 4
      %s312 = scalar_lea.vmem %s3, %s311
      %s313 = smul.u32 16, %s22
      %p314 = scmp.lt.s32.totalorder %s21, 3
      %s315 = scalar_select %p314, %s21, 3
      %p316 = scmp.lt.s32.totalorder %s22, 0
      %s317 = scalar_select %p316, %s22, 0
      %p318 = scmp.lt.s32.totalorder %s23, 0
      %s319 = scalar_select %p318, %s23, 0
      %s320 = sadd.s32 %s319, %s317
      %s321 = sadd.s32 %s320, %s315
      %s322 = smul.addr %s321, 8
      %s323 = scalar_lea.vmem %s4, %s322
      %v325 = vld [vmem:[%s288] sm:$0xf]
      %v326 = vld [vmem:[%s288 + $0x4] sm:$0xf]
      %v327 = vld [vmem:[%s288 + $0x8] sm:$0xf]
      %v328 = vld [vmem:[%s288 + $0xc] sm:$0xf]
      %v329 = vld [vmem:[%s288 + $0x10] sm:$0xf]
      %v330 = vld [vmem:[%s288 + $0x14] sm:$0xf]
      %v331 = vld [vmem:[%s288 + $0x18] sm:$0xf]
      %v332 = vld [vmem:[%s288 + $0x1c] sm:$0xf]
      %v333 = vld [vmem:[%s288 + $0x20] sm:$0xf]
      %v334 = vld [vmem:[%s288 + $0x24] sm:$0xf]
      %v335 = vld [vmem:[%s288 + $0x28] sm:$0xf]
      %v336 = vld [vmem:[%s288 + $0x2c] sm:$0xf]
      %v337 = vld [vmem:[%s288 + $0x30] sm:$0xf]
      %v338 = vld [vmem:[%s288 + $0x34] sm:$0xf]
      %v339 = vld [vmem:[%s288 + $0x38] sm:$0xf]
      %v340 = vld [vmem:[%s288 + $0x3c] sm:$0xf]
      %v341 = vld [vmem:[%s297] sm:$0xf]
      %v342 = vld [vmem:[%s297 + $0x4] sm:$0xf]
      %v343 = vld [vmem:[%s297 + $0x8] sm:$0xf]
      %v344 = vld [vmem:[%s297 + $0xc] sm:$0xf]
      %v345 = vld [vmem:[%s297 + $0x10] sm:$0xf]
      %v346 = vld [vmem:[%s297 + $0x14] sm:$0xf]
      %v347 = vld [vmem:[%s297 + $0x18] sm:$0xf]
      %v348 = vld [vmem:[%s297 + $0x1c] sm:$0xf]
      %v349 = vld [vmem:[%s297 + $0x20] sm:$0xf]
      %v350 = vld [vmem:[%s297 + $0x24] sm:$0xf]
      %v351 = vld [vmem:[%s297 + $0x28] sm:$0xf]
      %v352 = vld [vmem:[%s297 + $0x2c] sm:$0xf]
      %v353 = vld [vmem:[%s297 + $0x30] sm:$0xf]
      %v354 = vld [vmem:[%s297 + $0x34] sm:$0xf]
      %v355 = vld [vmem:[%s297 + $0x38] sm:$0xf]
      %v356 = vld [vmem:[%s297 + $0x3c] sm:$0xf]
      %v373 = vunpack.c.l.b16 %v325
      %v374 = vunpack.c.l.b16 %v326
      %v375 = vunpack.c.l.b16 %v327
      %v376 = vunpack.c.l.b16 %v328
      %v377 = vunpack.c.l.b16 %v329
      %v378 = vunpack.c.l.b16 %v330
      %v379 = vunpack.c.l.b16 %v331
      %v380 = vunpack.c.l.b16 %v332
      %v381 = vunpack.c.l.b16 %v333
      %v382 = vunpack.c.l.b16 %v334
      %v383 = vunpack.c.l.b16 %v335
      %v384 = vunpack.c.l.b16 %v336
      %v385 = vunpack.c.l.b16 %v337
      %v386 = vunpack.c.l.b16 %v338
      %v387 = vunpack.c.l.b16 %v339
      %v388 = vunpack.c.l.b16 %v340
      %v389 = vpack.c.b16 %v374, %v373
      %v390 = vpack.c.b16 %v376, %v375
      %v391 = vpack.c.b16 %v378, %v377
      %v392 = vpack.c.b16 %v380, %v379
      %v393 = vpack.c.b16 %v382, %v381
      %v394 = vpack.c.b16 %v384, %v383
      %v395 = vpack.c.b16 %v386, %v385
      %v396 = vpack.c.b16 %v388, %v387
      %v421 = vunpack.c.l.b16 %v341
      %v422 = vunpack.c.l.b16 %v342
      %v423 = vunpack.c.l.b16 %v343
      %v424 = vunpack.c.l.b16 %v344
      %v425 = vunpack.c.l.b16 %v345
      %v426 = vunpack.c.l.b16 %v346
      %v427 = vunpack.c.l.b16 %v347
      %v428 = vunpack.c.l.b16 %v348
      %v429 = vunpack.c.l.b16 %v349
      %v430 = vunpack.c.l.b16 %v350
      %v431 = vunpack.c.l.b16 %v351
      %v432 = vunpack.c.l.b16 %v352
      %v433 = vunpack.c.l.b16 %v353
      %v434 = vunpack.c.l.b16 %v354
      %v435 = vunpack.c.l.b16 %v355
      %v436 = vunpack.c.l.b16 %v356
      %v437 = vpack.c.b16 %v422, %v421
      %v438 = vpack.c.b16 %v424, %v423
      %v439 = vpack.c.b16 %v426, %v425
      %v440 = vpack.c.b16 %v428, %v427
      %v441 = vpack.c.b16 %v430, %v429
      %v442 = vpack.c.b16 %v432, %v431
      %v443 = vpack.c.b16 %v434, %v433
      %v444 = vpack.c.b16 %v436, %v435
      %453 = vmatprep.subr.bf16.mxu0 0
      %454 = vmatpush1.bf16.msra.mxu0 %v444
      %455 = vmatprep.subr.bf16.mxu0 0
      %456 = vmatpush1.bf16.msra.mxu0 %v443
      %457 = vmatprep.subr.bf16.mxu0 0
      %458 = vmatpush1.bf16.msra.mxu0 %v442
      %459 = vmatprep.subr.bf16.mxu0 0
      %460 = vmatpush1.bf16.msra.mxu0 %v441
      %461 = vmatprep.subr.bf16.mxu0 0
      %462 = vmatpush1.bf16.msra.mxu0 %v440
      %463 = vmatprep.subr.bf16.mxu0 0
      %464 = vmatpush1.bf16.msra.mxu0 %v439
      %465 = vmatprep.subr.bf16.mxu0 0
      %466 = vmatpush1.bf16.msra.mxu0 %v438
      %467 = vmatprep.subr.bf16.mxu0 0
      %468 = vmatpush1.bf16.msra.mxu0 %v437
      %469 = vmatprep.subr.bf16.mxu0 0
      %470 = vmatpush2.bf16.msra.mxu0 0
      %471 = vmatprep.subr.bf16.mxu0 0
      %472 = vmatpush2.bf16.msra.mxu0 0
      %473 = vmatprep.subr.bf16.mxu0 0
      %474 = vmatpush2.bf16.msra.mxu0 0
      %475 = vmatprep.subr.bf16.mxu0 0
      %476 = vmatpush2.bf16.msra.mxu0 0
      %477 = vmatprep.subr.bf16.mxu0 0
      %478 = vmatpush2.bf16.msra.mxu0 0
      %479 = vmatprep.subr.bf16.mxu0 0
      %480 = vmatpush2.bf16.msra.mxu0 0
      %481 = vmatprep.subr.bf16.mxu0 0
      %482 = vmatpush2.bf16.msra.mxu0 0
      %483 = vmatprep.subr.bf16.mxu0 0
      %484 = vmatpush2.bf16.msra.mxu0 0
      %485 = vmatprep.mubr.bf16.mxu0 0
      %486 = vmatmul.mubr.bf16.gmra.mxu0 %v389
      %v487 = vpop.f32.mrf.mxu0
      %v488 = vadd.f32 0.0, %v487
      %v489 = vpop.f32.mrf.mxu0
      %v490 = vpop.f32.mrf.mxu0
      %v491 = vadd.f32 0.0, %v490
      %v492 = vpop.f32.mrf.mxu0
      %493 = vmatprep.mubr.bf16.mxu0 0
      %494 = vmatmul.mubr.bf16.gmra.mxu0 %v390
      %v495 = vpop.f32.mrf.mxu0
      %v496 = vadd.f32 0.0, %v495
      %v497 = vpop.f32.mrf.mxu0
      %v498 = vpop.f32.mrf.mxu0
      %v499 = vadd.f32 0.0, %v498
      %v500 = vpop.f32.mrf.mxu0
      %501 = vmatprep.mubr.bf16.mxu0 0
      %502 = vmatmul.mubr.bf16.gmra.mxu0 %v391
      %v503 = vpop.f32.mrf.mxu0
      %v504 = vadd.f32 0.0, %v503
      %v505 = vpop.f32.mrf.mxu0
      %v506 = vpop.f32.mrf.mxu0
      %v507 = vadd.f32 0.0, %v506
      %v508 = vpop.f32.mrf.mxu0
      %509 = vmatprep.mubr.bf16.mxu0 0
      %510 = vmatmul.mubr.bf16.gmra.mxu0 %v392
      %v511 = vpop.f32.mrf.mxu0
      %v512 = vadd.f32 0.0, %v511
      %v513 = vpop.f32.mrf.mxu0
      %v514 = vpop.f32.mrf.mxu0
      %v515 = vadd.f32 0.0, %v514
      %v516 = vpop.f32.mrf.mxu0
      %517 = vmatprep.mubr.bf16.mxu0 0
      %518 = vmatmul.mubr.bf16.gmra.mxu0 %v393
      %v519 = vpop.f32.mrf.mxu0
      %v520 = vadd.f32 0.0, %v519
      %v521 = vpop.f32.mrf.mxu0
      %v522 = vpop.f32.mrf.mxu0
      %v523 = vadd.f32 0.0, %v522
      %v524 = vpop.f32.mrf.mxu0
      %525 = vmatprep.mubr.bf16.mxu0 0
      %526 = vmatmul.mubr.bf16.gmra.mxu0 %v394
      %v527 = vpop.f32.mrf.mxu0
      %v528 = vadd.f32 0.0, %v527
      %v529 = vpop.f32.mrf.mxu0
      %v530 = vpop.f32.mrf.mxu0
      %v531 = vadd.f32 0.0, %v530
      %v532 = vpop.f32.mrf.mxu0
      %533 = vmatprep.mubr.bf16.mxu0 0
      %534 = vmatmul.mubr.bf16.gmra.mxu0 %v395
      %v535 = vpop.f32.mrf.mxu0
      %v536 = vadd.f32 0.0, %v535
      %v537 = vpop.f32.mrf.mxu0
      %v538 = vpop.f32.mrf.mxu0
      %v539 = vadd.f32 0.0, %v538
      %v540 = vpop.f32.mrf.mxu0
      %541 = vmatprep.mubr.bf16.mxu0 0
      %542 = vmatmul.mubr.bf16.gmra.mxu0 %v396
      %v543 = vpop.f32.mrf.mxu0
      %v544 = vadd.f32 0.0, %v543
      %v545 = vpop.f32.mrf.mxu0
      %v546 = vpop.f32.mrf.mxu0
      %v547 = vadd.f32 0.0, %v546
      %v548 = vpop.f32.mrf.mxu0
      %549 = vdwg.mxu0
      %v550 = vadd.f32 %v488, %v491
      %v551 = vadd.f32 %v550, %v496
      %v552 = vadd.f32 %v551, %v499
      %v553 = vadd.f32 %v552, %v504
      %v554 = vadd.f32 %v553, %v507
      %v555 = vadd.f32 %v554, %v512
      %v556 = vadd.f32 %v555, %v515
      %v557 = vadd.f32 %v556, %v520
      %v558 = vadd.f32 %v557, %v523
      %v559 = vadd.f32 %v558, %v528
      %v560 = vadd.f32 %v559, %v531
      %v561 = vadd.f32 %v560, %v536
      %v562 = vadd.f32 %v561, %v539
      %v563 = vadd.f32 %v562, %v544
      %v564 = vadd.f32 %v563, %v547
      %v565 = vrot.slane %v564, 4
      %v566 = vadd.f32 %v564, %v565
      %v567 = vrot.slane %v566, 2
      %v568 = vadd.f32 %v566, %v567
      %v569 = vrot.slane %v568, 1
      %v570 = vadd.f32 %v568, %v569
      %v571 = vmul.f32 %v488, %v488
      %v572 = vmul.f32 %v491, %v491
      %v573 = vmul.f32 %v496, %v496
      %v574 = vmul.f32 %v499, %v499
      %v575 = vmul.f32 %v504, %v504
      %v576 = vmul.f32 %v507, %v507
      %v577 = vmul.f32 %v512, %v512
      %v578 = vmul.f32 %v515, %v515
      %v579 = vmul.f32 %v520, %v520
      %v580 = vmul.f32 %v523, %v523
      %v581 = vmul.f32 %v528, %v528
      %v582 = vmul.f32 %v531, %v531
      %v583 = vmul.f32 %v536, %v536
      %v584 = vmul.f32 %v539, %v539
      %v585 = vmul.f32 %v544, %v544
      %v586 = vmul.f32 %v547, %v547
      %v587 = vadd.f32 %v571, %v572
      %v588 = vadd.f32 %v587, %v573
      %v589 = vadd.f32 %v588, %v574
      %v590 = vadd.f32 %v589, %v575
      %v591 = vadd.f32 %v590, %v576
      %v592 = vadd.f32 %v591, %v577
      %v593 = vadd.f32 %v592, %v578
      %v594 = vadd.f32 %v593, %v579
      %v595 = vadd.f32 %v594, %v580
      %v596 = vadd.f32 %v595, %v581
      %v597 = vadd.f32 %v596, %v582
      %v598 = vadd.f32 %v597, %v583
      %v599 = vadd.f32 %v598, %v584
      %v600 = vadd.f32 %v599, %v585
      %v601 = vadd.f32 %v600, %v586
      %v602 = vrot.slane %v601, 4
      %v603 = vadd.f32 %v601, %v602
      %v604 = vrot.slane %v603, 2
      %v605 = vadd.f32 %v603, %v604
      %v606 = vrot.slane %v605, 1
      %v607 = vadd.f32 %v605, %v606
      %vm608 = vcmask 1040384
      %v609 = vsel %vm608, %v570, %v607
      %vm610 = vcmask 1041408
      %v611 = vsel %vm610, %v609, 0.0
      %612 = vst [vmem:[%s323] sm:$0xff] %v611
      %v613 = vld [vmem:[%s300] sm:$0x1]
      %v615 = vlaneseq
      %v616 = vshrl.u32 %v615, 7
      %v617 = vsub.s32 0, %v616
      %v618 = vrot.slane %v613, %v617
      %v620 = vadd.f32 %v488, %v618
      %v621 = vadd.f32 %v491, %v618
      %v622 = vadd.f32 %v496, %v618
      %v623 = vadd.f32 %v499, %v618
      %v624 = vadd.f32 %v504, %v618
      %v625 = vadd.f32 %v507, %v618
      %v626 = vadd.f32 %v512, %v618
      %v627 = vadd.f32 %v515, %v618
      %v628 = vadd.f32 %v520, %v618
      %v629 = vadd.f32 %v523, %v618
      %v630 = vadd.f32 %v528, %v618
      %v631 = vadd.f32 %v531, %v618
      %v632 = vadd.f32 %v536, %v618
      %v633 = vadd.f32 %v539, %v618
      %v634 = vadd.f32 %v544, %v618
      %v635 = vadd.f32 %v547, %v618
      %v636 = vpack.c.bf16 %v621, %v620
      %v637 = vpack.c.bf16 %v623, %v622
      %v638 = vpack.c.bf16 %v625, %v624
      %v639 = vpack.c.bf16 %v627, %v626
      %v640 = vpack.c.bf16 %v629, %v628
      %v641 = vpack.c.bf16 %v631, %v630
      %v642 = vpack.c.bf16 %v633, %v632
      %v643 = vpack.c.bf16 %v635, %v634
      %v652 = vunpack.c.l.b16 %v636
      %v653 = vunpack.c.h.b16 %v636
      %v654 = vunpack.c.l.b16 %v637
      %v655 = vunpack.c.h.b16 %v637
      %v656 = vunpack.c.l.b16 %v638
      %v657 = vunpack.c.h.b16 %v638
      %v658 = vunpack.c.l.b16 %v639
      %v659 = vunpack.c.h.b16 %v639
      %v660 = vunpack.c.l.b16 %v640
      %v661 = vunpack.c.h.b16 %v640
      %v662 = vunpack.c.l.b16 %v641
      %v663 = vunpack.c.h.b16 %v641
      %v664 = vunpack.c.l.b16 %v642
      %v665 = vunpack.c.h.b16 %v642
      %v666 = vunpack.c.l.b16 %v643
      %v667 = vunpack.c.h.b16 %v643
      %v668 = vpack.c.b16 %v652, %v652
      %v669 = vpack.c.b16 %v653, %v653
      %v670 = vpack.c.b16 %v654, %v654
      %v671 = vpack.c.b16 %v655, %v655
      %v672 = vpack.c.b16 %v656, %v656
      %v673 = vpack.c.b16 %v657, %v657
      %v674 = vpack.c.b16 %v658, %v658
      %v675 = vpack.c.b16 %v659, %v659
      %v676 = vpack.c.b16 %v660, %v660
      %v677 = vpack.c.b16 %v661, %v661
      %v678 = vpack.c.b16 %v662, %v662
      %v679 = vpack.c.b16 %v663, %v663
      %v680 = vpack.c.b16 %v664, %v664
      %v681 = vpack.c.b16 %v665, %v665
      %v682 = vpack.c.b16 %v666, %v666
      %v683 = vpack.c.b16 %v667, %v667
      %700 = vst [vmem:[%s312] sm:$0xf] %v668
      %701 = vst [vmem:[%s312 + $0x4] sm:$0xf] %v669
      %702 = vst [vmem:[%s312 + $0x8] sm:$0xf] %v670
      %703 = vst [vmem:[%s312 + $0xc] sm:$0xf] %v671
      %704 = vst [vmem:[%s312 + $0x10] sm:$0xf] %v672
      %705 = vst [vmem:[%s312 + $0x14] sm:$0xf] %v673
      %706 = vst [vmem:[%s312 + $0x18] sm:$0xf] %v674
      %707 = vst [vmem:[%s312 + $0x1c] sm:$0xf] %v675
      %708 = vst [vmem:[%s312 + $0x20] sm:$0xf] %v676
      %709 = vst [vmem:[%s312 + $0x24] sm:$0xf] %v677
      %710 = vst [vmem:[%s312 + $0x28] sm:$0xf] %v678
      %711 = vst [vmem:[%s312 + $0x2c] sm:$0xf] %v679
      %712 = vst [vmem:[%s312 + $0x30] sm:$0xf] %v680
      %713 = vst [vmem:[%s312 + $0x34] sm:$0xf] %v681
      %714 = vst [vmem:[%s312 + $0x38] sm:$0xf] %v682
      %715 = vst [vmem:[%s312 + $0x3c] sm:$0xf] %v683
      %s716 = smul.u32 16, %s22
      %p717 = scmp.lt.s32.totalorder %s21, 3
      %s718 = scalar_select %p717, %s21, 3
      %p719 = scmp.lt.s32.totalorder %s716, 15
      %s720 = scalar_select %p719, %s716, 15
      %p721 = scmp.lt.s32.totalorder %s23, 0
      %s722 = scalar_select %p721, %s23, 0
      %s723 = sadd.s32 %s722, %s720
      %s724 = smul.addr %s718, 16
      %s725 = sadd.s32 %s723, %s724
      %s726 = smul.addr %s725, 4
      %s727 = scalar_lea.vmem %s3, %s726
      %p728 = scmp.lt.s32.totalorder %s21, 3
      %s729 = scalar_select %p728, %s21, 3
      %p730 = scmp.lt.s32.totalorder %s22, 0
      %s731 = scalar_select %p730, %s22, 0
      %p732 = scmp.lt.s32.totalorder %s23, 0
      %s733 = scalar_select %p732, %s23, 0
      %s734 = sadd.s32 %s733, %s731
      %s735 = sadd.s32 %s734, %s729
      %s736 = smul.addr %s735, 8
      %s737 = scalar_lea.vmem %s4, %s736
      // Predicated region
      $region33: #{_lambda_.18} parent=31 // pred_check
        %p738 = pneg %p139
      $region34: #{_lambda_.18} parent=31 // pred_check_branch
        %740 = sbr.rel (%p738) target = $region36
      $region35: #{_lambda_.18} parent=31 // pred_region
        %s741 = smul.u32 16, %s22
      $region36: #{_lambda_.18} parent=31 // pred_fallthru
        _
      // Predicated region
      $region37: #{_lambda_.18} parent=31 // pred_check
        %p742 = pneg %p169
      $region38: #{_lambda_.18} parent=31 // pred_check_branch
        %744 = sbr.rel (%p742) target = $region40
      $region39: #{_lambda_.18} parent=31 // pred_region
        _
      $region40: #{_lambda_.18} parent=31 // pred_fallthru
        _
    $region32: #{_lambda_.18} parent=5 // pred_fallthru
      _
    %p745 = scmp.le.s32.totalorder 2, %s11
    // Predicated region
    $region41: #{_lambda_.18} parent=5 // pred_check
      %p746 = pneg %p745
    $region42: #{_lambda_.18} parent=5 // pred_check_branch
      %748 = sbr.rel (%p746) target = $region44
    $region43: #{_lambda_.18} parent=5 // pred_region
      %s749 = ssub.s32 %s11, 2
      // Predicated region
      $region45: #{_lambda_.18} parent=43 // pred_check
        %p750 = pneg %p145
      $region46: #{_lambda_.18} parent=43 // pred_check_branch
        %752 = sbr.rel (%p750) target = $region48
      $region47: #{_lambda_.18} parent=43 // pred_region
        %s753 = smul.u32 16, %s25
        %p754 = scmp.lt.s32.totalorder %s24, 3
        %s755 = scalar_select %p754, %s24, 3
        %p756 = scmp.lt.s32.totalorder %s753, 15
        %s757 = scalar_select %p756, %s753, 15
        %p758 = scmp.lt.s32.totalorder %s26, 0
        %s759 = scalar_select %p758, %s26, 0
        %s760 = sadd.s32 %s759, %s757
        %s761 = smul.addr %s755, 16
        %s762 = sadd.s32 %s760, %s761
        %s763 = smul.addr %s762, 4
        %s764 = scalar_lea.vmem %s3, %s763
      $region48: #{_lambda_.18} parent=43 // pred_fallthru
        _
      // Predicated region
      $region49: #{_lambda_.18} parent=43 // pred_check
        %p765 = pneg %p175
      $region50: #{_lambda_.18} parent=43 // pred_check_branch
        %767 = sbr.rel (%p765) target = $region52
      $region51: #{_lambda_.18} parent=43 // pred_region
        %p768 = scmp.lt.s32.totalorder %s24, 3
        %s769 = scalar_select %p768, %s24, 3
        %p770 = scmp.lt.s32.totalorder %s25, 0
        %s771 = scalar_select %p770, %s25, 0
        %p772 = scmp.lt.s32.totalorder %s26, 0
        %s773 = scalar_select %p772, %s26, 0
        %s774 = sadd.s32 %s773, %s771
        %s775 = sadd.s32 %s774, %s769
        %s776 = smul.addr %s775, 8
        %s777 = scalar_lea.vmem %s4, %s776
      $region52: #{_lambda_.18} parent=43 // pred_fallthru
        _
    $region44: #{_lambda_.18} parent=5 // pred_fallthru
      _
  $region6: #{_lambda_.18} parent=0 // loop_footer
    %s15 = sadd.s32 1, %s11
  $region7: #{_lambda_.18} parent=0 // loop_footer_branch
    %10 = sbr.rel target = $region3
  $region8: #{_lambda_.18} parent=0 // loop_exit
    _

// kernel: _lambda_.19
$region0: #{_lambda_.19}
  #allocation0 [shape = 'u32[]', space=smem, size = 0x4, offset = 0x4, fixed_abs, tag = 'smem constant byte address 0x4 - core index']
  #allocation1 [shape = 'u32[144,128]{1,0:T(1,128)}', space=vmem, size = 0x12000, scoped, tag = 'internal scratch']
  %s0 = inlined_call_operand.vmem [shape: bf16[4,512,128], index: 0, kind: input, shape index: {}]
  %s1 = inlined_call_operand.vmem [shape: bf16[4,128,128], index: 1, kind: input, shape index: {}]
  %s2 = inlined_call_operand.vmem [shape: f32[1,128], index: 2, kind: input, shape index: {}]
  %s3 = inlined_call_operand.vmem [shape: f32[4,512,128], index: 3, kind: output, shape index: {}]
  %s4 = sld [smem:[#allocation0]]
  $region45: #{_lambda_.19} parent=0
    _
  %s6 = ssub.s32 1, %s4
  %s7 = scalar_select 0, %s6, %s4
  loop: start=0, step=1, limit=10
  $region2: #{_lambda_.19} parent=0 // loop_pre_header
    _
  $region3: #{_lambda_.19} parent=0 // loop_header
    %s9 = sphi 0, %s13
    %p10 = scmp.ge.s32.totalorder %s9, 10
    %s16 = sphi 0, %s35
    %s17 = sphi 0, %s31
    %s18 = sphi 0, %s27
    %s19 = sphi 0, %s16
    %s20 = sphi 0, %s17
    %s21 = sphi 0, %s18
    %s22 = sphi 0, %s19
    %s23 = sphi 0, %s20
    %s24 = sphi 0, %s21
    %s40 = sphi 0, %s42
    %s43 = sphi 0, %s40
    %s44 = sphi 0, %s43
    %s60 = sphi 0, %s44
    %s68 = sphi 0, %s70
    %s71 = sphi 0, %s68
    %s72 = sphi 0, %s71
    %s88 = sphi 0, %s72
    %s94 = sphi 0, %s96
    %s97 = sphi 0, %s94
    %s98 = sphi 0, %s97
    %s114 = sphi 0, %s98
    %s124 = sphi 0, %s126
    %s127 = sphi 0, %s124
    %s128 = sphi 0, %s127
    %s144 = sphi 0, %s128
  $region4: #{_lambda_.19} parent=0 // loop_header_branch
    %12 = sbr.rel (%p10) target = $region8
  $region5: #{_lambda_.19} parent=0 // loop_body
    %s14 = ssub.s32 %s9, 1
    %s15 = ssub.s32 %s9, 2
    %s25 = sadd.s32 1, %s18
    %p26 = scmp.ge.s32.totalorder %s25, 1
    %s27 = scalar_select %p26, 0, %s25
    %s28 = sadd.s32 1, %s17
    %s29 = scalar_select %p26, %s28, %s17
    %p30 = scmp.ge.s32.totalorder %s29, 2
    %s31 = scalar_select %p30, 0, %s29
    %s32 = sadd.s32 1, %s16
    %s33 = scalar_select %p30, %s32, %s16
    %p34 = scmp.ge.s32.totalorder %s33, 4
    %s35 = scalar_select %p34, 0, %s33
    %s36 = ssub.s32 %s16, %s35
    %s37 = ssub.s32 %s17, %s31
    %s38 = sor.u32 %s36, %s37
    %p39 = scmp.eq.s32.totalorder %s38, 0
    %s41 = sadd.s32 %s40, 1
    %s42 = scalar_select %p39, %s40, %s41
    %p45 = pneg %p39
    %p46 = scmp.eq.s32.totalorder %s9, 7
    %p47 = por %p45, %p46
    %p48 = scmp.ne.s32.totalorder %s40, %s43
    %p49 = scmp.eq.s32.totalorder %s9, 0
    %p50 = por %p48, %p49
    %p51 = scmp.ne.s32.totalorder %s40, %s43
    %p52 = scmp.eq.s32.totalorder %s14, 7
    %p53 = por %p51, %p52
    %p54 = scmp.ne.s32.totalorder %s43, %s44
    %p55 = scmp.eq.s32.totalorder %s14, 0
    %p56 = por %p54, %p55
    %p57 = scmp.ne.s32.totalorder %s43, %s44
    %p58 = scmp.eq.s32.totalorder %s15, 7
    %p59 = por %p57, %p58
    %p61 = scmp.ne.s32.totalorder %s44, %s60
    %p62 = scmp.eq.s32.totalorder %s15, 0
    %p63 = por %p61, %p62
    %s64 = ssub.s32 %s16, %s35
    %s65 = ssub.s32 %s18, %s27
    %s66 = sor.u32 %s64, %s65
    %p67 = scmp.eq.s32.totalorder %s66, 0
    %s69 = sadd.s32 %s68, 1
    %s70 = scalar_select %p67, %s68, %s69
    %p73 = pneg %p67
    %p74 = scmp.eq.s32.totalorder %s9, 7
    %p75 = por %p73, %p74
    %p76 = scmp.ne.s32.totalorder %s68, %s71
    %p77 = scmp.eq.s32.totalorder %s9, 0
    %p78 = por %p76, %p77
    %p79 = scmp.ne.s32.totalorder %s68, %s71
    %p80 = scmp.eq.s32.totalorder %s14, 7
    %p81 = por %p79, %p80
    %p82 = scmp.ne.s32.totalorder %s71, %s72
    %p83 = scmp.eq.s32.totalorder %s14, 0
    %p84 = por %p82, %p83
    %p85 = scmp.ne.s32.totalorder %s71, %s72
    %p86 = scmp.eq.s32.totalorder %s15, 7
    %p87 = por %p85, %p86
    %p89 = scmp.ne.s32.totalorder %s72, %s88
    %p90 = scmp.eq.s32.totalorder %s15, 0
    %p91 = por %p89, %p90
    %s92 = ssub.s32 %s18, %s27
    %p93 = scmp.eq.s32.totalorder %s92, 0
    %s95 = sadd.s32 %s94, 1
    %s96 = scalar_select %p93, %s94, %s95
    %p99 = pneg %p93
    %p100 = scmp.eq.s32.totalorder %s9, 7
    %p101 = por %p99, %p100
    %p102 = scmp.ne.s32.totalorder %s94, %s97
    %p103 = scmp.eq.s32.totalorder %s9, 0
    %p104 = por %p102, %p103
    %p105 = scmp.ne.s32.totalorder %s94, %s97
    %p106 = scmp.eq.s32.totalorder %s14, 7
    %p107 = por %p105, %p106
    %p108 = scmp.ne.s32.totalorder %s97, %s98
    %p109 = scmp.eq.s32.totalorder %s14, 0
    %p110 = por %p108, %p109
    %p111 = scmp.ne.s32.totalorder %s97, %s98
    %p112 = scmp.eq.s32.totalorder %s15, 7
    %p113 = por %p111, %p112
    %p115 = scmp.ne.s32.totalorder %s98, %s114
    %p116 = scmp.eq.s32.totalorder %s15, 0
    %p117 = por %p115, %p116
    %s118 = ssub.s32 %s16, %s35
    %s119 = ssub.s32 %s17, %s31
    %s120 = sor.u32 %s118, %s119
    %s121 = ssub.s32 %s18, %s27
    %s122 = sor.u32 %s120, %s121
    %p123 = scmp.eq.s32.totalorder %s122, 0
    %s125 = sadd.s32 %s124, 1
    %s126 = scalar_select %p123, %s124, %s125
    %p129 = pneg %p123
    %p130 = scmp.eq.s32.totalorder %s9, 7
    %p131 = por %p129, %p130
    %p132 = scmp.ne.s32.totalorder %s124, %s127
    %p133 = scmp.eq.s32.totalorder %s9, 0
    %p134 = por %p132, %p133
    %p135 = scmp.ne.s32.totalorder %s124, %s127
    %p136 = scmp.eq.s32.totalorder %s14, 7
    %p137 = por %p135, %p136
    %p138 = scmp.ne.s32.totalorder %s127, %s128
    %p139 = scmp.eq.s32.totalorder %s14, 0
    %p140 = por %p138, %p139
    %p141 = scmp.ne.s32.totalorder %s127, %s128
    %p142 = scmp.eq.s32.totalorder %s15, 7
    %p143 = por %p141, %p142
    %p145 = scmp.ne.s32.totalorder %s128, %s144
    %p146 = scmp.eq.s32.totalorder %s15, 0
    %p147 = por %p145, %p146
    %p148 = scmp.le.s32.totalorder 1, %s9
    %p149 = scmp.lt.s32.totalorder %s9, 9
    %p150 = pnand %p148, %p149
    %p151 = pneg %p150
    // Predicated region
    $region9: #{_lambda_.19} parent=5 // pred_check
      _
    $region10: #{_lambda_.19} parent=5 // pred_check_branch
      %153 = sbr.rel (%p150) target = $region12
    $region11: #{_lambda_.19} parent=5 // pred_region
      %s154 = ssub.s32 %s9, 1
      // Predicated region
      $region13: #{_lambda_.19} parent=11 // pred_check
        %p155 = pneg %p110
      $region14: #{_lambda_.19} parent=11 // pred_check_branch
        %157 = sbr.rel (%p155) target = $region16
      $region15: #{_lambda_.19} parent=11 // pred_region
        %p158 = scmp.lt.s32.totalorder %s21, 0
        %s159 = scalar_select %p158, %s21, 0
        %s160 = scalar_lea.vmem %s2, %s159
      $region16: #{_lambda_.19} parent=11 // pred_fallthru
        _
    $region12: #{_lambda_.19} parent=5 // pred_fallthru
      _
    %p161 = scmp.lt.s32.totalorder %s9, 8
    // Predicated region
    $region17: #{_lambda_.19} parent=5 // pred_check
      %p162 = pneg %p161
    $region18: #{_lambda_.19} parent=5 // pred_check_branch
      %164 = sbr.rel (%p162) target = $region20
    $region19: #{_lambda_.19} parent=5 // pred_region
      // Predicated region
      $region21: #{_lambda_.19} parent=19 // pred_check
        %p165 = pneg %p50
      $region22: #{_lambda_.19} parent=19 // pred_check_branch
        %167 = sbr.rel (%p165) target = $region24
      $region23: #{_lambda_.19} parent=19 // pred_region
        %s168 = smul.u32 32, %s17
        %p169 = scmp.lt.s32.totalorder %s16, 3
        %s170 = scalar_select %p169, %s16, 3
        %p171 = scmp.lt.s32.totalorder %s168, 63
        %s172 = scalar_select %p171, %s168, 63
        %s173 = smul.addr %s170, 64
        %s174 = sadd.s32 %s172, %s173
        %s175 = smul.addr %s174, 4
        %s176 = scalar_lea.vmem %s0, %s175
        %s177 = smul.u32 32, %s17
      $region24: #{_lambda_.19} parent=19 // pred_fallthru
        _
      // Predicated region
      $region25: #{_lambda_.19} parent=19 // pred_check
        %p178 = pneg %p78
      $region26: #{_lambda_.19} parent=19 // pred_check_branch
        %180 = sbr.rel (%p178) target = $region28
      $region27: #{_lambda_.19} parent=19 // pred_region
        %p181 = scmp.lt.s32.totalorder %s16, 3
        %s182 = scalar_select %p181, %s16, 3
        %p183 = scmp.lt.s32.totalorder %s18, 0
        %s184 = scalar_select %p183, %s18, 0
        %s185 = smul.addr %s182, 16
        %s186 = sadd.s32 %s184, %s185
        %s187 = smul.addr %s186, 4
        %s188 = scalar_lea.vmem %s1, %s187
      $region28: #{_lambda_.19} parent=19 // pred_fallthru
        _
    $region20: #{_lambda_.19} parent=5 // pred_fallthru
      _
    %p189 = scmp.le.s32.totalorder 1, %s9
    %p190 = scmp.lt.s32.totalorder %s9, 9
    %p191 = pnand %p189, %p190
    %p192 = pneg %p191
    // Predicated region
    $region29: #{_lambda_.19} parent=5 // pred_check
      _
    $region30: #{_lambda_.19} parent=5 // pred_check_branch
      %194 = sbr.rel (%p191) target = $region32
    $region31: #{_lambda_.19} parent=5 // pred_region
      %s195 = ssub.s32 %s9, 1
      %s196 = smul.u32 32, %s20
      %p197 = scmp.lt.s32.totalorder %s19, 3
      %s198 = scalar_select %p197, %s19, 3
      %p199 = scmp.lt.s32.totalorder %s196, 63
      %s200 = scalar_select %p199, %s196, 63
      %s201 = smul.addr %s198, 64
      %s202 = sadd.s32 %s200, %s201
      %s203 = smul.addr %s202, 4
      %s204 = scalar_lea.vmem %s0, %s203
      %p205 = pneg %p56
      %p206 = pneg %p53
      %p207 = scmp.lt.s32.totalorder %s19, 3
      %s208 = scalar_select %p207, %s19, 3
      %p209 = scmp.lt.s32.totalorder %s21, 0
      %s210 = scalar_select %p209, %s21, 0
      %s211 = smul.addr %s208, 16
      %s212 = sadd.s32 %s210, %s211
      %s213 = smul.addr %s212, 4
      %s214 = scalar_lea.vmem %s1, %s213
      %p215 = pneg %p84
      %p216 = pneg %p81
      %p217 = scmp.lt.s32.totalorder %s21, 0
      %s218 = scalar_select %p217, %s21, 0
      %s219 = scalar_lea.vmem %s2, %s218
      %p220 = pneg %p110
      %p221 = pneg %p107
      %p222 = pneg %p140
      %p223 = pneg %p137
      %s224 = smul.u32 32, %s20
      %p225 = scmp.lt.s32.totalorder %s19, 3
      %s226 = scalar_select %p225, %s19, 3
      %p227 = scmp.lt.s32.totalorder %s224, 63
      %s228 = scalar_select %p227, %s224, 63
      %p229 = scmp.lt.s32.totalorder %s21, 0
      %s230 = scalar_select %p229, %s21, 0
      %s231 = sadd.s32 %s230, %s228
      %s232 = smul.addr %s226, 64
      %s233 = sadd.s32 %s231, %s232
      %s234 = smul.addr %s233, 8
      %s235 = scalar_lea.vmem %s3, %s234
      %s236 = smul.u32 32, %s20
      %p237 = scmp.lt.s32.totalorder %s19, 3
      %s238 = scalar_select %p237, %s19, 3
      %p239 = scmp.lt.s32.totalorder %s236, 63
      %s240 = scalar_select %p239, %s236, 63
      %s241 = smul.addr %s238, 64
      %s242 = sadd.s32 %s240, %s241
      %s243 = smul.addr %s242, 4
      %s244 = scalar_lea.vmem %s0, %s243
      %s245 = smul.u32 32, %s20
      %p246 = scmp.lt.s32.totalorder %s19, 3
      %s247 = scalar_select %p246, %s19, 3
      %p248 = scmp.lt.s32.totalorder %s21, 0
      %s249 = scalar_select %p248, %s21, 0
      %s250 = smul.addr %s247, 16
      %s251 = sadd.s32 %s249, %s250
      %s252 = smul.addr %s251, 4
      %s253 = scalar_lea.vmem %s1, %s252
      %p254 = scmp.lt.s32.totalorder %s21, 0
      %s255 = scalar_select %p254, %s21, 0
      %s256 = scalar_lea.vmem %s2, %s255
      %s257 = smul.u32 32, %s20
      %p258 = scmp.lt.s32.totalorder %s19, 3
      %s259 = scalar_select %p258, %s19, 3
      %p260 = scmp.lt.s32.totalorder %s257, 63
      %s261 = scalar_select %p260, %s257, 63
      %p262 = scmp.lt.s32.totalorder %s21, 0
      %s263 = scalar_select %p262, %s21, 0
      %s264 = sadd.s32 %s263, %s261
      %s265 = smul.addr %s259, 64
      %s266 = sadd.s32 %s264, %s265
      %s267 = smul.addr %s266, 8
      %s268 = scalar_lea.vmem %s3, %s267
      %s269 = smul.u32 32, %s20
      %v271 = vld [vmem:[%s244] sm:$0xf]
      %v272 = vld [vmem:[%s244 + $0x4] sm:$0xf]
      %v273 = vld [vmem:[%s244 + $0x8] sm:$0xf]
      %v274 = vld [vmem:[%s244 + $0xc] sm:$0xf]
      %v275 = vld [vmem:[%s244 + $0x10] sm:$0xf]
      %v276 = vld [vmem:[%s244 + $0x14] sm:$0xf]
      %v277 = vld [vmem:[%s244 + $0x18] sm:$0xf]
      %v278 = vld [vmem:[%s244 + $0x1c] sm:$0xf]
      %v279 = vld [vmem:[%s244 + $0x20] sm:$0xf]
      %v280 = vld [vmem:[%s244 + $0x24] sm:$0xf]
      %v281 = vld [vmem:[%s244 + $0x28] sm:$0xf]
      %v282 = vld [vmem:[%s244 + $0x2c] sm:$0xf]
      %v283 = vld [vmem:[%s244 + $0x30] sm:$0xf]
      %v284 = vld [vmem:[%s244 + $0x34] sm:$0xf]
      %v285 = vld [vmem:[%s244 + $0x38] sm:$0xf]
      %v286 = vld [vmem:[%s244 + $0x3c] sm:$0xf]
      %v287 = vld [vmem:[%s244 + $0x40] sm:$0xf]
      %v288 = vld [vmem:[%s244 + $0x44] sm:$0xf]
      %v289 = vld [vmem:[%s244 + $0x48] sm:$0xf]
      %v290 = vld [vmem:[%s244 + $0x4c] sm:$0xf]
      %v291 = vld [vmem:[%s244 + $0x50] sm:$0xf]
      %v292 = vld [vmem:[%s244 + $0x54] sm:$0xf]
      %v293 = vld [vmem:[%s244 + $0x58] sm:$0xf]
      %v294 = vld [vmem:[%s244 + $0x5c] sm:$0xf]
      %v295 = vld [vmem:[%s244 + $0x60] sm:$0xf]
      %v296 = vld [vmem:[%s244 + $0x64] sm:$0xf]
      %v297 = vld [vmem:[%s244 + $0x68] sm:$0xf]
      %v298 = vld [vmem:[%s244 + $0x6c] sm:$0xf]
      %v299 = vld [vmem:[%s244 + $0x70] sm:$0xf]
      %v300 = vld [vmem:[%s244 + $0x74] sm:$0xf]
      %v301 = vld [vmem:[%s244 + $0x78] sm:$0xf]
      %v302 = vld [vmem:[%s244 + $0x7c] sm:$0xf]
      %v303 = vld [vmem:[%s253] sm:$0xf]
      %v304 = vld [vmem:[%s253 + $0x4] sm:$0xf]
      %v305 = vld [vmem:[%s253 + $0x8] sm:$0xf]
      %v306 = vld [vmem:[%s253 + $0xc] sm:$0xf]
      %v307 = vld [vmem:[%s253 + $0x10] sm:$0xf]
      %v308 = vld [vmem:[%s253 + $0x14] sm:$0xf]
      %v309 = vld [vmem:[%s253 + $0x18] sm:$0xf]
      %v310 = vld [vmem:[%s253 + $0x1c] sm:$0xf]
      %v311 = vld [vmem:[%s253 + $0x20] sm:$0xf]
      %v312 = vld [vmem:[%s253 + $0x24] sm:$0xf]
      %v313 = vld [vmem:[%s253 + $0x28] sm:$0xf]
      %v314 = vld [vmem:[%s253 + $0x2c] sm:$0xf]
      %v315 = vld [vmem:[%s253 + $0x30] sm:$0xf]
      %v316 = vld [vmem:[%s253 + $0x34] sm:$0xf]
      %v317 = vld [vmem:[%s253 + $0x38] sm:$0xf]
      %v318 = vld [vmem:[%s253 + $0x3c] sm:$0xf]
      %v319 = vld [vmem:[%s256] sm:$0x1]
      %v321 = vlaneseq
      %v322 = vshrl.u32 %v321, 7
      %v323 = vsub.s32 0, %v322
      %v324 = vrot.slane %v319, %v323
      %v358 = vunpack.c.l.b16 %v271
      %v359 = vunpack.c.l.b16 %v272
      %v360 = vunpack.c.l.b16 %v273
      %v361 = vunpack.c.l.b16 %v274
      %v362 = vunpack.c.l.b16 %v275
      %v363 = vunpack.c.l.b16 %v276
      %v364 = vunpack.c.l.b16 %v277
      %v365 = vunpack.c.l.b16 %v278
      %v366 = vunpack.c.l.b16 %v279
      %v367 = vunpack.c.l.b16 %v280
      %v368 = vunpack.c.l.b16 %v281
      %v369 = vunpack.c.l.b16 %v282
      %v370 = vunpack.c.l.b16 %v283
      %v371 = vunpack.c.l.b16 %v284
      %v372 = vunpack.c.l.b16 %v285
      %v373 = vunpack.c.l.b16 %v286
      %v374 = vunpack.c.l.b16 %v287
      %v375 = vunpack.c.l.b16 %v288
      %v376 = vunpack.c.l.b16 %v289
      %v377 = vunpack.c.l.b16 %v290
      %v378 = vunpack.c.l.b16 %v291
      %v379 = vunpack.c.l.b16 %v292
      %v380 = vunpack.c.l.b16 %v293
      %v381 = vunpack.c.l.b16 %v294
      %v382 = vunpack.c.l.b16 %v295
      %v383 = vunpack.c.l.b16 %v296
      %v384 = vunpack.c.l.b16 %v297
      %v385 = vunpack.c.l.b16 %v298
      %v386 = vunpack.c.l.b16 %v299
      %v387 = vunpack.c.l.b16 %v300
      %v388 = vunpack.c.l.b16 %v301
      %v389 = vunpack.c.l.b16 %v302
      %v390 = vpack.c.b16 %v359, %v358
      %v391 = vpack.c.b16 %v361, %v360
      %v392 = vpack.c.b16 %v363, %v362
      %v393 = vpack.c.b16 %v365, %v364
      %v394 = vpack.c.b16 %v367, %v366
      %v395 = vpack.c.b16 %v369, %v368
      %v396 = vpack.c.b16 %v371, %v370
      %v397 = vpack.c.b16 %v373, %v372
      %v398 = vpack.c.b16 %v375, %v374
      %v399 = vpack.c.b16 %v377, %v376
      %v400 = vpack.c.b16 %v379, %v378
      %v401 = vpack.c.b16 %v381, %v380
      %v402 = vpack.c.b16 %v383, %v382
      %v403 = vpack.c.b16 %v385, %v384
      %v404 = vpack.c.b16 %v387, %v386
      %v405 = vpack.c.b16 %v389, %v388
      %v438 = vunpack.c.l.b16 %v303
      %v439 = vunpack.c.l.b16 %v304
      %v440 = vunpack.c.l.b16 %v305
      %v441 = vunpack.c.l.b16 %v306
      %v442 = vunpack.c.l.b16 %v307
      %v443 = vunpack.c.l.b16 %v308
      %v444 = vunpack.c.l.b16 %v309
      %v445 = vunpack.c.l.b16 %v310
      %v446 = vunpack.c.l.b16 %v311
      %v447 = vunpack.c.l.b16 %v312
      %v448 = vunpack.c.l.b16 %v313
      %v449 = vunpack.c.l.b16 %v314
      %v450 = vunpack.c.l.b16 %v315
      %v451 = vunpack.c.l.b16 %v316
      %v452 = vunpack.c.l.b16 %v317
      %v453 = vunpack.c.l.b16 %v318
      %v454 = vpack.c.b16 %v439, %v438
      %v455 = vpack.c.b16 %v441, %v440
      %v456 = vpack.c.b16 %v443, %v442
      %v457 = vpack.c.b16 %v445, %v444
      %v458 = vpack.c.b16 %v447, %v446
      %v459 = vpack.c.b16 %v449, %v448
      %v460 = vpack.c.b16 %v451, %v450
      %v461 = vpack.c.b16 %v453, %v452
      %470 = vmatprep.subr.bf16.mxu0 0
      %471 = vmatpush1.bf16.msra.mxu0 %v461
      %472 = vmatprep.subr.bf16.mxu0 0
      %473 = vmatpush1.bf16.msra.mxu0 %v460
      %474 = vmatprep.subr.bf16.mxu0 0
      %475 = vmatpush1.bf16.msra.mxu0 %v459
      %476 = vmatprep.subr.bf16.mxu0 0
      %477 = vmatpush1.bf16.msra.mxu0 %v458
      %478 = vmatprep.subr.bf16.mxu0 0
      %479 = vmatpush1.bf16.msra.mxu0 %v457
      %480 = vmatprep.subr.bf16.mxu0 0
      %481 = vmatpush1.bf16.msra.mxu0 %v456
      %482 = vmatprep.subr.bf16.mxu0 0
      %483 = vmatpush1.bf16.msra.mxu0 %v455
      %484 = vmatprep.subr.bf16.mxu0 0
      %485 = vmatpush1.bf16.msra.mxu0 %v454
      %486 = vmatprep.subr.bf16.mxu0 0
      %487 = vmatpush2.bf16.msra.mxu0 0
      %488 = vmatprep.subr.bf16.mxu0 0
      %489 = vmatpush2.bf16.msra.mxu0 0
      %490 = vmatprep.subr.bf16.mxu0 0
      %491 = vmatpush2.bf16.msra.mxu0 0
      %492 = vmatprep.subr.bf16.mxu0 0
      %493 = vmatpush2.bf16.msra.mxu0 0
      %494 = vmatprep.subr.bf16.mxu0 0
      %495 = vmatpush2.bf16.msra.mxu0 0
      %496 = vmatprep.subr.bf16.mxu0 0
      %497 = vmatpush2.bf16.msra.mxu0 0
      %498 = vmatprep.subr.bf16.mxu0 0
      %499 = vmatpush2.bf16.msra.mxu0 0
      %500 = vmatprep.subr.bf16.mxu0 0
      %501 = vmatpush2.bf16.msra.mxu0 0
      %502 = vmatprep.mubr.bf16.mxu0 0
      %503 = vmatmul.mubr.bf16.gmra.mxu0 %v390
      %v504 = vpop.f32.mrf.mxu0
      %v505 = vadd.f32 %v324, %v504
      %v506 = vpop.f32.mrf.mxu0
      %v507 = vpop.f32.mrf.mxu0
      %v508 = vadd.f32 %v324, %v507
      %v509 = vpop.f32.mrf.mxu0
      %510 = vmatprep.mubr.bf16.mxu0 0
      %511 = vmatmul.mubr.bf16.gmra.mxu0 %v391
      %v512 = vpop.f32.mrf.mxu0
      %v513 = vadd.f32 %v324, %v512
      %v514 = vpop.f32.mrf.mxu0
      %v515 = vpop.f32.mrf.mxu0
      %v516 = vadd.f32 %v324, %v515
      %v517 = vpop.f32.mrf.mxu0
      %518 = vmatprep.mubr.bf16.mxu0 0
      %519 = vmatmul.mubr.bf16.gmra.mxu0 %v392
      %v520 = vpop.f32.mrf.mxu0
      %v521 = vadd.f32 %v324, %v520
      %v522 = vpop.f32.mrf.mxu0
      %v523 = vpop.f32.mrf.mxu0
      %v524 = vadd.f32 %v324, %v523
      %v525 = vpop.f32.mrf.mxu0
      %526 = vmatprep.mubr.bf16.mxu0 0
      %527 = vmatmul.mubr.bf16.gmra.mxu0 %v393
      %v528 = vpop.f32.mrf.mxu0
      %v529 = vadd.f32 %v324, %v528
      %v530 = vpop.f32.mrf.mxu0
      %v531 = vpop.f32.mrf.mxu0
      %v532 = vadd.f32 %v324, %v531
      %v533 = vpop.f32.mrf.mxu0
      %534 = vmatprep.mubr.bf16.mxu0 0
      %535 = vmatmul.mubr.bf16.gmra.mxu0 %v394
      %v536 = vpop.f32.mrf.mxu0
      %v537 = vadd.f32 %v324, %v536
      %v538 = vpop.f32.mrf.mxu0
      %v539 = vpop.f32.mrf.mxu0
      %v540 = vadd.f32 %v324, %v539
      %v541 = vpop.f32.mrf.mxu0
      %542 = vmatprep.mubr.bf16.mxu0 0
      %543 = vmatmul.mubr.bf16.gmra.mxu0 %v395
      %v544 = vpop.f32.mrf.mxu0
      %v545 = vadd.f32 %v324, %v544
      %v546 = vpop.f32.mrf.mxu0
      %v547 = vpop.f32.mrf.mxu0
      %v548 = vadd.f32 %v324, %v547
      %v549 = vpop.f32.mrf.mxu0
      %550 = vmatprep.mubr.bf16.mxu0 0
      %551 = vmatmul.mubr.bf16.gmra.mxu0 %v396
      %v552 = vpop.f32.mrf.mxu0
      %v553 = vadd.f32 %v324, %v552
      %v554 = vpop.f32.mrf.mxu0
      %v555 = vpop.f32.mrf.mxu0
      %v556 = vadd.f32 %v324, %v555
      %v557 = vpop.f32.mrf.mxu0
      %558 = vmatprep.mubr.bf16.mxu0 0
      %559 = vmatmul.mubr.bf16.gmra.mxu0 %v397
      %v560 = vpop.f32.mrf.mxu0
      %v561 = vadd.f32 %v324, %v560
      %v562 = vpop.f32.mrf.mxu0
      %v563 = vpop.f32.mrf.mxu0
      %v564 = vadd.f32 %v324, %v563
      %v565 = vpop.f32.mrf.mxu0
      %566 = vmatprep.mubr.bf16.mxu0 0
      %567 = vmatmul.mubr.bf16.gmra.mxu0 %v398
      %v568 = vpop.f32.mrf.mxu0
      %v569 = vadd.f32 %v324, %v568
      %v570 = vpop.f32.mrf.mxu0
      %v571 = vpop.f32.mrf.mxu0
      %v572 = vadd.f32 %v324, %v571
      %v573 = vpop.f32.mrf.mxu0
      %574 = vmatprep.mubr.bf16.mxu0 0
      %575 = vmatmul.mubr.bf16.gmra.mxu0 %v399
      %v576 = vpop.f32.mrf.mxu0
      %v577 = vadd.f32 %v324, %v576
      %v578 = vpop.f32.mrf.mxu0
      %v579 = vpop.f32.mrf.mxu0
      %v580 = vadd.f32 %v324, %v579
      %v581 = vpop.f32.mrf.mxu0
      %582 = vmatprep.mubr.bf16.mxu0 0
      %583 = vmatmul.mubr.bf16.gmra.mxu0 %v400
      %v584 = vpop.f32.mrf.mxu0
      %v585 = vadd.f32 %v324, %v584
      %v586 = vpop.f32.mrf.mxu0
      %v587 = vpop.f32.mrf.mxu0
      %v588 = vadd.f32 %v324, %v587
      %v589 = vpop.f32.mrf.mxu0
      %590 = vmatprep.mubr.bf16.mxu0 0
      %591 = vmatmul.mubr.bf16.gmra.mxu0 %v401
      %v592 = vpop.f32.mrf.mxu0
      %v593 = vadd.f32 %v324, %v592
      %v594 = vpop.f32.mrf.mxu0
      %v595 = vpop.f32.mrf.mxu0
      %v596 = vadd.f32 %v324, %v595
      %v597 = vpop.f32.mrf.mxu0
      %598 = vmatprep.mubr.bf16.mxu0 0
      %599 = vmatmul.mubr.bf16.gmra.mxu0 %v402
      %v600 = vpop.f32.mrf.mxu0
      %v601 = vadd.f32 %v324, %v600
      %v602 = vpop.f32.mrf.mxu0
      %v603 = vpop.f32.mrf.mxu0
      %v604 = vadd.f32 %v324, %v603
      %v605 = vpop.f32.mrf.mxu0
      %606 = vmatprep.mubr.bf16.mxu0 0
      %607 = vmatmul.mubr.bf16.gmra.mxu0 %v403
      %v608 = vpop.f32.mrf.mxu0
      %v609 = vadd.f32 %v324, %v608
      %v610 = vpop.f32.mrf.mxu0
      %v611 = vpop.f32.mrf.mxu0
      %v612 = vadd.f32 %v324, %v611
      %v613 = vpop.f32.mrf.mxu0
      %614 = vmatprep.mubr.bf16.mxu0 0
      %615 = vmatmul.mubr.bf16.gmra.mxu0 %v404
      %v616 = vpop.f32.mrf.mxu0
      %v617 = vadd.f32 %v324, %v616
      %v618 = vpop.f32.mrf.mxu0
      %v619 = vpop.f32.mrf.mxu0
      %v620 = vadd.f32 %v324, %v619
      %v621 = vpop.f32.mrf.mxu0
      %622 = vmatprep.mubr.bf16.mxu0 0
      %623 = vmatmul.mubr.bf16.gmra.mxu0 %v405
      %v624 = vpop.f32.mrf.mxu0
      %v625 = vadd.f32 %v324, %v624
      %v626 = vpop.f32.mrf.mxu0
      %v627 = vpop.f32.mrf.mxu0
      %v628 = vadd.f32 %v324, %v627
      %v629 = vpop.f32.mrf.mxu0
      %630 = vdwg.mxu0
      %v631 = vtanh.pop %v505
      %v632 = vtanh.pop %v508
      %v633 = vtanh.pop %v513
      %v634 = vtanh.pop %v516
      %v635 = vtanh.pop %v521
      %v636 = vtanh.pop %v524
      %v637 = vtanh.pop %v529
      %v638 = vtanh.pop %v532
      %v639 = vtanh.pop %v537
      %v640 = vtanh.pop %v540
      %v641 = vtanh.pop %v545
      %v642 = vtanh.pop %v548
      %v643 = vtanh.pop %v553
      %v644 = vtanh.pop %v556
      %v645 = vtanh.pop %v561
      %v646 = vtanh.pop %v564
      %v647 = vtanh.pop %v569
      %v648 = vtanh.pop %v572
      %v649 = vtanh.pop %v577
      %v650 = vtanh.pop %v580
      %v651 = vtanh.pop %v585
      %v652 = vtanh.pop %v588
      %v653 = vtanh.pop %v593
      %v654 = vtanh.pop %v596
      %v655 = vtanh.pop %v601
      %v656 = vtanh.pop %v604
      %v657 = vtanh.pop %v609
      %v658 = vtanh.pop %v612
      %v659 = vtanh.pop %v617
      %v660 = vtanh.pop %v620
      %v661 = vtanh.pop %v625
      %v662 = vtanh.pop %v628
      %663 = vst [vmem:[%s268] sm:$0xff] %v631
      %664 = vst [vmem:[%s268 + $0x8] sm:$0xff] %v632
      %665 = vst [vmem:[%s268 + $0x10] sm:$0xff] %v633
      %666 = vst [vmem:[%s268 + $0x18] sm:$0xff] %v634
      %667 = vst [vmem:[%s268 + $0x20] sm:$0xff] %v635
      %668 = vst [vmem:[%s268 + $0x28] sm:$0xff] %v636
      %669 = vst [vmem:[%s268 + $0x30] sm:$0xff] %v637
      %670 = vst [vmem:[%s268 + $0x38] sm:$0xff] %v638
      %671 = vst [vmem:[%s268 + $0x40] sm:$0xff] %v639
      %672 = vst [vmem:[%s268 + $0x48] sm:$0xff] %v640
      %673 = vst [vmem:[%s268 + $0x50] sm:$0xff] %v641
      %674 = vst [vmem:[%s268 + $0x58] sm:$0xff] %v642
      %675 = vst [vmem:[%s268 + $0x60] sm:$0xff] %v643
      %676 = vst [vmem:[%s268 + $0x68] sm:$0xff] %v644
      %677 = vst [vmem:[%s268 + $0x70] sm:$0xff] %v645
      %678 = vst [vmem:[%s268 + $0x78] sm:$0xff] %v646
      %679 = vst [vmem:[%s268 + $0x80] sm:$0xff] %v647
      %680 = vst [vmem:[%s268 + $0x88] sm:$0xff] %v648
      %681 = vst [vmem:[%s268 + $0x90] sm:$0xff] %v649
      %682 = vst [vmem:[%s268 + $0x98] sm:$0xff] %v650
      %683 = vst [vmem:[%s268 + $0xa0] sm:$0xff] %v651
      %684 = vst [vmem:[%s268 + $0xa8] sm:$0xff] %v652
      %685 = vst [vmem:[%s268 + $0xb0] sm:$0xff] %v653
      %686 = vst [vmem:[%s268 + $0xb8] sm:$0xff] %v654
      %687 = vst [vmem:[%s268 + $0xc0] sm:$0xff] %v655
      %688 = vst [vmem:[%s268 + $0xc8] sm:$0xff] %v656
      %689 = vst [vmem:[%s268 + $0xd0] sm:$0xff] %v657
      %690 = vst [vmem:[%s268 + $0xd8] sm:$0xff] %v658
      %691 = vst [vmem:[%s268 + $0xe0] sm:$0xff] %v659
      %692 = vst [vmem:[%s268 + $0xe8] sm:$0xff] %v660
      %693 = vst [vmem:[%s268 + $0xf0] sm:$0xff] %v661
      %694 = vst [vmem:[%s268 + $0xf8] sm:$0xff] %v662
      %s695 = smul.u32 32, %s20
      %p696 = scmp.lt.s32.totalorder %s19, 3
      %s697 = scalar_select %p696, %s19, 3
      %p698 = scmp.lt.s32.totalorder %s695, 63
      %s699 = scalar_select %p698, %s695, 63
      %p700 = scmp.lt.s32.totalorder %s21, 0
      %s701 = scalar_select %p700, %s21, 0
      %s702 = sadd.s32 %s701, %s699
      %s703 = smul.addr %s697, 64
      %s704 = sadd.s32 %s702, %s703
      %s705 = smul.addr %s704, 8
      %s706 = scalar_lea.vmem %s3, %s705
      // Predicated region
      $region33: #{_lambda_.19} parent=31 // pred_check
        %p707 = pneg %p137
      $region34: #{_lambda_.19} parent=31 // pred_check_branch
        %709 = sbr.rel (%p707) target = $region36
      $region35: #{_lambda_.19} parent=31 // pred_region
        %s710 = smul.u32 32, %s20
      $region36: #{_lambda_.19} parent=31 // pred_fallthru
        _
    $region32: #{_lambda_.19} parent=5 // pred_fallthru
      _
    %p711 = scmp.le.s32.totalorder 2, %s9
    // Predicated region
    $region37: #{_lambda_.19} parent=5 // pred_check
      %p712 = pneg %p711
    $region38: #{_lambda_.19} parent=5 // pred_check_branch
      %714 = sbr.rel (%p712) target = $region40
    $region39: #{_lambda_.19} parent=5 // pred_region
      %s715 = ssub.s32 %s9, 2
      // Predicated region
      $region41: #{_lambda_.19} parent=39 // pred_check
        %p716 = pneg %p143
      $region42: #{_lambda_.19} parent=39 // pred_check_branch
        %718 = sbr.rel (%p716) target = $region44
      $region43: #{_lambda_.19} parent=39 // pred_region
        %s719 = smul.u32 32, %s23
        %p720 = scmp.lt.s32.totalorder %s22, 3
        %s721 = scalar_select %p720, %s22, 3
        %p722 = scmp.lt.s32.totalorder %s719, 63
        %s723 = scalar_select %p722, %s719, 63
        %p724 = scmp.lt.s32.totalorder %s24, 0
        %s725 = scalar_select %p724, %s24, 0
        %s726 = sadd.s32 %s725, %s723
        %s727 = smul.addr %s721, 64
        %s728 = sadd.s32 %s726, %s727
        %s729 = smul.addr %s728, 8
        %s730 = scalar_lea.vmem %s3, %s729
      $region44: #{_lambda_.19} parent=39 // pred_fallthru
        _
    $region40: #{_lambda_.19} parent=5 // pred_fallthru
      _
  $region6: #{_lambda_.19} parent=0 // loop_footer
    %s13 = sadd.s32 1, %s9
  $region7: #{_lambda_.19} parent=0 // loop_footer_branch
    %8 = sbr.rel target = $region3
  $region8: #{_lambda_.19} parent=0 // loop_exit
    _

</llo_original>
